<compile_context>
chip_gen: v6e
topology: v6e:2x2x1
jax: 0.10.0
libtpu: 0.0.40
codegen_flags: <defaults>
</compile_context>

<pallas_src>
from functools import partial

import jax
import jax.numpy as jnp
from jax import lax
from jax.experimental import pallas as pl
from jax.experimental.pallas import tpu as pltpu

C_PAD = 128          # lane-dense channel padding used for every layer
K1_PAD = 32          # conv1 im2col K: 3*3*3 = 27 real taps, padded to 32
N_CLASSES = 10
H1P = 34             # conv1 output (32x32) + 1-pixel halo
H2P = 18             # conv2 output (16x16) + 1-pixel halo


# ---------------------------------------------------------------------------
# Fused kernel: conv1 -> ReLU -> conv2 -> ReLU -> conv3 -> Linear
# ---------------------------------------------------------------------------
def _conv_s2(in_ref, w_ref, b_ref, relu):
    """3x3 stride-2 conv over a zero-halo-padded (nb, H+2, H+2, 128) buffer.

    bf16 MXU operands, f32 accumulation; bias-add / ReLU in f32.
    """
    nb, hp = in_ref.shape[0], in_ref.shape[1]
    hw = (hp - 2) // 2                     # output spatial size
    m = nb * hw * hw
    acc = None
    for di in range(3):
        for dj in range(3):
            tap = in_ref[:, pl.ds(di, hw, 2), pl.ds(dj, hw, 2), :]
            tap = tap.reshape(m, C_PAD).astype(jnp.bfloat16)
            part = jnp.dot(tap, w_ref[di, dj], preferred_element_type=jnp.float32)
            acc = part if acc is None else acc + part
    acc = acc + b_ref[...]                 # (m, 128) + (1, 128), f32
    if relu:
        acc = jnp.maximum(acc, 0.0)
    return acc                             # (m, 128) f32


def _netv1_kernel(xc_ref, w1_ref, b1_ref, w2_ref, b2_ref, w3_ref, b3_ref,
                  wfc_ref, bfc_ref, o_ref, a1_ref, a2_ref):
    f32 = jnp.float32
    nb = xc_ref.shape[0]

    # ---- zero ONLY the 1-pixel halo rings of the padded activation buffers.
    #      The interiors (incl. channels >= real Cout) are fully written by the
    #      matmuls below, whose zero-padded weights/biases keep them zero.
    a1_ref[:, 0:1, :, :] = jnp.zeros((nb, 1, H1P, C_PAD), f32)
    a1_ref[:, H1P - 1:H1P, :, :] = jnp.zeros((nb, 1, H1P, C_PAD), f32)
    a1_ref[:, :, 0:1, :] = jnp.zeros((nb, H1P, 1, C_PAD), f32)
    a1_ref[:, :, H1P - 1:H1P, :] = jnp.zeros((nb, H1P, 1, C_PAD), f32)
    a2_ref[:, 0:1, :, :] = jnp.zeros((nb, 1, H2P, C_PAD), f32)
    a2_ref[:, H2P - 1:H2P, :, :] = jnp.zeros((nb, 1, H2P, C_PAD), f32)
    a2_ref[:, :, 0:1, :] = jnp.zeros((nb, H2P, 1, C_PAD), f32)
    a2_ref[:, :, H2P - 1:H2P, :] = jnp.zeros((nb, H2P, 1, C_PAD), f32)

    # ---- conv1: single K=27(->32) bf16 matmul on pre-im2col'd input.
    #      3 -> 16 channels, stride 1, pad 1, ReLU.   (32x32 -> 32x32)
    y1 = jnp.dot(xc_ref[...].reshape(nb * 1024, K1_PAD), w1_ref[...],
                 preferred_element_type=f32)
    y1 = jnp.maximum(y1 + b1_ref[...], 0.0)
    a1_ref[:, 1:33, 1:33, :] = y1.reshape(nb, 32, 32, C_PAD)

    # ---- conv2: 16 -> 32, stride 2, pad 1, ReLU     (32x32 -> 16x16)
    y2 = _conv_s2(a1_ref, w2_ref, b2_ref, relu=True)
    a2_ref[:, 1:17, 1:17, :] = y2.reshape(nb, 16, 16, C_PAD)

    # ---- conv3: 32 -> 64, stride 2, pad 1, NO ReLU  (16x16 -> 8x8)
    y3 = _conv_s2(a2_ref, w3_ref, b3_ref, relu=False).reshape(nb, 64, C_PAD)

    # ---- FC epilogue (tiny): out[b,n] = sum_{s,c} y3[b,s,c]*wfc[n,s,c] + bfc[n]
    lane = lax.broadcasted_iota(jnp.int32, (1, C_PAD), 1)
    out = jnp.broadcast_to(bfc_ref[...], (nb, C_PAD))
    for n in range(N_CLASSES):
        s_n = jnp.sum(y3 * wfc_ref[n], axis=(1, 2), keepdims=True)[:, 0, :]
        out = out + jnp.where(lane == n, s_n, 0.0)      # (nb, 128)

    o_ref[...] = jnp.broadcast_to(out[:, None, :], (nb, 8, C_PAD))  # lane-dense


# ---------------------------------------------------------------------------
# Wrapper
# ---------------------------------------------------------------------------
def _im2col_conv1(x_nhwc):
    """(B,32,32,3) -> (B,1024,K1_PAD) bf16 patches in (kh, kw, ci) order."""
    B = x_nhwc.shape[0]
    xp = jnp.pad(x_nhwc, ((0, 0), (1, 1), (1, 1), (0, 0)))
    taps = [xp[:, di:di + 32, dj:dj + 32, :]
            for di in range(3) for dj in range(3)]
    xc = jnp.concatenate(taps, axis=-1).reshape(B, 32 * 32, 27)
    xc = jnp.pad(xc, ((0, 0), (0, 0), (0, K1_PAD - 27)))
    return xc.astype(jnp.bfloat16)


def _netv1_pallas(xc, p, nb):
    B = xc.shape[0]
    assert B % nb == 0, "batch must be divisible by the batch tile nb"
    grid_spec = pltpu.PrefetchScalarGridSpec(
        num_scalar_prefetch=0,
        grid=(B // nb,),
        in_specs=[
            pl.BlockSpec((nb, 1024, K1_PAD), lambda i: (i, 0, 0)),       # im2col x
            pl.BlockSpec((K1_PAD, C_PAD), lambda i: (0, 0)),             # w1
            pl.BlockSpec((1, C_PAD), lambda i: (0, 0)),                  # b1
            pl.BlockSpec((3, 3, C_PAD, C_PAD), lambda i: (0, 0, 0, 0)),  # w2
            pl.BlockSpec((1, C_PAD), lambda i: (0, 0)),                  # b2
            pl.BlockSpec((3, 3, C_PAD, C_PAD), lambda i: (0, 0, 0, 0)),  # w3
            pl.BlockSpec((1, C_PAD), lambda i: (0, 0)),                  # b3
            pl.BlockSpec((N_CLASSES, 64, C_PAD), lambda i: (0, 0, 0)),   # wfc
            pl.BlockSpec((1, C_PAD), lambda i: (0, 0)),                  # bfc
        ],
        out_specs=pl.BlockSpec((nb, 8, C_PAD), lambda i: (i, 0, 0)),
        scratch_shapes=[
            pltpu.VMEM((nb, H1P, H1P, C_PAD), jnp.float32),   # padded conv1 out
            pltpu.VMEM((nb, H2P, H2P, C_PAD), jnp.float32),   # padded conv2 out
        ],
    )
    out = pl.pallas_call(
        _netv1_kernel,
        out_shape=jax.ShapeDtypeStruct((B, 8, C_PAD), jnp.float32),
        grid_spec=grid_spec,
        compiler_params=pltpu.CompilerParams(
            dimension_semantics=("parallel",),
            vmem_limit_bytes=32 * 1024 * 1024),
    )(xc, p["w1"], p["b1"], p["w2"], p["b2"], p["w3"], p["b3"],
      p["wfc"], p["bfc"])
    return out[:, 0, :N_CLASSES]                          # (B, 10)


# ---------------------------------------------------------------------------
# Parameters: deterministic init + one-time layout / padding / bf16 prep
# ---------------------------------------------------------------------------
def init_params(key):
    ks = jax.random.split(key, 8)

    def u(k, shape, fan_in):
        bound = 1.0 / jnp.sqrt(float(fan_in))
        return jax.random.uniform(k, shape, jnp.float32, -bound, bound)

    return {
        "conv1_w": u(ks[0], (16, 3, 3, 3), 3 * 9),
        "conv1_b": u(ks[1], (16,), 3 * 9),
        "conv2_w": u(ks[2], (32, 16, 3, 3), 16 * 9),
        "conv2_b": u(ks[3], (32,), 16 * 9),
        "conv3_w": u(ks[4], (64, 32, 3, 3), 32 * 9),
        "conv3_b": u(ks[5], (64,), 32 * 9),
        "fc_w": u(ks[6], (10, 64 * 8 * 8), 64 * 8 * 8),
        "fc_b": u(ks[7], (10,), 64 * 8 * 8),
    }


def prepare_params(params):
    """Hoist layout transforms, zero padding and bf16 casts out of the forward."""
    def vec(b):                         # (C,) -> (1, 128) f32, zero padded
        return jnp.zeros((1, C_PAD), jnp.float32).at[0, :b.shape[0]].set(b)

    def conv_w(w):                      # (Cout,Cin,3,3) -> (3,3,128,128) bf16
        co, ci, kh, kw = w.shape
        wt = jnp.transpose(w, (2, 3, 1, 0)).astype(jnp.float32)
        full = jnp.zeros((kh, kw, C_PAD, C_PAD), jnp.float32)
        return full.at[:, :, :ci, :co].set(wt).astype(jnp.bfloat16)

    # conv1 weight in im2col order: (co,ci,kh,kw) -> (kh,kw,ci) x co -> (32,128)
    w1 = jnp.transpose(params["conv1_w"], (2, 3, 1, 0)).reshape(27, 16)
    w1 = (jnp.zeros((K1_PAD, C_PAD), jnp.float32)
          .at[:27, :16].set(w1).astype(jnp.bfloat16))

    # fc_w columns are in (c,h,w) order; reorder to (s=h*8+w, c), pad c to 128.
    wfc = params["fc_w"].reshape(N_CLASSES, 64, 8, 8)            # (n, c, h, w)
    wfc = jnp.transpose(wfc, (0, 2, 3, 1)).reshape(N_CLASSES, 64, 64)
    wfc = jnp.zeros((N_CLASSES, 64, C_PAD), jnp.float32).at[:, :, :64].set(wfc)

    return {
        "w1": w1, "b1": vec(params["conv1_b"]),
        "w2": conv_w(params["conv2_w"]), "b2": vec(params["conv2_b"]),
        "w3": conv_w(params["conv3_w"]), "b3": vec(params["conv3_b"]),
        "wfc": wfc, "bfc": vec(params["fc_b"]),
    }


@partial(jax.jit, static_argnames=("nb",))
def netv1_forward(prepared, x_nchw, nb=1):
    # NCHW -> NHWC and conv1 im2col are cheap XLA glue; everything else in-kernel.
    x = jnp.transpose(x_nchw, (0, 2, 3, 1)).astype(jnp.float32)
    xc = _im2col_conv1(x)
    return _netv1_pallas(xc, prepared, nb)


if __name__ == "__main__":
    key = jax.random.PRNGKey(0)
    k_params, k_x = jax.random.split(key)
    params = init_params(k_params)
    prepared = prepare_params(params)

    # input implied by the module: 32x32 spatial so that 64*8*8 matches
    x = jax.random.normal(k_x, (2, 3, 32, 32), jnp.float32)

    # nb=1 -> grid=(2,): both v7x TensorCores busy; raise nb for larger batches.
    y = netv1_forward(prepared, x, nb=1)
    jax.block_until_ready(y)
    assert y.shape == (2, 10) and y.dtype == jnp.float32
    print("KERNEL_OK")
</pallas_src>

<mosaic_0001>
module attributes {stable_mosaic.version = 11 : i64} {
  func.func @_netv1_kernel(%arg0: i32, %arg1: memref<1x1024x32xbf16, #tpu.memory_space<vmem>>, %arg2: memref<32x128xbf16, #tpu.memory_space<vmem>>, %arg3: memref<1x128xf32, #tpu.memory_space<vmem>>, %arg4: memref<3x3x128x128xbf16, #tpu.memory_space<vmem>>, %arg5: memref<1x128xf32, #tpu.memory_space<vmem>>, %arg6: memref<3x3x128x128xbf16, #tpu.memory_space<vmem>>, %arg7: memref<1x128xf32, #tpu.memory_space<vmem>>, %arg8: memref<10x64x128xf32, #tpu.memory_space<vmem>>, %arg9: memref<1x128xf32, #tpu.memory_space<vmem>>, %arg10: memref<1x8x128xf32, #tpu.memory_space<vmem>>, %arg11: memref<1x34x34x128xf32, #tpu.memory_space<vmem>>, %arg12: memref<1x18x18x128xf32, #tpu.memory_space<vmem>>) attributes {dimension_semantics = [#tpu.dimension_semantics<parallel>], iteration_bounds = array<i64: 2>, scalar_prefetch = 0 : i64, scratch_operands = 2 : i64, tpu.core_type = #tpu.core_type<tc>, window_params = [{transform_indices = @transform_0, window_bounds = array<i64: 1, 1024, 32>}, {pipeline_mode = #tpu.pipeline_mode<synchronous>, transform_indices = @transform_1, window_bounds = array<i64: 32, 128>}, {pipeline_mode = #tpu.pipeline_mode<synchronous>, transform_indices = @transform_2, window_bounds = array<i64: 1, 128>}, {pipeline_mode = #tpu.pipeline_mode<synchronous>, transform_indices = @transform_3, window_bounds = array<i64: 3, 3, 128, 128>}, {pipeline_mode = #tpu.pipeline_mode<synchronous>, transform_indices = @transform_4, window_bounds = array<i64: 1, 128>}, {pipeline_mode = #tpu.pipeline_mode<synchronous>, transform_indices = @transform_5, window_bounds = array<i64: 3, 3, 128, 128>}, {pipeline_mode = #tpu.pipeline_mode<synchronous>, transform_indices = @transform_6, window_bounds = array<i64: 1, 128>}, {pipeline_mode = #tpu.pipeline_mode<synchronous>, transform_indices = @transform_7, window_bounds = array<i64: 10, 64, 128>}, {pipeline_mode = #tpu.pipeline_mode<synchronous>, transform_indices = @transform_8, window_bounds = array<i64: 1, 128>}, {transform_indices = @transform_9, window_bounds = array<i64: 1, 8, 128>}]} {
    %cst = arith.constant 0.000000e+00 : f32
    %0 = vector.broadcast %cst : f32 to vector<1x1x34x128xf32>
    %c0 = arith.constant 0 : index
    %c0_0 = arith.constant 0 : index
    %c0_1 = arith.constant 0 : index
    %c0_2 = arith.constant 0 : index
    %1 = vector.load %arg11[%c0, %c0_0, %c0_1, %c0_2] : memref<1x34x34x128xf32, #tpu.memory_space<vmem>>, vector<1x1x34x128xf32>
    tpu.vector_store %arg11[%c0, %c0_0, %c0_1, %c0_2], %0 {strides = array<i32>} : memref<1x34x34x128xf32, #tpu.memory_space<vmem>>, vector<1x1x34x128xf32>,
    %cst_3 = arith.constant 0.000000e+00 : f32
    %2 = vector.broadcast %cst_3 : f32 to vector<1x1x34x128xf32>
    %c0_4 = arith.constant 0 : index
    %c33 = arith.constant 33 : index
    %c0_5 = arith.constant 0 : index
    %c0_6 = arith.constant 0 : index
    %3 = vector.load %arg11[%c0_4, %c33, %c0_5, %c0_6] : memref<1x34x34x128xf32, #tpu.memory_space<vmem>>, vector<1x1x34x128xf32>
    tpu.vector_store %arg11[%c0_4, %c33, %c0_5, %c0_6], %2 {strides = array<i32>} : memref<1x34x34x128xf32, #tpu.memory_space<vmem>>, vector<1x1x34x128xf32>,
    %cst_7 = arith.constant 0.000000e+00 : f32
    %4 = vector.broadcast %cst_7 : f32 to vector<1x34x1x128xf32>
    %c0_8 = arith.constant 0 : index
    %c0_9 = arith.constant 0 : index
    %c0_10 = arith.constant 0 : index
    %c0_11 = arith.constant 0 : index
    %5 = vector.load %arg11[%c0_8, %c0_9, %c0_10, %c0_11] : memref<1x34x34x128xf32, #tpu.memory_space<vmem>>, vector<1x34x1x128xf32>
    tpu.vector_store %arg11[%c0_8, %c0_9, %c0_10, %c0_11], %4 {strides = array<i32>} : memref<1x34x34x128xf32, #tpu.memory_space<vmem>>, vector<1x34x1x128xf32>,
    %cst_12 = arith.constant 0.000000e+00 : f32
    %6 = vector.broadcast %cst_12 : f32 to vector<1x34x1x128xf32>
    %c0_13 = arith.constant 0 : index
    %c0_14 = arith.constant 0 : index
    %c33_15 = arith.constant 33 : index
    %c0_16 = arith.constant 0 : index
    %7 = vector.load %arg11[%c0_13, %c0_14, %c33_15, %c0_16] : memref<1x34x34x128xf32, #tpu.memory_space<vmem>>, vector<1x34x1x128xf32>
    tpu.vector_store %arg11[%c0_13, %c0_14, %c33_15, %c0_16], %6 {strides = array<i32>} : memref<1x34x34x128xf32, #tpu.memory_space<vmem>>, vector<1x34x1x128xf32>,
    %cst_17 = arith.constant 0.000000e+00 : f32
    %8 = vector.broadcast %cst_17 : f32 to vector<1x1x18x128xf32>
    %c0_18 = arith.constant 0 : index
    %c0_19 = arith.constant 0 : index
    %c0_20 = arith.constant 0 : index
    %c0_21 = arith.constant 0 : index
    %9 = vector.load %arg12[%c0_18, %c0_19, %c0_20, %c0_21] : memref<1x18x18x128xf32, #tpu.memory_space<vmem>>, vector<1x1x18x128xf32>
    tpu.vector_store %arg12[%c0_18, %c0_19, %c0_20, %c0_21], %8 {strides = array<i32>} : memref<1x18x18x128xf32, #tpu.memory_space<vmem>>, vector<1x1x18x128xf32>,
    %cst_22 = arith.constant 0.000000e+00 : f32
    %10 = vector.broadcast %cst_22 : f32 to vector<1x1x18x128xf32>
    %c0_23 = arith.constant 0 : index
    %c17 = arith.constant 17 : index
    %c0_24 = arith.constant 0 : index
    %c0_25 = arith.constant 0 : index
    %11 = vector.load %arg12[%c0_23, %c17, %c0_24, %c0_25] : memref<1x18x18x128xf32, #tpu.memory_space<vmem>>, vector<1x1x18x128xf32>
    tpu.vector_store %arg12[%c0_23, %c17, %c0_24, %c0_25], %10 {strides = array<i32>} : memref<1x18x18x128xf32, #tpu.memory_space<vmem>>, vector<1x1x18x128xf32>,
    %cst_26 = arith.constant 0.000000e+00 : f32
    %12 = vector.broadcast %cst_26 : f32 to vector<1x18x1x128xf32>
    %c0_27 = arith.constant 0 : index
    %c0_28 = arith.constant 0 : index
    %c0_29 = arith.constant 0 : index
    %c0_30 = arith.constant 0 : index
    %13 = vector.load %arg12[%c0_27, %c0_28, %c0_29, %c0_30] : memref<1x18x18x128xf32, #tpu.memory_space<vmem>>, vector<1x18x1x128xf32>
    tpu.vector_store %arg12[%c0_27, %c0_28, %c0_29, %c0_30], %12 {strides = array<i32>} : memref<1x18x18x128xf32, #tpu.memory_space<vmem>>, vector<1x18x1x128xf32>,
    %cst_31 = arith.constant 0.000000e+00 : f32
    %14 = vector.broadcast %cst_31 : f32 to vector<1x18x1x128xf32>
    %c0_32 = arith.constant 0 : index
    %c0_33 = arith.constant 0 : index
    %c17_34 = arith.constant 17 : index
    %c0_35 = arith.constant 0 : index
    %15 = vector.load %arg12[%c0_32, %c0_33, %c17_34, %c0_35] : memref<1x18x18x128xf32, #tpu.memory_space<vmem>>, vector<1x18x1x128xf32>
    tpu.vector_store %arg12[%c0_32, %c0_33, %c17_34, %c0_35], %14 {strides = array<i32>} : memref<1x18x18x128xf32, #tpu.memory_space<vmem>>, vector<1x18x1x128xf32>,
    %c0_36 = arith.constant 0 : index
    %c0_37 = arith.constant 0 : index
    %c0_38 = arith.constant 0 : index
    %16 = vector.load %arg1[%c0_36, %c0_37, %c0_38] : memref<1x1024x32xbf16, #tpu.memory_space<vmem>>, vector<1x1024x32xbf16>
    %17 = vector.shape_cast %16 : vector<1x1024x32xbf16> to vector<1024x32xbf16>
    %c0_39 = arith.constant 0 : index
    %c0_40 = arith.constant 0 : index
    %18 = vector.load %arg2[%c0_39, %c0_40] : memref<32x128xbf16, #tpu.memory_space<vmem>>, vector<32x128xbf16>
    %cst_41 = arith.constant dense<0.000000e+00> : vector<1024x128xf32>
    %19 = tpu.matmul %17, %18, %cst_41 {dimension_numbers = #tpu.dot_dimension_numbers<[1], [0], [0], [1], [0, 0, 1, 1], [], []>} : vector<1024x32xbf16>, vector<32x128xbf16>, vector<1024x128xf32> -> vector<1024x128xf32>
    %c0_42 = arith.constant 0 : index
    %c0_43 = arith.constant 0 : index
    %20 = vector.load %arg3[%c0_42, %c0_43] : memref<1x128xf32, #tpu.memory_space<vmem>>, vector<1x128xf32>
    %21 = vector.broadcast %20 : vector<1x128xf32> to vector<1024x128xf32>
    %22 = arith.addf %19, %21 : vector<1024x128xf32>
    %cst_44 = arith.constant 0.000000e+00 : f32
    %23 = vector.broadcast %cst_44 : f32 to vector<1024x128xf32>
    %24 = arith.maximumf %22, %23 : vector<1024x128xf32>
    %25 = vector.shape_cast %24 : vector<1024x128xf32> to vector<1x32x32x128xf32>
    %c0_45 = arith.constant 0 : index
    %c1 = arith.constant 1 : index
    %c1_46 = arith.constant 1 : index
    %c0_47 = arith.constant 0 : index
    %26 = vector.load %arg11[%c0_45, %c1, %c1_46, %c0_47] : memref<1x34x34x128xf32, #tpu.memory_space<vmem>>, vector<1x32x32x128xf32>
    tpu.vector_store %arg11[%c0_45, %c1, %c1_46, %c0_47], %25 {strides = array<i32>} : memref<1x34x34x128xf32, #tpu.memory_space<vmem>>, vector<1x32x32x128xf32>,
    %c0_48 = arith.constant 0 : index
    %c0_49 = arith.constant 0 : index
    %c0_50 = arith.constant 0 : index
    %c0_51 = arith.constant 0 : index
    %27 = tpu.strided_load %arg11[%c0_48, %c0_49, %c0_50, %c0_51] {strides = array<i32: 1, 2, 2, 1>} : memref<1x34x34x128xf32, #tpu.memory_space<vmem>>, vector<1x16x16x128xf32>
    %28 = vector.shape_cast %27 : vector<1x16x16x128xf32> to vector<256x128xf32>
    %29 = arith.truncf %28 : vector<256x128xf32> to vector<256x128xbf16>
    %c0_52 = arith.constant 0 : index
    %c0_53 = arith.constant 0 : index
    %c0_54 = arith.constant 0 : index
    %c0_55 = arith.constant 0 : index
    %30 = vector.load %arg4[%c0_52, %c0_53, %c0_54, %c0_55] : memref<3x3x128x128xbf16, #tpu.memory_space<vmem>>, vector<1x1x128x128xbf16>
    %31 = vector.shape_cast %30 : vector<1x1x128x128xbf16> to vector<128x128xbf16>
    %cst_56 = arith.constant dense<0.000000e+00> : vector<256x128xf32>
    %32 = tpu.matmul %29, %31, %cst_56 {dimension_numbers = #tpu.dot_dimension_numbers<[1], [0], [0], [1], [0, 0, 1, 1], [], []>} : vector<256x128xbf16>, vector<128x128xbf16>, vector<256x128xf32> -> vector<256x128xf32>
    %c0_57 = arith.constant 0 : index
    %c0_58 = arith.constant 0 : index
    %c1_59 = arith.constant 1 : index
    %c0_60 = arith.constant 0 : index
    %33 = tpu.strided_load %arg11[%c0_57, %c0_58, %c1_59, %c0_60] {strides = array<i32: 1, 2, 2, 1>} : memref<1x34x34x128xf32, #tpu.memory_space<vmem>>, vector<1x16x16x128xf32>
    %34 = vector.shape_cast %33 : vector<1x16x16x128xf32> to vector<256x128xf32>
    %35 = arith.truncf %34 : vector<256x128xf32> to vector<256x128xbf16>
    %c0_61 = arith.constant 0 : index
    %c1_62 = arith.constant 1 : index
    %c0_63 = arith.constant 0 : index
    %c0_64 = arith.constant 0 : index
    %36 = vector.load %arg4[%c0_61, %c1_62, %c0_63, %c0_64] : memref<3x3x128x128xbf16, #tpu.memory_space<vmem>>, vector<1x1x128x128xbf16>
    %37 = vector.shape_cast %36 : vector<1x1x128x128xbf16> to vector<128x128xbf16>
    %cst_65 = arith.constant dense<0.000000e+00> : vector<256x128xf32>
    %38 = tpu.matmul %35, %37, %cst_65 {dimension_numbers = #tpu.dot_dimension_numbers<[1], [0], [0], [1], [0, 0, 1, 1], [], []>} : vector<256x128xbf16>, vector<128x128xbf16>, vector<256x128xf32> -> vector<256x128xf32>
    %39 = arith.addf %32, %38 : vector<256x128xf32>
    %c0_66 = arith.constant 0 : index
    %c0_67 = arith.constant 0 : index
    %c2 = arith.constant 2 : index
    %c0_68 = arith.constant 0 : index
    %40 = tpu.strided_load %arg11[%c0_66, %c0_67, %c2, %c0_68] {strides = array<i32: 1, 2, 2, 1>} : memref<1x34x34x128xf32, #tpu.memory_space<vmem>>, vector<1x16x16x128xf32>
    %41 = vector.shape_cast %40 : vector<1x16x16x128xf32> to vector<256x128xf32>
    %42 = arith.truncf %41 : vector<256x128xf32> to vector<256x128xbf16>
    %c0_69 = arith.constant 0 : index
    %c2_70 = arith.constant 2 : index
    %c0_71 = arith.constant 0 : index
    %c0_72 = arith.constant 0 : index
    %43 = vector.load %arg4[%c0_69, %c2_70, %c0_71, %c0_72] : memref<3x3x128x128xbf16, #tpu.memory_space<vmem>>, vector<1x1x128x128xbf16>
    %44 = vector.shape_cast %43 : vector<1x1x128x128xbf16> to vector<128x128xbf16>
    %cst_73 = arith.constant dense<0.000000e+00> : vector<256x128xf32>
    %45 = tpu.matmul %42, %44, %cst_73 {dimension_numbers = #tpu.dot_dimension_numbers<[1], [0], [0], [1], [0, 0, 1, 1], [], []>} : vector<256x128xbf16>, vector<128x128xbf16>, vector<256x128xf32> -> vector<256x128xf32>
    %46 = arith.addf %39, %45 : vector<256x128xf32>
    %c0_74 = arith.constant 0 : index
    %c1_75 = arith.constant 1 : index
    %c0_76 = arith.constant 0 : index
    %c0_77 = arith.constant 0 : index
    %47 = tpu.strided_load %arg11[%c0_74, %c1_75, %c0_76, %c0_77] {strides = array<i32: 1, 2, 2, 1>} : memref<1x34x34x128xf32, #tpu.memory_space<vmem>>, vector<1x16x16x128xf32>
    %48 = vector.shape_cast %47 : vector<1x16x16x128xf32> to vector<256x128xf32>
    %49 = arith.truncf %48 : vector<256x128xf32> to vector<256x128xbf16>
    %c1_78 = arith.constant 1 : index
    %c0_79 = arith.constant 0 : index
    %c0_80 = arith.constant 0 : index
    %c0_81 = arith.constant 0 : index
    %50 = vector.load %arg4[%c1_78, %c0_79, %c0_80, %c0_81] : memref<3x3x128x128xbf16, #tpu.memory_space<vmem>>, vector<1x1x128x128xbf16>
    %51 = vector.shape_cast %50 : vector<1x1x128x128xbf16> to vector<128x128xbf16>
    %cst_82 = arith.constant dense<0.000000e+00> : vector<256x128xf32>
    %52 = tpu.matmul %49, %51, %cst_82 {dimension_numbers = #tpu.dot_dimension_numbers<[1], [0], [0], [1], [0, 0, 1, 1], [], []>} : vector<256x128xbf16>, vector<128x128xbf16>, vector<256x128xf32> -> vector<256x128xf32>
    %53 = arith.addf %46, %52 : vector<256x128xf32>
    %c0_83 = arith.constant 0 : index
    %c1_84 = arith.constant 1 : index
    %c1_85 = arith.constant 1 : index
    %c0_86 = arith.constant 0 : index
    %54 = tpu.strided_load %arg11[%c0_83, %c1_84, %c1_85, %c0_86] {strides = array<i32: 1, 2, 2, 1>} : memref<1x34x34x128xf32, #tpu.memory_space<vmem>>, vector<1x16x16x128xf32>
    %55 = vector.shape_cast %54 : vector<1x16x16x128xf32> to vector<256x128xf32>
    %56 = arith.truncf %55 : vector<256x128xf32> to vector<256x128xbf16>
    %c1_87 = arith.constant 1 : index
    %c1_88 = arith.constant 1 : index
    %c0_89 = arith.constant 0 : index
    %c0_90 = arith.constant 0 : index
    %57 = vector.load %arg4[%c1_87, %c1_88, %c0_89, %c0_90] : memref<3x3x128x128xbf16, #tpu.memory_space<vmem>>, vector<1x1x128x128xbf16>
    %58 = vector.shape_cast %57 : vector<1x1x128x128xbf16> to vector<128x128xbf16>
    %cst_91 = arith.constant dense<0.000000e+00> : vector<256x128xf32>
    %59 = tpu.matmul %56, %58, %cst_91 {dimension_numbers = #tpu.dot_dimension_numbers<[1], [0], [0], [1], [0, 0, 1, 1], [], []>} : vector<256x128xbf16>, vector<128x128xbf16>, vector<256x128xf32> -> vector<256x128xf32>
    %60 = arith.addf %53, %59 : vector<256x128xf32>
    %c0_92 = arith.constant 0 : index
    %c1_93 = arith.constant 1 : index
    %c2_94 = arith.constant 2 : index
    %c0_95 = arith.constant 0 : index
    %61 = tpu.strided_load %arg11[%c0_92, %c1_93, %c2_94, %c0_95] {strides = array<i32: 1, 2, 2, 1>} : memref<1x34x34x128xf32, #tpu.memory_space<vmem>>, vector<1x16x16x128xf32>
    %62 = vector.shape_cast %61 : vector<1x16x16x128xf32> to vector<256x128xf32>
    %63 = arith.truncf %62 : vector<256x128xf32> to vector<256x128xbf16>
    %c1_96 = arith.constant 1 : index
    %c2_97 = arith.constant 2 : index
    %c0_98 = arith.constant 0 : index
    %c0_99 = arith.constant 0 : index
    %64 = vector.load %arg4[%c1_96, %c2_97, %c0_98, %c0_99] : memref<3x3x128x128xbf16, #tpu.memory_space<vmem>>, vector<1x1x128x128xbf16>
    %65 = vector.shape_cast %64 : vector<1x1x128x128xbf16> to vector<128x128xbf16>
    %cst_100 = arith.constant dense<0.000000e+00> : vector<256x128xf32>
    %66 = tpu.matmul %63, %65, %cst_100 {dimension_numbers = #tpu.dot_dimension_numbers<[1], [0], [0], [1], [0, 0, 1, 1], [], []>} : vector<256x128xbf16>, vector<128x128xbf16>, vector<256x128xf32> -> vector<256x128xf32>
    %67 = arith.addf %60, %66 : vector<256x128xf32>
    %c0_101 = arith.constant 0 : index
    %c2_102 = arith.constant 2 : index
    %c0_103 = arith.constant 0 : index
    %c0_104 = arith.constant 0 : index
    %68 = tpu.strided_load %arg11[%c0_101, %c2_102, %c0_103, %c0_104] {strides = array<i32: 1, 2, 2, 1>} : memref<1x34x34x128xf32, #tpu.memory_space<vmem>>, vector<1x16x16x128xf32>
    %69 = vector.shape_cast %68 : vector<1x16x16x128xf32> to vector<256x128xf32>
    %70 = arith.truncf %69 : vector<256x128xf32> to vector<256x128xbf16>
    %c2_105 = arith.constant 2 : index
    %c0_106 = arith.constant 0 : index
    %c0_107 = arith.constant 0 : index
    %c0_108 = arith.constant 0 : index
    %71 = vector.load %arg4[%c2_105, %c0_106, %c0_107, %c0_108] : memref<3x3x128x128xbf16, #tpu.memory_space<vmem>>, vector<1x1x128x128xbf16>
    %72 = vector.shape_cast %71 : vector<1x1x128x128xbf16> to vector<128x128xbf16>
    %cst_109 = arith.constant dense<0.000000e+00> : vector<256x128xf32>
    %73 = tpu.matmul %70, %72, %cst_109 {dimension_numbers = #tpu.dot_dimension_numbers<[1], [0], [0], [1], [0, 0, 1, 1], [], []>} : vector<256x128xbf16>, vector<128x128xbf16>, vector<256x128xf32> -> vector<256x128xf32>
    %74 = arith.addf %67, %73 : vector<256x128xf32>
    %c0_110 = arith.constant 0 : index
    %c2_111 = arith.constant 2 : index
    %c1_112 = arith.constant 1 : index
    %c0_113 = arith.constant 0 : index
    %75 = tpu.strided_load %arg11[%c0_110, %c2_111, %c1_112, %c0_113] {strides = array<i32: 1, 2, 2, 1>} : memref<1x34x34x128xf32, #tpu.memory_space<vmem>>, vector<1x16x16x128xf32>
    %76 = vector.shape_cast %75 : vector<1x16x16x128xf32> to vector<256x128xf32>
    %77 = arith.truncf %76 : vector<256x128xf32> to vector<256x128xbf16>
    %c2_114 = arith.constant 2 : index
    %c1_115 = arith.constant 1 : index
    %c0_116 = arith.constant 0 : index
    %c0_117 = arith.constant 0 : index
    %78 = vector.load %arg4[%c2_114, %c1_115, %c0_116, %c0_117] : memref<3x3x128x128xbf16, #tpu.memory_space<vmem>>, vector<1x1x128x128xbf16>
    %79 = vector.shape_cast %78 : vector<1x1x128x128xbf16> to vector<128x128xbf16>
    %cst_118 = arith.constant dense<0.000000e+00> : vector<256x128xf32>
    %80 = tpu.matmul %77, %79, %cst_118 {dimension_numbers = #tpu.dot_dimension_numbers<[1], [0], [0], [1], [0, 0, 1, 1], [], []>} : vector<256x128xbf16>, vector<128x128xbf16>, vector<256x128xf32> -> vector<256x128xf32>
    %81 = arith.addf %74, %80 : vector<256x128xf32>
    %c0_119 = arith.constant 0 : index
    %c2_120 = arith.constant 2 : index
    %c2_121 = arith.constant 2 : index
    %c0_122 = arith.constant 0 : index
    %82 = tpu.strided_load %arg11[%c0_119, %c2_120, %c2_121, %c0_122] {strides = array<i32: 1, 2, 2, 1>} : memref<1x34x34x128xf32, #tpu.memory_space<vmem>>, vector<1x16x16x128xf32>
    %83 = vector.shape_cast %82 : vector<1x16x16x128xf32> to vector<256x128xf32>
    %84 = arith.truncf %83 : vector<256x128xf32> to vector<256x128xbf16>
    %c2_123 = arith.constant 2 : index
    %c2_124 = arith.constant 2 : index
    %c0_125 = arith.constant 0 : index
    %c0_126 = arith.constant 0 : index
    %85 = vector.load %arg4[%c2_123, %c2_124, %c0_125, %c0_126] : memref<3x3x128x128xbf16, #tpu.memory_space<vmem>>, vector<1x1x128x128xbf16>
    %86 = vector.shape_cast %85 : vector<1x1x128x128xbf16> to vector<128x128xbf16>
    %cst_127 = arith.constant dense<0.000000e+00> : vector<256x128xf32>
    %87 = tpu.matmul %84, %86, %cst_127 {dimension_numbers = #tpu.dot_dimension_numbers<[1], [0], [0], [1], [0, 0, 1, 1], [], []>} : vector<256x128xbf16>, vector<128x128xbf16>, vector<256x128xf32> -> vector<256x128xf32>
    %88 = arith.addf %81, %87 : vector<256x128xf32>
    %c0_128 = arith.constant 0 : index
    %c0_129 = arith.constant 0 : index
    %89 = vector.load %arg5[%c0_128, %c0_129] : memref<1x128xf32, #tpu.memory_space<vmem>>, vector<1x128xf32>
    %90 = vector.broadcast %89 : vector<1x128xf32> to vector<256x128xf32>
    %91 = arith.addf %88, %90 : vector<256x128xf32>
    %cst_130 = arith.constant 0.000000e+00 : f32
    %92 = vector.broadcast %cst_130 : f32 to vector<256x128xf32>
    %93 = arith.maximumf %91, %92 : vector<256x128xf32>
    %94 = vector.shape_cast %93 : vector<256x128xf32> to vector<1x16x16x128xf32>
    %c0_131 = arith.constant 0 : index
    %c1_132 = arith.constant 1 : index
    %c1_133 = arith.constant 1 : index
    %c0_134 = arith.constant 0 : index
    %95 = vector.load %arg12[%c0_131, %c1_132, %c1_133, %c0_134] : memref<1x18x18x128xf32, #tpu.memory_space<vmem>>, vector<1x16x16x128xf32>
    tpu.vector_store %arg12[%c0_131, %c1_132, %c1_133, %c0_134], %94 {strides = array<i32>} : memref<1x18x18x128xf32, #tpu.memory_space<vmem>>, vector<1x16x16x128xf32>,
    %c0_135 = arith.constant 0 : index
    %c0_136 = arith.constant 0 : index
    %c0_137 = arith.constant 0 : index
    %c0_138 = arith.constant 0 : index
    %96 = tpu.strided_load %arg12[%c0_135, %c0_136, %c0_137, %c0_138] {strides = array<i32: 1, 2, 2, 1>} : memref<1x18x18x128xf32, #tpu.memory_space<vmem>>, vector<1x8x8x128xf32>
    %97 = vector.shape_cast %96 : vector<1x8x8x128xf32> to vector<64x128xf32>
    %98 = arith.truncf %97 : vector<64x128xf32> to vector<64x128xbf16>
    %c0_139 = arith.constant 0 : index
    %c0_140 = arith.constant 0 : index
    %c0_141 = arith.constant 0 : index
    %c0_142 = arith.constant 0 : index
    %99 = vector.load %arg6[%c0_139, %c0_140, %c0_141, %c0_142] : memref<3x3x128x128xbf16, #tpu.memory_space<vmem>>, vector<1x1x128x128xbf16>
    %100 = vector.shape_cast %99 : vector<1x1x128x128xbf16> to vector<128x128xbf16>
    %cst_143 = arith.constant dense<0.000000e+00> : vector<64x128xf32>
    %101 = tpu.matmul %98, %100, %cst_143 {dimension_numbers = #tpu.dot_dimension_numbers<[1], [0], [0], [1], [0, 0, 1, 1], [], []>} : vector<64x128xbf16>, vector<128x128xbf16>, vector<64x128xf32> -> vector<64x128xf32>
    %c0_144 = arith.constant 0 : index
    %c0_145 = arith.constant 0 : index
    %c1_146 = arith.constant 1 : index
    %c0_147 = arith.constant 0 : index
    %102 = tpu.strided_load %arg12[%c0_144, %c0_145, %c1_146, %c0_147] {strides = array<i32: 1, 2, 2, 1>} : memref<1x18x18x128xf32, #tpu.memory_space<vmem>>, vector<1x8x8x128xf32>
    %103 = vector.shape_cast %102 : vector<1x8x8x128xf32> to vector<64x128xf32>
    %104 = arith.truncf %103 : vector<64x128xf32> to vector<64x128xbf16>
    %c0_148 = arith.constant 0 : index
    %c1_149 = arith.constant 1 : index
    %c0_150 = arith.constant 0 : index
    %c0_151 = arith.constant 0 : index
    %105 = vector.load %arg6[%c0_148, %c1_149, %c0_150, %c0_151] : memref<3x3x128x128xbf16, #tpu.memory_space<vmem>>, vector<1x1x128x128xbf16>
    %106 = vector.shape_cast %105 : vector<1x1x128x128xbf16> to vector<128x128xbf16>
    %cst_152 = arith.constant dense<0.000000e+00> : vector<64x128xf32>
    %107 = tpu.matmul %104, %106, %cst_152 {dimension_numbers = #tpu.dot_dimension_numbers<[1], [0], [0], [1], [0, 0, 1, 1], [], []>} : vector<64x128xbf16>, vector<128x128xbf16>, vector<64x128xf32> -> vector<64x128xf32>
    %108 = arith.addf %101, %107 : vector<64x128xf32>
    %c0_153 = arith.constant 0 : index
    %c0_154 = arith.constant 0 : index
    %c2_155 = arith.constant 2 : index
    %c0_156 = arith.constant 0 : index
    %109 = tpu.strided_load %arg12[%c0_153, %c0_154, %c2_155, %c0_156] {strides = array<i32: 1, 2, 2, 1>} : memref<1x18x18x128xf32, #tpu.memory_space<vmem>>, vector<1x8x8x128xf32>
    %110 = vector.shape_cast %109 : vector<1x8x8x128xf32> to vector<64x128xf32>
    %111 = arith.truncf %110 : vector<64x128xf32> to vector<64x128xbf16>
    %c0_157 = arith.constant 0 : index
    %c2_158 = arith.constant 2 : index
    %c0_159 = arith.constant 0 : index
    %c0_160 = arith.constant 0 : index
    %112 = vector.load %arg6[%c0_157, %c2_158, %c0_159, %c0_160] : memref<3x3x128x128xbf16, #tpu.memory_space<vmem>>, vector<1x1x128x128xbf16>
    %113 = vector.shape_cast %112 : vector<1x1x128x128xbf16> to vector<128x128xbf16>
    %cst_161 = arith.constant dense<0.000000e+00> : vector<64x128xf32>
    %114 = tpu.matmul %111, %113, %cst_161 {dimension_numbers = #tpu.dot_dimension_numbers<[1], [0], [0], [1], [0, 0, 1, 1], [], []>} : vector<64x128xbf16>, vector<128x128xbf16>, vector<64x128xf32> -> vector<64x128xf32>
    %115 = arith.addf %108, %114 : vector<64x128xf32>
    %c0_162 = arith.constant 0 : index
    %c1_163 = arith.constant 1 : index
    %c0_164 = arith.constant 0 : index
    %c0_165 = arith.constant 0 : index
    %116 = tpu.strided_load %arg12[%c0_162, %c1_163, %c0_164, %c0_165] {strides = array<i32: 1, 2, 2, 1>} : memref<1x18x18x128xf32, #tpu.memory_space<vmem>>, vector<1x8x8x128xf32>
    %117 = vector.shape_cast %116 : vector<1x8x8x128xf32> to vector<64x128xf32>
    %118 = arith.truncf %117 : vector<64x128xf32> to vector<64x128xbf16>
    %c1_166 = arith.constant 1 : index
    %c0_167 = arith.constant 0 : index
    %c0_168 = arith.constant 0 : index
    %c0_169 = arith.constant 0 : index
    %119 = vector.load %arg6[%c1_166, %c0_167, %c0_168, %c0_169] : memref<3x3x128x128xbf16, #tpu.memory_space<vmem>>, vector<1x1x128x128xbf16>
    %120 = vector.shape_cast %119 : vector<1x1x128x128xbf16> to vector<128x128xbf16>
    %cst_170 = arith.constant dense<0.000000e+00> : vector<64x128xf32>
    %121 = tpu.matmul %118, %120, %cst_170 {dimension_numbers = #tpu.dot_dimension_numbers<[1], [0], [0], [1], [0, 0, 1, 1], [], []>} : vector<64x128xbf16>, vector<128x128xbf16>, vector<64x128xf32> -> vector<64x128xf32>
    %122 = arith.addf %115, %121 : vector<64x128xf32>
    %c0_171 = arith.constant 0 : index
    %c1_172 = arith.constant 1 : index
    %c1_173 = arith.constant 1 : index
    %c0_174 = arith.constant 0 : index
    %123 = tpu.strided_load %arg12[%c0_171, %c1_172, %c1_173, %c0_174] {strides = array<i32: 1, 2, 2, 1>} : memref<1x18x18x128xf32, #tpu.memory_space<vmem>>, vector<1x8x8x128xf32>
    %124 = vector.shape_cast %123 : vector<1x8x8x128xf32> to vector<64x128xf32>
    %125 = arith.truncf %124 : vector<64x128xf32> to vector<64x128xbf16>
    %c1_175 = arith.constant 1 : index
    %c1_176 = arith.constant 1 : index
    %c0_177 = arith.constant 0 : index
    %c0_178 = arith.constant 0 : index
    %126 = vector.load %arg6[%c1_175, %c1_176, %c0_177, %c0_178] : memref<3x3x128x128xbf16, #tpu.memory_space<vmem>>, vector<1x1x128x128xbf16>
    %127 = vector.shape_cast %126 : vector<1x1x128x128xbf16> to vector<128x128xbf16>
    %cst_179 = arith.constant dense<0.000000e+00> : vector<64x128xf32>
    %128 = tpu.matmul %125, %127, %cst_179 {dimension_numbers = #tpu.dot_dimension_numbers<[1], [0], [0], [1], [0, 0, 1, 1], [], []>} : vector<64x128xbf16>, vector<128x128xbf16>, vector<64x128xf32> -> vector<64x128xf32>
    %129 = arith.addf %122, %128 : vector<64x128xf32>
    %c0_180 = arith.constant 0 : index
    %c1_181 = arith.constant 1 : index
    %c2_182 = arith.constant 2 : index
    %c0_183 = arith.constant 0 : index
    %130 = tpu.strided_load %arg12[%c0_180, %c1_181, %c2_182, %c0_183] {strides = array<i32: 1, 2, 2, 1>} : memref<1x18x18x128xf32, #tpu.memory_space<vmem>>, vector<1x8x8x128xf32>
    %131 = vector.shape_cast %130 : vector<1x8x8x128xf32> to vector<64x128xf32>
    %132 = arith.truncf %131 : vector<64x128xf32> to vector<64x128xbf16>
    %c1_184 = arith.constant 1 : index
    %c2_185 = arith.constant 2 : index
    %c0_186 = arith.constant 0 : index
    %c0_187 = arith.constant 0 : index
    %133 = vector.load %arg6[%c1_184, %c2_185, %c0_186, %c0_187] : memref<3x3x128x128xbf16, #tpu.memory_space<vmem>>, vector<1x1x128x128xbf16>
    %134 = vector.shape_cast %133 : vector<1x1x128x128xbf16> to vector<128x128xbf16>
    %cst_188 = arith.constant dense<0.000000e+00> : vector<64x128xf32>
    %135 = tpu.matmul %132, %134, %cst_188 {dimension_numbers = #tpu.dot_dimension_numbers<[1], [0], [0], [1], [0, 0, 1, 1], [], []>} : vector<64x128xbf16>, vector<128x128xbf16>, vector<64x128xf32> -> vector<64x128xf32>
    %136 = arith.addf %129, %135 : vector<64x128xf32>
    %c0_189 = arith.constant 0 : index
    %c2_190 = arith.constant 2 : index
    %c0_191 = arith.constant 0 : index
    %c0_192 = arith.constant 0 : index
    %137 = tpu.strided_load %arg12[%c0_189, %c2_190, %c0_191, %c0_192] {strides = array<i32: 1, 2, 2, 1>} : memref<1x18x18x128xf32, #tpu.memory_space<vmem>>, vector<1x8x8x128xf32>
    %138 = vector.shape_cast %137 : vector<1x8x8x128xf32> to vector<64x128xf32>
    %139 = arith.truncf %138 : vector<64x128xf32> to vector<64x128xbf16>
    %c2_193 = arith.constant 2 : index
    %c0_194 = arith.constant 0 : index
    %c0_195 = arith.constant 0 : index
    %c0_196 = arith.constant 0 : index
    %140 = vector.load %arg6[%c2_193, %c0_194, %c0_195, %c0_196] : memref<3x3x128x128xbf16, #tpu.memory_space<vmem>>, vector<1x1x128x128xbf16>
    %141 = vector.shape_cast %140 : vector<1x1x128x128xbf16> to vector<128x128xbf16>
    %cst_197 = arith.constant dense<0.000000e+00> : vector<64x128xf32>
    %142 = tpu.matmul %139, %141, %cst_197 {dimension_numbers = #tpu.dot_dimension_numbers<[1], [0], [0], [1], [0, 0, 1, 1], [], []>} : vector<64x128xbf16>, vector<128x128xbf16>, vector<64x128xf32> -> vector<64x128xf32>
    %143 = arith.addf %136, %142 : vector<64x128xf32>
    %c0_198 = arith.constant 0 : index
    %c2_199 = arith.constant 2 : index
    %c1_200 = arith.constant 1 : index
    %c0_201 = arith.constant 0 : index
    %144 = tpu.strided_load %arg12[%c0_198, %c2_199, %c1_200, %c0_201] {strides = array<i32: 1, 2, 2, 1>} : memref<1x18x18x128xf32, #tpu.memory_space<vmem>>, vector<1x8x8x128xf32>
    %145 = vector.shape_cast %144 : vector<1x8x8x128xf32> to vector<64x128xf32>
    %146 = arith.truncf %145 : vector<64x128xf32> to vector<64x128xbf16>
    %c2_202 = arith.constant 2 : index
    %c1_203 = arith.constant 1 : index
    %c0_204 = arith.constant 0 : index
    %c0_205 = arith.constant 0 : index
    %147 = vector.load %arg6[%c2_202, %c1_203, %c0_204, %c0_205] : memref<3x3x128x128xbf16, #tpu.memory_space<vmem>>, vector<1x1x128x128xbf16>
    %148 = vector.shape_cast %147 : vector<1x1x128x128xbf16> to vector<128x128xbf16>
    %cst_206 = arith.constant dense<0.000000e+00> : vector<64x128xf32>
    %149 = tpu.matmul %146, %148, %cst_206 {dimension_numbers = #tpu.dot_dimension_numbers<[1], [0], [0], [1], [0, 0, 1, 1], [], []>} : vector<64x128xbf16>, vector<128x128xbf16>, vector<64x128xf32> -> vector<64x128xf32>
    %150 = arith.addf %143, %149 : vector<64x128xf32>
    %c0_207 = arith.constant 0 : index
    %c2_208 = arith.constant 2 : index
    %c2_209 = arith.constant 2 : index
    %c0_210 = arith.constant 0 : index
    %151 = tpu.strided_load %arg12[%c0_207, %c2_208, %c2_209, %c0_210] {strides = array<i32: 1, 2, 2, 1>} : memref<1x18x18x128xf32, #tpu.memory_space<vmem>>, vector<1x8x8x128xf32>
    %152 = vector.shape_cast %151 : vector<1x8x8x128xf32> to vector<64x128xf32>
    %153 = arith.truncf %152 : vector<64x128xf32> to vector<64x128xbf16>
    %c2_211 = arith.constant 2 : index
    %c2_212 = arith.constant 2 : index
    %c0_213 = arith.constant 0 : index
    %c0_214 = arith.constant 0 : index
    %154 = vector.load %arg6[%c2_211, %c2_212, %c0_213, %c0_214] : memref<3x3x128x128xbf16, #tpu.memory_space<vmem>>, vector<1x1x128x128xbf16>
    %155 = vector.shape_cast %154 : vector<1x1x128x128xbf16> to vector<128x128xbf16>
    %cst_215 = arith.constant dense<0.000000e+00> : vector<64x128xf32>
    %156 = tpu.matmul %153, %155, %cst_215 {dimension_numbers = #tpu.dot_dimension_numbers<[1], [0], [0], [1], [0, 0, 1, 1], [], []>} : vector<64x128xbf16>, vector<128x128xbf16>, vector<64x128xf32> -> vector<64x128xf32>
    %157 = arith.addf %150, %156 : vector<64x128xf32>
    %c0_216 = arith.constant 0 : index
    %c0_217 = arith.constant 0 : index
    %158 = vector.load %arg7[%c0_216, %c0_217] : memref<1x128xf32, #tpu.memory_space<vmem>>, vector<1x128xf32>
    %159 = vector.broadcast %158 : vector<1x128xf32> to vector<64x128xf32>
    %160 = arith.addf %157, %159 : vector<64x128xf32>
    %161 = vector.shape_cast %160 : vector<64x128xf32> to vector<1x64x128xf32>
    %162 = tpu.iota {dimensions = array<i32: 1>} : vector<1x128xi32>
    %c0_218 = arith.constant 0 : index
    %c0_219 = arith.constant 0 : index
    %163 = vector.load %arg9[%c0_218, %c0_219] : memref<1x128xf32, #tpu.memory_space<vmem>>, vector<1x128xf32>
    %c0_220 = arith.constant 0 : index
    %c0_221 = arith.constant 0 : index
    %c0_222 = arith.constant 0 : index
    %164 = vector.load %arg8[%c0_220, %c0_221, %c0_222] : memref<10x64x128xf32, #tpu.memory_space<vmem>>, vector<1x64x128xf32>
    %165 = vector.shape_cast %164 : vector<1x64x128xf32> to vector<64x128xf32>
    %166 = vector.shape_cast %165 : vector<64x128xf32> to vector<1x64x128xf32>
    %167 = arith.mulf %161, %166 : vector<1x64x128xf32>
    %cst_223 = arith.constant dense<0.000000e+00> : vector<1xf32>
    %168 = vector.multi_reduction <add>, %167, %cst_223 [1, 2] : vector<1x64x128xf32> to vector<1xf32>
    %169 = vector.shape_cast %168 : vector<1xf32> to vector<1x1x1xf32>
    %170 = vector.shape_cast %169 : vector<1x1x1xf32> to vector<1x1xf32>
    %c0_i32 = arith.constant 0 : i32
    %171 = vector.broadcast %c0_i32 : i32 to vector<1x128xi32>
    %172 = arith.cmpi eq, %162, %171 : vector<1x128xi32>
    %cst_224 = arith.constant 0.000000e+00 : f32
    %173 = vector.shape_cast %170 : vector<1x1xf32> to vector<1x1xf32>
    %174 = vector.broadcast %173 : vector<1x1xf32> to vector<1x128xf32>
    %175 = vector.broadcast %cst_224 : f32 to vector<1x128xf32>
    %176 = arith.select %172, %174, %175 : vector<1x128xi1>, vector<1x128xf32>
    %177 = arith.addf %163, %176 : vector<1x128xf32>
    %c1_225 = arith.constant 1 : index
    %c0_226 = arith.constant 0 : index
    %c0_227 = arith.constant 0 : index
    %178 = vector.load %arg8[%c1_225, %c0_226, %c0_227] : memref<10x64x128xf32, #tpu.memory_space<vmem>>, vector<1x64x128xf32>
    %179 = vector.shape_cast %178 : vector<1x64x128xf32> to vector<64x128xf32>
    %180 = vector.shape_cast %179 : vector<64x128xf32> to vector<1x64x128xf32>
    %181 = arith.mulf %161, %180 : vector<1x64x128xf32>
    %cst_228 = arith.constant dense<0.000000e+00> : vector<1xf32>
    %182 = vector.multi_reduction <add>, %181, %cst_228 [1, 2] : vector<1x64x128xf32> to vector<1xf32>
    %183 = vector.shape_cast %182 : vector<1xf32> to vector<1x1x1xf32>
    %184 = vector.shape_cast %183 : vector<1x1x1xf32> to vector<1x1xf32>
    %c1_i32 = arith.constant 1 : i32
    %185 = vector.broadcast %c1_i32 : i32 to vector<1x128xi32>
    %186 = arith.cmpi eq, %162, %185 : vector<1x128xi32>
    %cst_229 = arith.constant 0.000000e+00 : f32
    %187 = vector.shape_cast %184 : vector<1x1xf32> to vector<1x1xf32>
    %188 = vector.broadcast %187 : vector<1x1xf32> to vector<1x128xf32>
    %189 = vector.broadcast %cst_229 : f32 to vector<1x128xf32>
    %190 = arith.select %186, %188, %189 : vector<1x128xi1>, vector<1x128xf32>
    %191 = arith.addf %177, %190 : vector<1x128xf32>
    %c2_230 = arith.constant 2 : index
    %c0_231 = arith.constant 0 : index
    %c0_232 = arith.constant 0 : index
    %192 = vector.load %arg8[%c2_230, %c0_231, %c0_232] : memref<10x64x128xf32, #tpu.memory_space<vmem>>, vector<1x64x128xf32>
    %193 = vector.shape_cast %192 : vector<1x64x128xf32> to vector<64x128xf32>
    %194 = vector.shape_cast %193 : vector<64x128xf32> to vector<1x64x128xf32>
    %195 = arith.mulf %161, %194 : vector<1x64x128xf32>
    %cst_233 = arith.constant dense<0.000000e+00> : vector<1xf32>
    %196 = vector.multi_reduction <add>, %195, %cst_233 [1, 2] : vector<1x64x128xf32> to vector<1xf32>
    %197 = vector.shape_cast %196 : vector<1xf32> to vector<1x1x1xf32>
    %198 = vector.shape_cast %197 : vector<1x1x1xf32> to vector<1x1xf32>
    %c2_i32 = arith.constant 2 : i32
    %199 = vector.broadcast %c2_i32 : i32 to vector<1x128xi32>
    %200 = arith.cmpi eq, %162, %199 : vector<1x128xi32>
    %cst_234 = arith.constant 0.000000e+00 : f32
    %201 = vector.shape_cast %198 : vector<1x1xf32> to vector<1x1xf32>
    %202 = vector.broadcast %201 : vector<1x1xf32> to vector<1x128xf32>
    %203 = vector.broadcast %cst_234 : f32 to vector<1x128xf32>
    %204 = arith.select %200, %202, %203 : vector<1x128xi1>, vector<1x128xf32>
    %205 = arith.addf %191, %204 : vector<1x128xf32>
    %c3 = arith.constant 3 : index
    %c0_235 = arith.constant 0 : index
    %c0_236 = arith.constant 0 : index
    %206 = vector.load %arg8[%c3, %c0_235, %c0_236] : memref<10x64x128xf32, #tpu.memory_space<vmem>>, vector<1x64x128xf32>
    %207 = vector.shape_cast %206 : vector<1x64x128xf32> to vector<64x128xf32>
    %208 = vector.shape_cast %207 : vector<64x128xf32> to vector<1x64x128xf32>
    %209 = arith.mulf %161, %208 : vector<1x64x128xf32>
    %cst_237 = arith.constant dense<0.000000e+00> : vector<1xf32>
    %210 = vector.multi_reduction <add>, %209, %cst_237 [1, 2] : vector<1x64x128xf32> to vector<1xf32>
    %211 = vector.shape_cast %210 : vector<1xf32> to vector<1x1x1xf32>
    %212 = vector.shape_cast %211 : vector<1x1x1xf32> to vector<1x1xf32>
    %c3_i32 = arith.constant 3 : i32
    %213 = vector.broadcast %c3_i32 : i32 to vector<1x128xi32>
    %214 = arith.cmpi eq, %162, %213 : vector<1x128xi32>
    %cst_238 = arith.constant 0.000000e+00 : f32
    %215 = vector.shape_cast %212 : vector<1x1xf32> to vector<1x1xf32>
    %216 = vector.broadcast %215 : vector<1x1xf32> to vector<1x128xf32>
    %217 = vector.broadcast %cst_238 : f32 to vector<1x128xf32>
    %218 = arith.select %214, %216, %217 : vector<1x128xi1>, vector<1x128xf32>
    %219 = arith.addf %205, %218 : vector<1x128xf32>
    %c4 = arith.constant 4 : index
    %c0_239 = arith.constant 0 : index
    %c0_240 = arith.constant 0 : index
    %220 = vector.load %arg8[%c4, %c0_239, %c0_240] : memref<10x64x128xf32, #tpu.memory_space<vmem>>, vector<1x64x128xf32>
    %221 = vector.shape_cast %220 : vector<1x64x128xf32> to vector<64x128xf32>
    %222 = vector.shape_cast %221 : vector<64x128xf32> to vector<1x64x128xf32>
    %223 = arith.mulf %161, %222 : vector<1x64x128xf32>
    %cst_241 = arith.constant dense<0.000000e+00> : vector<1xf32>
    %224 = vector.multi_reduction <add>, %223, %cst_241 [1, 2] : vector<1x64x128xf32> to vector<1xf32>
    %225 = vector.shape_cast %224 : vector<1xf32> to vector<1x1x1xf32>
    %226 = vector.shape_cast %225 : vector<1x1x1xf32> to vector<1x1xf32>
    %c4_i32 = arith.constant 4 : i32
    %227 = vector.broadcast %c4_i32 : i32 to vector<1x128xi32>
    %228 = arith.cmpi eq, %162, %227 : vector<1x128xi32>
    %cst_242 = arith.constant 0.000000e+00 : f32
    %229 = vector.shape_cast %226 : vector<1x1xf32> to vector<1x1xf32>
    %230 = vector.broadcast %229 : vector<1x1xf32> to vector<1x128xf32>
    %231 = vector.broadcast %cst_242 : f32 to vector<1x128xf32>
    %232 = arith.select %228, %230, %231 : vector<1x128xi1>, vector<1x128xf32>
    %233 = arith.addf %219, %232 : vector<1x128xf32>
    %c5 = arith.constant 5 : index
    %c0_243 = arith.constant 0 : index
    %c0_244 = arith.constant 0 : index
    %234 = vector.load %arg8[%c5, %c0_243, %c0_244] : memref<10x64x128xf32, #tpu.memory_space<vmem>>, vector<1x64x128xf32>
    %235 = vector.shape_cast %234 : vector<1x64x128xf32> to vector<64x128xf32>
    %236 = vector.shape_cast %235 : vector<64x128xf32> to vector<1x64x128xf32>
    %237 = arith.mulf %161, %236 : vector<1x64x128xf32>
    %cst_245 = arith.constant dense<0.000000e+00> : vector<1xf32>
    %238 = vector.multi_reduction <add>, %237, %cst_245 [1, 2] : vector<1x64x128xf32> to vector<1xf32>
    %239 = vector.shape_cast %238 : vector<1xf32> to vector<1x1x1xf32>
    %240 = vector.shape_cast %239 : vector<1x1x1xf32> to vector<1x1xf32>
    %c5_i32 = arith.constant 5 : i32
    %241 = vector.broadcast %c5_i32 : i32 to vector<1x128xi32>
    %242 = arith.cmpi eq, %162, %241 : vector<1x128xi32>
    %cst_246 = arith.constant 0.000000e+00 : f32
    %243 = vector.shape_cast %240 : vector<1x1xf32> to vector<1x1xf32>
    %244 = vector.broadcast %243 : vector<1x1xf32> to vector<1x128xf32>
    %245 = vector.broadcast %cst_246 : f32 to vector<1x128xf32>
    %246 = arith.select %242, %244, %245 : vector<1x128xi1>, vector<1x128xf32>
    %247 = arith.addf %233, %246 : vector<1x128xf32>
    %c6 = arith.constant 6 : index
    %c0_247 = arith.constant 0 : index
    %c0_248 = arith.constant 0 : index
    %248 = vector.load %arg8[%c6, %c0_247, %c0_248] : memref<10x64x128xf32, #tpu.memory_space<vmem>>, vector<1x64x128xf32>
    %249 = vector.shape_cast %248 : vector<1x64x128xf32> to vector<64x128xf32>
    %250 = vector.shape_cast %249 : vector<64x128xf32> to vector<1x64x128xf32>
    %251 = arith.mulf %161, %250 : vector<1x64x128xf32>
    %cst_249 = arith.constant dense<0.000000e+00> : vector<1xf32>
    %252 = vector.multi_reduction <add>, %251, %cst_249 [1, 2] : vector<1x64x128xf32> to vector<1xf32>
    %253 = vector.shape_cast %252 : vector<1xf32> to vector<1x1x1xf32>
    %254 = vector.shape_cast %253 : vector<1x1x1xf32> to vector<1x1xf32>
    %c6_i32 = arith.constant 6 : i32
    %255 = vector.broadcast %c6_i32 : i32 to vector<1x128xi32>
    %256 = arith.cmpi eq, %162, %255 : vector<1x128xi32>
    %cst_250 = arith.constant 0.000000e+00 : f32
    %257 = vector.shape_cast %254 : vector<1x1xf32> to vector<1x1xf32>
    %258 = vector.broadcast %257 : vector<1x1xf32> to vector<1x128xf32>
    %259 = vector.broadcast %cst_250 : f32 to vector<1x128xf32>
    %260 = arith.select %256, %258, %259 : vector<1x128xi1>, vector<1x128xf32>
    %261 = arith.addf %247, %260 : vector<1x128xf32>
    %c7 = arith.constant 7 : index
    %c0_251 = arith.constant 0 : index
    %c0_252 = arith.constant 0 : index
    %262 = vector.load %arg8[%c7, %c0_251, %c0_252] : memref<10x64x128xf32, #tpu.memory_space<vmem>>, vector<1x64x128xf32>
    %263 = vector.shape_cast %262 : vector<1x64x128xf32> to vector<64x128xf32>
    %264 = vector.shape_cast %263 : vector<64x128xf32> to vector<1x64x128xf32>
    %265 = arith.mulf %161, %264 : vector<1x64x128xf32>
    %cst_253 = arith.constant dense<0.000000e+00> : vector<1xf32>
    %266 = vector.multi_reduction <add>, %265, %cst_253 [1, 2] : vector<1x64x128xf32> to vector<1xf32>
    %267 = vector.shape_cast %266 : vector<1xf32> to vector<1x1x1xf32>
    %268 = vector.shape_cast %267 : vector<1x1x1xf32> to vector<1x1xf32>
    %c7_i32 = arith.constant 7 : i32
    %269 = vector.broadcast %c7_i32 : i32 to vector<1x128xi32>
    %270 = arith.cmpi eq, %162, %269 : vector<1x128xi32>
    %cst_254 = arith.constant 0.000000e+00 : f32
    %271 = vector.shape_cast %268 : vector<1x1xf32> to vector<1x1xf32>
    %272 = vector.broadcast %271 : vector<1x1xf32> to vector<1x128xf32>
    %273 = vector.broadcast %cst_254 : f32 to vector<1x128xf32>
    %274 = arith.select %270, %272, %273 : vector<1x128xi1>, vector<1x128xf32>
    %275 = arith.addf %261, %274 : vector<1x128xf32>
    %c8 = arith.constant 8 : index
    %c0_255 = arith.constant 0 : index
    %c0_256 = arith.constant 0 : index
    %276 = vector.load %arg8[%c8, %c0_255, %c0_256] : memref<10x64x128xf32, #tpu.memory_space<vmem>>, vector<1x64x128xf32>
    %277 = vector.shape_cast %276 : vector<1x64x128xf32> to vector<64x128xf32>
    %278 = vector.shape_cast %277 : vector<64x128xf32> to vector<1x64x128xf32>
    %279 = arith.mulf %161, %278 : vector<1x64x128xf32>
    %cst_257 = arith.constant dense<0.000000e+00> : vector<1xf32>
    %280 = vector.multi_reduction <add>, %279, %cst_257 [1, 2] : vector<1x64x128xf32> to vector<1xf32>
    %281 = vector.shape_cast %280 : vector<1xf32> to vector<1x1x1xf32>
    %282 = vector.shape_cast %281 : vector<1x1x1xf32> to vector<1x1xf32>
    %c8_i32 = arith.constant 8 : i32
    %283 = vector.broadcast %c8_i32 : i32 to vector<1x128xi32>
    %284 = arith.cmpi eq, %162, %283 : vector<1x128xi32>
    %cst_258 = arith.constant 0.000000e+00 : f32
    %285 = vector.shape_cast %282 : vector<1x1xf32> to vector<1x1xf32>
    %286 = vector.broadcast %285 : vector<1x1xf32> to vector<1x128xf32>
    %287 = vector.broadcast %cst_258 : f32 to vector<1x128xf32>
    %288 = arith.select %284, %286, %287 : vector<1x128xi1>, vector<1x128xf32>
    %289 = arith.addf %275, %288 : vector<1x128xf32>
    %c9 = arith.constant 9 : index
    %c0_259 = arith.constant 0 : index
    %c0_260 = arith.constant 0 : index
    %290 = vector.load %arg8[%c9, %c0_259, %c0_260] : memref<10x64x128xf32, #tpu.memory_space<vmem>>, vector<1x64x128xf32>
    %291 = vector.shape_cast %290 : vector<1x64x128xf32> to vector<64x128xf32>
    %292 = vector.shape_cast %291 : vector<64x128xf32> to vector<1x64x128xf32>
    %293 = arith.mulf %161, %292 : vector<1x64x128xf32>
    %cst_261 = arith.constant dense<0.000000e+00> : vector<1xf32>
    %294 = vector.multi_reduction <add>, %293, %cst_261 [1, 2] : vector<1x64x128xf32> to vector<1xf32>
    %295 = vector.shape_cast %294 : vector<1xf32> to vector<1x1x1xf32>
    %296 = vector.shape_cast %295 : vector<1x1x1xf32> to vector<1x1xf32>
    %c9_i32 = arith.constant 9 : i32
    %297 = vector.broadcast %c9_i32 : i32 to vector<1x128xi32>
    %298 = arith.cmpi eq, %162, %297 : vector<1x128xi32>
    %cst_262 = arith.constant 0.000000e+00 : f32
    %299 = vector.shape_cast %296 : vector<1x1xf32> to vector<1x1xf32>
    %300 = vector.broadcast %299 : vector<1x1xf32> to vector<1x128xf32>
    %301 = vector.broadcast %cst_262 : f32 to vector<1x128xf32>
    %302 = arith.select %298, %300, %301 : vector<1x128xi1>, vector<1x128xf32>
    %303 = arith.addf %289, %302 : vector<1x128xf32>
    %304 = vector.shape_cast %303 : vector<1x128xf32> to vector<1x1x128xf32>
    %305 = vector.shape_cast %304 : vector<1x1x128xf32> to vector<1x1x128xf32>
    %306 = vector.broadcast %305 : vector<1x1x128xf32> to vector<1x8x128xf32>
    %c0_263 = arith.constant 0 : index
    %c0_264 = arith.constant 0 : index
    %c0_265 = arith.constant 0 : index
    %307 = vector.load %arg10[%c0_263, %c0_264, %c0_265] : memref<1x8x128xf32, #tpu.memory_space<vmem>>, vector<1x8x128xf32>
    tpu.vector_store %arg10[%c0_263, %c0_264, %c0_265], %306 {strides = array<i32>} : memref<1x8x128xf32, #tpu.memory_space<vmem>>, vector<1x8x128xf32>,
    return
  }
  func.func @transform_0(%arg0: i32) -> (i32, i32, i32) {
    %c0_i32 = arith.constant 0 : i32
    %c0_i32_0 = arith.constant 0 : i32
    %c0_i32_1 = arith.constant 0 : i32
    return %arg0, %c0_i32, %c0_i32_0 : i32, i32, i32
  }
  func.func @transform_1(%arg0: i32) -> (i32, i32) {
    %c0_i32 = arith.constant 0 : i32
    %c0_i32_0 = arith.constant 0 : i32
    %c0_i32_1 = arith.constant 0 : i32
    return %c0_i32, %c0_i32_0 : i32, i32
  }
  func.func @transform_2(%arg0: i32) -> (i32, i32) {
    %c0_i32 = arith.constant 0 : i32
    %c0_i32_0 = arith.constant 0 : i32
    %c0_i32_1 = arith.constant 0 : i32
    return %c0_i32, %c0_i32_0 : i32, i32
  }
  func.func @transform_3(%arg0: i32) -> (i32, i32, i32, i32) {
    %c0_i32 = arith.constant 0 : i32
    %c0_i32_0 = arith.constant 0 : i32
    %c0_i32_1 = arith.constant 0 : i32
    %c0_i32_2 = arith.constant 0 : i32
    %c0_i32_3 = arith.constant 0 : i32
    return %c0_i32, %c0_i32_0, %c0_i32_1, %c0_i32_2 : i32, i32, i32, i32
  }
  func.func @transform_4(%arg0: i32) -> (i32, i32) {
    %c0_i32 = arith.constant 0 : i32
    %c0_i32_0 = arith.constant 0 : i32
    %c0_i32_1 = arith.constant 0 : i32
    return %c0_i32, %c0_i32_0 : i32, i32
  }
  func.func @transform_5(%arg0: i32) -> (i32, i32, i32, i32) {
    %c0_i32 = arith.constant 0 : i32
    %c0_i32_0 = arith.constant 0 : i32
    %c0_i32_1 = arith.constant 0 : i32
    %c0_i32_2 = arith.constant 0 : i32
    %c0_i32_3 = arith.constant 0 : i32
    return %c0_i32, %c0_i32_0, %c0_i32_1, %c0_i32_2 : i32, i32, i32, i32
  }
  func.func @transform_6(%arg0: i32) -> (i32, i32) {
    %c0_i32 = arith.constant 0 : i32
    %c0_i32_0 = arith.constant 0 : i32
    %c0_i32_1 = arith.constant 0 : i32
    return %c0_i32, %c0_i32_0 : i32, i32
  }
  func.func @transform_7(%arg0: i32) -> (i32, i32, i32) {
    %c0_i32 = arith.constant 0 : i32
    %c0_i32_0 = arith.constant 0 : i32
    %c0_i32_1 = arith.constant 0 : i32
    %c0_i32_2 = arith.constant 0 : i32
    return %c0_i32, %c0_i32_0, %c0_i32_1 : i32, i32, i32
  }
  func.func @transform_8(%arg0: i32) -> (i32, i32) {
    %c0_i32 = arith.constant 0 : i32
    %c0_i32_0 = arith.constant 0 : i32
    %c0_i32_1 = arith.constant 0 : i32
    return %c0_i32, %c0_i32_0 : i32, i32
  }
  func.func @transform_9(%arg0: i32) -> (i32, i32, i32) {
    %c0_i32 = arith.constant 0 : i32
    %c0_i32_0 = arith.constant 0 : i32
    %c0_i32_1 = arith.constant 0 : i32
    return %arg0, %c0_i32, %c0_i32_0 : i32, i32, i32
  }
}

</mosaic_0001>

<llo_original>
// kernel: netv1_forward.1
$region0: #{netv1_forward.1}
  #allocation0 [shape = 'u32[]', space=smem, size = 0x4, offset = 0x4, fixed_abs, tag = 'smem constant byte address 0x4 - core index']
  #allocation1 [shape = 'u32[144,128]{1,0:T(1,128)}', space=vmem, size = 0x12000, scoped, tag = 'internal scratch']
  #allocation2 [shape = 'f32[1,34,34,128]{3,2,1,0:T(8,128)}', space=vmem, size = 0xaa000, scoped, tag = 'scratch operand']
  #allocation3 [shape = 'f32[1,18,18,128]{3,2,1,0:T(8,128)}', space=vmem, size = 0x36000, scoped, tag = 'scratch operand']
  %s0 = inlined_call_operand.vmem [shape: bf16[2,1024,32], index: 0, kind: input, shape index: {}]
  %s1 = inlined_call_operand.vmem [shape: bf16[32,128], index: 1, kind: input, shape index: {}]
  %s2 = inlined_call_operand.vmem [shape: f32[1,128], index: 2, kind: input, shape index: {}]
  %s3 = inlined_call_operand.vmem [shape: bf16[3,3,128,128], index: 3, kind: input, shape index: {}]
  %s4 = inlined_call_operand.vmem [shape: f32[1,128], index: 4, kind: input, shape index: {}]
  %s5 = inlined_call_operand.vmem [shape: bf16[3,3,128,128], index: 5, kind: input, shape index: {}]
  %s6 = inlined_call_operand.vmem [shape: f32[1,128], index: 6, kind: input, shape index: {}]
  %s7 = inlined_call_operand.vmem [shape: f32[10,64,128], index: 7, kind: input, shape index: {}]
  %s8 = inlined_call_operand.vmem [shape: f32[1,128], index: 8, kind: input, shape index: {}]
  %s9 = inlined_call_operand.vmem [shape: f32[2,8,128], index: 9, kind: output, shape index: {}]
  %s10 = sld [smem:[#allocation0]]
  $region69: #{netv1_forward.1} parent=0
    _
  %s12 = ssub.s32 1, %s10
  %s13 = scalar_select 0, %s12, %s10
  loop: start=0, step=1, limit=4
  $region2: #{netv1_forward.1} parent=0 // loop_pre_header
    _
  $region3: #{netv1_forward.1} parent=0 // loop_header
    %s15 = sphi 0, %s19
    %p16 = scmp.ge.s32.totalorder %s15, 4
    %s25 = sphi 0, %s27
    %s28 = sphi 0, %s25
    %s29 = sphi 0, %s28
    %s45 = sphi 0, %s29
    %s49 = sphi 0, %s49
    %s51 = sphi 0, %s49
    %s52 = sphi 0, %s51
    %s66 = sphi 0, %s52
    %s70 = sphi 0, %s70
    %s72 = sphi 0, %s70
    %s73 = sphi 0, %s72
    %s87 = sphi 0, %s73
    %s91 = sphi 0, %s91
    %s93 = sphi 0, %s91
    %s94 = sphi 0, %s93
    %s108 = sphi 0, %s94
    %s112 = sphi 0, %s112
    %s114 = sphi 0, %s112
    %s115 = sphi 0, %s114
    %s129 = sphi 0, %s115
    %s133 = sphi 0, %s133
    %s135 = sphi 0, %s133
    %s136 = sphi 0, %s135
    %s150 = sphi 0, %s136
    %s154 = sphi 0, %s154
    %s156 = sphi 0, %s154
    %s157 = sphi 0, %s156
    %s171 = sphi 0, %s157
    %s175 = sphi 0, %s175
    %s177 = sphi 0, %s175
    %s178 = sphi 0, %s177
    %s192 = sphi 0, %s178
    %s196 = sphi 0, %s196
    %s198 = sphi 0, %s196
    %s199 = sphi 0, %s198
    %s213 = sphi 0, %s199
    %s219 = sphi 0, %s221
    %s222 = sphi 0, %s219
    %s223 = sphi 0, %s222
    %s239 = sphi 0, %s223
  $region4: #{netv1_forward.1} parent=0 // loop_header_branch
    %18 = sbr.rel (%p16) target = $region8
  $region5: #{netv1_forward.1} parent=0 // loop_body
    %s20 = ssub.s32 %s15, 1
    %s21 = ssub.s32 %s15, 2
    %s22 = sadd.s32 %s15, 1
    %s23 = ssub.s32 %s15, %s22
    %p24 = scmp.eq.s32.totalorder %s23, 0
    %s26 = sadd.s32 %s25, 1
    %s27 = scalar_select %p24, %s25, %s26
    %p30 = pneg %p24
    %p31 = scmp.eq.s32.totalorder %s15, 1
    %p32 = por %p30, %p31
    %p33 = scmp.ne.s32.totalorder %s25, %s28
    %p34 = scmp.eq.s32.totalorder %s15, 0
    %p35 = por %p33, %p34
    %p36 = scmp.ne.s32.totalorder %s25, %s28
    %p37 = scmp.eq.s32.totalorder %s20, 1
    %p38 = por %p36, %p37
    %p39 = scmp.ne.s32.totalorder %s28, %s29
    %p40 = scmp.eq.s32.totalorder %s20, 0
    %p41 = por %p39, %p40
    %p42 = scmp.ne.s32.totalorder %s28, %s29
    %p43 = scmp.eq.s32.totalorder %s21, 1
    %p44 = por %p42, %p43
    %p46 = scmp.ne.s32.totalorder %s29, %s45
    %p47 = scmp.eq.s32.totalorder %s21, 0
    %p48 = por %p46, %p47
    %s50 = sadd.s32 %s49, 1
    %p53 = scmp.eq.s32.totalorder %s15, 1
    %p54 = scmp.ne.s32.totalorder %s49, %s51
    %p55 = scmp.eq.s32.totalorder %s15, 0
    %p56 = por %p54, %p55
    %p57 = scmp.ne.s32.totalorder %s49, %s51
    %p58 = scmp.eq.s32.totalorder %s20, 1
    %p59 = por %p57, %p58
    %p60 = scmp.ne.s32.totalorder %s51, %s52
    %p61 = scmp.eq.s32.totalorder %s20, 0
    %p62 = por %p60, %p61
    %p63 = scmp.ne.s32.totalorder %s51, %s52
    %p64 = scmp.eq.s32.totalorder %s21, 1
    %p65 = por %p63, %p64
    %p67 = scmp.ne.s32.totalorder %s52, %s66
    %p68 = scmp.eq.s32.totalorder %s21, 0
    %p69 = por %p67, %p68
    %s71 = sadd.s32 %s70, 1
    %p74 = scmp.eq.s32.totalorder %s15, 1
    %p75 = scmp.ne.s32.totalorder %s70, %s72
    %p76 = scmp.eq.s32.totalorder %s15, 0
    %p77 = por %p75, %p76
    %p78 = scmp.ne.s32.totalorder %s70, %s72
    %p79 = scmp.eq.s32.totalorder %s20, 1
    %p80 = por %p78, %p79
    %p81 = scmp.ne.s32.totalorder %s72, %s73
    %p82 = scmp.eq.s32.totalorder %s20, 0
    %p83 = por %p81, %p82
    %p84 = scmp.ne.s32.totalorder %s72, %s73
    %p85 = scmp.eq.s32.totalorder %s21, 1
    %p86 = por %p84, %p85
    %p88 = scmp.ne.s32.totalorder %s73, %s87
    %p89 = scmp.eq.s32.totalorder %s21, 0
    %p90 = por %p88, %p89
    %s92 = sadd.s32 %s91, 1
    %p95 = scmp.eq.s32.totalorder %s15, 1
    %p96 = scmp.ne.s32.totalorder %s91, %s93
    %p97 = scmp.eq.s32.totalorder %s15, 0
    %p98 = por %p96, %p97
    %p99 = scmp.ne.s32.totalorder %s91, %s93
    %p100 = scmp.eq.s32.totalorder %s20, 1
    %p101 = por %p99, %p100
    %p102 = scmp.ne.s32.totalorder %s93, %s94
    %p103 = scmp.eq.s32.totalorder %s20, 0
    %p104 = por %p102, %p103
    %p105 = scmp.ne.s32.totalorder %s93, %s94
    %p106 = scmp.eq.s32.totalorder %s21, 1
    %p107 = por %p105, %p106
    %p109 = scmp.ne.s32.totalorder %s94, %s108
    %p110 = scmp.eq.s32.totalorder %s21, 0
    %p111 = por %p109, %p110
    %s113 = sadd.s32 %s112, 1
    %p116 = scmp.eq.s32.totalorder %s15, 1
    %p117 = scmp.ne.s32.totalorder %s112, %s114
    %p118 = scmp.eq.s32.totalorder %s15, 0
    %p119 = por %p117, %p118
    %p120 = scmp.ne.s32.totalorder %s112, %s114
    %p121 = scmp.eq.s32.totalorder %s20, 1
    %p122 = por %p120, %p121
    %p123 = scmp.ne.s32.totalorder %s114, %s115
    %p124 = scmp.eq.s32.totalorder %s20, 0
    %p125 = por %p123, %p124
    %p126 = scmp.ne.s32.totalorder %s114, %s115
    %p127 = scmp.eq.s32.totalorder %s21, 1
    %p128 = por %p126, %p127
    %p130 = scmp.ne.s32.totalorder %s115, %s129
    %p131 = scmp.eq.s32.totalorder %s21, 0
    %p132 = por %p130, %p131
    %s134 = sadd.s32 %s133, 1
    %p137 = scmp.eq.s32.totalorder %s15, 1
    %p138 = scmp.ne.s32.totalorder %s133, %s135
    %p139 = scmp.eq.s32.totalorder %s15, 0
    %p140 = por %p138, %p139
    %p141 = scmp.ne.s32.totalorder %s133, %s135
    %p142 = scmp.eq.s32.totalorder %s20, 1
    %p143 = por %p141, %p142
    %p144 = scmp.ne.s32.totalorder %s135, %s136
    %p145 = scmp.eq.s32.totalorder %s20, 0
    %p146 = por %p144, %p145
    %p147 = scmp.ne.s32.totalorder %s135, %s136
    %p148 = scmp.eq.s32.totalorder %s21, 1
    %p149 = por %p147, %p148
    %p151 = scmp.ne.s32.totalorder %s136, %s150
    %p152 = scmp.eq.s32.totalorder %s21, 0
    %p153 = por %p151, %p152
    %s155 = sadd.s32 %s154, 1
    %p158 = scmp.eq.s32.totalorder %s15, 1
    %p159 = scmp.ne.s32.totalorder %s154, %s156
    %p160 = scmp.eq.s32.totalorder %s15, 0
    %p161 = por %p159, %p160
    %p162 = scmp.ne.s32.totalorder %s154, %s156
    %p163 = scmp.eq.s32.totalorder %s20, 1
    %p164 = por %p162, %p163
    %p165 = scmp.ne.s32.totalorder %s156, %s157
    %p166 = scmp.eq.s32.totalorder %s20, 0
    %p167 = por %p165, %p166
    %p168 = scmp.ne.s32.totalorder %s156, %s157
    %p169 = scmp.eq.s32.totalorder %s21, 1
    %p170 = por %p168, %p169
    %p172 = scmp.ne.s32.totalorder %s157, %s171
    %p173 = scmp.eq.s32.totalorder %s21, 0
    %p174 = por %p172, %p173
    %s176 = sadd.s32 %s175, 1
    %p179 = scmp.eq.s32.totalorder %s15, 1
    %p180 = scmp.ne.s32.totalorder %s175, %s177
    %p181 = scmp.eq.s32.totalorder %s15, 0
    %p182 = por %p180, %p181
    %p183 = scmp.ne.s32.totalorder %s175, %s177
    %p184 = scmp.eq.s32.totalorder %s20, 1
    %p185 = por %p183, %p184
    %p186 = scmp.ne.s32.totalorder %s177, %s178
    %p187 = scmp.eq.s32.totalorder %s20, 0
    %p188 = por %p186, %p187
    %p189 = scmp.ne.s32.totalorder %s177, %s178
    %p190 = scmp.eq.s32.totalorder %s21, 1
    %p191 = por %p189, %p190
    %p193 = scmp.ne.s32.totalorder %s178, %s192
    %p194 = scmp.eq.s32.totalorder %s21, 0
    %p195 = por %p193, %p194
    %s197 = sadd.s32 %s196, 1
    %p200 = scmp.eq.s32.totalorder %s15, 1
    %p201 = scmp.ne.s32.totalorder %s196, %s198
    %p202 = scmp.eq.s32.totalorder %s15, 0
    %p203 = por %p201, %p202
    %p204 = scmp.ne.s32.totalorder %s196, %s198
    %p205 = scmp.eq.s32.totalorder %s20, 1
    %p206 = por %p204, %p205
    %p207 = scmp.ne.s32.totalorder %s198, %s199
    %p208 = scmp.eq.s32.totalorder %s20, 0
    %p209 = por %p207, %p208
    %p210 = scmp.ne.s32.totalorder %s198, %s199
    %p211 = scmp.eq.s32.totalorder %s21, 1
    %p212 = por %p210, %p211
    %p214 = scmp.ne.s32.totalorder %s199, %s213
    %p215 = scmp.eq.s32.totalorder %s21, 0
    %p216 = por %p214, %p215
    %s217 = ssub.s32 %s15, %s22
    %p218 = scmp.eq.s32.totalorder %s217, 0
    %s220 = sadd.s32 %s219, 1
    %s221 = scalar_select %p218, %s219, %s220
    %p224 = pneg %p218
    %p225 = scmp.eq.s32.totalorder %s15, 1
    %p226 = por %p224, %p225
    %p227 = scmp.ne.s32.totalorder %s219, %s222
    %p228 = scmp.eq.s32.totalorder %s15, 0
    %p229 = por %p227, %p228
    %p230 = scmp.ne.s32.totalorder %s219, %s222
    %p231 = scmp.eq.s32.totalorder %s20, 1
    %p232 = por %p230, %p231
    %p233 = scmp.ne.s32.totalorder %s222, %s223
    %p234 = scmp.eq.s32.totalorder %s20, 0
    %p235 = por %p233, %p234
    %p236 = scmp.ne.s32.totalorder %s222, %s223
    %p237 = scmp.eq.s32.totalorder %s21, 1
    %p238 = por %p236, %p237
    %p240 = scmp.ne.s32.totalorder %s223, %s239
    %p241 = scmp.eq.s32.totalorder %s21, 0
    %p242 = por %p240, %p241
    %p243 = scmp.le.s32.totalorder 1, %s15
    %p244 = scmp.lt.s32.totalorder %s15, 3
    %p245 = pnand %p243, %p244
    %p246 = pneg %p245
    // Predicated region
    $region9: #{netv1_forward.1} parent=5 // pred_check
      _
    $region10: #{netv1_forward.1} parent=5 // pred_check_branch
      %248 = sbr.rel (%p245) target = $region12
    $region11: #{netv1_forward.1} parent=5 // pred_region
      %s249 = ssub.s32 %s15, 1
      // Predicated region
      $region13: #{netv1_forward.1} parent=11 // pred_check
        %p250 = pneg %p62
      $region14: #{netv1_forward.1} parent=11 // pred_check_branch
        %252 = sbr.rel (%p250) target = $region16
      $region15: #{netv1_forward.1} parent=11 // pred_region
        _
      $region16: #{netv1_forward.1} parent=11 // pred_fallthru
        _
      // Predicated region
      $region17: #{netv1_forward.1} parent=11 // pred_check
        %p253 = pneg %p83
      $region18: #{netv1_forward.1} parent=11 // pred_check_branch
        %255 = sbr.rel (%p253) target = $region20
      $region19: #{netv1_forward.1} parent=11 // pred_region
        _
      $region20: #{netv1_forward.1} parent=11 // pred_fallthru
        _
      // Predicated region
      $region21: #{netv1_forward.1} parent=11 // pred_check
        %p256 = pneg %p104
      $region22: #{netv1_forward.1} parent=11 // pred_check_branch
        %258 = sbr.rel (%p256) target = $region24
      $region23: #{netv1_forward.1} parent=11 // pred_region
        _
      $region24: #{netv1_forward.1} parent=11 // pred_fallthru
        _
      // Predicated region
      $region25: #{netv1_forward.1} parent=11 // pred_check
        %p259 = pneg %p125
      $region26: #{netv1_forward.1} parent=11 // pred_check_branch
        %261 = sbr.rel (%p259) target = $region28
      $region27: #{netv1_forward.1} parent=11 // pred_region
        _
      $region28: #{netv1_forward.1} parent=11 // pred_fallthru
        _
      // Predicated region
      $region29: #{netv1_forward.1} parent=11 // pred_check
        %p262 = pneg %p146
      $region30: #{netv1_forward.1} parent=11 // pred_check_branch
        %264 = sbr.rel (%p262) target = $region32
      $region31: #{netv1_forward.1} parent=11 // pred_region
        _
      $region32: #{netv1_forward.1} parent=11 // pred_fallthru
        _
      // Predicated region
      $region33: #{netv1_forward.1} parent=11 // pred_check
        %p265 = pneg %p167
      $region34: #{netv1_forward.1} parent=11 // pred_check_branch
        %267 = sbr.rel (%p265) target = $region36
      $region35: #{netv1_forward.1} parent=11 // pred_region
        _
      $region36: #{netv1_forward.1} parent=11 // pred_fallthru
        _
      // Predicated region
      $region37: #{netv1_forward.1} parent=11 // pred_check
        %p268 = pneg %p188
      $region38: #{netv1_forward.1} parent=11 // pred_check_branch
        %270 = sbr.rel (%p268) target = $region40
      $region39: #{netv1_forward.1} parent=11 // pred_region
        _
      $region40: #{netv1_forward.1} parent=11 // pred_fallthru
        _
      // Predicated region
      $region41: #{netv1_forward.1} parent=11 // pred_check
        %p271 = pneg %p209
      $region42: #{netv1_forward.1} parent=11 // pred_check_branch
        %273 = sbr.rel (%p271) target = $region44
      $region43: #{netv1_forward.1} parent=11 // pred_region
        _
      $region44: #{netv1_forward.1} parent=11 // pred_fallthru
        _
    $region12: #{netv1_forward.1} parent=5 // pred_fallthru
      _
    %p274 = scmp.lt.s32.totalorder %s15, 2
    // Predicated region
    $region45: #{netv1_forward.1} parent=5 // pred_check
      %p275 = pneg %p274
    $region46: #{netv1_forward.1} parent=5 // pred_check_branch
      %277 = sbr.rel (%p275) target = $region48
    $region47: #{netv1_forward.1} parent=5 // pred_region
      // Predicated region
      $region49: #{netv1_forward.1} parent=47 // pred_check
        %p278 = pneg %p35
      $region50: #{netv1_forward.1} parent=47 // pred_check_branch
        %280 = sbr.rel (%p278) target = $region52
      $region51: #{netv1_forward.1} parent=47 // pred_region
        %p281 = scmp.lt.s32.totalorder %s15, 1
        %s282 = scalar_select %p281, %s15, 1
        %s283 = smul.addr %s282, 128
        %s284 = smul.addr %s283, 4
        %s285 = scalar_lea.vmem %s0, %s284
      $region52: #{netv1_forward.1} parent=47 // pred_fallthru
        _
    $region48: #{netv1_forward.1} parent=5 // pred_fallthru
      _
    %p286 = scmp.le.s32.totalorder 1, %s15
    %p287 = scmp.lt.s32.totalorder %s15, 3
    %p288 = pnand %p286, %p287
    %p289 = pneg %p288
    // Predicated region
    $region53: #{netv1_forward.1} parent=5 // pred_check
      _
    $region54: #{netv1_forward.1} parent=5 // pred_check_branch
      %291 = sbr.rel (%p288) target = $region56
    $region55: #{netv1_forward.1} parent=5 // pred_region
      %s292 = ssub.s32 %s15, 1
      %p293 = scmp.lt.s32.totalorder %s20, 1
      %s294 = scalar_select %p293, %s20, 1
      %s295 = smul.addr %s294, 128
      %s296 = smul.addr %s295, 4
      %s297 = scalar_lea.vmem %s0, %s296
      %p298 = pneg %p41
      %p299 = pneg %p38
      %p300 = pneg %p62
      %p301 = pneg %p59
      %p302 = pneg %p83
      %p303 = pneg %p80
      %p304 = pneg %p104
      %p305 = pneg %p101
      %p306 = pneg %p125
      %p307 = pneg %p122
      %p308 = pneg %p146
      %p309 = pneg %p143
      %p310 = pneg %p167
      %p311 = pneg %p164
      %p312 = pneg %p188
      %p313 = pneg %p185
      %p314 = pneg %p209
      %p315 = pneg %p206
      %p316 = pneg %p235
      %p317 = pneg %p232
      %p318 = scmp.lt.s32.totalorder %s20, 1
      %s319 = scalar_select %p318, %s20, 1
      %s320 = smul.addr %s319, 8
      %s321 = scalar_lea.vmem %s9, %s320
      %p322 = scmp.lt.s32.totalorder %s20, 1
      %s323 = scalar_select %p322, %s20, 1
      %s324 = smul.addr %s323, 128
      %s325 = smul.addr %s324, 4
      %s326 = scalar_lea.vmem %s0, %s325
      %p327 = scmp.lt.s32.totalorder %s20, 1
      %s328 = scalar_select %p327, %s20, 1
      %s329 = smul.addr %s328, 8
      %s330 = scalar_lea.vmem %s9, %s329
      %332 = vst [vmem:[#allocation2] sm:$0xff] 0.0
      %333 = vst [vmem:[#allocation2 + $0x8] sm:$0xff] 0.0
      %334 = vst [vmem:[#allocation2 + $0x10] sm:$0xff] 0.0
      %335 = vst [vmem:[#allocation2 + $0x18] sm:$0xff] 0.0
      %336 = vst [vmem:[#allocation2 + $0x20] sm:$0x3] 0.0
      %s337 = scalar_lea.vmem [#allocation2], 1320
      %338 = vst [vmem:[%s337] sm:$0xff] 0.0
      %339 = vst [vmem:[%s337 + $0x8] sm:$0xff] 0.0
      %340 = vst [vmem:[%s337 + $0x10] sm:$0xff] 0.0
      %341 = vst [vmem:[%s337 + $0x18] sm:$0xff] 0.0
      %342 = vst [vmem:[%s337 + $0x20] sm:$0x3] 0.0
      %343 = vst [vmem:[#allocation2] sm:$0x1] 0.0
      %344 = vst [vmem:[#allocation2 + $0x28] sm:$0x1] 0.0
      %345 = vst [vmem:[#allocation2 + $0x50] sm:$0x1] 0.0
      %346 = vst [vmem:[#allocation2 + $0x78] sm:$0x1] 0.0
      %347 = vst [vmem:[#allocation2 + $0xa0] sm:$0x1] 0.0
      %348 = vst [vmem:[#allocation2 + $0xc8] sm:$0x1] 0.0
      %349 = vst [vmem:[#allocation2 + $0xf0] sm:$0x1] 0.0
      %350 = vst [vmem:[#allocation2 + $0x118] sm:$0x1] 0.0
      %351 = vst [vmem:[#allocation2 + $0x140] sm:$0x1] 0.0
      %352 = vst [vmem:[#allocation2 + $0x168] sm:$0x1] 0.0
      %353 = vst [vmem:[#allocation2 + $0x190] sm:$0x1] 0.0
      %354 = vst [vmem:[#allocation2 + $0x1b8] sm:$0x1] 0.0
      %355 = vst [vmem:[#allocation2 + $0x1e0] sm:$0x1] 0.0
      %356 = vst [vmem:[#allocation2 + $0x208] sm:$0x1] 0.0
      %357 = vst [vmem:[#allocation2 + $0x230] sm:$0x1] 0.0
      %358 = vst [vmem:[#allocation2 + $0x258] sm:$0x1] 0.0
      %359 = vst [vmem:[#allocation2 + $0x280] sm:$0x1] 0.0
      %360 = vst [vmem:[#allocation2 + $0x2a8] sm:$0x1] 0.0
      %361 = vst [vmem:[#allocation2 + $0x2d0] sm:$0x1] 0.0
      %362 = vst [vmem:[#allocation2 + $0x2f8] sm:$0x1] 0.0
      %363 = vst [vmem:[#allocation2 + $0x320] sm:$0x1] 0.0
      %364 = vst [vmem:[#allocation2 + $0x348] sm:$0x1] 0.0
      %365 = vst [vmem:[#allocation2 + $0x370] sm:$0x1] 0.0
      %366 = vst [vmem:[#allocation2 + $0x398] sm:$0x1] 0.0
      %367 = vst [vmem:[#allocation2 + $0x3c0] sm:$0x1] 0.0
      %368 = vst [vmem:[#allocation2 + $0x3e8] sm:$0x1] 0.0
      %369 = vst [vmem:[#allocation2 + $0x410] sm:$0x1] 0.0
      %370 = vst [vmem:[#allocation2 + $0x438] sm:$0x1] 0.0
      %371 = vst [vmem:[#allocation2 + $0x460] sm:$0x1] 0.0
      %372 = vst [vmem:[#allocation2 + $0x488] sm:$0x1] 0.0
      %373 = vst [vmem:[#allocation2 + $0x4b0] sm:$0x1] 0.0
      %374 = vst [vmem:[#allocation2 + $0x4d8] sm:$0x1] 0.0
      %375 = vst [vmem:[#allocation2 + $0x500] sm:$0x1] 0.0
      %376 = vst [vmem:[#allocation2 + $0x528] sm:$0x1] 0.0
      %377 = vst [vmem:[#allocation2 + $0x21] sm:$0x1] 0.0
      %378 = vst [vmem:[#allocation2 + $0x49] sm:$0x1] 0.0
      %379 = vst [vmem:[#allocation2 + $0x71] sm:$0x1] 0.0
      %380 = vst [vmem:[#allocation2 + $0x99] sm:$0x1] 0.0
      %381 = vst [vmem:[#allocation2 + $0xc1] sm:$0x1] 0.0
      %382 = vst [vmem:[#allocation2 + $0xe9] sm:$0x1] 0.0
      %383 = vst [vmem:[#allocation2 + $0x111] sm:$0x1] 0.0
      %384 = vst [vmem:[#allocation2 + $0x139] sm:$0x1] 0.0
      %385 = vst [vmem:[#allocation2 + $0x161] sm:$0x1] 0.0
      %386 = vst [vmem:[#allocation2 + $0x189] sm:$0x1] 0.0
      %387 = vst [vmem:[#allocation2 + $0x1b1] sm:$0x1] 0.0
      %388 = vst [vmem:[#allocation2 + $0x1d9] sm:$0x1] 0.0
      %389 = vst [vmem:[#allocation2 + $0x201] sm:$0x1] 0.0
      %390 = vst [vmem:[#allocation2 + $0x229] sm:$0x1] 0.0
      %391 = vst [vmem:[#allocation2 + $0x251] sm:$0x1] 0.0
      %392 = vst [vmem:[#allocation2 + $0x279] sm:$0x1] 0.0
      %393 = vst [vmem:[#allocation2 + $0x2a1] sm:$0x1] 0.0
      %394 = vst [vmem:[#allocation2 + $0x2c9] sm:$0x1] 0.0
      %395 = vst [vmem:[#allocation2 + $0x2f1] sm:$0x1] 0.0
      %396 = vst [vmem:[#allocation2 + $0x319] sm:$0x1] 0.0
      %397 = vst [vmem:[#allocation2 + $0x341] sm:$0x1] 0.0
      %398 = vst [vmem:[#allocation2 + $0x369] sm:$0x1] 0.0
      %399 = vst [vmem:[#allocation2 + $0x391] sm:$0x1] 0.0
      %400 = vst [vmem:[#allocation2 + $0x3b9] sm:$0x1] 0.0
      %401 = vst [vmem:[#allocation2 + $0x3e1] sm:$0x1] 0.0
      %402 = vst [vmem:[#allocation2 + $0x409] sm:$0x1] 0.0
      %403 = vst [vmem:[#allocation2 + $0x431] sm:$0x1] 0.0
      %404 = vst [vmem:[#allocation2 + $0x459] sm:$0x1] 0.0
      %405 = vst [vmem:[#allocation2 + $0x481] sm:$0x1] 0.0
      %406 = vst [vmem:[#allocation2 + $0x4a9] sm:$0x1] 0.0
      %407 = vst [vmem:[#allocation2 + $0x4d1] sm:$0x1] 0.0
      %408 = vst [vmem:[#allocation2 + $0x4f9] sm:$0x1] 0.0
      %409 = vst [vmem:[#allocation2 + $0x521] sm:$0x1] 0.0
      %410 = vst [vmem:[#allocation2 + $0x549] sm:$0x1] 0.0
      %411 = vst [vmem:[#allocation3] sm:$0xff] 0.0
      %412 = vst [vmem:[#allocation3 + $0x8] sm:$0xff] 0.0
      %413 = vst [vmem:[#allocation3 + $0x10] sm:$0x3] 0.0
      %s414 = scalar_lea.vmem [#allocation3], 408
      %415 = vst [vmem:[%s414] sm:$0xff] 0.0
      %416 = vst [vmem:[%s414 + $0x8] sm:$0xff] 0.0
      %417 = vst [vmem:[%s414 + $0x10] sm:$0x3] 0.0
      %418 = vst [vmem:[#allocation3] sm:$0x1] 0.0
      %419 = vst [vmem:[#allocation3 + $0x18] sm:$0x1] 0.0
      %420 = vst [vmem:[#allocation3 + $0x30] sm:$0x1] 0.0
      %421 = vst [vmem:[#allocation3 + $0x48] sm:$0x1] 0.0
      %422 = vst [vmem:[#allocation3 + $0x60] sm:$0x1] 0.0
      %423 = vst [vmem:[#allocation3 + $0x78] sm:$0x1] 0.0
      %424 = vst [vmem:[#allocation3 + $0x90] sm:$0x1] 0.0
      %425 = vst [vmem:[#allocation3 + $0xa8] sm:$0x1] 0.0
      %426 = vst [vmem:[#allocation3 + $0xc0] sm:$0x1] 0.0
      %427 = vst [vmem:[#allocation3 + $0xd8] sm:$0x1] 0.0
      %428 = vst [vmem:[#allocation3 + $0xf0] sm:$0x1] 0.0
      %429 = vst [vmem:[#allocation3 + $0x108] sm:$0x1] 0.0
      %430 = vst [vmem:[#allocation3 + $0x120] sm:$0x1] 0.0
      %431 = vst [vmem:[#allocation3 + $0x138] sm:$0x1] 0.0
      %432 = vst [vmem:[#allocation3 + $0x150] sm:$0x1] 0.0
      %433 = vst [vmem:[#allocation3 + $0x168] sm:$0x1] 0.0
      %434 = vst [vmem:[#allocation3 + $0x180] sm:$0x1] 0.0
      %435 = vst [vmem:[#allocation3 + $0x198] sm:$0x1] 0.0
      %436 = vst [vmem:[#allocation3 + $0x11] sm:$0x1] 0.0
      %437 = vst [vmem:[#allocation3 + $0x29] sm:$0x1] 0.0
      %438 = vst [vmem:[#allocation3 + $0x41] sm:$0x1] 0.0
      %439 = vst [vmem:[#allocation3 + $0x59] sm:$0x1] 0.0
      %440 = vst [vmem:[#allocation3 + $0x71] sm:$0x1] 0.0
      %441 = vst [vmem:[#allocation3 + $0x89] sm:$0x1] 0.0
      %442 = vst [vmem:[#allocation3 + $0xa1] sm:$0x1] 0.0
      %443 = vst [vmem:[#allocation3 + $0xb9] sm:$0x1] 0.0
      %444 = vst [vmem:[#allocation3 + $0xd1] sm:$0x1] 0.0
      %445 = vst [vmem:[#allocation3 + $0xe9] sm:$0x1] 0.0
      %446 = vst [vmem:[#allocation3 + $0x101] sm:$0x1] 0.0
      %447 = vst [vmem:[#allocation3 + $0x119] sm:$0x1] 0.0
      %448 = vst [vmem:[#allocation3 + $0x131] sm:$0x1] 0.0
      %449 = vst [vmem:[#allocation3 + $0x149] sm:$0x1] 0.0
      %450 = vst [vmem:[#allocation3 + $0x161] sm:$0x1] 0.0
      %451 = vst [vmem:[#allocation3 + $0x179] sm:$0x1] 0.0
      %452 = vst [vmem:[#allocation3 + $0x191] sm:$0x1] 0.0
      %453 = vst [vmem:[#allocation3 + $0x1a9] sm:$0x1] 0.0
      %v454 = vld [vmem:[%s326] sm:$0xf]
      %v455 = vld [vmem:[%s326 + $0x4] sm:$0xf]
      %v456 = vld [vmem:[%s326 + $0x8] sm:$0xf]
      %v457 = vld [vmem:[%s326 + $0xc] sm:$0xf]
      %v458 = vld [vmem:[%s326 + $0x10] sm:$0xf]
      %v459 = vld [vmem:[%s326 + $0x14] sm:$0xf]
      %v460 = vld [vmem:[%s326 + $0x18] sm:$0xf]
      %v461 = vld [vmem:[%s326 + $0x1c] sm:$0xf]
      %v462 = vld [vmem:[%s326 + $0x20] sm:$0xf]
      %v463 = vld [vmem:[%s326 + $0x24] sm:$0xf]
      %v464 = vld [vmem:[%s326 + $0x28] sm:$0xf]
      %v465 = vld [vmem:[%s326 + $0x2c] sm:$0xf]
      %v466 = vld [vmem:[%s326 + $0x30] sm:$0xf]
      %v467 = vld [vmem:[%s326 + $0x34] sm:$0xf]
      %v468 = vld [vmem:[%s326 + $0x38] sm:$0xf]
      %v469 = vld [vmem:[%s326 + $0x3c] sm:$0xf]
      %v470 = vld [vmem:[%s326 + $0x40] sm:$0xf]
      %v471 = vld [vmem:[%s326 + $0x44] sm:$0xf]
      %v472 = vld [vmem:[%s326 + $0x48] sm:$0xf]
      %v473 = vld [vmem:[%s326 + $0x4c] sm:$0xf]
      %v474 = vld [vmem:[%s326 + $0x50] sm:$0xf]
      %v475 = vld [vmem:[%s326 + $0x54] sm:$0xf]
      %v476 = vld [vmem:[%s326 + $0x58] sm:$0xf]
      %v477 = vld [vmem:[%s326 + $0x5c] sm:$0xf]
      %v478 = vld [vmem:[%s326 + $0x60] sm:$0xf]
      %v479 = vld [vmem:[%s326 + $0x64] sm:$0xf]
      %v480 = vld [vmem:[%s326 + $0x68] sm:$0xf]
      %v481 = vld [vmem:[%s326 + $0x6c] sm:$0xf]
      %v482 = vld [vmem:[%s326 + $0x70] sm:$0xf]
      %v483 = vld [vmem:[%s326 + $0x74] sm:$0xf]
      %v484 = vld [vmem:[%s326 + $0x78] sm:$0xf]
      %v485 = vld [vmem:[%s326 + $0x7c] sm:$0xf]
      %v486 = vld [vmem:[%s326 + $0x80] sm:$0xf]
      %v487 = vld [vmem:[%s326 + $0x84] sm:$0xf]
      %v488 = vld [vmem:[%s326 + $0x88] sm:$0xf]
      %v489 = vld [vmem:[%s326 + $0x8c] sm:$0xf]
      %v490 = vld [vmem:[%s326 + $0x90] sm:$0xf]
      %v491 = vld [vmem:[%s326 + $0x94] sm:$0xf]
      %v492 = vld [vmem:[%s326 + $0x98] sm:$0xf]
      %v493 = vld [vmem:[%s326 + $0x9c] sm:$0xf]
      %v494 = vld [vmem:[%s326 + $0xa0] sm:$0xf]
      %v495 = vld [vmem:[%s326 + $0xa4] sm:$0xf]
      %v496 = vld [vmem:[%s326 + $0xa8] sm:$0xf]
      %v497 = vld [vmem:[%s326 + $0xac] sm:$0xf]
      %v498 = vld [vmem:[%s326 + $0xb0] sm:$0xf]
      %v499 = vld [vmem:[%s326 + $0xb4] sm:$0xf]
      %v500 = vld [vmem:[%s326 + $0xb8] sm:$0xf]
      %v501 = vld [vmem:[%s326 + $0xbc] sm:$0xf]
      %v502 = vld [vmem:[%s326 + $0xc0] sm:$0xf]
      %v503 = vld [vmem:[%s326 + $0xc4] sm:$0xf]
      %v504 = vld [vmem:[%s326 + $0xc8] sm:$0xf]
      %v505 = vld [vmem:[%s326 + $0xcc] sm:$0xf]
      %v506 = vld [vmem:[%s326 + $0xd0] sm:$0xf]
      %v507 = vld [vmem:[%s326 + $0xd4] sm:$0xf]
      %v508 = vld [vmem:[%s326 + $0xd8] sm:$0xf]
      %v509 = vld [vmem:[%s326 + $0xdc] sm:$0xf]
      %v510 = vld [vmem:[%s326 + $0xe0] sm:$0xf]
      %v511 = vld [vmem:[%s326 + $0xe4] sm:$0xf]
      %v512 = vld [vmem:[%s326 + $0xe8] sm:$0xf]
      %v513 = vld [vmem:[%s326 + $0xec] sm:$0xf]
      %v514 = vld [vmem:[%s326 + $0xf0] sm:$0xf]
      %v515 = vld [vmem:[%s326 + $0xf4] sm:$0xf]
      %v516 = vld [vmem:[%s326 + $0xf8] sm:$0xf]
      %v517 = vld [vmem:[%s326 + $0xfc] sm:$0xf]
      %v518 = vld [vmem:[%s326 + $0x100] sm:$0xf]
      %v519 = vld [vmem:[%s326 + $0x104] sm:$0xf]
      %v520 = vld [vmem:[%s326 + $0x108] sm:$0xf]
      %v521 = vld [vmem:[%s326 + $0x10c] sm:$0xf]
      %v522 = vld [vmem:[%s326 + $0x110] sm:$0xf]
      %v523 = vld [vmem:[%s326 + $0x114] sm:$0xf]
      %v524 = vld [vmem:[%s326 + $0x118] sm:$0xf]
      %v525 = vld [vmem:[%s326 + $0x11c] sm:$0xf]
      %v526 = vld [vmem:[%s326 + $0x120] sm:$0xf]
      %v527 = vld [vmem:[%s326 + $0x124] sm:$0xf]
      %v528 = vld [vmem:[%s326 + $0x128] sm:$0xf]
      %v529 = vld [vmem:[%s326 + $0x12c] sm:$0xf]
      %v530 = vld [vmem:[%s326 + $0x130] sm:$0xf]
      %v531 = vld [vmem:[%s326 + $0x134] sm:$0xf]
      %v532 = vld [vmem:[%s326 + $0x138] sm:$0xf]
      %v533 = vld [vmem:[%s326 + $0x13c] sm:$0xf]
      %v534 = vld [vmem:[%s326 + $0x140] sm:$0xf]
      %v535 = vld [vmem:[%s326 + $0x144] sm:$0xf]
      %v536 = vld [vmem:[%s326 + $0x148] sm:$0xf]
      %v537 = vld [vmem:[%s326 + $0x14c] sm:$0xf]
      %v538 = vld [vmem:[%s326 + $0x150] sm:$0xf]
      %v539 = vld [vmem:[%s326 + $0x154] sm:$0xf]
      %v540 = vld [vmem:[%s326 + $0x158] sm:$0xf]
      %v541 = vld [vmem:[%s326 + $0x15c] sm:$0xf]
      %v542 = vld [vmem:[%s326 + $0x160] sm:$0xf]
      %v543 = vld [vmem:[%s326 + $0x164] sm:$0xf]
      %v544 = vld [vmem:[%s326 + $0x168] sm:$0xf]
      %v545 = vld [vmem:[%s326 + $0x16c] sm:$0xf]
      %v546 = vld [vmem:[%s326 + $0x170] sm:$0xf]
      %v547 = vld [vmem:[%s326 + $0x174] sm:$0xf]
      %v548 = vld [vmem:[%s326 + $0x178] sm:$0xf]
      %v549 = vld [vmem:[%s326 + $0x17c] sm:$0xf]
      %v550 = vld [vmem:[%s326 + $0x180] sm:$0xf]
      %v551 = vld [vmem:[%s326 + $0x184] sm:$0xf]
      %v552 = vld [vmem:[%s326 + $0x188] sm:$0xf]
      %v553 = vld [vmem:[%s326 + $0x18c] sm:$0xf]
      %v554 = vld [vmem:[%s326 + $0x190] sm:$0xf]
      %v555 = vld [vmem:[%s326 + $0x194] sm:$0xf]
      %v556 = vld [vmem:[%s326 + $0x198] sm:$0xf]
      %v557 = vld [vmem:[%s326 + $0x19c] sm:$0xf]
      %v558 = vld [vmem:[%s326 + $0x1a0] sm:$0xf]
      %v559 = vld [vmem:[%s326 + $0x1a4] sm:$0xf]
      %v560 = vld [vmem:[%s326 + $0x1a8] sm:$0xf]
      %v561 = vld [vmem:[%s326 + $0x1ac] sm:$0xf]
      %v562 = vld [vmem:[%s326 + $0x1b0] sm:$0xf]
      %v563 = vld [vmem:[%s326 + $0x1b4] sm:$0xf]
      %v564 = vld [vmem:[%s326 + $0x1b8] sm:$0xf]
      %v565 = vld [vmem:[%s326 + $0x1bc] sm:$0xf]
      %v566 = vld [vmem:[%s326 + $0x1c0] sm:$0xf]
      %v567 = vld [vmem:[%s326 + $0x1c4] sm:$0xf]
      %v568 = vld [vmem:[%s326 + $0x1c8] sm:$0xf]
      %v569 = vld [vmem:[%s326 + $0x1cc] sm:$0xf]
      %v570 = vld [vmem:[%s326 + $0x1d0] sm:$0xf]
      %v571 = vld [vmem:[%s326 + $0x1d4] sm:$0xf]
      %v572 = vld [vmem:[%s326 + $0x1d8] sm:$0xf]
      %v573 = vld [vmem:[%s326 + $0x1dc] sm:$0xf]
      %v574 = vld [vmem:[%s326 + $0x1e0] sm:$0xf]
      %v575 = vld [vmem:[%s326 + $0x1e4] sm:$0xf]
      %v576 = vld [vmem:[%s326 + $0x1e8] sm:$0xf]
      %v577 = vld [vmem:[%s326 + $0x1ec] sm:$0xf]
      %v578 = vld [vmem:[%s326 + $0x1f0] sm:$0xf]
      %v579 = vld [vmem:[%s326 + $0x1f4] sm:$0xf]
      %v580 = vld [vmem:[%s326 + $0x1f8] sm:$0xf]
      %v581 = vld [vmem:[%s326 + $0x1fc] sm:$0xf]
      %v582 = vld [vmem:[%s1] sm:$0xf]
      %v583 = vld [vmem:[%s1 + $0x4] sm:$0xf]
      %v584 = vld [vmem:[%s1 + $0x8] sm:$0xf]
      %v585 = vld [vmem:[%s1 + $0xc] sm:$0xf]
      %v586 = vld [vmem:[%s2] sm:$0x1]
      %v588 = vlaneseq
      %v589 = vshrl.u32 %v588, 7
      %v590 = vsub.s32 0, %v589
      %v591 = vrot.slane %v586, %v590
      %v721 = vunpack.c.l.b16 %v454
      %v722 = vunpack.c.l.b16 %v455
      %v723 = vunpack.c.l.b16 %v456
      %v724 = vunpack.c.l.b16 %v457
      %v725 = vunpack.c.l.b16 %v458
      %v726 = vunpack.c.l.b16 %v459
      %v727 = vunpack.c.l.b16 %v460
      %v728 = vunpack.c.l.b16 %v461
      %v729 = vunpack.c.l.b16 %v462
      %v730 = vunpack.c.l.b16 %v463
      %v731 = vunpack.c.l.b16 %v464
      %v732 = vunpack.c.l.b16 %v465
      %v733 = vunpack.c.l.b16 %v466
      %v734 = vunpack.c.l.b16 %v467
      %v735 = vunpack.c.l.b16 %v468
      %v736 = vunpack.c.l.b16 %v469
      %v737 = vunpack.c.l.b16 %v470
      %v738 = vunpack.c.l.b16 %v471
      %v739 = vunpack.c.l.b16 %v472
      %v740 = vunpack.c.l.b16 %v473
      %v741 = vunpack.c.l.b16 %v474
      %v742 = vunpack.c.l.b16 %v475
      %v743 = vunpack.c.l.b16 %v476
      %v744 = vunpack.c.l.b16 %v477
      %v745 = vunpack.c.l.b16 %v478
      %v746 = vunpack.c.l.b16 %v479
      %v747 = vunpack.c.l.b16 %v480
      %v748 = vunpack.c.l.b16 %v481
      %v749 = vunpack.c.l.b16 %v482
      %v750 = vunpack.c.l.b16 %v483
      %v751 = vunpack.c.l.b16 %v484
      %v752 = vunpack.c.l.b16 %v485
      %v753 = vunpack.c.l.b16 %v486
      %v754 = vunpack.c.l.b16 %v487
      %v755 = vunpack.c.l.b16 %v488
      %v756 = vunpack.c.l.b16 %v489
      %v757 = vunpack.c.l.b16 %v490
      %v758 = vunpack.c.l.b16 %v491
      %v759 = vunpack.c.l.b16 %v492
      %v760 = vunpack.c.l.b16 %v493
      %v761 = vunpack.c.l.b16 %v494
      %v762 = vunpack.c.l.b16 %v495
      %v763 = vunpack.c.l.b16 %v496
      %v764 = vunpack.c.l.b16 %v497
      %v765 = vunpack.c.l.b16 %v498
      %v766 = vunpack.c.l.b16 %v499
      %v767 = vunpack.c.l.b16 %v500
      %v768 = vunpack.c.l.b16 %v501
      %v769 = vunpack.c.l.b16 %v502
      %v770 = vunpack.c.l.b16 %v503
      %v771 = vunpack.c.l.b16 %v504
      %v772 = vunpack.c.l.b16 %v505
      %v773 = vunpack.c.l.b16 %v506
      %v774 = vunpack.c.l.b16 %v507
      %v775 = vunpack.c.l.b16 %v508
      %v776 = vunpack.c.l.b16 %v509
      %v777 = vunpack.c.l.b16 %v510
      %v778 = vunpack.c.l.b16 %v511
      %v779 = vunpack.c.l.b16 %v512
      %v780 = vunpack.c.l.b16 %v513
      %v781 = vunpack.c.l.b16 %v514
      %v782 = vunpack.c.l.b16 %v515
      %v783 = vunpack.c.l.b16 %v516
      %v784 = vunpack.c.l.b16 %v517
      %v785 = vunpack.c.l.b16 %v518
      %v786 = vunpack.c.l.b16 %v519
      %v787 = vunpack.c.l.b16 %v520
      %v788 = vunpack.c.l.b16 %v521
      %v789 = vunpack.c.l.b16 %v522
      %v790 = vunpack.c.l.b16 %v523
      %v791 = vunpack.c.l.b16 %v524
      %v792 = vunpack.c.l.b16 %v525
      %v793 = vunpack.c.l.b16 %v526
      %v794 = vunpack.c.l.b16 %v527
      %v795 = vunpack.c.l.b16 %v528
      %v796 = vunpack.c.l.b16 %v529
      %v797 = vunpack.c.l.b16 %v530
      %v798 = vunpack.c.l.b16 %v531
      %v799 = vunpack.c.l.b16 %v532
      %v800 = vunpack.c.l.b16 %v533
      %v801 = vunpack.c.l.b16 %v534
      %v802 = vunpack.c.l.b16 %v535
      %v803 = vunpack.c.l.b16 %v536
      %v804 = vunpack.c.l.b16 %v537
      %v805 = vunpack.c.l.b16 %v538
      %v806 = vunpack.c.l.b16 %v539
      %v807 = vunpack.c.l.b16 %v540
      %v808 = vunpack.c.l.b16 %v541
      %v809 = vunpack.c.l.b16 %v542
      %v810 = vunpack.c.l.b16 %v543
      %v811 = vunpack.c.l.b16 %v544
      %v812 = vunpack.c.l.b16 %v545
      %v813 = vunpack.c.l.b16 %v546
      %v814 = vunpack.c.l.b16 %v547
      %v815 = vunpack.c.l.b16 %v548
      %v816 = vunpack.c.l.b16 %v549
      %v817 = vunpack.c.l.b16 %v550
      %v818 = vunpack.c.l.b16 %v551
      %v819 = vunpack.c.l.b16 %v552
      %v820 = vunpack.c.l.b16 %v553
      %v821 = vunpack.c.l.b16 %v554
      %v822 = vunpack.c.l.b16 %v555
      %v823 = vunpack.c.l.b16 %v556
      %v824 = vunpack.c.l.b16 %v557
      %v825 = vunpack.c.l.b16 %v558
      %v826 = vunpack.c.l.b16 %v559
      %v827 = vunpack.c.l.b16 %v560
      %v828 = vunpack.c.l.b16 %v561
      %v829 = vunpack.c.l.b16 %v562
      %v830 = vunpack.c.l.b16 %v563
      %v831 = vunpack.c.l.b16 %v564
      %v832 = vunpack.c.l.b16 %v565
      %v833 = vunpack.c.l.b16 %v566
      %v834 = vunpack.c.l.b16 %v567
      %v835 = vunpack.c.l.b16 %v568
      %v836 = vunpack.c.l.b16 %v569
      %v837 = vunpack.c.l.b16 %v570
      %v838 = vunpack.c.l.b16 %v571
      %v839 = vunpack.c.l.b16 %v572
      %v840 = vunpack.c.l.b16 %v573
      %v841 = vunpack.c.l.b16 %v574
      %v842 = vunpack.c.l.b16 %v575
      %v843 = vunpack.c.l.b16 %v576
      %v844 = vunpack.c.l.b16 %v577
      %v845 = vunpack.c.l.b16 %v578
      %v846 = vunpack.c.l.b16 %v579
      %v847 = vunpack.c.l.b16 %v580
      %v848 = vunpack.c.l.b16 %v581
      %v849 = vpack.c.b16 %v722, %v721
      %v850 = vpack.c.b16 %v724, %v723
      %v851 = vpack.c.b16 %v726, %v725
      %v852 = vpack.c.b16 %v728, %v727
      %v853 = vpack.c.b16 %v730, %v729
      %v854 = vpack.c.b16 %v732, %v731
      %v855 = vpack.c.b16 %v734, %v733
      %v856 = vpack.c.b16 %v736, %v735
      %v857 = vpack.c.b16 %v738, %v737
      %v858 = vpack.c.b16 %v740, %v739
      %v859 = vpack.c.b16 %v742, %v741
      %v860 = vpack.c.b16 %v744, %v743
      %v861 = vpack.c.b16 %v746, %v745
      %v862 = vpack.c.b16 %v748, %v747
      %v863 = vpack.c.b16 %v750, %v749
      %v864 = vpack.c.b16 %v752, %v751
      %v865 = vpack.c.b16 %v754, %v753
      %v866 = vpack.c.b16 %v756, %v755
      %v867 = vpack.c.b16 %v758, %v757
      %v868 = vpack.c.b16 %v760, %v759
      %v869 = vpack.c.b16 %v762, %v761
      %v870 = vpack.c.b16 %v764, %v763
      %v871 = vpack.c.b16 %v766, %v765
      %v872 = vpack.c.b16 %v768, %v767
      %v873 = vpack.c.b16 %v770, %v769
      %v874 = vpack.c.b16 %v772, %v771
      %v875 = vpack.c.b16 %v774, %v773
      %v876 = vpack.c.b16 %v776, %v775
      %v877 = vpack.c.b16 %v778, %v777
      %v878 = vpack.c.b16 %v780, %v779
      %v879 = vpack.c.b16 %v782, %v781
      %v880 = vpack.c.b16 %v784, %v783
      %v881 = vpack.c.b16 %v786, %v785
      %v882 = vpack.c.b16 %v788, %v787
      %v883 = vpack.c.b16 %v790, %v789
      %v884 = vpack.c.b16 %v792, %v791
      %v885 = vpack.c.b16 %v794, %v793
      %v886 = vpack.c.b16 %v796, %v795
      %v887 = vpack.c.b16 %v798, %v797
      %v888 = vpack.c.b16 %v800, %v799
      %v889 = vpack.c.b16 %v802, %v801
      %v890 = vpack.c.b16 %v804, %v803
      %v891 = vpack.c.b16 %v806, %v805
      %v892 = vpack.c.b16 %v808, %v807
      %v893 = vpack.c.b16 %v810, %v809
      %v894 = vpack.c.b16 %v812, %v811
      %v895 = vpack.c.b16 %v814, %v813
      %v896 = vpack.c.b16 %v816, %v815
      %v897 = vpack.c.b16 %v818, %v817
      %v898 = vpack.c.b16 %v820, %v819
      %v899 = vpack.c.b16 %v822, %v821
      %v900 = vpack.c.b16 %v824, %v823
      %v901 = vpack.c.b16 %v826, %v825
      %v902 = vpack.c.b16 %v828, %v827
      %v903 = vpack.c.b16 %v830, %v829
      %v904 = vpack.c.b16 %v832, %v831
      %v905 = vpack.c.b16 %v834, %v833
      %v906 = vpack.c.b16 %v836, %v835
      %v907 = vpack.c.b16 %v838, %v837
      %v908 = vpack.c.b16 %v840, %v839
      %v909 = vpack.c.b16 %v842, %v841
      %v910 = vpack.c.b16 %v844, %v843
      %v911 = vpack.c.b16 %v846, %v845
      %v912 = vpack.c.b16 %v848, %v847
      %v917 = vunpack.c.l.b16 %v582
      %v918 = vunpack.c.l.b16 %v583
      %v919 = vunpack.c.l.b16 %v584
      %v920 = vunpack.c.l.b16 %v585
      %v921 = vpack.c.b16 %v918, %v917
      %v922 = vpack.c.b16 %v920, %v919
      %vm925 = vcmask 261120
      %v927 = vsel %vm925, %v849, 0
      %v930 = vsel %vm925, %v850, 0
      %v933 = vsel %vm925, %v851, 0
      %v936 = vsel %vm925, %v852, 0
      %v939 = vsel %vm925, %v853, 0
      %v942 = vsel %vm925, %v854, 0
      %v945 = vsel %vm925, %v855, 0
      %v948 = vsel %vm925, %v856, 0
      %v951 = vsel %vm925, %v857, 0
      %v954 = vsel %vm925, %v858, 0
      %v957 = vsel %vm925, %v859, 0
      %v960 = vsel %vm925, %v860, 0
      %v963 = vsel %vm925, %v861, 0
      %v966 = vsel %vm925, %v862, 0
      %v969 = vsel %vm925, %v863, 0
      %v972 = vsel %vm925, %v864, 0
      %v975 = vsel %vm925, %v865, 0
      %v978 = vsel %vm925, %v866, 0
      %v981 = vsel %vm925, %v867, 0
      %v984 = vsel %vm925, %v868, 0
      %v987 = vsel %vm925, %v869, 0
      %v990 = vsel %vm925, %v870, 0
      %v993 = vsel %vm925, %v871, 0
      %v996 = vsel %vm925, %v872, 0
      %v999 = vsel %vm925, %v873, 0
      %v1002 = vsel %vm925, %v874, 0
      %v1005 = vsel %vm925, %v875, 0
      %v1008 = vsel %vm925, %v876, 0
      %v1011 = vsel %vm925, %v877, 0
      %v1014 = vsel %vm925, %v878, 0
      %v1017 = vsel %vm925, %v879, 0
      %v1020 = vsel %vm925, %v880, 0
      %v1023 = vsel %vm925, %v881, 0
      %v1026 = vsel %vm925, %v882, 0
      %v1029 = vsel %vm925, %v883, 0
      %v1032 = vsel %vm925, %v884, 0
      %v1035 = vsel %vm925, %v885, 0
      %v1038 = vsel %vm925, %v886, 0
      %v1041 = vsel %vm925, %v887, 0
      %v1044 = vsel %vm925, %v888, 0
      %v1047 = vsel %vm925, %v889, 0
      %v1050 = vsel %vm925, %v890, 0
      %v1053 = vsel %vm925, %v891, 0
      %v1056 = vsel %vm925, %v892, 0
      %v1059 = vsel %vm925, %v893, 0
      %v1062 = vsel %vm925, %v894, 0
      %v1065 = vsel %vm925, %v895, 0
      %v1068 = vsel %vm925, %v896, 0
      %v1071 = vsel %vm925, %v897, 0
      %v1074 = vsel %vm925, %v898, 0
      %v1077 = vsel %vm925, %v899, 0
      %v1080 = vsel %vm925, %v900, 0
      %v1083 = vsel %vm925, %v901, 0
      %v1086 = vsel %vm925, %v902, 0
      %v1089 = vsel %vm925, %v903, 0
      %v1092 = vsel %vm925, %v904, 0
      %v1095 = vsel %vm925, %v905, 0
      %v1098 = vsel %vm925, %v906, 0
      %v1101 = vsel %vm925, %v907, 0
      %v1104 = vsel %vm925, %v908, 0
      %v1107 = vsel %vm925, %v909, 0
      %v1110 = vsel %vm925, %v910, 0
      %v1113 = vsel %vm925, %v911, 0
      %v1116 = vsel %vm925, %v912, 0
      %1118 = vmatprep.subr.bf16.mxu0 0
      %1119 = vmatpush1.bf16.msra.mxu0 0
      %1120 = vmatprep.subr.bf16.mxu0 0
      %1121 = vmatpush1.bf16.msra.mxu0 0
      %1122 = vmatprep.subr.bf16.mxu0 0
      %1123 = vmatpush1.bf16.msra.mxu0 0
      %1124 = vmatprep.subr.bf16.mxu0 0
      %1125 = vmatpush1.bf16.msra.mxu0 0
      %1126 = vmatprep.subr.bf16.mxu0 0
      %1127 = vmatpush1.bf16.msra.mxu0 0
      %1128 = vmatprep.subr.bf16.mxu0 0
      %1129 = vmatpush1.bf16.msra.mxu0 0
      %1130 = vmatprep.subr.bf16.mxu0 0
      %1131 = vmatpush1.bf16.msra.mxu0 %v922
      %1132 = vmatprep.subr.bf16.mxu0 0
      %1133 = vmatpush1.bf16.msra.mxu0 %v921
      %1134 = vmatprep.subr.bf16.mxu0 0
      %1135 = vmatpush2.bf16.msra.mxu0 0
      %1136 = vmatprep.subr.bf16.mxu0 0
      %1137 = vmatpush2.bf16.msra.mxu0 0
      %1138 = vmatprep.subr.bf16.mxu0 0
      %1139 = vmatpush2.bf16.msra.mxu0 0
      %1140 = vmatprep.subr.bf16.mxu0 0
      %1141 = vmatpush2.bf16.msra.mxu0 0
      %1142 = vmatprep.subr.bf16.mxu0 0
      %1143 = vmatpush2.bf16.msra.mxu0 0
      %1144 = vmatprep.subr.bf16.mxu0 0
      %1145 = vmatpush2.bf16.msra.mxu0 0
      %1146 = vmatprep.subr.bf16.mxu0 0
      %1147 = vmatpush2.bf16.msra.mxu0 0
      %1148 = vmatprep.subr.bf16.mxu0 0
      %1149 = vmatpush2.bf16.msra.mxu0 0
      %1150 = vmatprep.mubr.bf16.mxu0 0
      %1151 = vmatmul.mubr.bf16.gmra.mxu0 %v927
      %v1152 = vpop.f32.mrf.mxu0
      %v1153 = vadd.f32 %v591, %v1152
      %v1154 = vpop.f32.mrf.mxu0
      %v1155 = vpop.f32.mrf.mxu0
      %v1156 = vadd.f32 %v591, %v1155
      %v1157 = vpop.f32.mrf.mxu0
      %1158 = vmatprep.mubr.bf16.mxu0 0
      %1159 = vmatmul.mubr.bf16.gmra.mxu0 %v930
      %v1160 = vpop.f32.mrf.mxu0
      %v1161 = vadd.f32 %v591, %v1160
      %v1162 = vpop.f32.mrf.mxu0
      %v1163 = vpop.f32.mrf.mxu0
      %v1164 = vadd.f32 %v591, %v1163
      %v1165 = vpop.f32.mrf.mxu0
      %1166 = vmatprep.mubr.bf16.mxu0 0
      %1167 = vmatmul.mubr.bf16.gmra.mxu0 %v933
      %v1168 = vpop.f32.mrf.mxu0
      %v1169 = vadd.f32 %v591, %v1168
      %v1170 = vpop.f32.mrf.mxu0
      %v1171 = vpop.f32.mrf.mxu0
      %v1172 = vadd.f32 %v591, %v1171
      %v1173 = vpop.f32.mrf.mxu0
      %1174 = vmatprep.mubr.bf16.mxu0 0
      %1175 = vmatmul.mubr.bf16.gmra.mxu0 %v936
      %v1176 = vpop.f32.mrf.mxu0
      %v1177 = vadd.f32 %v591, %v1176
      %v1178 = vpop.f32.mrf.mxu0
      %v1179 = vpop.f32.mrf.mxu0
      %v1180 = vadd.f32 %v591, %v1179
      %v1181 = vpop.f32.mrf.mxu0
      %1182 = vmatprep.mubr.bf16.mxu0 0
      %1183 = vmatmul.mubr.bf16.gmra.mxu0 %v939
      %v1184 = vpop.f32.mrf.mxu0
      %v1185 = vadd.f32 %v591, %v1184
      %v1186 = vpop.f32.mrf.mxu0
      %v1187 = vpop.f32.mrf.mxu0
      %v1188 = vadd.f32 %v591, %v1187
      %v1189 = vpop.f32.mrf.mxu0
      %1190 = vmatprep.mubr.bf16.mxu0 0
      %1191 = vmatmul.mubr.bf16.gmra.mxu0 %v942
      %v1192 = vpop.f32.mrf.mxu0
      %v1193 = vadd.f32 %v591, %v1192
      %v1194 = vpop.f32.mrf.mxu0
      %v1195 = vpop.f32.mrf.mxu0
      %v1196 = vadd.f32 %v591, %v1195
      %v1197 = vpop.f32.mrf.mxu0
      %1198 = vmatprep.mubr.bf16.mxu0 0
      %1199 = vmatmul.mubr.bf16.gmra.mxu0 %v945
      %v1200 = vpop.f32.mrf.mxu0
      %v1201 = vadd.f32 %v591, %v1200
      %v1202 = vpop.f32.mrf.mxu0
      %v1203 = vpop.f32.mrf.mxu0
      %v1204 = vadd.f32 %v591, %v1203
      %v1205 = vpop.f32.mrf.mxu0
      %1206 = vmatprep.mubr.bf16.mxu0 0
      %1207 = vmatmul.mubr.bf16.gmra.mxu0 %v948
      %v1208 = vpop.f32.mrf.mxu0
      %v1209 = vadd.f32 %v591, %v1208
      %v1210 = vpop.f32.mrf.mxu0
      %v1211 = vpop.f32.mrf.mxu0
      %v1212 = vadd.f32 %v591, %v1211
      %v1213 = vpop.f32.mrf.mxu0
      %1214 = vmatprep.mubr.bf16.mxu0 0
      %1215 = vmatmul.mubr.bf16.gmra.mxu0 %v951
      %v1216 = vpop.f32.mrf.mxu0
      %v1217 = vadd.f32 %v591, %v1216
      %v1218 = vpop.f32.mrf.mxu0
      %v1219 = vpop.f32.mrf.mxu0
      %v1220 = vadd.f32 %v591, %v1219
      %v1221 = vpop.f32.mrf.mxu0
      %1222 = vmatprep.mubr.bf16.mxu0 0
      %1223 = vmatmul.mubr.bf16.gmra.mxu0 %v954
      %v1224 = vpop.f32.mrf.mxu0
      %v1225 = vadd.f32 %v591, %v1224
      %v1226 = vpop.f32.mrf.mxu0
      %v1227 = vpop.f32.mrf.mxu0
      %v1228 = vadd.f32 %v591, %v1227
      %v1229 = vpop.f32.mrf.mxu0
      %1230 = vmatprep.mubr.bf16.mxu0 0
      %1231 = vmatmul.mubr.bf16.gmra.mxu0 %v957
      %v1232 = vpop.f32.mrf.mxu0
      %v1233 = vadd.f32 %v591, %v1232
      %v1234 = vpop.f32.mrf.mxu0
      %v1235 = vpop.f32.mrf.mxu0
      %v1236 = vadd.f32 %v591, %v1235
      %v1237 = vpop.f32.mrf.mxu0
      %1238 = vmatprep.mubr.bf16.mxu0 0
      %1239 = vmatmul.mubr.bf16.gmra.mxu0 %v960
      %v1240 = vpop.f32.mrf.mxu0
      %v1241 = vadd.f32 %v591, %v1240
      %v1242 = vpop.f32.mrf.mxu0
      %v1243 = vpop.f32.mrf.mxu0
      %v1244 = vadd.f32 %v591, %v1243
      %v1245 = vpop.f32.mrf.mxu0
      %1246 = vmatprep.mubr.bf16.mxu0 0
      %1247 = vmatmul.mubr.bf16.gmra.mxu0 %v963
      %v1248 = vpop.f32.mrf.mxu0
      %v1249 = vadd.f32 %v591, %v1248
      %v1250 = vpop.f32.mrf.mxu0
      %v1251 = vpop.f32.mrf.mxu0
      %v1252 = vadd.f32 %v591, %v1251
      %v1253 = vpop.f32.mrf.mxu0
      %1254 = vmatprep.mubr.bf16.mxu0 0
      %1255 = vmatmul.mubr.bf16.gmra.mxu0 %v966
      %v1256 = vpop.f32.mrf.mxu0
      %v1257 = vadd.f32 %v591, %v1256
      %v1258 = vpop.f32.mrf.mxu0
      %v1259 = vpop.f32.mrf.mxu0
      %v1260 = vadd.f32 %v591, %v1259
      %v1261 = vpop.f32.mrf.mxu0
      %1262 = vmatprep.mubr.bf16.mxu0 0
      %1263 = vmatmul.mubr.bf16.gmra.mxu0 %v969
      %v1264 = vpop.f32.mrf.mxu0
      %v1265 = vadd.f32 %v591, %v1264
      %v1266 = vpop.f32.mrf.mxu0
      %v1267 = vpop.f32.mrf.mxu0
      %v1268 = vadd.f32 %v591, %v1267
      %v1269 = vpop.f32.mrf.mxu0
      %1270 = vmatprep.mubr.bf16.mxu0 0
      %1271 = vmatmul.mubr.bf16.gmra.mxu0 %v972
      %v1272 = vpop.f32.mrf.mxu0
      %v1273 = vadd.f32 %v591, %v1272
      %v1274 = vpop.f32.mrf.mxu0
      %v1275 = vpop.f32.mrf.mxu0
      %v1276 = vadd.f32 %v591, %v1275
      %v1277 = vpop.f32.mrf.mxu0
      %1278 = vmatprep.mubr.bf16.mxu0 0
      %1279 = vmatmul.mubr.bf16.gmra.mxu0 %v975
      %v1280 = vpop.f32.mrf.mxu0
      %v1281 = vadd.f32 %v591, %v1280
      %v1282 = vpop.f32.mrf.mxu0
      %v1283 = vpop.f32.mrf.mxu0
      %v1284 = vadd.f32 %v591, %v1283
      %v1285 = vpop.f32.mrf.mxu0
      %1286 = vmatprep.mubr.bf16.mxu0 0
      %1287 = vmatmul.mubr.bf16.gmra.mxu0 %v978
      %v1288 = vpop.f32.mrf.mxu0
      %v1289 = vadd.f32 %v591, %v1288
      %v1290 = vpop.f32.mrf.mxu0
      %v1291 = vpop.f32.mrf.mxu0
      %v1292 = vadd.f32 %v591, %v1291
      %v1293 = vpop.f32.mrf.mxu0
      %1294 = vmatprep.mubr.bf16.mxu0 0
      %1295 = vmatmul.mubr.bf16.gmra.mxu0 %v981
      %v1296 = vpop.f32.mrf.mxu0
      %v1297 = vadd.f32 %v591, %v1296
      %v1298 = vpop.f32.mrf.mxu0
      %v1299 = vpop.f32.mrf.mxu0
      %v1300 = vadd.f32 %v591, %v1299
      %v1301 = vpop.f32.mrf.mxu0
      %1302 = vmatprep.mubr.bf16.mxu0 0
      %1303 = vmatmul.mubr.bf16.gmra.mxu0 %v984
      %v1304 = vpop.f32.mrf.mxu0
      %v1305 = vadd.f32 %v591, %v1304
      %v1306 = vpop.f32.mrf.mxu0
      %v1307 = vpop.f32.mrf.mxu0
      %v1308 = vadd.f32 %v591, %v1307
      %v1309 = vpop.f32.mrf.mxu0
      %1310 = vmatprep.mubr.bf16.mxu0 0
      %1311 = vmatmul.mubr.bf16.gmra.mxu0 %v987
      %v1312 = vpop.f32.mrf.mxu0
      %v1313 = vadd.f32 %v591, %v1312
      %v1314 = vpop.f32.mrf.mxu0
      %v1315 = vpop.f32.mrf.mxu0
      %v1316 = vadd.f32 %v591, %v1315
      %v1317 = vpop.f32.mrf.mxu0
      %1318 = vmatprep.mubr.bf16.mxu0 0
      %1319 = vmatmul.mubr.bf16.gmra.mxu0 %v990
      %v1320 = vpop.f32.mrf.mxu0
      %v1321 = vadd.f32 %v591, %v1320
      %v1322 = vpop.f32.mrf.mxu0
      %v1323 = vpop.f32.mrf.mxu0
      %v1324 = vadd.f32 %v591, %v1323
      %v1325 = vpop.f32.mrf.mxu0
      %1326 = vmatprep.mubr.bf16.mxu0 0
      %1327 = vmatmul.mubr.bf16.gmra.mxu0 %v993
      %v1328 = vpop.f32.mrf.mxu0
      %v1329 = vadd.f32 %v591, %v1328
      %v1330 = vpop.f32.mrf.mxu0
      %v1331 = vpop.f32.mrf.mxu0
      %v1332 = vadd.f32 %v591, %v1331
      %v1333 = vpop.f32.mrf.mxu0
      %1334 = vmatprep.mubr.bf16.mxu0 0
      %1335 = vmatmul.mubr.bf16.gmra.mxu0 %v996
      %v1336 = vpop.f32.mrf.mxu0
      %v1337 = vadd.f32 %v591, %v1336
      %v1338 = vpop.f32.mrf.mxu0
      %v1339 = vpop.f32.mrf.mxu0
      %v1340 = vadd.f32 %v591, %v1339
      %v1341 = vpop.f32.mrf.mxu0
      %1342 = vmatprep.mubr.bf16.mxu0 0
      %1343 = vmatmul.mubr.bf16.gmra.mxu0 %v999
      %v1344 = vpop.f32.mrf.mxu0
      %v1345 = vadd.f32 %v591, %v1344
      %v1346 = vpop.f32.mrf.mxu0
      %v1347 = vpop.f32.mrf.mxu0
      %v1348 = vadd.f32 %v591, %v1347
      %v1349 = vpop.f32.mrf.mxu0
      %1350 = vmatprep.mubr.bf16.mxu0 0
      %1351 = vmatmul.mubr.bf16.gmra.mxu0 %v1002
      %v1352 = vpop.f32.mrf.mxu0
      %v1353 = vadd.f32 %v591, %v1352
      %v1354 = vpop.f32.mrf.mxu0
      %v1355 = vpop.f32.mrf.mxu0
      %v1356 = vadd.f32 %v591, %v1355
      %v1357 = vpop.f32.mrf.mxu0
      %1358 = vmatprep.mubr.bf16.mxu0 0
      %1359 = vmatmul.mubr.bf16.gmra.mxu0 %v1005
      %v1360 = vpop.f32.mrf.mxu0
      %v1361 = vadd.f32 %v591, %v1360
      %v1362 = vpop.f32.mrf.mxu0
      %v1363 = vpop.f32.mrf.mxu0
      %v1364 = vadd.f32 %v591, %v1363
      %v1365 = vpop.f32.mrf.mxu0
      %1366 = vmatprep.mubr.bf16.mxu0 0
      %1367 = vmatmul.mubr.bf16.gmra.mxu0 %v1008
      %v1368 = vpop.f32.mrf.mxu0
      %v1369 = vadd.f32 %v591, %v1368
      %v1370 = vpop.f32.mrf.mxu0
      %v1371 = vpop.f32.mrf.mxu0
      %v1372 = vadd.f32 %v591, %v1371
      %v1373 = vpop.f32.mrf.mxu0
      %1374 = vmatprep.mubr.bf16.mxu0 0
      %1375 = vmatmul.mubr.bf16.gmra.mxu0 %v1011
      %v1376 = vpop.f32.mrf.mxu0
      %v1377 = vadd.f32 %v591, %v1376
      %v1378 = vpop.f32.mrf.mxu0
      %v1379 = vpop.f32.mrf.mxu0
      %v1380 = vadd.f32 %v591, %v1379
      %v1381 = vpop.f32.mrf.mxu0
      %1382 = vmatprep.mubr.bf16.mxu0 0
      %1383 = vmatmul.mubr.bf16.gmra.mxu0 %v1014
      %v1384 = vpop.f32.mrf.mxu0
      %v1385 = vadd.f32 %v591, %v1384
      %v1386 = vpop.f32.mrf.mxu0
      %v1387 = vpop.f32.mrf.mxu0
      %v1388 = vadd.f32 %v591, %v1387
      %v1389 = vpop.f32.mrf.mxu0
      %1390 = vmatprep.mubr.bf16.mxu0 0
      %1391 = vmatmul.mubr.bf16.gmra.mxu0 %v1017
      %v1392 = vpop.f32.mrf.mxu0
      %v1393 = vadd.f32 %v591, %v1392
      %v1394 = vpop.f32.mrf.mxu0
      %v1395 = vpop.f32.mrf.mxu0
      %v1396 = vadd.f32 %v591, %v1395
      %v1397 = vpop.f32.mrf.mxu0
      %1398 = vmatprep.mubr.bf16.mxu0 0
      %1399 = vmatmul.mubr.bf16.gmra.mxu0 %v1020
      %v1400 = vpop.f32.mrf.mxu0
      %v1401 = vadd.f32 %v591, %v1400
      %v1402 = vpop.f32.mrf.mxu0
      %v1403 = vpop.f32.mrf.mxu0
      %v1404 = vadd.f32 %v591, %v1403
      %v1405 = vpop.f32.mrf.mxu0
      %1406 = vmatprep.mubr.bf16.mxu0 0
      %1407 = vmatmul.mubr.bf16.gmra.mxu0 %v1023
      %v1408 = vpop.f32.mrf.mxu0
      %v1409 = vadd.f32 %v591, %v1408
      %v1410 = vpop.f32.mrf.mxu0
      %v1411 = vpop.f32.mrf.mxu0
      %v1412 = vadd.f32 %v591, %v1411
      %v1413 = vpop.f32.mrf.mxu0
      %1414 = vmatprep.mubr.bf16.mxu0 0
      %1415 = vmatmul.mubr.bf16.gmra.mxu0 %v1026
      %v1416 = vpop.f32.mrf.mxu0
      %v1417 = vadd.f32 %v591, %v1416
      %v1418 = vpop.f32.mrf.mxu0
      %v1419 = vpop.f32.mrf.mxu0
      %v1420 = vadd.f32 %v591, %v1419
      %v1421 = vpop.f32.mrf.mxu0
      %1422 = vmatprep.mubr.bf16.mxu0 0
      %1423 = vmatmul.mubr.bf16.gmra.mxu0 %v1029
      %v1424 = vpop.f32.mrf.mxu0
      %v1425 = vadd.f32 %v591, %v1424
      %v1426 = vpop.f32.mrf.mxu0
      %v1427 = vpop.f32.mrf.mxu0
      %v1428 = vadd.f32 %v591, %v1427
      %v1429 = vpop.f32.mrf.mxu0
      %1430 = vmatprep.mubr.bf16.mxu0 0
      %1431 = vmatmul.mubr.bf16.gmra.mxu0 %v1032
      %v1432 = vpop.f32.mrf.mxu0
      %v1433 = vadd.f32 %v591, %v1432
      %v1434 = vpop.f32.mrf.mxu0
      %v1435 = vpop.f32.mrf.mxu0
      %v1436 = vadd.f32 %v591, %v1435
      %v1437 = vpop.f32.mrf.mxu0
      %1438 = vmatprep.mubr.bf16.mxu0 0
      %1439 = vmatmul.mubr.bf16.gmra.mxu0 %v1035
      %v1440 = vpop.f32.mrf.mxu0
      %v1441 = vadd.f32 %v591, %v1440
      %v1442 = vpop.f32.mrf.mxu0
      %v1443 = vpop.f32.mrf.mxu0
      %v1444 = vadd.f32 %v591, %v1443
      %v1445 = vpop.f32.mrf.mxu0
      %1446 = vmatprep.mubr.bf16.mxu0 0
      %1447 = vmatmul.mubr.bf16.gmra.mxu0 %v1038
      %v1448 = vpop.f32.mrf.mxu0
      %v1449 = vadd.f32 %v591, %v1448
      %v1450 = vpop.f32.mrf.mxu0
      %v1451 = vpop.f32.mrf.mxu0
      %v1452 = vadd.f32 %v591, %v1451
      %v1453 = vpop.f32.mrf.mxu0
      %1454 = vmatprep.mubr.bf16.mxu0 0
      %1455 = vmatmul.mubr.bf16.gmra.mxu0 %v1041
      %v1456 = vpop.f32.mrf.mxu0
      %v1457 = vadd.f32 %v591, %v1456
      %v1458 = vpop.f32.mrf.mxu0
      %v1459 = vpop.f32.mrf.mxu0
      %v1460 = vadd.f32 %v591, %v1459
      %v1461 = vpop.f32.mrf.mxu0
      %1462 = vmatprep.mubr.bf16.mxu0 0
      %1463 = vmatmul.mubr.bf16.gmra.mxu0 %v1044
      %v1464 = vpop.f32.mrf.mxu0
      %v1465 = vadd.f32 %v591, %v1464
      %v1466 = vpop.f32.mrf.mxu0
      %v1467 = vpop.f32.mrf.mxu0
      %v1468 = vadd.f32 %v591, %v1467
      %v1469 = vpop.f32.mrf.mxu0
      %1470 = vmatprep.mubr.bf16.mxu0 0
      %1471 = vmatmul.mubr.bf16.gmra.mxu0 %v1047
      %v1472 = vpop.f32.mrf.mxu0
      %v1473 = vadd.f32 %v591, %v1472
      %v1474 = vpop.f32.mrf.mxu0
      %v1475 = vpop.f32.mrf.mxu0
      %v1476 = vadd.f32 %v591, %v1475
      %v1477 = vpop.f32.mrf.mxu0
      %1478 = vmatprep.mubr.bf16.mxu0 0
      %1479 = vmatmul.mubr.bf16.gmra.mxu0 %v1050
      %v1480 = vpop.f32.mrf.mxu0
      %v1481 = vadd.f32 %v591, %v1480
      %v1482 = vpop.f32.mrf.mxu0
      %v1483 = vpop.f32.mrf.mxu0
      %v1484 = vadd.f32 %v591, %v1483
      %v1485 = vpop.f32.mrf.mxu0
      %1486 = vmatprep.mubr.bf16.mxu0 0
      %1487 = vmatmul.mubr.bf16.gmra.mxu0 %v1053
      %v1488 = vpop.f32.mrf.mxu0
      %v1489 = vadd.f32 %v591, %v1488
      %v1490 = vpop.f32.mrf.mxu0
      %v1491 = vpop.f32.mrf.mxu0
      %v1492 = vadd.f32 %v591, %v1491
      %v1493 = vpop.f32.mrf.mxu0
      %1494 = vmatprep.mubr.bf16.mxu0 0
      %1495 = vmatmul.mubr.bf16.gmra.mxu0 %v1056
      %v1496 = vpop.f32.mrf.mxu0
      %v1497 = vadd.f32 %v591, %v1496
      %v1498 = vpop.f32.mrf.mxu0
      %v1499 = vpop.f32.mrf.mxu0
      %v1500 = vadd.f32 %v591, %v1499
      %v1501 = vpop.f32.mrf.mxu0
      %1502 = vmatprep.mubr.bf16.mxu0 0
      %1503 = vmatmul.mubr.bf16.gmra.mxu0 %v1059
      %v1504 = vpop.f32.mrf.mxu0
      %v1505 = vadd.f32 %v591, %v1504
      %v1506 = vpop.f32.mrf.mxu0
      %v1507 = vpop.f32.mrf.mxu0
      %v1508 = vadd.f32 %v591, %v1507
      %v1509 = vpop.f32.mrf.mxu0
      %1510 = vmatprep.mubr.bf16.mxu0 0
      %1511 = vmatmul.mubr.bf16.gmra.mxu0 %v1062
      %v1512 = vpop.f32.mrf.mxu0
      %v1513 = vadd.f32 %v591, %v1512
      %v1514 = vpop.f32.mrf.mxu0
      %v1515 = vpop.f32.mrf.mxu0
      %v1516 = vadd.f32 %v591, %v1515
      %v1517 = vpop.f32.mrf.mxu0
      %1518 = vmatprep.mubr.bf16.mxu0 0
      %1519 = vmatmul.mubr.bf16.gmra.mxu0 %v1065
      %v1520 = vpop.f32.mrf.mxu0
      %v1521 = vadd.f32 %v591, %v1520
      %v1522 = vpop.f32.mrf.mxu0
      %v1523 = vpop.f32.mrf.mxu0
      %v1524 = vadd.f32 %v591, %v1523
      %v1525 = vpop.f32.mrf.mxu0
      %1526 = vmatprep.mubr.bf16.mxu0 0
      %1527 = vmatmul.mubr.bf16.gmra.mxu0 %v1068
      %v1528 = vpop.f32.mrf.mxu0
      %v1529 = vadd.f32 %v591, %v1528
      %v1530 = vpop.f32.mrf.mxu0
      %v1531 = vpop.f32.mrf.mxu0
      %v1532 = vadd.f32 %v591, %v1531
      %v1533 = vpop.f32.mrf.mxu0
      %1534 = vmatprep.mubr.bf16.mxu0 0
      %1535 = vmatmul.mubr.bf16.gmra.mxu0 %v1071
      %v1536 = vpop.f32.mrf.mxu0
      %v1537 = vadd.f32 %v591, %v1536
      %v1538 = vpop.f32.mrf.mxu0
      %v1539 = vpop.f32.mrf.mxu0
      %v1540 = vadd.f32 %v591, %v1539
      %v1541 = vpop.f32.mrf.mxu0
      %1542 = vmatprep.mubr.bf16.mxu0 0
      %1543 = vmatmul.mubr.bf16.gmra.mxu0 %v1074
      %v1544 = vpop.f32.mrf.mxu0
      %v1545 = vadd.f32 %v591, %v1544
      %v1546 = vpop.f32.mrf.mxu0
      %v1547 = vpop.f32.mrf.mxu0
      %v1548 = vadd.f32 %v591, %v1547
      %v1549 = vpop.f32.mrf.mxu0
      %1550 = vmatprep.mubr.bf16.mxu0 0
      %1551 = vmatmul.mubr.bf16.gmra.mxu0 %v1077
      %v1552 = vpop.f32.mrf.mxu0
      %v1553 = vadd.f32 %v591, %v1552
      %v1554 = vpop.f32.mrf.mxu0
      %v1555 = vpop.f32.mrf.mxu0
      %v1556 = vadd.f32 %v591, %v1555
      %v1557 = vpop.f32.mrf.mxu0
      %1558 = vmatprep.mubr.bf16.mxu0 0
      %1559 = vmatmul.mubr.bf16.gmra.mxu0 %v1080
      %v1560 = vpop.f32.mrf.mxu0
      %v1561 = vadd.f32 %v591, %v1560
      %v1562 = vpop.f32.mrf.mxu0
      %v1563 = vpop.f32.mrf.mxu0
      %v1564 = vadd.f32 %v591, %v1563
      %v1565 = vpop.f32.mrf.mxu0
      %1566 = vmatprep.mubr.bf16.mxu0 0
      %1567 = vmatmul.mubr.bf16.gmra.mxu0 %v1083
      %v1568 = vpop.f32.mrf.mxu0
      %v1569 = vadd.f32 %v591, %v1568
      %v1570 = vpop.f32.mrf.mxu0
      %v1571 = vpop.f32.mrf.mxu0
      %v1572 = vadd.f32 %v591, %v1571
      %v1573 = vpop.f32.mrf.mxu0
      %1574 = vmatprep.mubr.bf16.mxu0 0
      %1575 = vmatmul.mubr.bf16.gmra.mxu0 %v1086
      %v1576 = vpop.f32.mrf.mxu0
      %v1577 = vadd.f32 %v591, %v1576
      %v1578 = vpop.f32.mrf.mxu0
      %v1579 = vpop.f32.mrf.mxu0
      %v1580 = vadd.f32 %v591, %v1579
      %v1581 = vpop.f32.mrf.mxu0
      %1582 = vmatprep.mubr.bf16.mxu0 0
      %1583 = vmatmul.mubr.bf16.gmra.mxu0 %v1089
      %v1584 = vpop.f32.mrf.mxu0
      %v1585 = vadd.f32 %v591, %v1584
      %v1586 = vpop.f32.mrf.mxu0
      %v1587 = vpop.f32.mrf.mxu0
      %v1588 = vadd.f32 %v591, %v1587
      %v1589 = vpop.f32.mrf.mxu0
      %1590 = vmatprep.mubr.bf16.mxu0 0
      %1591 = vmatmul.mubr.bf16.gmra.mxu0 %v1092
      %v1592 = vpop.f32.mrf.mxu0
      %v1593 = vadd.f32 %v591, %v1592
      %v1594 = vpop.f32.mrf.mxu0
      %v1595 = vpop.f32.mrf.mxu0
      %v1596 = vadd.f32 %v591, %v1595
      %v1597 = vpop.f32.mrf.mxu0
      %1598 = vmatprep.mubr.bf16.mxu0 0
      %1599 = vmatmul.mubr.bf16.gmra.mxu0 %v1095
      %v1600 = vpop.f32.mrf.mxu0
      %v1601 = vadd.f32 %v591, %v1600
      %v1602 = vpop.f32.mrf.mxu0
      %v1603 = vpop.f32.mrf.mxu0
      %v1604 = vadd.f32 %v591, %v1603
      %v1605 = vpop.f32.mrf.mxu0
      %1606 = vmatprep.mubr.bf16.mxu0 0
      %1607 = vmatmul.mubr.bf16.gmra.mxu0 %v1098
      %v1608 = vpop.f32.mrf.mxu0
      %v1609 = vadd.f32 %v591, %v1608
      %v1610 = vpop.f32.mrf.mxu0
      %v1611 = vpop.f32.mrf.mxu0
      %v1612 = vadd.f32 %v591, %v1611
      %v1613 = vpop.f32.mrf.mxu0
      %1614 = vmatprep.mubr.bf16.mxu0 0
      %1615 = vmatmul.mubr.bf16.gmra.mxu0 %v1101
      %v1616 = vpop.f32.mrf.mxu0
      %v1617 = vadd.f32 %v591, %v1616
      %v1618 = vpop.f32.mrf.mxu0
      %v1619 = vpop.f32.mrf.mxu0
      %v1620 = vadd.f32 %v591, %v1619
      %v1621 = vpop.f32.mrf.mxu0
      %1622 = vmatprep.mubr.bf16.mxu0 0
      %1623 = vmatmul.mubr.bf16.gmra.mxu0 %v1104
      %v1624 = vpop.f32.mrf.mxu0
      %v1625 = vadd.f32 %v591, %v1624
      %v1626 = vpop.f32.mrf.mxu0
      %v1627 = vpop.f32.mrf.mxu0
      %v1628 = vadd.f32 %v591, %v1627
      %v1629 = vpop.f32.mrf.mxu0
      %1630 = vmatprep.mubr.bf16.mxu0 0
      %1631 = vmatmul.mubr.bf16.gmra.mxu0 %v1107
      %v1632 = vpop.f32.mrf.mxu0
      %v1633 = vadd.f32 %v591, %v1632
      %v1634 = vpop.f32.mrf.mxu0
      %v1635 = vpop.f32.mrf.mxu0
      %v1636 = vadd.f32 %v591, %v1635
      %v1637 = vpop.f32.mrf.mxu0
      %1638 = vmatprep.mubr.bf16.mxu0 0
      %1639 = vmatmul.mubr.bf16.gmra.mxu0 %v1110
      %v1640 = vpop.f32.mrf.mxu0
      %v1641 = vadd.f32 %v591, %v1640
      %v1642 = vpop.f32.mrf.mxu0
      %v1643 = vpop.f32.mrf.mxu0
      %v1644 = vadd.f32 %v591, %v1643
      %v1645 = vpop.f32.mrf.mxu0
      %1646 = vmatprep.mubr.bf16.mxu0 0
      %1647 = vmatmul.mubr.bf16.gmra.mxu0 %v1113
      %v1648 = vpop.f32.mrf.mxu0
      %v1649 = vadd.f32 %v591, %v1648
      %v1650 = vpop.f32.mrf.mxu0
      %v1651 = vpop.f32.mrf.mxu0
      %v1652 = vadd.f32 %v591, %v1651
      %v1653 = vpop.f32.mrf.mxu0
      %1654 = vmatprep.mubr.bf16.mxu0 0
      %1655 = vmatmul.mubr.bf16.gmra.mxu0 %v1116
      %v1656 = vpop.f32.mrf.mxu0
      %v1657 = vadd.f32 %v591, %v1656
      %v1658 = vpop.f32.mrf.mxu0
      %v1659 = vpop.f32.mrf.mxu0
      %v1660 = vadd.f32 %v591, %v1659
      %v1661 = vpop.f32.mrf.mxu0
      %1662 = vdwg.mxu0
      %v1663 = vmax.f32 %v1153, 0.0
      %v1664 = vmax.f32 %v1156, 0.0
      %v1665 = vmax.f32 %v1161, 0.0
      %v1666 = vmax.f32 %v1164, 0.0
      %v1667 = vmax.f32 %v1169, 0.0
      %v1668 = vmax.f32 %v1172, 0.0
      %v1669 = vmax.f32 %v1177, 0.0
      %v1670 = vmax.f32 %v1180, 0.0
      %v1671 = vmax.f32 %v1185, 0.0
      %v1672 = vmax.f32 %v1188, 0.0
      %v1673 = vmax.f32 %v1193, 0.0
      %v1674 = vmax.f32 %v1196, 0.0
      %v1675 = vmax.f32 %v1201, 0.0
      %v1676 = vmax.f32 %v1204, 0.0
      %v1677 = vmax.f32 %v1209, 0.0
      %v1678 = vmax.f32 %v1212, 0.0
      %v1679 = vmax.f32 %v1217, 0.0
      %v1680 = vmax.f32 %v1220, 0.0
      %v1681 = vmax.f32 %v1225, 0.0
      %v1682 = vmax.f32 %v1228, 0.0
      %v1683 = vmax.f32 %v1233, 0.0
      %v1684 = vmax.f32 %v1236, 0.0
      %v1685 = vmax.f32 %v1241, 0.0
      %v1686 = vmax.f32 %v1244, 0.0
      %v1687 = vmax.f32 %v1249, 0.0
      %v1688 = vmax.f32 %v1252, 0.0
      %v1689 = vmax.f32 %v1257, 0.0
      %v1690 = vmax.f32 %v1260, 0.0
      %v1691 = vmax.f32 %v1265, 0.0
      %v1692 = vmax.f32 %v1268, 0.0
      %v1693 = vmax.f32 %v1273, 0.0
      %v1694 = vmax.f32 %v1276, 0.0
      %v1695 = vmax.f32 %v1281, 0.0
      %v1696 = vmax.f32 %v1284, 0.0
      %v1697 = vmax.f32 %v1289, 0.0
      %v1698 = vmax.f32 %v1292, 0.0
      %v1699 = vmax.f32 %v1297, 0.0
      %v1700 = vmax.f32 %v1300, 0.0
      %v1701 = vmax.f32 %v1305, 0.0
      %v1702 = vmax.f32 %v1308, 0.0
      %v1703 = vmax.f32 %v1313, 0.0
      %v1704 = vmax.f32 %v1316, 0.0
      %v1705 = vmax.f32 %v1321, 0.0
      %v1706 = vmax.f32 %v1324, 0.0
      %v1707 = vmax.f32 %v1329, 0.0
      %v1708 = vmax.f32 %v1332, 0.0
      %v1709 = vmax.f32 %v1337, 0.0
      %v1710 = vmax.f32 %v1340, 0.0
      %v1711 = vmax.f32 %v1345, 0.0
      %v1712 = vmax.f32 %v1348, 0.0
      %v1713 = vmax.f32 %v1353, 0.0
      %v1714 = vmax.f32 %v1356, 0.0
      %v1715 = vmax.f32 %v1361, 0.0
      %v1716 = vmax.f32 %v1364, 0.0
      %v1717 = vmax.f32 %v1369, 0.0
      %v1718 = vmax.f32 %v1372, 0.0
      %v1719 = vmax.f32 %v1377, 0.0
      %v1720 = vmax.f32 %v1380, 0.0
      %v1721 = vmax.f32 %v1385, 0.0
      %v1722 = vmax.f32 %v1388, 0.0
      %v1723 = vmax.f32 %v1393, 0.0
      %v1724 = vmax.f32 %v1396, 0.0
      %v1725 = vmax.f32 %v1401, 0.0
      %v1726 = vmax.f32 %v1404, 0.0
      %v1727 = vmax.f32 %v1409, 0.0
      %v1728 = vmax.f32 %v1412, 0.0
      %v1729 = vmax.f32 %v1417, 0.0
      %v1730 = vmax.f32 %v1420, 0.0
      %v1731 = vmax.f32 %v1425, 0.0
      %v1732 = vmax.f32 %v1428, 0.0
      %v1733 = vmax.f32 %v1433, 0.0
      %v1734 = vmax.f32 %v1436, 0.0
      %v1735 = vmax.f32 %v1441, 0.0
      %v1736 = vmax.f32 %v1444, 0.0
      %v1737 = vmax.f32 %v1449, 0.0
      %v1738 = vmax.f32 %v1452, 0.0
      %v1739 = vmax.f32 %v1457, 0.0
      %v1740 = vmax.f32 %v1460, 0.0
      %v1741 = vmax.f32 %v1465, 0.0
      %v1742 = vmax.f32 %v1468, 0.0
      %v1743 = vmax.f32 %v1473, 0.0
      %v1744 = vmax.f32 %v1476, 0.0
      %v1745 = vmax.f32 %v1481, 0.0
      %v1746 = vmax.f32 %v1484, 0.0
      %v1747 = vmax.f32 %v1489, 0.0
      %v1748 = vmax.f32 %v1492, 0.0
      %v1749 = vmax.f32 %v1497, 0.0
      %v1750 = vmax.f32 %v1500, 0.0
      %v1751 = vmax.f32 %v1505, 0.0
      %v1752 = vmax.f32 %v1508, 0.0
      %v1753 = vmax.f32 %v1513, 0.0
      %v1754 = vmax.f32 %v1516, 0.0
      %v1755 = vmax.f32 %v1521, 0.0
      %v1756 = vmax.f32 %v1524, 0.0
      %v1757 = vmax.f32 %v1529, 0.0
      %v1758 = vmax.f32 %v1532, 0.0
      %v1759 = vmax.f32 %v1537, 0.0
      %v1760 = vmax.f32 %v1540, 0.0
      %v1761 = vmax.f32 %v1545, 0.0
      %v1762 = vmax.f32 %v1548, 0.0
      %v1763 = vmax.f32 %v1553, 0.0
      %v1764 = vmax.f32 %v1556, 0.0
      %v1765 = vmax.f32 %v1561, 0.0
      %v1766 = vmax.f32 %v1564, 0.0
      %v1767 = vmax.f32 %v1569, 0.0
      %v1768 = vmax.f32 %v1572, 0.0
      %v1769 = vmax.f32 %v1577, 0.0
      %v1770 = vmax.f32 %v1580, 0.0
      %v1771 = vmax.f32 %v1585, 0.0
      %v1772 = vmax.f32 %v1588, 0.0
      %v1773 = vmax.f32 %v1593, 0.0
      %v1774 = vmax.f32 %v1596, 0.0
      %v1775 = vmax.f32 %v1601, 0.0
      %v1776 = vmax.f32 %v1604, 0.0
      %v1777 = vmax.f32 %v1609, 0.0
      %v1778 = vmax.f32 %v1612, 0.0
      %v1779 = vmax.f32 %v1617, 0.0
      %v1780 = vmax.f32 %v1620, 0.0
      %v1781 = vmax.f32 %v1625, 0.0
      %v1782 = vmax.f32 %v1628, 0.0
      %v1783 = vmax.f32 %v1633, 0.0
      %v1784 = vmax.f32 %v1636, 0.0
      %v1785 = vmax.f32 %v1641, 0.0
      %v1786 = vmax.f32 %v1644, 0.0
      %v1787 = vmax.f32 %v1649, 0.0
      %v1788 = vmax.f32 %v1652, 0.0
      %v1789 = vmax.f32 %v1657, 0.0
      %v1790 = vmax.f32 %v1660, 0.0
      %s1791 = scalar_lea.vmem [#allocation2], 40
      %1792 = vst [vmem:[%s1791 + $0x1] sm:$0xff] %v1663
      %1793 = vst [vmem:[%s1791 + $0x9] sm:$0xff] %v1664
      %1794 = vst [vmem:[%s1791 + $0x11] sm:$0xff] %v1665
      %1795 = vst [vmem:[%s1791 + $0x19] sm:$0xff] %v1666
      %1796 = vst [vmem:[%s1791 + $0x29] sm:$0xff] %v1667
      %1797 = vst [vmem:[%s1791 + $0x31] sm:$0xff] %v1668
      %1798 = vst [vmem:[%s1791 + $0x39] sm:$0xff] %v1669
      %1799 = vst [vmem:[%s1791 + $0x41] sm:$0xff] %v1670
      %1800 = vst [vmem:[%s1791 + $0x51] sm:$0xff] %v1671
      %1801 = vst [vmem:[%s1791 + $0x59] sm:$0xff] %v1672
      %1802 = vst [vmem:[%s1791 + $0x61] sm:$0xff] %v1673
      %1803 = vst [vmem:[%s1791 + $0x69] sm:$0xff] %v1674
      %1804 = vst [vmem:[%s1791 + $0x79] sm:$0xff] %v1675
      %1805 = vst [vmem:[%s1791 + $0x81] sm:$0xff] %v1676
      %1806 = vst [vmem:[%s1791 + $0x89] sm:$0xff] %v1677
      %1807 = vst [vmem:[%s1791 + $0x91] sm:$0xff] %v1678
      %1808 = vst [vmem:[%s1791 + $0xa1] sm:$0xff] %v1679
      %1809 = vst [vmem:[%s1791 + $0xa9] sm:$0xff] %v1680
      %1810 = vst [vmem:[%s1791 + $0xb1] sm:$0xff] %v1681
      %1811 = vst [vmem:[%s1791 + $0xb9] sm:$0xff] %v1682
      %1812 = vst [vmem:[%s1791 + $0xc9] sm:$0xff] %v1683
      %1813 = vst [vmem:[%s1791 + $0xd1] sm:$0xff] %v1684
      %1814 = vst [vmem:[%s1791 + $0xd9] sm:$0xff] %v1685
      %1815 = vst [vmem:[%s1791 + $0xe1] sm:$0xff] %v1686
      %1816 = vst [vmem:[%s1791 + $0xf1] sm:$0xff] %v1687
      %1817 = vst [vmem:[%s1791 + $0xf9] sm:$0xff] %v1688
      %1818 = vst [vmem:[%s1791 + $0x101] sm:$0xff] %v1689
      %1819 = vst [vmem:[%s1791 + $0x109] sm:$0xff] %v1690
      %1820 = vst [vmem:[%s1791 + $0x119] sm:$0xff] %v1691
      %1821 = vst [vmem:[%s1791 + $0x121] sm:$0xff] %v1692
      %1822 = vst [vmem:[%s1791 + $0x129] sm:$0xff] %v1693
      %1823 = vst [vmem:[%s1791 + $0x131] sm:$0xff] %v1694
      %1824 = vst [vmem:[%s1791 + $0x141] sm:$0xff] %v1695
      %1825 = vst [vmem:[%s1791 + $0x149] sm:$0xff] %v1696
      %1826 = vst [vmem:[%s1791 + $0x151] sm:$0xff] %v1697
      %1827 = vst [vmem:[%s1791 + $0x159] sm:$0xff] %v1698
      %1828 = vst [vmem:[%s1791 + $0x169] sm:$0xff] %v1699
      %1829 = vst [vmem:[%s1791 + $0x171] sm:$0xff] %v1700
      %1830 = vst [vmem:[%s1791 + $0x179] sm:$0xff] %v1701
      %1831 = vst [vmem:[%s1791 + $0x181] sm:$0xff] %v1702
      %1832 = vst [vmem:[%s1791 + $0x191] sm:$0xff] %v1703
      %1833 = vst [vmem:[%s1791 + $0x199] sm:$0xff] %v1704
      %1834 = vst [vmem:[%s1791 + $0x1a1] sm:$0xff] %v1705
      %1835 = vst [vmem:[%s1791 + $0x1a9] sm:$0xff] %v1706
      %1836 = vst [vmem:[%s1791 + $0x1b9] sm:$0xff] %v1707
      %1837 = vst [vmem:[%s1791 + $0x1c1] sm:$0xff] %v1708
      %1838 = vst [vmem:[%s1791 + $0x1c9] sm:$0xff] %v1709
      %1839 = vst [vmem:[%s1791 + $0x1d1] sm:$0xff] %v1710
      %1840 = vst [vmem:[%s1791 + $0x1e1] sm:$0xff] %v1711
      %1841 = vst [vmem:[%s1791 + $0x1e9] sm:$0xff] %v1712
      %1842 = vst [vmem:[%s1791 + $0x1f1] sm:$0xff] %v1713
      %1843 = vst [vmem:[%s1791 + $0x1f9] sm:$0xff] %v1714
      %1844 = vst [vmem:[%s1791 + $0x209] sm:$0xff] %v1715
      %1845 = vst [vmem:[%s1791 + $0x211] sm:$0xff] %v1716
      %1846 = vst [vmem:[%s1791 + $0x219] sm:$0xff] %v1717
      %1847 = vst [vmem:[%s1791 + $0x221] sm:$0xff] %v1718
      %1848 = vst [vmem:[%s1791 + $0x231] sm:$0xff] %v1719
      %1849 = vst [vmem:[%s1791 + $0x239] sm:$0xff] %v1720
      %1850 = vst [vmem:[%s1791 + $0x241] sm:$0xff] %v1721
      %1851 = vst [vmem:[%s1791 + $0x249] sm:$0xff] %v1722
      %1852 = vst [vmem:[%s1791 + $0x259] sm:$0xff] %v1723
      %1853 = vst [vmem:[%s1791 + $0x261] sm:$0xff] %v1724
      %1854 = vst [vmem:[%s1791 + $0x269] sm:$0xff] %v1725
      %1855 = vst [vmem:[%s1791 + $0x271] sm:$0xff] %v1726
      %1856 = vst [vmem:[%s1791 + $0x281] sm:$0xff] %v1727
      %1857 = vst [vmem:[%s1791 + $0x289] sm:$0xff] %v1728
      %1858 = vst [vmem:[%s1791 + $0x291] sm:$0xff] %v1729
      %1859 = vst [vmem:[%s1791 + $0x299] sm:$0xff] %v1730
      %1860 = vst [vmem:[%s1791 + $0x2a9] sm:$0xff] %v1731
      %1861 = vst [vmem:[%s1791 + $0x2b1] sm:$0xff] %v1732
      %1862 = vst [vmem:[%s1791 + $0x2b9] sm:$0xff] %v1733
      %1863 = vst [vmem:[%s1791 + $0x2c1] sm:$0xff] %v1734
      %1864 = vst [vmem:[%s1791 + $0x2d1] sm:$0xff] %v1735
      %1865 = vst [vmem:[%s1791 + $0x2d9] sm:$0xff] %v1736
      %1866 = vst [vmem:[%s1791 + $0x2e1] sm:$0xff] %v1737
      %1867 = vst [vmem:[%s1791 + $0x2e9] sm:$0xff] %v1738
      %1868 = vst [vmem:[%s1791 + $0x2f9] sm:$0xff] %v1739
      %1869 = vst [vmem:[%s1791 + $0x301] sm:$0xff] %v1740
      %1870 = vst [vmem:[%s1791 + $0x309] sm:$0xff] %v1741
      %1871 = vst [vmem:[%s1791 + $0x311] sm:$0xff] %v1742
      %1872 = vst [vmem:[%s1791 + $0x321] sm:$0xff] %v1743
      %1873 = vst [vmem:[%s1791 + $0x329] sm:$0xff] %v1744
      %1874 = vst [vmem:[%s1791 + $0x331] sm:$0xff] %v1745
      %1875 = vst [vmem:[%s1791 + $0x339] sm:$0xff] %v1746
      %1876 = vst [vmem:[%s1791 + $0x349] sm:$0xff] %v1747
      %1877 = vst [vmem:[%s1791 + $0x351] sm:$0xff] %v1748
      %1878 = vst [vmem:[%s1791 + $0x359] sm:$0xff] %v1749
      %1879 = vst [vmem:[%s1791 + $0x361] sm:$0xff] %v1750
      %1880 = vst [vmem:[%s1791 + $0x371] sm:$0xff] %v1751
      %1881 = vst [vmem:[%s1791 + $0x379] sm:$0xff] %v1752
      %1882 = vst [vmem:[%s1791 + $0x381] sm:$0xff] %v1753
      %1883 = vst [vmem:[%s1791 + $0x389] sm:$0xff] %v1754
      %1884 = vst [vmem:[%s1791 + $0x399] sm:$0xff] %v1755
      %1885 = vst [vmem:[%s1791 + $0x3a1] sm:$0xff] %v1756
      %1886 = vst [vmem:[%s1791 + $0x3a9] sm:$0xff] %v1757
      %1887 = vst [vmem:[%s1791 + $0x3b1] sm:$0xff] %v1758
      %1888 = vst [vmem:[%s1791 + $0x3c1] sm:$0xff] %v1759
      %1889 = vst [vmem:[%s1791 + $0x3c9] sm:$0xff] %v1760
      %1890 = vst [vmem:[%s1791 + $0x3d1] sm:$0xff] %v1761
      %1891 = vst [vmem:[%s1791 + $0x3d9] sm:$0xff] %v1762
      %1892 = vst [vmem:[%s1791 + $0x3e9] sm:$0xff] %v1763
      %1893 = vst [vmem:[%s1791 + $0x3f1] sm:$0xff] %v1764
      %1894 = vst [vmem:[%s1791 + $0x3f9] sm:$0xff] %v1765
      %1895 = vst [vmem:[%s1791 + $0x401] sm:$0xff] %v1766
      %1896 = vst [vmem:[%s1791 + $0x411] sm:$0xff] %v1767
      %1897 = vst [vmem:[%s1791 + $0x419] sm:$0xff] %v1768
      %1898 = vst [vmem:[%s1791 + $0x421] sm:$0xff] %v1769
      %1899 = vst [vmem:[%s1791 + $0x429] sm:$0xff] %v1770
      %1900 = vst [vmem:[%s1791 + $0x439] sm:$0xff] %v1771
      %1901 = vst [vmem:[%s1791 + $0x441] sm:$0xff] %v1772
      %1902 = vst [vmem:[%s1791 + $0x449] sm:$0xff] %v1773
      %1903 = vst [vmem:[%s1791 + $0x451] sm:$0xff] %v1774
      %1904 = vst [vmem:[%s1791 + $0x461] sm:$0xff] %v1775
      %1905 = vst [vmem:[%s1791 + $0x469] sm:$0xff] %v1776
      %1906 = vst [vmem:[%s1791 + $0x471] sm:$0xff] %v1777
      %1907 = vst [vmem:[%s1791 + $0x479] sm:$0xff] %v1778
      %1908 = vst [vmem:[%s1791 + $0x489] sm:$0xff] %v1779
      %1909 = vst [vmem:[%s1791 + $0x491] sm:$0xff] %v1780
      %1910 = vst [vmem:[%s1791 + $0x499] sm:$0xff] %v1781
      %1911 = vst [vmem:[%s1791 + $0x4a1] sm:$0xff] %v1782
      %1912 = vst [vmem:[%s1791 + $0x4b1] sm:$0xff] %v1783
      %1913 = vst [vmem:[%s1791 + $0x4b9] sm:$0xff] %v1784
      %1914 = vst [vmem:[%s1791 + $0x4c1] sm:$0xff] %v1785
      %1915 = vst [vmem:[%s1791 + $0x4c9] sm:$0xff] %v1786
      %1916 = vst [vmem:[%s1791 + $0x4d9] sm:$0xff] %v1787
      %1917 = vst [vmem:[%s1791 + $0x4e1] sm:$0xff] %v1788
      %1918 = vst [vmem:[%s1791 + $0x4e9] sm:$0xff] %v1789
      %1919 = vst [vmem:[%s1791 + $0x4f1] sm:$0xff] %v1790
      %v1920 = vld [vmem:[#allocation2] ss:$2 sm:$0xff]
      %s1921 = scalar_lea.vmem [#allocation2], 16
      %v1922 = vld [vmem:[%s1921] ss:$2 sm:$0xff]
      %s1923 = scalar_lea.vmem [#allocation2], 80
      %v1924 = vld [vmem:[%s1923] ss:$2 sm:$0xff]
      %s1925 = scalar_lea.vmem [#allocation2], 96
      %v1926 = vld [vmem:[%s1925] ss:$2 sm:$0xff]
      %s1927 = scalar_lea.vmem [#allocation2], 160
      %v1928 = vld [vmem:[%s1927] ss:$2 sm:$0xff]
      %s1929 = scalar_lea.vmem [#allocation2], 176
      %v1930 = vld [vmem:[%s1929] ss:$2 sm:$0xff]
      %s1931 = scalar_lea.vmem [#allocation2], 240
      %v1932 = vld [vmem:[%s1931] ss:$2 sm:$0xff]
      %s1933 = scalar_lea.vmem [#allocation2], 256
      %v1934 = vld [vmem:[%s1933] ss:$2 sm:$0xff]
      %s1935 = scalar_lea.vmem [#allocation2], 320
      %v1936 = vld [vmem:[%s1935] ss:$2 sm:$0xff]
      %s1937 = scalar_lea.vmem [#allocation2], 336
      %v1938 = vld [vmem:[%s1937] ss:$2 sm:$0xff]
      %s1939 = scalar_lea.vmem [#allocation2], 400
      %v1940 = vld [vmem:[%s1939] ss:$2 sm:$0xff]
      %s1941 = scalar_lea.vmem [#allocation2], 416
      %v1942 = vld [vmem:[%s1941] ss:$2 sm:$0xff]
      %s1943 = scalar_lea.vmem [#allocation2], 480
      %v1944 = vld [vmem:[%s1943] ss:$2 sm:$0xff]
      %s1945 = scalar_lea.vmem [#allocation2], 496
      %v1946 = vld [vmem:[%s1945] ss:$2 sm:$0xff]
      %s1947 = scalar_lea.vmem [#allocation2], 560
      %v1948 = vld [vmem:[%s1947] ss:$2 sm:$0xff]
      %s1949 = scalar_lea.vmem [#allocation2], 576
      %v1950 = vld [vmem:[%s1949] ss:$2 sm:$0xff]
      %s1951 = scalar_lea.vmem [#allocation2], 640
      %v1952 = vld [vmem:[%s1951] ss:$2 sm:$0xff]
      %s1953 = scalar_lea.vmem [#allocation2], 656
      %v1954 = vld [vmem:[%s1953] ss:$2 sm:$0xff]
      %s1955 = scalar_lea.vmem [#allocation2], 720
      %v1956 = vld [vmem:[%s1955] ss:$2 sm:$0xff]
      %s1957 = scalar_lea.vmem [#allocation2], 736
      %v1958 = vld [vmem:[%s1957] ss:$2 sm:$0xff]
      %s1959 = scalar_lea.vmem [#allocation2], 800
      %v1960 = vld [vmem:[%s1959] ss:$2 sm:$0xff]
      %s1961 = scalar_lea.vmem [#allocation2], 816
      %v1962 = vld [vmem:[%s1961] ss:$2 sm:$0xff]
      %s1963 = scalar_lea.vmem [#allocation2], 880
      %v1964 = vld [vmem:[%s1963] ss:$2 sm:$0xff]
      %s1965 = scalar_lea.vmem [#allocation2], 896
      %v1966 = vld [vmem:[%s1965] ss:$2 sm:$0xff]
      %s1967 = scalar_lea.vmem [#allocation2], 960
      %v1968 = vld [vmem:[%s1967] ss:$2 sm:$0xff]
      %s1969 = scalar_lea.vmem [#allocation2], 976
      %v1970 = vld [vmem:[%s1969] ss:$2 sm:$0xff]
      %s1971 = scalar_lea.vmem [#allocation2], 1040
      %v1972 = vld [vmem:[%s1971] ss:$2 sm:$0xff]
      %s1973 = scalar_lea.vmem [#allocation2], 1056
      %v1974 = vld [vmem:[%s1973] ss:$2 sm:$0xff]
      %s1975 = scalar_lea.vmem [#allocation2], 1120
      %v1976 = vld [vmem:[%s1975] ss:$2 sm:$0xff]
      %s1977 = scalar_lea.vmem [#allocation2], 1136
      %v1978 = vld [vmem:[%s1977] ss:$2 sm:$0xff]
      %s1979 = scalar_lea.vmem [#allocation2], 1200
      %v1980 = vld [vmem:[%s1979] ss:$2 sm:$0xff]
      %s1981 = scalar_lea.vmem [#allocation2], 1216
      %v1982 = vld [vmem:[%s1981] ss:$2 sm:$0xff]
      %v1983 = vpack.c.bf16 %v1922, %v1920
      %v1984 = vpack.c.bf16 %v1926, %v1924
      %v1985 = vpack.c.bf16 %v1930, %v1928
      %v1986 = vpack.c.bf16 %v1934, %v1932
      %v1987 = vpack.c.bf16 %v1938, %v1936
      %v1988 = vpack.c.bf16 %v1942, %v1940
      %v1989 = vpack.c.bf16 %v1946, %v1944
      %v1990 = vpack.c.bf16 %v1950, %v1948
      %v1991 = vpack.c.bf16 %v1954, %v1952
      %v1992 = vpack.c.bf16 %v1958, %v1956
      %v1993 = vpack.c.bf16 %v1962, %v1960
      %v1994 = vpack.c.bf16 %v1966, %v1964
      %v1995 = vpack.c.bf16 %v1970, %v1968
      %v1996 = vpack.c.bf16 %v1974, %v1972
      %v1997 = vpack.c.bf16 %v1978, %v1976
      %v1998 = vpack.c.bf16 %v1982, %v1980
      %v1999 = vld [vmem:[%s3] sm:$0xf]
      %v2000 = vld [vmem:[%s3 + $0x4] sm:$0xf]
      %v2001 = vld [vmem:[%s3 + $0x8] sm:$0xf]
      %v2002 = vld [vmem:[%s3 + $0xc] sm:$0xf]
      %v2003 = vld [vmem:[%s3 + $0x10] sm:$0xf]
      %v2004 = vld [vmem:[%s3 + $0x14] sm:$0xf]
      %v2005 = vld [vmem:[%s3 + $0x18] sm:$0xf]
      %v2006 = vld [vmem:[%s3 + $0x1c] sm:$0xf]
      %v2007 = vld [vmem:[%s3 + $0x20] sm:$0xf]
      %v2008 = vld [vmem:[%s3 + $0x24] sm:$0xf]
      %v2009 = vld [vmem:[%s3 + $0x28] sm:$0xf]
      %v2010 = vld [vmem:[%s3 + $0x2c] sm:$0xf]
      %v2011 = vld [vmem:[%s3 + $0x30] sm:$0xf]
      %v2012 = vld [vmem:[%s3 + $0x34] sm:$0xf]
      %v2013 = vld [vmem:[%s3 + $0x38] sm:$0xf]
      %v2014 = vld [vmem:[%s3 + $0x3c] sm:$0xf]
      %s2015 = scalar_lea.vmem [#allocation2], 1
      %v2016 = vld [vmem:[%s2015] ss:$2 sm:$0xff]
      %s2017 = scalar_lea.vmem [#allocation2], 17
      %v2018 = vld [vmem:[%s2017] ss:$2 sm:$0xff]
      %s2019 = scalar_lea.vmem [#allocation2], 81
      %v2020 = vld [vmem:[%s2019] ss:$2 sm:$0xff]
      %s2021 = scalar_lea.vmem [#allocation2], 97
      %v2022 = vld [vmem:[%s2021] ss:$2 sm:$0xff]
      %s2023 = scalar_lea.vmem [#allocation2], 161
      %v2024 = vld [vmem:[%s2023] ss:$2 sm:$0xff]
      %s2025 = scalar_lea.vmem [#allocation2], 177
      %v2026 = vld [vmem:[%s2025] ss:$2 sm:$0xff]
      %s2027 = scalar_lea.vmem [#allocation2], 241
      %v2028 = vld [vmem:[%s2027] ss:$2 sm:$0xff]
      %s2029 = scalar_lea.vmem [#allocation2], 257
      %v2030 = vld [vmem:[%s2029] ss:$2 sm:$0xff]
      %s2031 = scalar_lea.vmem [#allocation2], 321
      %v2032 = vld [vmem:[%s2031] ss:$2 sm:$0xff]
      %s2033 = scalar_lea.vmem [#allocation2], 337
      %v2034 = vld [vmem:[%s2033] ss:$2 sm:$0xff]
      %s2035 = scalar_lea.vmem [#allocation2], 401
      %v2036 = vld [vmem:[%s2035] ss:$2 sm:$0xff]
      %s2037 = scalar_lea.vmem [#allocation2], 417
      %v2038 = vld [vmem:[%s2037] ss:$2 sm:$0xff]
      %s2039 = scalar_lea.vmem [#allocation2], 481
      %v2040 = vld [vmem:[%s2039] ss:$2 sm:$0xff]
      %s2041 = scalar_lea.vmem [#allocation2], 497
      %v2042 = vld [vmem:[%s2041] ss:$2 sm:$0xff]
      %s2043 = scalar_lea.vmem [#allocation2], 561
      %v2044 = vld [vmem:[%s2043] ss:$2 sm:$0xff]
      %s2045 = scalar_lea.vmem [#allocation2], 577
      %v2046 = vld [vmem:[%s2045] ss:$2 sm:$0xff]
      %s2047 = scalar_lea.vmem [#allocation2], 641
      %v2048 = vld [vmem:[%s2047] ss:$2 sm:$0xff]
      %s2049 = scalar_lea.vmem [#allocation2], 657
      %v2050 = vld [vmem:[%s2049] ss:$2 sm:$0xff]
      %s2051 = scalar_lea.vmem [#allocation2], 721
      %v2052 = vld [vmem:[%s2051] ss:$2 sm:$0xff]
      %s2053 = scalar_lea.vmem [#allocation2], 737
      %v2054 = vld [vmem:[%s2053] ss:$2 sm:$0xff]
      %s2055 = scalar_lea.vmem [#allocation2], 801
      %v2056 = vld [vmem:[%s2055] ss:$2 sm:$0xff]
      %s2057 = scalar_lea.vmem [#allocation2], 817
      %v2058 = vld [vmem:[%s2057] ss:$2 sm:$0xff]
      %s2059 = scalar_lea.vmem [#allocation2], 881
      %v2060 = vld [vmem:[%s2059] ss:$2 sm:$0xff]
      %s2061 = scalar_lea.vmem [#allocation2], 897
      %v2062 = vld [vmem:[%s2061] ss:$2 sm:$0xff]
      %s2063 = scalar_lea.vmem [#allocation2], 961
      %v2064 = vld [vmem:[%s2063] ss:$2 sm:$0xff]
      %s2065 = scalar_lea.vmem [#allocation2], 977
      %v2066 = vld [vmem:[%s2065] ss:$2 sm:$0xff]
      %s2067 = scalar_lea.vmem [#allocation2], 1041
      %v2068 = vld [vmem:[%s2067] ss:$2 sm:$0xff]
      %s2069 = scalar_lea.vmem [#allocation2], 1057
      %v2070 = vld [vmem:[%s2069] ss:$2 sm:$0xff]
      %s2071 = scalar_lea.vmem [#allocation2], 1121
      %v2072 = vld [vmem:[%s2071] ss:$2 sm:$0xff]
      %s2073 = scalar_lea.vmem [#allocation2], 1137
      %v2074 = vld [vmem:[%s2073] ss:$2 sm:$0xff]
      %s2075 = scalar_lea.vmem [#allocation2], 1201
      %v2076 = vld [vmem:[%s2075] ss:$2 sm:$0xff]
      %s2077 = scalar_lea.vmem [#allocation2], 1217
      %v2078 = vld [vmem:[%s2077] ss:$2 sm:$0xff]
      %v2079 = vpack.c.bf16 %v2018, %v2016
      %v2080 = vpack.c.bf16 %v2022, %v2020
      %v2081 = vpack.c.bf16 %v2026, %v2024
      %v2082 = vpack.c.bf16 %v2030, %v2028
      %v2083 = vpack.c.bf16 %v2034, %v2032
      %v2084 = vpack.c.bf16 %v2038, %v2036
      %v2085 = vpack.c.bf16 %v2042, %v2040
      %v2086 = vpack.c.bf16 %v2046, %v2044
      %v2087 = vpack.c.bf16 %v2050, %v2048
      %v2088 = vpack.c.bf16 %v2054, %v2052
      %v2089 = vpack.c.bf16 %v2058, %v2056
      %v2090 = vpack.c.bf16 %v2062, %v2060
      %v2091 = vpack.c.bf16 %v2066, %v2064
      %v2092 = vpack.c.bf16 %v2070, %v2068
      %v2093 = vpack.c.bf16 %v2074, %v2072
      %v2094 = vpack.c.bf16 %v2078, %v2076
      %s2095 = scalar_lea.vmem %s3, 64
      %v2096 = vld [vmem:[%s2095] sm:$0xf]
      %v2097 = vld [vmem:[%s2095 + $0x4] sm:$0xf]
      %v2098 = vld [vmem:[%s2095 + $0x8] sm:$0xf]
      %v2099 = vld [vmem:[%s2095 + $0xc] sm:$0xf]
      %v2100 = vld [vmem:[%s2095 + $0x10] sm:$0xf]
      %v2101 = vld [vmem:[%s2095 + $0x14] sm:$0xf]
      %v2102 = vld [vmem:[%s2095 + $0x18] sm:$0xf]
      %v2103 = vld [vmem:[%s2095 + $0x1c] sm:$0xf]
      %v2104 = vld [vmem:[%s2095 + $0x20] sm:$0xf]
      %v2105 = vld [vmem:[%s2095 + $0x24] sm:$0xf]
      %v2106 = vld [vmem:[%s2095 + $0x28] sm:$0xf]
      %v2107 = vld [vmem:[%s2095 + $0x2c] sm:$0xf]
      %v2108 = vld [vmem:[%s2095 + $0x30] sm:$0xf]
      %v2109 = vld [vmem:[%s2095 + $0x34] sm:$0xf]
      %v2110 = vld [vmem:[%s2095 + $0x38] sm:$0xf]
      %v2111 = vld [vmem:[%s2095 + $0x3c] sm:$0xf]
      %v2128 = vunpack.c.l.b16 %v2096
      %v2129 = vunpack.c.l.b16 %v2097
      %v2130 = vunpack.c.l.b16 %v2098
      %v2131 = vunpack.c.l.b16 %v2099
      %v2132 = vunpack.c.l.b16 %v2100
      %v2133 = vunpack.c.l.b16 %v2101
      %v2134 = vunpack.c.l.b16 %v2102
      %v2135 = vunpack.c.l.b16 %v2103
      %v2136 = vunpack.c.l.b16 %v2104
      %v2137 = vunpack.c.l.b16 %v2105
      %v2138 = vunpack.c.l.b16 %v2106
      %v2139 = vunpack.c.l.b16 %v2107
      %v2140 = vunpack.c.l.b16 %v2108
      %v2141 = vunpack.c.l.b16 %v2109
      %v2142 = vunpack.c.l.b16 %v2110
      %v2143 = vunpack.c.l.b16 %v2111
      %v2144 = vpack.c.b16 %v2129, %v2128
      %v2145 = vpack.c.b16 %v2131, %v2130
      %v2146 = vpack.c.b16 %v2133, %v2132
      %v2147 = vpack.c.b16 %v2135, %v2134
      %v2148 = vpack.c.b16 %v2137, %v2136
      %v2149 = vpack.c.b16 %v2139, %v2138
      %v2150 = vpack.c.b16 %v2141, %v2140
      %v2151 = vpack.c.b16 %v2143, %v2142
      %2160 = vmatprep.subr.bf16.mxu0 0
      %2161 = vmatpush1.bf16.msra.mxu0 %v2151
      %2162 = vmatprep.subr.bf16.mxu0 0
      %2163 = vmatpush1.bf16.msra.mxu0 %v2150
      %2164 = vmatprep.subr.bf16.mxu0 0
      %2165 = vmatpush1.bf16.msra.mxu0 %v2149
      %2166 = vmatprep.subr.bf16.mxu0 0
      %2167 = vmatpush1.bf16.msra.mxu0 %v2148
      %2168 = vmatprep.subr.bf16.mxu0 0
      %2169 = vmatpush1.bf16.msra.mxu0 %v2147
      %2170 = vmatprep.subr.bf16.mxu0 0
      %2171 = vmatpush1.bf16.msra.mxu0 %v2146
      %2172 = vmatprep.subr.bf16.mxu0 0
      %2173 = vmatpush1.bf16.msra.mxu0 %v2145
      %2174 = vmatprep.subr.bf16.mxu0 0
      %2175 = vmatpush1.bf16.msra.mxu0 %v2144
      %2176 = vmatprep.subr.bf16.mxu0 0
      %2177 = vmatpush2.bf16.msra.mxu0 0
      %2178 = vmatprep.subr.bf16.mxu0 0
      %2179 = vmatpush2.bf16.msra.mxu0 0
      %2180 = vmatprep.subr.bf16.mxu0 0
      %2181 = vmatpush2.bf16.msra.mxu0 0
      %2182 = vmatprep.subr.bf16.mxu0 0
      %2183 = vmatpush2.bf16.msra.mxu0 0
      %2184 = vmatprep.subr.bf16.mxu0 0
      %2185 = vmatpush2.bf16.msra.mxu0 0
      %2186 = vmatprep.subr.bf16.mxu0 0
      %2187 = vmatpush2.bf16.msra.mxu0 0
      %2188 = vmatprep.subr.bf16.mxu0 0
      %2189 = vmatpush2.bf16.msra.mxu0 0
      %2190 = vmatprep.subr.bf16.mxu0 0
      %2191 = vmatpush2.bf16.msra.mxu0 0
      %2192 = vmatprep.mubr.bf16.mxu0 0
      %2193 = vmatmul.mubr.bf16.gmra.mxu0 %v2079
      %v2194 = vpop.f32.mrf.mxu0
      %v2195 = vadd.f32 0.0, %v2194
      %v2196 = vpop.f32.mrf.mxu0
      %v2197 = vpop.f32.mrf.mxu0
      %v2198 = vadd.f32 0.0, %v2197
      %v2199 = vpop.f32.mrf.mxu0
      %2200 = vmatprep.mubr.bf16.mxu0 0
      %2201 = vmatmul.mubr.bf16.gmra.mxu0 %v2080
      %v2202 = vpop.f32.mrf.mxu0
      %v2203 = vadd.f32 0.0, %v2202
      %v2204 = vpop.f32.mrf.mxu0
      %v2205 = vpop.f32.mrf.mxu0
      %v2206 = vadd.f32 0.0, %v2205
      %v2207 = vpop.f32.mrf.mxu0
      %2208 = vmatprep.mubr.bf16.mxu0 0
      %2209 = vmatmul.mubr.bf16.gmra.mxu0 %v2081
      %v2210 = vpop.f32.mrf.mxu0
      %v2211 = vadd.f32 0.0, %v2210
      %v2212 = vpop.f32.mrf.mxu0
      %v2213 = vpop.f32.mrf.mxu0
      %v2214 = vadd.f32 0.0, %v2213
      %v2215 = vpop.f32.mrf.mxu0
      %2216 = vmatprep.mubr.bf16.mxu0 0
      %2217 = vmatmul.mubr.bf16.gmra.mxu0 %v2082
      %v2218 = vpop.f32.mrf.mxu0
      %v2219 = vadd.f32 0.0, %v2218
      %v2220 = vpop.f32.mrf.mxu0
      %v2221 = vpop.f32.mrf.mxu0
      %v2222 = vadd.f32 0.0, %v2221
      %v2223 = vpop.f32.mrf.mxu0
      %2224 = vmatprep.mubr.bf16.mxu0 0
      %2225 = vmatmul.mubr.bf16.gmra.mxu0 %v2083
      %v2226 = vpop.f32.mrf.mxu0
      %v2227 = vadd.f32 0.0, %v2226
      %v2228 = vpop.f32.mrf.mxu0
      %v2229 = vpop.f32.mrf.mxu0
      %v2230 = vadd.f32 0.0, %v2229
      %v2231 = vpop.f32.mrf.mxu0
      %2232 = vmatprep.mubr.bf16.mxu0 0
      %2233 = vmatmul.mubr.bf16.gmra.mxu0 %v2084
      %v2234 = vpop.f32.mrf.mxu0
      %v2235 = vadd.f32 0.0, %v2234
      %v2236 = vpop.f32.mrf.mxu0
      %v2237 = vpop.f32.mrf.mxu0
      %v2238 = vadd.f32 0.0, %v2237
      %v2239 = vpop.f32.mrf.mxu0
      %2240 = vmatprep.mubr.bf16.mxu0 0
      %2241 = vmatmul.mubr.bf16.gmra.mxu0 %v2085
      %v2242 = vpop.f32.mrf.mxu0
      %v2243 = vadd.f32 0.0, %v2242
      %v2244 = vpop.f32.mrf.mxu0
      %v2245 = vpop.f32.mrf.mxu0
      %v2246 = vadd.f32 0.0, %v2245
      %v2247 = vpop.f32.mrf.mxu0
      %2248 = vmatprep.mubr.bf16.mxu0 0
      %2249 = vmatmul.mubr.bf16.gmra.mxu0 %v2086
      %v2250 = vpop.f32.mrf.mxu0
      %v2251 = vadd.f32 0.0, %v2250
      %v2252 = vpop.f32.mrf.mxu0
      %v2253 = vpop.f32.mrf.mxu0
      %v2254 = vadd.f32 0.0, %v2253
      %v2255 = vpop.f32.mrf.mxu0
      %2256 = vmatprep.mubr.bf16.mxu0 0
      %2257 = vmatmul.mubr.bf16.gmra.mxu0 %v2087
      %v2258 = vpop.f32.mrf.mxu0
      %v2259 = vadd.f32 0.0, %v2258
      %v2260 = vpop.f32.mrf.mxu0
      %v2261 = vpop.f32.mrf.mxu0
      %v2262 = vadd.f32 0.0, %v2261
      %v2263 = vpop.f32.mrf.mxu0
      %2264 = vmatprep.mubr.bf16.mxu0 0
      %2265 = vmatmul.mubr.bf16.gmra.mxu0 %v2088
      %v2266 = vpop.f32.mrf.mxu0
      %v2267 = vadd.f32 0.0, %v2266
      %v2268 = vpop.f32.mrf.mxu0
      %v2269 = vpop.f32.mrf.mxu0
      %v2270 = vadd.f32 0.0, %v2269
      %v2271 = vpop.f32.mrf.mxu0
      %2272 = vmatprep.mubr.bf16.mxu0 0
      %2273 = vmatmul.mubr.bf16.gmra.mxu0 %v2089
      %v2274 = vpop.f32.mrf.mxu0
      %v2275 = vadd.f32 0.0, %v2274
      %v2276 = vpop.f32.mrf.mxu0
      %v2277 = vpop.f32.mrf.mxu0
      %v2278 = vadd.f32 0.0, %v2277
      %v2279 = vpop.f32.mrf.mxu0
      %2280 = vmatprep.mubr.bf16.mxu0 0
      %2281 = vmatmul.mubr.bf16.gmra.mxu0 %v2090
      %v2282 = vpop.f32.mrf.mxu0
      %v2283 = vadd.f32 0.0, %v2282
      %v2284 = vpop.f32.mrf.mxu0
      %v2285 = vpop.f32.mrf.mxu0
      %v2286 = vadd.f32 0.0, %v2285
      %v2287 = vpop.f32.mrf.mxu0
      %2288 = vmatprep.mubr.bf16.mxu0 0
      %2289 = vmatmul.mubr.bf16.gmra.mxu0 %v2091
      %v2290 = vpop.f32.mrf.mxu0
      %v2291 = vadd.f32 0.0, %v2290
      %v2292 = vpop.f32.mrf.mxu0
      %v2293 = vpop.f32.mrf.mxu0
      %v2294 = vadd.f32 0.0, %v2293
      %v2295 = vpop.f32.mrf.mxu0
      %2296 = vmatprep.mubr.bf16.mxu0 0
      %2297 = vmatmul.mubr.bf16.gmra.mxu0 %v2092
      %v2298 = vpop.f32.mrf.mxu0
      %v2299 = vadd.f32 0.0, %v2298
      %v2300 = vpop.f32.mrf.mxu0
      %v2301 = vpop.f32.mrf.mxu0
      %v2302 = vadd.f32 0.0, %v2301
      %v2303 = vpop.f32.mrf.mxu0
      %2304 = vmatprep.mubr.bf16.mxu0 0
      %2305 = vmatmul.mubr.bf16.gmra.mxu0 %v2093
      %v2306 = vpop.f32.mrf.mxu0
      %v2307 = vadd.f32 0.0, %v2306
      %v2308 = vpop.f32.mrf.mxu0
      %v2309 = vpop.f32.mrf.mxu0
      %v2310 = vadd.f32 0.0, %v2309
      %v2311 = vpop.f32.mrf.mxu0
      %2312 = vmatprep.mubr.bf16.mxu0 0
      %2313 = vmatmul.mubr.bf16.gmra.mxu0 %v2094
      %v2314 = vpop.f32.mrf.mxu0
      %v2315 = vadd.f32 0.0, %v2314
      %v2316 = vpop.f32.mrf.mxu0
      %v2317 = vpop.f32.mrf.mxu0
      %v2318 = vadd.f32 0.0, %v2317
      %v2319 = vpop.f32.mrf.mxu0
      %2320 = vdwg.mxu0
      %v2337 = vunpack.c.l.b16 %v1999
      %v2338 = vunpack.c.l.b16 %v2000
      %v2339 = vunpack.c.l.b16 %v2001
      %v2340 = vunpack.c.l.b16 %v2002
      %v2341 = vunpack.c.l.b16 %v2003
      %v2342 = vunpack.c.l.b16 %v2004
      %v2343 = vunpack.c.l.b16 %v2005
      %v2344 = vunpack.c.l.b16 %v2006
      %v2345 = vunpack.c.l.b16 %v2007
      %v2346 = vunpack.c.l.b16 %v2008
      %v2347 = vunpack.c.l.b16 %v2009
      %v2348 = vunpack.c.l.b16 %v2010
      %v2349 = vunpack.c.l.b16 %v2011
      %v2350 = vunpack.c.l.b16 %v2012
      %v2351 = vunpack.c.l.b16 %v2013
      %v2352 = vunpack.c.l.b16 %v2014
      %v2353 = vpack.c.b16 %v2338, %v2337
      %v2354 = vpack.c.b16 %v2340, %v2339
      %v2355 = vpack.c.b16 %v2342, %v2341
      %v2356 = vpack.c.b16 %v2344, %v2343
      %v2357 = vpack.c.b16 %v2346, %v2345
      %v2358 = vpack.c.b16 %v2348, %v2347
      %v2359 = vpack.c.b16 %v2350, %v2349
      %v2360 = vpack.c.b16 %v2352, %v2351
      %2369 = vmatprep.subr.bf16.mxu0 0
      %2370 = vmatpush1.bf16.msra.mxu0 %v2360
      %2371 = vmatprep.subr.bf16.mxu0 0
      %2372 = vmatpush1.bf16.msra.mxu0 %v2359
      %2373 = vmatprep.subr.bf16.mxu0 0
      %2374 = vmatpush1.bf16.msra.mxu0 %v2358
      %2375 = vmatprep.subr.bf16.mxu0 0
      %2376 = vmatpush1.bf16.msra.mxu0 %v2357
      %2377 = vmatprep.subr.bf16.mxu0 0
      %2378 = vmatpush1.bf16.msra.mxu0 %v2356
      %2379 = vmatprep.subr.bf16.mxu0 0
      %2380 = vmatpush1.bf16.msra.mxu0 %v2355
      %2381 = vmatprep.subr.bf16.mxu0 0
      %2382 = vmatpush1.bf16.msra.mxu0 %v2354
      %2383 = vmatprep.subr.bf16.mxu0 0
      %2384 = vmatpush1.bf16.msra.mxu0 %v2353
      %2385 = vmatprep.subr.bf16.mxu0 0
      %2386 = vmatpush2.bf16.msra.mxu0 0
      %2387 = vmatprep.subr.bf16.mxu0 0
      %2388 = vmatpush2.bf16.msra.mxu0 0
      %2389 = vmatprep.subr.bf16.mxu0 0
      %2390 = vmatpush2.bf16.msra.mxu0 0
      %2391 = vmatprep.subr.bf16.mxu0 0
      %2392 = vmatpush2.bf16.msra.mxu0 0
      %2393 = vmatprep.subr.bf16.mxu0 0
      %2394 = vmatpush2.bf16.msra.mxu0 0
      %2395 = vmatprep.subr.bf16.mxu0 0
      %2396 = vmatpush2.bf16.msra.mxu0 0
      %2397 = vmatprep.subr.bf16.mxu0 0
      %2398 = vmatpush2.bf16.msra.mxu0 0
      %2399 = vmatprep.subr.bf16.mxu0 0
      %2400 = vmatpush2.bf16.msra.mxu0 0
      %2401 = vmatprep.mubr.bf16.mxu0 0
      %2402 = vmatmul.mubr.bf16.gmra.mxu0 %v1983
      %v2403 = vpop.f32.mrf.mxu0
      %v2404 = vadd.f32 %v2195, %v2403
      %v2405 = vpop.f32.mrf.mxu0
      %v2406 = vpop.f32.mrf.mxu0
      %v2407 = vadd.f32 %v2198, %v2406
      %v2408 = vpop.f32.mrf.mxu0
      %2409 = vmatprep.mubr.bf16.mxu0 0
      %2410 = vmatmul.mubr.bf16.gmra.mxu0 %v1984
      %v2411 = vpop.f32.mrf.mxu0
      %v2412 = vadd.f32 %v2203, %v2411
      %v2413 = vpop.f32.mrf.mxu0
      %v2414 = vpop.f32.mrf.mxu0
      %v2415 = vadd.f32 %v2206, %v2414
      %v2416 = vpop.f32.mrf.mxu0
      %2417 = vmatprep.mubr.bf16.mxu0 0
      %2418 = vmatmul.mubr.bf16.gmra.mxu0 %v1985
      %v2419 = vpop.f32.mrf.mxu0
      %v2420 = vadd.f32 %v2211, %v2419
      %v2421 = vpop.f32.mrf.mxu0
      %v2422 = vpop.f32.mrf.mxu0
      %v2423 = vadd.f32 %v2214, %v2422
      %v2424 = vpop.f32.mrf.mxu0
      %2425 = vmatprep.mubr.bf16.mxu0 0
      %2426 = vmatmul.mubr.bf16.gmra.mxu0 %v1986
      %v2427 = vpop.f32.mrf.mxu0
      %v2428 = vadd.f32 %v2219, %v2427
      %v2429 = vpop.f32.mrf.mxu0
      %v2430 = vpop.f32.mrf.mxu0
      %v2431 = vadd.f32 %v2222, %v2430
      %v2432 = vpop.f32.mrf.mxu0
      %2433 = vmatprep.mubr.bf16.mxu0 0
      %2434 = vmatmul.mubr.bf16.gmra.mxu0 %v1987
      %v2435 = vpop.f32.mrf.mxu0
      %v2436 = vadd.f32 %v2227, %v2435
      %v2437 = vpop.f32.mrf.mxu0
      %v2438 = vpop.f32.mrf.mxu0
      %v2439 = vadd.f32 %v2230, %v2438
      %v2440 = vpop.f32.mrf.mxu0
      %2441 = vmatprep.mubr.bf16.mxu0 0
      %2442 = vmatmul.mubr.bf16.gmra.mxu0 %v1988
      %v2443 = vpop.f32.mrf.mxu0
      %v2444 = vadd.f32 %v2235, %v2443
      %v2445 = vpop.f32.mrf.mxu0
      %v2446 = vpop.f32.mrf.mxu0
      %v2447 = vadd.f32 %v2238, %v2446
      %v2448 = vpop.f32.mrf.mxu0
      %2449 = vmatprep.mubr.bf16.mxu0 0
      %2450 = vmatmul.mubr.bf16.gmra.mxu0 %v1989
      %v2451 = vpop.f32.mrf.mxu0
      %v2452 = vadd.f32 %v2243, %v2451
      %v2453 = vpop.f32.mrf.mxu0
      %v2454 = vpop.f32.mrf.mxu0
      %v2455 = vadd.f32 %v2246, %v2454
      %v2456 = vpop.f32.mrf.mxu0
      %2457 = vmatprep.mubr.bf16.mxu0 0
      %2458 = vmatmul.mubr.bf16.gmra.mxu0 %v1990
      %v2459 = vpop.f32.mrf.mxu0
      %v2460 = vadd.f32 %v2251, %v2459
      %v2461 = vpop.f32.mrf.mxu0
      %v2462 = vpop.f32.mrf.mxu0
      %v2463 = vadd.f32 %v2254, %v2462
      %v2464 = vpop.f32.mrf.mxu0
      %2465 = vmatprep.mubr.bf16.mxu0 0
      %2466 = vmatmul.mubr.bf16.gmra.mxu0 %v1991
      %v2467 = vpop.f32.mrf.mxu0
      %v2468 = vadd.f32 %v2259, %v2467
      %v2469 = vpop.f32.mrf.mxu0
      %v2470 = vpop.f32.mrf.mxu0
      %v2471 = vadd.f32 %v2262, %v2470
      %v2472 = vpop.f32.mrf.mxu0
      %2473 = vmatprep.mubr.bf16.mxu0 0
      %2474 = vmatmul.mubr.bf16.gmra.mxu0 %v1992
      %v2475 = vpop.f32.mrf.mxu0
      %v2476 = vadd.f32 %v2267, %v2475
      %v2477 = vpop.f32.mrf.mxu0
      %v2478 = vpop.f32.mrf.mxu0
      %v2479 = vadd.f32 %v2270, %v2478
      %v2480 = vpop.f32.mrf.mxu0
      %2481 = vmatprep.mubr.bf16.mxu0 0
      %2482 = vmatmul.mubr.bf16.gmra.mxu0 %v1993
      %v2483 = vpop.f32.mrf.mxu0
      %v2484 = vadd.f32 %v2275, %v2483
      %v2485 = vpop.f32.mrf.mxu0
      %v2486 = vpop.f32.mrf.mxu0
      %v2487 = vadd.f32 %v2278, %v2486
      %v2488 = vpop.f32.mrf.mxu0
      %2489 = vmatprep.mubr.bf16.mxu0 0
      %2490 = vmatmul.mubr.bf16.gmra.mxu0 %v1994
      %v2491 = vpop.f32.mrf.mxu0
      %v2492 = vadd.f32 %v2283, %v2491
      %v2493 = vpop.f32.mrf.mxu0
      %v2494 = vpop.f32.mrf.mxu0
      %v2495 = vadd.f32 %v2286, %v2494
      %v2496 = vpop.f32.mrf.mxu0
      %2497 = vmatprep.mubr.bf16.mxu0 0
      %2498 = vmatmul.mubr.bf16.gmra.mxu0 %v1995
      %v2499 = vpop.f32.mrf.mxu0
      %v2500 = vadd.f32 %v2291, %v2499
      %v2501 = vpop.f32.mrf.mxu0
      %v2502 = vpop.f32.mrf.mxu0
      %v2503 = vadd.f32 %v2294, %v2502
      %v2504 = vpop.f32.mrf.mxu0
      %2505 = vmatprep.mubr.bf16.mxu0 0
      %2506 = vmatmul.mubr.bf16.gmra.mxu0 %v1996
      %v2507 = vpop.f32.mrf.mxu0
      %v2508 = vadd.f32 %v2299, %v2507
      %v2509 = vpop.f32.mrf.mxu0
      %v2510 = vpop.f32.mrf.mxu0
      %v2511 = vadd.f32 %v2302, %v2510
      %v2512 = vpop.f32.mrf.mxu0
      %2513 = vmatprep.mubr.bf16.mxu0 0
      %2514 = vmatmul.mubr.bf16.gmra.mxu0 %v1997
      %v2515 = vpop.f32.mrf.mxu0
      %v2516 = vadd.f32 %v2307, %v2515
      %v2517 = vpop.f32.mrf.mxu0
      %v2518 = vpop.f32.mrf.mxu0
      %v2519 = vadd.f32 %v2310, %v2518
      %v2520 = vpop.f32.mrf.mxu0
      %2521 = vmatprep.mubr.bf16.mxu0 0
      %2522 = vmatmul.mubr.bf16.gmra.mxu0 %v1998
      %v2523 = vpop.f32.mrf.mxu0
      %v2524 = vadd.f32 %v2315, %v2523
      %v2525 = vpop.f32.mrf.mxu0
      %v2526 = vpop.f32.mrf.mxu0
      %v2527 = vadd.f32 %v2318, %v2526
      %v2528 = vpop.f32.mrf.mxu0
      %2529 = vdwg.mxu0
      %s2530 = scalar_lea.vmem [#allocation2], 2
      %v2531 = vld [vmem:[%s2530] ss:$2 sm:$0xff]
      %s2532 = scalar_lea.vmem [#allocation2], 18
      %v2533 = vld [vmem:[%s2532] ss:$2 sm:$0xff]
      %s2534 = scalar_lea.vmem [#allocation2], 82
      %v2535 = vld [vmem:[%s2534] ss:$2 sm:$0xff]
      %s2536 = scalar_lea.vmem [#allocation2], 98
      %v2537 = vld [vmem:[%s2536] ss:$2 sm:$0xff]
      %s2538 = scalar_lea.vmem [#allocation2], 162
      %v2539 = vld [vmem:[%s2538] ss:$2 sm:$0xff]
      %s2540 = scalar_lea.vmem [#allocation2], 178
      %v2541 = vld [vmem:[%s2540] ss:$2 sm:$0xff]
      %s2542 = scalar_lea.vmem [#allocation2], 242
      %v2543 = vld [vmem:[%s2542] ss:$2 sm:$0xff]
      %s2544 = scalar_lea.vmem [#allocation2], 258
      %v2545 = vld [vmem:[%s2544] ss:$2 sm:$0xff]
      %s2546 = scalar_lea.vmem [#allocation2], 322
      %v2547 = vld [vmem:[%s2546] ss:$2 sm:$0xff]
      %s2548 = scalar_lea.vmem [#allocation2], 338
      %v2549 = vld [vmem:[%s2548] ss:$2 sm:$0xff]
      %s2550 = scalar_lea.vmem [#allocation2], 402
      %v2551 = vld [vmem:[%s2550] ss:$2 sm:$0xff]
      %s2552 = scalar_lea.vmem [#allocation2], 418
      %v2553 = vld [vmem:[%s2552] ss:$2 sm:$0xff]
      %s2554 = scalar_lea.vmem [#allocation2], 482
      %v2555 = vld [vmem:[%s2554] ss:$2 sm:$0xff]
      %s2556 = scalar_lea.vmem [#allocation2], 498
      %v2557 = vld [vmem:[%s2556] ss:$2 sm:$0xff]
      %s2558 = scalar_lea.vmem [#allocation2], 562
      %v2559 = vld [vmem:[%s2558] ss:$2 sm:$0xff]
      %s2560 = scalar_lea.vmem [#allocation2], 578
      %v2561 = vld [vmem:[%s2560] ss:$2 sm:$0xff]
      %s2562 = scalar_lea.vmem [#allocation2], 642
      %v2563 = vld [vmem:[%s2562] ss:$2 sm:$0xff]
      %s2564 = scalar_lea.vmem [#allocation2], 658
      %v2565 = vld [vmem:[%s2564] ss:$2 sm:$0xff]
      %s2566 = scalar_lea.vmem [#allocation2], 722
      %v2567 = vld [vmem:[%s2566] ss:$2 sm:$0xff]
      %s2568 = scalar_lea.vmem [#allocation2], 738
      %v2569 = vld [vmem:[%s2568] ss:$2 sm:$0xff]
      %s2570 = scalar_lea.vmem [#allocation2], 802
      %v2571 = vld [vmem:[%s2570] ss:$2 sm:$0xff]
      %s2572 = scalar_lea.vmem [#allocation2], 818
      %v2573 = vld [vmem:[%s2572] ss:$2 sm:$0xff]
      %s2574 = scalar_lea.vmem [#allocation2], 882
      %v2575 = vld [vmem:[%s2574] ss:$2 sm:$0xff]
      %s2576 = scalar_lea.vmem [#allocation2], 898
      %v2577 = vld [vmem:[%s2576] ss:$2 sm:$0xff]
      %s2578 = scalar_lea.vmem [#allocation2], 962
      %v2579 = vld [vmem:[%s2578] ss:$2 sm:$0xff]
      %s2580 = scalar_lea.vmem [#allocation2], 978
      %v2581 = vld [vmem:[%s2580] ss:$2 sm:$0xff]
      %s2582 = scalar_lea.vmem [#allocation2], 1042
      %v2583 = vld [vmem:[%s2582] ss:$2 sm:$0xff]
      %s2584 = scalar_lea.vmem [#allocation2], 1058
      %v2585 = vld [vmem:[%s2584] ss:$2 sm:$0xff]
      %s2586 = scalar_lea.vmem [#allocation2], 1122
      %v2587 = vld [vmem:[%s2586] ss:$2 sm:$0xff]
      %s2588 = scalar_lea.vmem [#allocation2], 1138
      %v2589 = vld [vmem:[%s2588] ss:$2 sm:$0xff]
      %s2590 = scalar_lea.vmem [#allocation2], 1202
      %v2591 = vld [vmem:[%s2590] ss:$2 sm:$0xff]
      %s2592 = scalar_lea.vmem [#allocation2], 1218
      %v2593 = vld [vmem:[%s2592] ss:$2 sm:$0xff]
      %v2594 = vpack.c.bf16 %v2533, %v2531
      %v2595 = vpack.c.bf16 %v2537, %v2535
      %v2596 = vpack.c.bf16 %v2541, %v2539
      %v2597 = vpack.c.bf16 %v2545, %v2543
      %v2598 = vpack.c.bf16 %v2549, %v2547
      %v2599 = vpack.c.bf16 %v2553, %v2551
      %v2600 = vpack.c.bf16 %v2557, %v2555
      %v2601 = vpack.c.bf16 %v2561, %v2559
      %v2602 = vpack.c.bf16 %v2565, %v2563
      %v2603 = vpack.c.bf16 %v2569, %v2567
      %v2604 = vpack.c.bf16 %v2573, %v2571
      %v2605 = vpack.c.bf16 %v2577, %v2575
      %v2606 = vpack.c.bf16 %v2581, %v2579
      %v2607 = vpack.c.bf16 %v2585, %v2583
      %v2608 = vpack.c.bf16 %v2589, %v2587
      %v2609 = vpack.c.bf16 %v2593, %v2591
      %s2610 = scalar_lea.vmem %s3, 128
      %v2611 = vld [vmem:[%s2610] sm:$0xf]
      %v2612 = vld [vmem:[%s2610 + $0x4] sm:$0xf]
      %v2613 = vld [vmem:[%s2610 + $0x8] sm:$0xf]
      %v2614 = vld [vmem:[%s2610 + $0xc] sm:$0xf]
      %v2615 = vld [vmem:[%s2610 + $0x10] sm:$0xf]
      %v2616 = vld [vmem:[%s2610 + $0x14] sm:$0xf]
      %v2617 = vld [vmem:[%s2610 + $0x18] sm:$0xf]
      %v2618 = vld [vmem:[%s2610 + $0x1c] sm:$0xf]
      %v2619 = vld [vmem:[%s2610 + $0x20] sm:$0xf]
      %v2620 = vld [vmem:[%s2610 + $0x24] sm:$0xf]
      %v2621 = vld [vmem:[%s2610 + $0x28] sm:$0xf]
      %v2622 = vld [vmem:[%s2610 + $0x2c] sm:$0xf]
      %v2623 = vld [vmem:[%s2610 + $0x30] sm:$0xf]
      %v2624 = vld [vmem:[%s2610 + $0x34] sm:$0xf]
      %v2625 = vld [vmem:[%s2610 + $0x38] sm:$0xf]
      %v2626 = vld [vmem:[%s2610 + $0x3c] sm:$0xf]
      %v2643 = vunpack.c.l.b16 %v2611
      %v2644 = vunpack.c.l.b16 %v2612
      %v2645 = vunpack.c.l.b16 %v2613
      %v2646 = vunpack.c.l.b16 %v2614
      %v2647 = vunpack.c.l.b16 %v2615
      %v2648 = vunpack.c.l.b16 %v2616
      %v2649 = vunpack.c.l.b16 %v2617
      %v2650 = vunpack.c.l.b16 %v2618
      %v2651 = vunpack.c.l.b16 %v2619
      %v2652 = vunpack.c.l.b16 %v2620
      %v2653 = vunpack.c.l.b16 %v2621
      %v2654 = vunpack.c.l.b16 %v2622
      %v2655 = vunpack.c.l.b16 %v2623
      %v2656 = vunpack.c.l.b16 %v2624
      %v2657 = vunpack.c.l.b16 %v2625
      %v2658 = vunpack.c.l.b16 %v2626
      %v2659 = vpack.c.b16 %v2644, %v2643
      %v2660 = vpack.c.b16 %v2646, %v2645
      %v2661 = vpack.c.b16 %v2648, %v2647
      %v2662 = vpack.c.b16 %v2650, %v2649
      %v2663 = vpack.c.b16 %v2652, %v2651
      %v2664 = vpack.c.b16 %v2654, %v2653
      %v2665 = vpack.c.b16 %v2656, %v2655
      %v2666 = vpack.c.b16 %v2658, %v2657
      %2675 = vmatprep.subr.bf16.mxu0 0
      %2676 = vmatpush1.bf16.msra.mxu0 %v2666
      %2677 = vmatprep.subr.bf16.mxu0 0
      %2678 = vmatpush1.bf16.msra.mxu0 %v2665
      %2679 = vmatprep.subr.bf16.mxu0 0
      %2680 = vmatpush1.bf16.msra.mxu0 %v2664
      %2681 = vmatprep.subr.bf16.mxu0 0
      %2682 = vmatpush1.bf16.msra.mxu0 %v2663
      %2683 = vmatprep.subr.bf16.mxu0 0
      %2684 = vmatpush1.bf16.msra.mxu0 %v2662
      %2685 = vmatprep.subr.bf16.mxu0 0
      %2686 = vmatpush1.bf16.msra.mxu0 %v2661
      %2687 = vmatprep.subr.bf16.mxu0 0
      %2688 = vmatpush1.bf16.msra.mxu0 %v2660
      %2689 = vmatprep.subr.bf16.mxu0 0
      %2690 = vmatpush1.bf16.msra.mxu0 %v2659
      %2691 = vmatprep.subr.bf16.mxu0 0
      %2692 = vmatpush2.bf16.msra.mxu0 0
      %2693 = vmatprep.subr.bf16.mxu0 0
      %2694 = vmatpush2.bf16.msra.mxu0 0
      %2695 = vmatprep.subr.bf16.mxu0 0
      %2696 = vmatpush2.bf16.msra.mxu0 0
      %2697 = vmatprep.subr.bf16.mxu0 0
      %2698 = vmatpush2.bf16.msra.mxu0 0
      %2699 = vmatprep.subr.bf16.mxu0 0
      %2700 = vmatpush2.bf16.msra.mxu0 0
      %2701 = vmatprep.subr.bf16.mxu0 0
      %2702 = vmatpush2.bf16.msra.mxu0 0
      %2703 = vmatprep.subr.bf16.mxu0 0
      %2704 = vmatpush2.bf16.msra.mxu0 0
      %2705 = vmatprep.subr.bf16.mxu0 0
      %2706 = vmatpush2.bf16.msra.mxu0 0
      %2707 = vmatprep.mubr.bf16.mxu0 0
      %2708 = vmatmul.mubr.bf16.gmra.mxu0 %v2594
      %v2709 = vpop.f32.mrf.mxu0
      %v2710 = vadd.f32 0.0, %v2709
      %v2711 = vpop.f32.mrf.mxu0
      %v2712 = vpop.f32.mrf.mxu0
      %v2713 = vadd.f32 0.0, %v2712
      %v2714 = vpop.f32.mrf.mxu0
      %2715 = vmatprep.mubr.bf16.mxu0 0
      %2716 = vmatmul.mubr.bf16.gmra.mxu0 %v2595
      %v2717 = vpop.f32.mrf.mxu0
      %v2718 = vadd.f32 0.0, %v2717
      %v2719 = vpop.f32.mrf.mxu0
      %v2720 = vpop.f32.mrf.mxu0
      %v2721 = vadd.f32 0.0, %v2720
      %v2722 = vpop.f32.mrf.mxu0
      %2723 = vmatprep.mubr.bf16.mxu0 0
      %2724 = vmatmul.mubr.bf16.gmra.mxu0 %v2596
      %v2725 = vpop.f32.mrf.mxu0
      %v2726 = vadd.f32 0.0, %v2725
      %v2727 = vpop.f32.mrf.mxu0
      %v2728 = vpop.f32.mrf.mxu0
      %v2729 = vadd.f32 0.0, %v2728
      %v2730 = vpop.f32.mrf.mxu0
      %2731 = vmatprep.mubr.bf16.mxu0 0
      %2732 = vmatmul.mubr.bf16.gmra.mxu0 %v2597
      %v2733 = vpop.f32.mrf.mxu0
      %v2734 = vadd.f32 0.0, %v2733
      %v2735 = vpop.f32.mrf.mxu0
      %v2736 = vpop.f32.mrf.mxu0
      %v2737 = vadd.f32 0.0, %v2736
      %v2738 = vpop.f32.mrf.mxu0
      %2739 = vmatprep.mubr.bf16.mxu0 0
      %2740 = vmatmul.mubr.bf16.gmra.mxu0 %v2598
      %v2741 = vpop.f32.mrf.mxu0
      %v2742 = vadd.f32 0.0, %v2741
      %v2743 = vpop.f32.mrf.mxu0
      %v2744 = vpop.f32.mrf.mxu0
      %v2745 = vadd.f32 0.0, %v2744
      %v2746 = vpop.f32.mrf.mxu0
      %2747 = vmatprep.mubr.bf16.mxu0 0
      %2748 = vmatmul.mubr.bf16.gmra.mxu0 %v2599
      %v2749 = vpop.f32.mrf.mxu0
      %v2750 = vadd.f32 0.0, %v2749
      %v2751 = vpop.f32.mrf.mxu0
      %v2752 = vpop.f32.mrf.mxu0
      %v2753 = vadd.f32 0.0, %v2752
      %v2754 = vpop.f32.mrf.mxu0
      %2755 = vmatprep.mubr.bf16.mxu0 0
      %2756 = vmatmul.mubr.bf16.gmra.mxu0 %v2600
      %v2757 = vpop.f32.mrf.mxu0
      %v2758 = vadd.f32 0.0, %v2757
      %v2759 = vpop.f32.mrf.mxu0
      %v2760 = vpop.f32.mrf.mxu0
      %v2761 = vadd.f32 0.0, %v2760
      %v2762 = vpop.f32.mrf.mxu0
      %2763 = vmatprep.mubr.bf16.mxu0 0
      %2764 = vmatmul.mubr.bf16.gmra.mxu0 %v2601
      %v2765 = vpop.f32.mrf.mxu0
      %v2766 = vadd.f32 0.0, %v2765
      %v2767 = vpop.f32.mrf.mxu0
      %v2768 = vpop.f32.mrf.mxu0
      %v2769 = vadd.f32 0.0, %v2768
      %v2770 = vpop.f32.mrf.mxu0
      %2771 = vmatprep.mubr.bf16.mxu0 0
      %2772 = vmatmul.mubr.bf16.gmra.mxu0 %v2602
      %v2773 = vpop.f32.mrf.mxu0
      %v2774 = vadd.f32 0.0, %v2773
      %v2775 = vpop.f32.mrf.mxu0
      %v2776 = vpop.f32.mrf.mxu0
      %v2777 = vadd.f32 0.0, %v2776
      %v2778 = vpop.f32.mrf.mxu0
      %2779 = vmatprep.mubr.bf16.mxu0 0
      %2780 = vmatmul.mubr.bf16.gmra.mxu0 %v2603
      %v2781 = vpop.f32.mrf.mxu0
      %v2782 = vadd.f32 0.0, %v2781
      %v2783 = vpop.f32.mrf.mxu0
      %v2784 = vpop.f32.mrf.mxu0
      %v2785 = vadd.f32 0.0, %v2784
      %v2786 = vpop.f32.mrf.mxu0
      %2787 = vmatprep.mubr.bf16.mxu0 0
      %2788 = vmatmul.mubr.bf16.gmra.mxu0 %v2604
      %v2789 = vpop.f32.mrf.mxu0
      %v2790 = vadd.f32 0.0, %v2789
      %v2791 = vpop.f32.mrf.mxu0
      %v2792 = vpop.f32.mrf.mxu0
      %v2793 = vadd.f32 0.0, %v2792
      %v2794 = vpop.f32.mrf.mxu0
      %2795 = vmatprep.mubr.bf16.mxu0 0
      %2796 = vmatmul.mubr.bf16.gmra.mxu0 %v2605
      %v2797 = vpop.f32.mrf.mxu0
      %v2798 = vadd.f32 0.0, %v2797
      %v2799 = vpop.f32.mrf.mxu0
      %v2800 = vpop.f32.mrf.mxu0
      %v2801 = vadd.f32 0.0, %v2800
      %v2802 = vpop.f32.mrf.mxu0
      %2803 = vmatprep.mubr.bf16.mxu0 0
      %2804 = vmatmul.mubr.bf16.gmra.mxu0 %v2606
      %v2805 = vpop.f32.mrf.mxu0
      %v2806 = vadd.f32 0.0, %v2805
      %v2807 = vpop.f32.mrf.mxu0
      %v2808 = vpop.f32.mrf.mxu0
      %v2809 = vadd.f32 0.0, %v2808
      %v2810 = vpop.f32.mrf.mxu0
      %2811 = vmatprep.mubr.bf16.mxu0 0
      %2812 = vmatmul.mubr.bf16.gmra.mxu0 %v2607
      %v2813 = vpop.f32.mrf.mxu0
      %v2814 = vadd.f32 0.0, %v2813
      %v2815 = vpop.f32.mrf.mxu0
      %v2816 = vpop.f32.mrf.mxu0
      %v2817 = vadd.f32 0.0, %v2816
      %v2818 = vpop.f32.mrf.mxu0
      %2819 = vmatprep.mubr.bf16.mxu0 0
      %2820 = vmatmul.mubr.bf16.gmra.mxu0 %v2608
      %v2821 = vpop.f32.mrf.mxu0
      %v2822 = vadd.f32 0.0, %v2821
      %v2823 = vpop.f32.mrf.mxu0
      %v2824 = vpop.f32.mrf.mxu0
      %v2825 = vadd.f32 0.0, %v2824
      %v2826 = vpop.f32.mrf.mxu0
      %2827 = vmatprep.mubr.bf16.mxu0 0
      %2828 = vmatmul.mubr.bf16.gmra.mxu0 %v2609
      %v2829 = vpop.f32.mrf.mxu0
      %v2830 = vadd.f32 0.0, %v2829
      %v2831 = vpop.f32.mrf.mxu0
      %v2832 = vpop.f32.mrf.mxu0
      %v2833 = vadd.f32 0.0, %v2832
      %v2834 = vpop.f32.mrf.mxu0
      %2835 = vdwg.mxu0
      %v2836 = vadd.f32 %v2404, %v2710
      %v2837 = vadd.f32 %v2407, %v2713
      %v2838 = vadd.f32 %v2412, %v2718
      %v2839 = vadd.f32 %v2415, %v2721
      %v2840 = vadd.f32 %v2420, %v2726
      %v2841 = vadd.f32 %v2423, %v2729
      %v2842 = vadd.f32 %v2428, %v2734
      %v2843 = vadd.f32 %v2431, %v2737
      %v2844 = vadd.f32 %v2436, %v2742
      %v2845 = vadd.f32 %v2439, %v2745
      %v2846 = vadd.f32 %v2444, %v2750
      %v2847 = vadd.f32 %v2447, %v2753
      %v2848 = vadd.f32 %v2452, %v2758
      %v2849 = vadd.f32 %v2455, %v2761
      %v2850 = vadd.f32 %v2460, %v2766
      %v2851 = vadd.f32 %v2463, %v2769
      %v2852 = vadd.f32 %v2468, %v2774
      %v2853 = vadd.f32 %v2471, %v2777
      %v2854 = vadd.f32 %v2476, %v2782
      %v2855 = vadd.f32 %v2479, %v2785
      %v2856 = vadd.f32 %v2484, %v2790
      %v2857 = vadd.f32 %v2487, %v2793
      %v2858 = vadd.f32 %v2492, %v2798
      %v2859 = vadd.f32 %v2495, %v2801
      %v2860 = vadd.f32 %v2500, %v2806
      %v2861 = vadd.f32 %v2503, %v2809
      %v2862 = vadd.f32 %v2508, %v2814
      %v2863 = vadd.f32 %v2511, %v2817
      %v2864 = vadd.f32 %v2516, %v2822
      %v2865 = vadd.f32 %v2519, %v2825
      %v2866 = vadd.f32 %v2524, %v2830
      %v2867 = vadd.f32 %v2527, %v2833
      %v2868 = vld [vmem:[%s1791] ss:$2 sm:$0xff]
      %s2869 = scalar_lea.vmem %s1791, 16 [#allocation2]
      %v2870 = vld [vmem:[%s2869] ss:$2 sm:$0xff]
      %s2871 = scalar_lea.vmem %s1791, 80 [#allocation2]
      %v2872 = vld [vmem:[%s2871] ss:$2 sm:$0xff]
      %s2873 = scalar_lea.vmem %s1791, 96 [#allocation2]
      %v2874 = vld [vmem:[%s2873] ss:$2 sm:$0xff]
      %s2875 = scalar_lea.vmem %s1791, 160 [#allocation2]
      %v2876 = vld [vmem:[%s2875] ss:$2 sm:$0xff]
      %s2877 = scalar_lea.vmem %s1791, 176 [#allocation2]
      %v2878 = vld [vmem:[%s2877] ss:$2 sm:$0xff]
      %s2879 = scalar_lea.vmem %s1791, 240 [#allocation2]
      %v2880 = vld [vmem:[%s2879] ss:$2 sm:$0xff]
      %s2881 = scalar_lea.vmem %s1791, 256 [#allocation2]
      %v2882 = vld [vmem:[%s2881] ss:$2 sm:$0xff]
      %s2883 = scalar_lea.vmem %s1791, 320 [#allocation2]
      %v2884 = vld [vmem:[%s2883] ss:$2 sm:$0xff]
      %s2885 = scalar_lea.vmem %s1791, 336 [#allocation2]
      %v2886 = vld [vmem:[%s2885] ss:$2 sm:$0xff]
      %s2887 = scalar_lea.vmem %s1791, 400 [#allocation2]
      %v2888 = vld [vmem:[%s2887] ss:$2 sm:$0xff]
      %s2889 = scalar_lea.vmem %s1791, 416 [#allocation2]
      %v2890 = vld [vmem:[%s2889] ss:$2 sm:$0xff]
      %s2891 = scalar_lea.vmem %s1791, 480 [#allocation2]
      %v2892 = vld [vmem:[%s2891] ss:$2 sm:$0xff]
      %s2893 = scalar_lea.vmem %s1791, 496 [#allocation2]
      %v2894 = vld [vmem:[%s2893] ss:$2 sm:$0xff]
      %s2895 = scalar_lea.vmem %s1791, 560 [#allocation2]
      %v2896 = vld [vmem:[%s2895] ss:$2 sm:$0xff]
      %s2897 = scalar_lea.vmem %s1791, 576 [#allocation2]
      %v2898 = vld [vmem:[%s2897] ss:$2 sm:$0xff]
      %s2899 = scalar_lea.vmem %s1791, 640 [#allocation2]
      %v2900 = vld [vmem:[%s2899] ss:$2 sm:$0xff]
      %s2901 = scalar_lea.vmem %s1791, 656 [#allocation2]
      %v2902 = vld [vmem:[%s2901] ss:$2 sm:$0xff]
      %s2903 = scalar_lea.vmem %s1791, 720 [#allocation2]
      %v2904 = vld [vmem:[%s2903] ss:$2 sm:$0xff]
      %s2905 = scalar_lea.vmem %s1791, 736 [#allocation2]
      %v2906 = vld [vmem:[%s2905] ss:$2 sm:$0xff]
      %s2907 = scalar_lea.vmem %s1791, 800 [#allocation2]
      %v2908 = vld [vmem:[%s2907] ss:$2 sm:$0xff]
      %s2909 = scalar_lea.vmem %s1791, 816 [#allocation2]
      %v2910 = vld [vmem:[%s2909] ss:$2 sm:$0xff]
      %s2911 = scalar_lea.vmem %s1791, 880 [#allocation2]
      %v2912 = vld [vmem:[%s2911] ss:$2 sm:$0xff]
      %s2913 = scalar_lea.vmem %s1791, 896 [#allocation2]
      %v2914 = vld [vmem:[%s2913] ss:$2 sm:$0xff]
      %s2915 = scalar_lea.vmem %s1791, 960 [#allocation2]
      %v2916 = vld [vmem:[%s2915] ss:$2 sm:$0xff]
      %s2917 = scalar_lea.vmem %s1791, 976 [#allocation2]
      %v2918 = vld [vmem:[%s2917] ss:$2 sm:$0xff]
      %s2919 = scalar_lea.vmem %s1791, 1040 [#allocation2]
      %v2920 = vld [vmem:[%s2919] ss:$2 sm:$0xff]
      %s2921 = scalar_lea.vmem %s1791, 1056 [#allocation2]
      %v2922 = vld [vmem:[%s2921] ss:$2 sm:$0xff]
      %s2923 = scalar_lea.vmem %s1791, 1120 [#allocation2]
      %v2924 = vld [vmem:[%s2923] ss:$2 sm:$0xff]
      %s2925 = scalar_lea.vmem %s1791, 1136 [#allocation2]
      %v2926 = vld [vmem:[%s2925] ss:$2 sm:$0xff]
      %s2927 = scalar_lea.vmem %s1791, 1200 [#allocation2]
      %v2928 = vld [vmem:[%s2927] ss:$2 sm:$0xff]
      %s2929 = scalar_lea.vmem %s1791, 1216 [#allocation2]
      %v2930 = vld [vmem:[%s2929] ss:$2 sm:$0xff]
      %v2931 = vpack.c.bf16 %v2870, %v2868
      %v2932 = vpack.c.bf16 %v2874, %v2872
      %v2933 = vpack.c.bf16 %v2878, %v2876
      %v2934 = vpack.c.bf16 %v2882, %v2880
      %v2935 = vpack.c.bf16 %v2886, %v2884
      %v2936 = vpack.c.bf16 %v2890, %v2888
      %v2937 = vpack.c.bf16 %v2894, %v2892
      %v2938 = vpack.c.bf16 %v2898, %v2896
      %v2939 = vpack.c.bf16 %v2902, %v2900
      %v2940 = vpack.c.bf16 %v2906, %v2904
      %v2941 = vpack.c.bf16 %v2910, %v2908
      %v2942 = vpack.c.bf16 %v2914, %v2912
      %v2943 = vpack.c.bf16 %v2918, %v2916
      %v2944 = vpack.c.bf16 %v2922, %v2920
      %v2945 = vpack.c.bf16 %v2926, %v2924
      %v2946 = vpack.c.bf16 %v2930, %v2928
      %s2947 = scalar_lea.vmem %s3, 192
      %v2948 = vld [vmem:[%s2947] sm:$0xf]
      %v2949 = vld [vmem:[%s2947 + $0x4] sm:$0xf]
      %v2950 = vld [vmem:[%s2947 + $0x8] sm:$0xf]
      %v2951 = vld [vmem:[%s2947 + $0xc] sm:$0xf]
      %v2952 = vld [vmem:[%s2947 + $0x10] sm:$0xf]
      %v2953 = vld [vmem:[%s2947 + $0x14] sm:$0xf]
      %v2954 = vld [vmem:[%s2947 + $0x18] sm:$0xf]
      %v2955 = vld [vmem:[%s2947 + $0x1c] sm:$0xf]
      %v2956 = vld [vmem:[%s2947 + $0x20] sm:$0xf]
      %v2957 = vld [vmem:[%s2947 + $0x24] sm:$0xf]
      %v2958 = vld [vmem:[%s2947 + $0x28] sm:$0xf]
      %v2959 = vld [vmem:[%s2947 + $0x2c] sm:$0xf]
      %v2960 = vld [vmem:[%s2947 + $0x30] sm:$0xf]
      %v2961 = vld [vmem:[%s2947 + $0x34] sm:$0xf]
      %v2962 = vld [vmem:[%s2947 + $0x38] sm:$0xf]
      %v2963 = vld [vmem:[%s2947 + $0x3c] sm:$0xf]
      %v2980 = vunpack.c.l.b16 %v2948
      %v2981 = vunpack.c.l.b16 %v2949
      %v2982 = vunpack.c.l.b16 %v2950
      %v2983 = vunpack.c.l.b16 %v2951
      %v2984 = vunpack.c.l.b16 %v2952
      %v2985 = vunpack.c.l.b16 %v2953
      %v2986 = vunpack.c.l.b16 %v2954
      %v2987 = vunpack.c.l.b16 %v2955
      %v2988 = vunpack.c.l.b16 %v2956
      %v2989 = vunpack.c.l.b16 %v2957
      %v2990 = vunpack.c.l.b16 %v2958
      %v2991 = vunpack.c.l.b16 %v2959
      %v2992 = vunpack.c.l.b16 %v2960
      %v2993 = vunpack.c.l.b16 %v2961
      %v2994 = vunpack.c.l.b16 %v2962
      %v2995 = vunpack.c.l.b16 %v2963
      %v2996 = vpack.c.b16 %v2981, %v2980
      %v2997 = vpack.c.b16 %v2983, %v2982
      %v2998 = vpack.c.b16 %v2985, %v2984
      %v2999 = vpack.c.b16 %v2987, %v2986
      %v3000 = vpack.c.b16 %v2989, %v2988
      %v3001 = vpack.c.b16 %v2991, %v2990
      %v3002 = vpack.c.b16 %v2993, %v2992
      %v3003 = vpack.c.b16 %v2995, %v2994
      %3012 = vmatprep.subr.bf16.mxu0 0
      %3013 = vmatpush1.bf16.msra.mxu0 %v3003
      %3014 = vmatprep.subr.bf16.mxu0 0
      %3015 = vmatpush1.bf16.msra.mxu0 %v3002
      %3016 = vmatprep.subr.bf16.mxu0 0
      %3017 = vmatpush1.bf16.msra.mxu0 %v3001
      %3018 = vmatprep.subr.bf16.mxu0 0
      %3019 = vmatpush1.bf16.msra.mxu0 %v3000
      %3020 = vmatprep.subr.bf16.mxu0 0
      %3021 = vmatpush1.bf16.msra.mxu0 %v2999
      %3022 = vmatprep.subr.bf16.mxu0 0
      %3023 = vmatpush1.bf16.msra.mxu0 %v2998
      %3024 = vmatprep.subr.bf16.mxu0 0
      %3025 = vmatpush1.bf16.msra.mxu0 %v2997
      %3026 = vmatprep.subr.bf16.mxu0 0
      %3027 = vmatpush1.bf16.msra.mxu0 %v2996
      %3028 = vmatprep.subr.bf16.mxu0 0
      %3029 = vmatpush2.bf16.msra.mxu0 0
      %3030 = vmatprep.subr.bf16.mxu0 0
      %3031 = vmatpush2.bf16.msra.mxu0 0
      %3032 = vmatprep.subr.bf16.mxu0 0
      %3033 = vmatpush2.bf16.msra.mxu0 0
      %3034 = vmatprep.subr.bf16.mxu0 0
      %3035 = vmatpush2.bf16.msra.mxu0 0
      %3036 = vmatprep.subr.bf16.mxu0 0
      %3037 = vmatpush2.bf16.msra.mxu0 0
      %3038 = vmatprep.subr.bf16.mxu0 0
      %3039 = vmatpush2.bf16.msra.mxu0 0
      %3040 = vmatprep.subr.bf16.mxu0 0
      %3041 = vmatpush2.bf16.msra.mxu0 0
      %3042 = vmatprep.subr.bf16.mxu0 0
      %3043 = vmatpush2.bf16.msra.mxu0 0
      %3044 = vmatprep.mubr.bf16.mxu0 0
      %3045 = vmatmul.mubr.bf16.gmra.mxu0 %v2931
      %v3046 = vpop.f32.mrf.mxu0
      %v3047 = vadd.f32 0.0, %v3046
      %v3048 = vpop.f32.mrf.mxu0
      %v3049 = vpop.f32.mrf.mxu0
      %v3050 = vadd.f32 0.0, %v3049
      %v3051 = vpop.f32.mrf.mxu0
      %3052 = vmatprep.mubr.bf16.mxu0 0
      %3053 = vmatmul.mubr.bf16.gmra.mxu0 %v2932
      %v3054 = vpop.f32.mrf.mxu0
      %v3055 = vadd.f32 0.0, %v3054
      %v3056 = vpop.f32.mrf.mxu0
      %v3057 = vpop.f32.mrf.mxu0
      %v3058 = vadd.f32 0.0, %v3057
      %v3059 = vpop.f32.mrf.mxu0
      %3060 = vmatprep.mubr.bf16.mxu0 0
      %3061 = vmatmul.mubr.bf16.gmra.mxu0 %v2933
      %v3062 = vpop.f32.mrf.mxu0
      %v3063 = vadd.f32 0.0, %v3062
      %v3064 = vpop.f32.mrf.mxu0
      %v3065 = vpop.f32.mrf.mxu0
      %v3066 = vadd.f32 0.0, %v3065
      %v3067 = vpop.f32.mrf.mxu0
      %3068 = vmatprep.mubr.bf16.mxu0 0
      %3069 = vmatmul.mubr.bf16.gmra.mxu0 %v2934
      %v3070 = vpop.f32.mrf.mxu0
      %v3071 = vadd.f32 0.0, %v3070
      %v3072 = vpop.f32.mrf.mxu0
      %v3073 = vpop.f32.mrf.mxu0
      %v3074 = vadd.f32 0.0, %v3073
      %v3075 = vpop.f32.mrf.mxu0
      %3076 = vmatprep.mubr.bf16.mxu0 0
      %3077 = vmatmul.mubr.bf16.gmra.mxu0 %v2935
      %v3078 = vpop.f32.mrf.mxu0
      %v3079 = vadd.f32 0.0, %v3078
      %v3080 = vpop.f32.mrf.mxu0
      %v3081 = vpop.f32.mrf.mxu0
      %v3082 = vadd.f32 0.0, %v3081
      %v3083 = vpop.f32.mrf.mxu0
      %3084 = vmatprep.mubr.bf16.mxu0 0
      %3085 = vmatmul.mubr.bf16.gmra.mxu0 %v2936
      %v3086 = vpop.f32.mrf.mxu0
      %v3087 = vadd.f32 0.0, %v3086
      %v3088 = vpop.f32.mrf.mxu0
      %v3089 = vpop.f32.mrf.mxu0
      %v3090 = vadd.f32 0.0, %v3089
      %v3091 = vpop.f32.mrf.mxu0
      %3092 = vmatprep.mubr.bf16.mxu0 0
      %3093 = vmatmul.mubr.bf16.gmra.mxu0 %v2937
      %v3094 = vpop.f32.mrf.mxu0
      %v3095 = vadd.f32 0.0, %v3094
      %v3096 = vpop.f32.mrf.mxu0
      %v3097 = vpop.f32.mrf.mxu0
      %v3098 = vadd.f32 0.0, %v3097
      %v3099 = vpop.f32.mrf.mxu0
      %3100 = vmatprep.mubr.bf16.mxu0 0
      %3101 = vmatmul.mubr.bf16.gmra.mxu0 %v2938
      %v3102 = vpop.f32.mrf.mxu0
      %v3103 = vadd.f32 0.0, %v3102
      %v3104 = vpop.f32.mrf.mxu0
      %v3105 = vpop.f32.mrf.mxu0
      %v3106 = vadd.f32 0.0, %v3105
      %v3107 = vpop.f32.mrf.mxu0
      %3108 = vmatprep.mubr.bf16.mxu0 0
      %3109 = vmatmul.mubr.bf16.gmra.mxu0 %v2939
      %v3110 = vpop.f32.mrf.mxu0
      %v3111 = vadd.f32 0.0, %v3110
      %v3112 = vpop.f32.mrf.mxu0
      %v3113 = vpop.f32.mrf.mxu0
      %v3114 = vadd.f32 0.0, %v3113
      %v3115 = vpop.f32.mrf.mxu0
      %3116 = vmatprep.mubr.bf16.mxu0 0
      %3117 = vmatmul.mubr.bf16.gmra.mxu0 %v2940
      %v3118 = vpop.f32.mrf.mxu0
      %v3119 = vadd.f32 0.0, %v3118
      %v3120 = vpop.f32.mrf.mxu0
      %v3121 = vpop.f32.mrf.mxu0
      %v3122 = vadd.f32 0.0, %v3121
      %v3123 = vpop.f32.mrf.mxu0
      %3124 = vmatprep.mubr.bf16.mxu0 0
      %3125 = vmatmul.mubr.bf16.gmra.mxu0 %v2941
      %v3126 = vpop.f32.mrf.mxu0
      %v3127 = vadd.f32 0.0, %v3126
      %v3128 = vpop.f32.mrf.mxu0
      %v3129 = vpop.f32.mrf.mxu0
      %v3130 = vadd.f32 0.0, %v3129
      %v3131 = vpop.f32.mrf.mxu0
      %3132 = vmatprep.mubr.bf16.mxu0 0
      %3133 = vmatmul.mubr.bf16.gmra.mxu0 %v2942
      %v3134 = vpop.f32.mrf.mxu0
      %v3135 = vadd.f32 0.0, %v3134
      %v3136 = vpop.f32.mrf.mxu0
      %v3137 = vpop.f32.mrf.mxu0
      %v3138 = vadd.f32 0.0, %v3137
      %v3139 = vpop.f32.mrf.mxu0
      %3140 = vmatprep.mubr.bf16.mxu0 0
      %3141 = vmatmul.mubr.bf16.gmra.mxu0 %v2943
      %v3142 = vpop.f32.mrf.mxu0
      %v3143 = vadd.f32 0.0, %v3142
      %v3144 = vpop.f32.mrf.mxu0
      %v3145 = vpop.f32.mrf.mxu0
      %v3146 = vadd.f32 0.0, %v3145
      %v3147 = vpop.f32.mrf.mxu0
      %3148 = vmatprep.mubr.bf16.mxu0 0
      %3149 = vmatmul.mubr.bf16.gmra.mxu0 %v2944
      %v3150 = vpop.f32.mrf.mxu0
      %v3151 = vadd.f32 0.0, %v3150
      %v3152 = vpop.f32.mrf.mxu0
      %v3153 = vpop.f32.mrf.mxu0
      %v3154 = vadd.f32 0.0, %v3153
      %v3155 = vpop.f32.mrf.mxu0
      %3156 = vmatprep.mubr.bf16.mxu0 0
      %3157 = vmatmul.mubr.bf16.gmra.mxu0 %v2945
      %v3158 = vpop.f32.mrf.mxu0
      %v3159 = vadd.f32 0.0, %v3158
      %v3160 = vpop.f32.mrf.mxu0
      %v3161 = vpop.f32.mrf.mxu0
      %v3162 = vadd.f32 0.0, %v3161
      %v3163 = vpop.f32.mrf.mxu0
      %3164 = vmatprep.mubr.bf16.mxu0 0
      %3165 = vmatmul.mubr.bf16.gmra.mxu0 %v2946
      %v3166 = vpop.f32.mrf.mxu0
      %v3167 = vadd.f32 0.0, %v3166
      %v3168 = vpop.f32.mrf.mxu0
      %v3169 = vpop.f32.mrf.mxu0
      %v3170 = vadd.f32 0.0, %v3169
      %v3171 = vpop.f32.mrf.mxu0
      %3172 = vdwg.mxu0
      %v3173 = vadd.f32 %v2836, %v3047
      %v3174 = vadd.f32 %v2837, %v3050
      %v3175 = vadd.f32 %v2838, %v3055
      %v3176 = vadd.f32 %v2839, %v3058
      %v3177 = vadd.f32 %v2840, %v3063
      %v3178 = vadd.f32 %v2841, %v3066
      %v3179 = vadd.f32 %v2842, %v3071
      %v3180 = vadd.f32 %v2843, %v3074
      %v3181 = vadd.f32 %v2844, %v3079
      %v3182 = vadd.f32 %v2845, %v3082
      %v3183 = vadd.f32 %v2846, %v3087
      %v3184 = vadd.f32 %v2847, %v3090
      %v3185 = vadd.f32 %v2848, %v3095
      %v3186 = vadd.f32 %v2849, %v3098
      %v3187 = vadd.f32 %v2850, %v3103
      %v3188 = vadd.f32 %v2851, %v3106
      %v3189 = vadd.f32 %v2852, %v3111
      %v3190 = vadd.f32 %v2853, %v3114
      %v3191 = vadd.f32 %v2854, %v3119
      %v3192 = vadd.f32 %v2855, %v3122
      %v3193 = vadd.f32 %v2856, %v3127
      %v3194 = vadd.f32 %v2857, %v3130
      %v3195 = vadd.f32 %v2858, %v3135
      %v3196 = vadd.f32 %v2859, %v3138
      %v3197 = vadd.f32 %v2860, %v3143
      %v3198 = vadd.f32 %v2861, %v3146
      %v3199 = vadd.f32 %v2862, %v3151
      %v3200 = vadd.f32 %v2863, %v3154
      %v3201 = vadd.f32 %v2864, %v3159
      %v3202 = vadd.f32 %v2865, %v3162
      %v3203 = vadd.f32 %v2866, %v3167
      %v3204 = vadd.f32 %v2867, %v3170
      %s3205 = scalar_lea.vmem %s1791, 1 [#allocation2]
      %v3206 = vld [vmem:[%s3205] ss:$2 sm:$0xff]
      %s3207 = scalar_lea.vmem %s1791, 17 [#allocation2]
      %v3208 = vld [vmem:[%s3207] ss:$2 sm:$0xff]
      %s3209 = scalar_lea.vmem %s1791, 81 [#allocation2]
      %v3210 = vld [vmem:[%s3209] ss:$2 sm:$0xff]
      %s3211 = scalar_lea.vmem %s1791, 97 [#allocation2]
      %v3212 = vld [vmem:[%s3211] ss:$2 sm:$0xff]
      %s3213 = scalar_lea.vmem %s1791, 161 [#allocation2]
      %v3214 = vld [vmem:[%s3213] ss:$2 sm:$0xff]
      %s3215 = scalar_lea.vmem %s1791, 177 [#allocation2]
      %v3216 = vld [vmem:[%s3215] ss:$2 sm:$0xff]
      %s3217 = scalar_lea.vmem %s1791, 241 [#allocation2]
      %v3218 = vld [vmem:[%s3217] ss:$2 sm:$0xff]
      %s3219 = scalar_lea.vmem %s1791, 257 [#allocation2]
      %v3220 = vld [vmem:[%s3219] ss:$2 sm:$0xff]
      %s3221 = scalar_lea.vmem %s1791, 321 [#allocation2]
      %v3222 = vld [vmem:[%s3221] ss:$2 sm:$0xff]
      %s3223 = scalar_lea.vmem %s1791, 337 [#allocation2]
      %v3224 = vld [vmem:[%s3223] ss:$2 sm:$0xff]
      %s3225 = scalar_lea.vmem %s1791, 401 [#allocation2]
      %v3226 = vld [vmem:[%s3225] ss:$2 sm:$0xff]
      %s3227 = scalar_lea.vmem %s1791, 417 [#allocation2]
      %v3228 = vld [vmem:[%s3227] ss:$2 sm:$0xff]
      %s3229 = scalar_lea.vmem %s1791, 481 [#allocation2]
      %v3230 = vld [vmem:[%s3229] ss:$2 sm:$0xff]
      %s3231 = scalar_lea.vmem %s1791, 497 [#allocation2]
      %v3232 = vld [vmem:[%s3231] ss:$2 sm:$0xff]
      %s3233 = scalar_lea.vmem %s1791, 561 [#allocation2]
      %v3234 = vld [vmem:[%s3233] ss:$2 sm:$0xff]
      %s3235 = scalar_lea.vmem %s1791, 577 [#allocation2]
      %v3236 = vld [vmem:[%s3235] ss:$2 sm:$0xff]
      %s3237 = scalar_lea.vmem %s1791, 641 [#allocation2]
      %v3238 = vld [vmem:[%s3237] ss:$2 sm:$0xff]
      %s3239 = scalar_lea.vmem %s1791, 657 [#allocation2]
      %v3240 = vld [vmem:[%s3239] ss:$2 sm:$0xff]
      %s3241 = scalar_lea.vmem %s1791, 721 [#allocation2]
      %v3242 = vld [vmem:[%s3241] ss:$2 sm:$0xff]
      %s3243 = scalar_lea.vmem %s1791, 737 [#allocation2]
      %v3244 = vld [vmem:[%s3243] ss:$2 sm:$0xff]
      %s3245 = scalar_lea.vmem %s1791, 801 [#allocation2]
      %v3246 = vld [vmem:[%s3245] ss:$2 sm:$0xff]
      %s3247 = scalar_lea.vmem %s1791, 817 [#allocation2]
      %v3248 = vld [vmem:[%s3247] ss:$2 sm:$0xff]
      %s3249 = scalar_lea.vmem %s1791, 881 [#allocation2]
      %v3250 = vld [vmem:[%s3249] ss:$2 sm:$0xff]
      %s3251 = scalar_lea.vmem %s1791, 897 [#allocation2]
      %v3252 = vld [vmem:[%s3251] ss:$2 sm:$0xff]
      %s3253 = scalar_lea.vmem %s1791, 961 [#allocation2]
      %v3254 = vld [vmem:[%s3253] ss:$2 sm:$0xff]
      %s3255 = scalar_lea.vmem %s1791, 977 [#allocation2]
      %v3256 = vld [vmem:[%s3255] ss:$2 sm:$0xff]
      %s3257 = scalar_lea.vmem %s1791, 1041 [#allocation2]
      %v3258 = vld [vmem:[%s3257] ss:$2 sm:$0xff]
      %s3259 = scalar_lea.vmem %s1791, 1057 [#allocation2]
      %v3260 = vld [vmem:[%s3259] ss:$2 sm:$0xff]
      %s3261 = scalar_lea.vmem %s1791, 1121 [#allocation2]
      %v3262 = vld [vmem:[%s3261] ss:$2 sm:$0xff]
      %s3263 = scalar_lea.vmem %s1791, 1137 [#allocation2]
      %v3264 = vld [vmem:[%s3263] ss:$2 sm:$0xff]
      %s3265 = scalar_lea.vmem %s1791, 1201 [#allocation2]
      %v3266 = vld [vmem:[%s3265] ss:$2 sm:$0xff]
      %s3267 = scalar_lea.vmem %s1791, 1217 [#allocation2]
      %v3268 = vld [vmem:[%s3267] ss:$2 sm:$0xff]
      %v3269 = vpack.c.bf16 %v3208, %v3206
      %v3270 = vpack.c.bf16 %v3212, %v3210
      %v3271 = vpack.c.bf16 %v3216, %v3214
      %v3272 = vpack.c.bf16 %v3220, %v3218
      %v3273 = vpack.c.bf16 %v3224, %v3222
      %v3274 = vpack.c.bf16 %v3228, %v3226
      %v3275 = vpack.c.bf16 %v3232, %v3230
      %v3276 = vpack.c.bf16 %v3236, %v3234
      %v3277 = vpack.c.bf16 %v3240, %v3238
      %v3278 = vpack.c.bf16 %v3244, %v3242
      %v3279 = vpack.c.bf16 %v3248, %v3246
      %v3280 = vpack.c.bf16 %v3252, %v3250
      %v3281 = vpack.c.bf16 %v3256, %v3254
      %v3282 = vpack.c.bf16 %v3260, %v3258
      %v3283 = vpack.c.bf16 %v3264, %v3262
      %v3284 = vpack.c.bf16 %v3268, %v3266
      %s3285 = scalar_lea.vmem %s3, 256
      %v3286 = vld [vmem:[%s3285] sm:$0xf]
      %v3287 = vld [vmem:[%s3285 + $0x4] sm:$0xf]
      %v3288 = vld [vmem:[%s3285 + $0x8] sm:$0xf]
      %v3289 = vld [vmem:[%s3285 + $0xc] sm:$0xf]
      %v3290 = vld [vmem:[%s3285 + $0x10] sm:$0xf]
      %v3291 = vld [vmem:[%s3285 + $0x14] sm:$0xf]
      %v3292 = vld [vmem:[%s3285 + $0x18] sm:$0xf]
      %v3293 = vld [vmem:[%s3285 + $0x1c] sm:$0xf]
      %v3294 = vld [vmem:[%s3285 + $0x20] sm:$0xf]
      %v3295 = vld [vmem:[%s3285 + $0x24] sm:$0xf]
      %v3296 = vld [vmem:[%s3285 + $0x28] sm:$0xf]
      %v3297 = vld [vmem:[%s3285 + $0x2c] sm:$0xf]
      %v3298 = vld [vmem:[%s3285 + $0x30] sm:$0xf]
      %v3299 = vld [vmem:[%s3285 + $0x34] sm:$0xf]
      %v3300 = vld [vmem:[%s3285 + $0x38] sm:$0xf]
      %v3301 = vld [vmem:[%s3285 + $0x3c] sm:$0xf]
      %v3318 = vunpack.c.l.b16 %v3286
      %v3319 = vunpack.c.l.b16 %v3287
      %v3320 = vunpack.c.l.b16 %v3288
      %v3321 = vunpack.c.l.b16 %v3289
      %v3322 = vunpack.c.l.b16 %v3290
      %v3323 = vunpack.c.l.b16 %v3291
      %v3324 = vunpack.c.l.b16 %v3292
      %v3325 = vunpack.c.l.b16 %v3293
      %v3326 = vunpack.c.l.b16 %v3294
      %v3327 = vunpack.c.l.b16 %v3295
      %v3328 = vunpack.c.l.b16 %v3296
      %v3329 = vunpack.c.l.b16 %v3297
      %v3330 = vunpack.c.l.b16 %v3298
      %v3331 = vunpack.c.l.b16 %v3299
      %v3332 = vunpack.c.l.b16 %v3300
      %v3333 = vunpack.c.l.b16 %v3301
      %v3334 = vpack.c.b16 %v3319, %v3318
      %v3335 = vpack.c.b16 %v3321, %v3320
      %v3336 = vpack.c.b16 %v3323, %v3322
      %v3337 = vpack.c.b16 %v3325, %v3324
      %v3338 = vpack.c.b16 %v3327, %v3326
      %v3339 = vpack.c.b16 %v3329, %v3328
      %v3340 = vpack.c.b16 %v3331, %v3330
      %v3341 = vpack.c.b16 %v3333, %v3332
      %3350 = vmatprep.subr.bf16.mxu0 0
      %3351 = vmatpush1.bf16.msra.mxu0 %v3341
      %3352 = vmatprep.subr.bf16.mxu0 0
      %3353 = vmatpush1.bf16.msra.mxu0 %v3340
      %3354 = vmatprep.subr.bf16.mxu0 0
      %3355 = vmatpush1.bf16.msra.mxu0 %v3339
      %3356 = vmatprep.subr.bf16.mxu0 0
      %3357 = vmatpush1.bf16.msra.mxu0 %v3338
      %3358 = vmatprep.subr.bf16.mxu0 0
      %3359 = vmatpush1.bf16.msra.mxu0 %v3337
      %3360 = vmatprep.subr.bf16.mxu0 0
      %3361 = vmatpush1.bf16.msra.mxu0 %v3336
      %3362 = vmatprep.subr.bf16.mxu0 0
      %3363 = vmatpush1.bf16.msra.mxu0 %v3335
      %3364 = vmatprep.subr.bf16.mxu0 0
      %3365 = vmatpush1.bf16.msra.mxu0 %v3334
      %3366 = vmatprep.subr.bf16.mxu0 0
      %3367 = vmatpush2.bf16.msra.mxu0 0
      %3368 = vmatprep.subr.bf16.mxu0 0
      %3369 = vmatpush2.bf16.msra.mxu0 0
      %3370 = vmatprep.subr.bf16.mxu0 0
      %3371 = vmatpush2.bf16.msra.mxu0 0
      %3372 = vmatprep.subr.bf16.mxu0 0
      %3373 = vmatpush2.bf16.msra.mxu0 0
      %3374 = vmatprep.subr.bf16.mxu0 0
      %3375 = vmatpush2.bf16.msra.mxu0 0
      %3376 = vmatprep.subr.bf16.mxu0 0
      %3377 = vmatpush2.bf16.msra.mxu0 0
      %3378 = vmatprep.subr.bf16.mxu0 0
      %3379 = vmatpush2.bf16.msra.mxu0 0
      %3380 = vmatprep.subr.bf16.mxu0 0
      %3381 = vmatpush2.bf16.msra.mxu0 0
      %3382 = vmatprep.mubr.bf16.mxu0 0
      %3383 = vmatmul.mubr.bf16.gmra.mxu0 %v3269
      %v3384 = vpop.f32.mrf.mxu0
      %v3385 = vadd.f32 0.0, %v3384
      %v3386 = vpop.f32.mrf.mxu0
      %v3387 = vpop.f32.mrf.mxu0
      %v3388 = vadd.f32 0.0, %v3387
      %v3389 = vpop.f32.mrf.mxu0
      %3390 = vmatprep.mubr.bf16.mxu0 0
      %3391 = vmatmul.mubr.bf16.gmra.mxu0 %v3270
      %v3392 = vpop.f32.mrf.mxu0
      %v3393 = vadd.f32 0.0, %v3392
      %v3394 = vpop.f32.mrf.mxu0
      %v3395 = vpop.f32.mrf.mxu0
      %v3396 = vadd.f32 0.0, %v3395
      %v3397 = vpop.f32.mrf.mxu0
      %3398 = vmatprep.mubr.bf16.mxu0 0
      %3399 = vmatmul.mubr.bf16.gmra.mxu0 %v3271
      %v3400 = vpop.f32.mrf.mxu0
      %v3401 = vadd.f32 0.0, %v3400
      %v3402 = vpop.f32.mrf.mxu0
      %v3403 = vpop.f32.mrf.mxu0
      %v3404 = vadd.f32 0.0, %v3403
      %v3405 = vpop.f32.mrf.mxu0
      %3406 = vmatprep.mubr.bf16.mxu0 0
      %3407 = vmatmul.mubr.bf16.gmra.mxu0 %v3272
      %v3408 = vpop.f32.mrf.mxu0
      %v3409 = vadd.f32 0.0, %v3408
      %v3410 = vpop.f32.mrf.mxu0
      %v3411 = vpop.f32.mrf.mxu0
      %v3412 = vadd.f32 0.0, %v3411
      %v3413 = vpop.f32.mrf.mxu0
      %3414 = vmatprep.mubr.bf16.mxu0 0
      %3415 = vmatmul.mubr.bf16.gmra.mxu0 %v3273
      %v3416 = vpop.f32.mrf.mxu0
      %v3417 = vadd.f32 0.0, %v3416
      %v3418 = vpop.f32.mrf.mxu0
      %v3419 = vpop.f32.mrf.mxu0
      %v3420 = vadd.f32 0.0, %v3419
      %v3421 = vpop.f32.mrf.mxu0
      %3422 = vmatprep.mubr.bf16.mxu0 0
      %3423 = vmatmul.mubr.bf16.gmra.mxu0 %v3274
      %v3424 = vpop.f32.mrf.mxu0
      %v3425 = vadd.f32 0.0, %v3424
      %v3426 = vpop.f32.mrf.mxu0
      %v3427 = vpop.f32.mrf.mxu0
      %v3428 = vadd.f32 0.0, %v3427
      %v3429 = vpop.f32.mrf.mxu0
      %3430 = vmatprep.mubr.bf16.mxu0 0
      %3431 = vmatmul.mubr.bf16.gmra.mxu0 %v3275
      %v3432 = vpop.f32.mrf.mxu0
      %v3433 = vadd.f32 0.0, %v3432
      %v3434 = vpop.f32.mrf.mxu0
      %v3435 = vpop.f32.mrf.mxu0
      %v3436 = vadd.f32 0.0, %v3435
      %v3437 = vpop.f32.mrf.mxu0
      %3438 = vmatprep.mubr.bf16.mxu0 0
      %3439 = vmatmul.mubr.bf16.gmra.mxu0 %v3276
      %v3440 = vpop.f32.mrf.mxu0
      %v3441 = vadd.f32 0.0, %v3440
      %v3442 = vpop.f32.mrf.mxu0
      %v3443 = vpop.f32.mrf.mxu0
      %v3444 = vadd.f32 0.0, %v3443
      %v3445 = vpop.f32.mrf.mxu0
      %3446 = vmatprep.mubr.bf16.mxu0 0
      %3447 = vmatmul.mubr.bf16.gmra.mxu0 %v3277
      %v3448 = vpop.f32.mrf.mxu0
      %v3449 = vadd.f32 0.0, %v3448
      %v3450 = vpop.f32.mrf.mxu0
      %v3451 = vpop.f32.mrf.mxu0
      %v3452 = vadd.f32 0.0, %v3451
      %v3453 = vpop.f32.mrf.mxu0
      %3454 = vmatprep.mubr.bf16.mxu0 0
      %3455 = vmatmul.mubr.bf16.gmra.mxu0 %v3278
      %v3456 = vpop.f32.mrf.mxu0
      %v3457 = vadd.f32 0.0, %v3456
      %v3458 = vpop.f32.mrf.mxu0
      %v3459 = vpop.f32.mrf.mxu0
      %v3460 = vadd.f32 0.0, %v3459
      %v3461 = vpop.f32.mrf.mxu0
      %3462 = vmatprep.mubr.bf16.mxu0 0
      %3463 = vmatmul.mubr.bf16.gmra.mxu0 %v3279
      %v3464 = vpop.f32.mrf.mxu0
      %v3465 = vadd.f32 0.0, %v3464
      %v3466 = vpop.f32.mrf.mxu0
      %v3467 = vpop.f32.mrf.mxu0
      %v3468 = vadd.f32 0.0, %v3467
      %v3469 = vpop.f32.mrf.mxu0
      %3470 = vmatprep.mubr.bf16.mxu0 0
      %3471 = vmatmul.mubr.bf16.gmra.mxu0 %v3280
      %v3472 = vpop.f32.mrf.mxu0
      %v3473 = vadd.f32 0.0, %v3472
      %v3474 = vpop.f32.mrf.mxu0
      %v3475 = vpop.f32.mrf.mxu0
      %v3476 = vadd.f32 0.0, %v3475
      %v3477 = vpop.f32.mrf.mxu0
      %3478 = vmatprep.mubr.bf16.mxu0 0
      %3479 = vmatmul.mubr.bf16.gmra.mxu0 %v3281
      %v3480 = vpop.f32.mrf.mxu0
      %v3481 = vadd.f32 0.0, %v3480
      %v3482 = vpop.f32.mrf.mxu0
      %v3483 = vpop.f32.mrf.mxu0
      %v3484 = vadd.f32 0.0, %v3483
      %v3485 = vpop.f32.mrf.mxu0
      %3486 = vmatprep.mubr.bf16.mxu0 0
      %3487 = vmatmul.mubr.bf16.gmra.mxu0 %v3282
      %v3488 = vpop.f32.mrf.mxu0
      %v3489 = vadd.f32 0.0, %v3488
      %v3490 = vpop.f32.mrf.mxu0
      %v3491 = vpop.f32.mrf.mxu0
      %v3492 = vadd.f32 0.0, %v3491
      %v3493 = vpop.f32.mrf.mxu0
      %3494 = vmatprep.mubr.bf16.mxu0 0
      %3495 = vmatmul.mubr.bf16.gmra.mxu0 %v3283
      %v3496 = vpop.f32.mrf.mxu0
      %v3497 = vadd.f32 0.0, %v3496
      %v3498 = vpop.f32.mrf.mxu0
      %v3499 = vpop.f32.mrf.mxu0
      %v3500 = vadd.f32 0.0, %v3499
      %v3501 = vpop.f32.mrf.mxu0
      %3502 = vmatprep.mubr.bf16.mxu0 0
      %3503 = vmatmul.mubr.bf16.gmra.mxu0 %v3284
      %v3504 = vpop.f32.mrf.mxu0
      %v3505 = vadd.f32 0.0, %v3504
      %v3506 = vpop.f32.mrf.mxu0
      %v3507 = vpop.f32.mrf.mxu0
      %v3508 = vadd.f32 0.0, %v3507
      %v3509 = vpop.f32.mrf.mxu0
      %3510 = vdwg.mxu0
      %v3511 = vadd.f32 %v3173, %v3385
      %v3512 = vadd.f32 %v3174, %v3388
      %v3513 = vadd.f32 %v3175, %v3393
      %v3514 = vadd.f32 %v3176, %v3396
      %v3515 = vadd.f32 %v3177, %v3401
      %v3516 = vadd.f32 %v3178, %v3404
      %v3517 = vadd.f32 %v3179, %v3409
      %v3518 = vadd.f32 %v3180, %v3412
      %v3519 = vadd.f32 %v3181, %v3417
      %v3520 = vadd.f32 %v3182, %v3420
      %v3521 = vadd.f32 %v3183, %v3425
      %v3522 = vadd.f32 %v3184, %v3428
      %v3523 = vadd.f32 %v3185, %v3433
      %v3524 = vadd.f32 %v3186, %v3436
      %v3525 = vadd.f32 %v3187, %v3441
      %v3526 = vadd.f32 %v3188, %v3444
      %v3527 = vadd.f32 %v3189, %v3449
      %v3528 = vadd.f32 %v3190, %v3452
      %v3529 = vadd.f32 %v3191, %v3457
      %v3530 = vadd.f32 %v3192, %v3460
      %v3531 = vadd.f32 %v3193, %v3465
      %v3532 = vadd.f32 %v3194, %v3468
      %v3533 = vadd.f32 %v3195, %v3473
      %v3534 = vadd.f32 %v3196, %v3476
      %v3535 = vadd.f32 %v3197, %v3481
      %v3536 = vadd.f32 %v3198, %v3484
      %v3537 = vadd.f32 %v3199, %v3489
      %v3538 = vadd.f32 %v3200, %v3492
      %v3539 = vadd.f32 %v3201, %v3497
      %v3540 = vadd.f32 %v3202, %v3500
      %v3541 = vadd.f32 %v3203, %v3505
      %v3542 = vadd.f32 %v3204, %v3508
      %s3543 = scalar_lea.vmem %s1791, 2 [#allocation2]
      %v3544 = vld [vmem:[%s3543] ss:$2 sm:$0xff]
      %s3545 = scalar_lea.vmem %s1791, 18 [#allocation2]
      %v3546 = vld [vmem:[%s3545] ss:$2 sm:$0xff]
      %s3547 = scalar_lea.vmem %s1791, 82 [#allocation2]
      %v3548 = vld [vmem:[%s3547] ss:$2 sm:$0xff]
      %s3549 = scalar_lea.vmem %s1791, 98 [#allocation2]
      %v3550 = vld [vmem:[%s3549] ss:$2 sm:$0xff]
      %s3551 = scalar_lea.vmem %s1791, 162 [#allocation2]
      %v3552 = vld [vmem:[%s3551] ss:$2 sm:$0xff]
      %s3553 = scalar_lea.vmem %s1791, 178 [#allocation2]
      %v3554 = vld [vmem:[%s3553] ss:$2 sm:$0xff]
      %s3555 = scalar_lea.vmem %s1791, 242 [#allocation2]
      %v3556 = vld [vmem:[%s3555] ss:$2 sm:$0xff]
      %s3557 = scalar_lea.vmem %s1791, 258 [#allocation2]
      %v3558 = vld [vmem:[%s3557] ss:$2 sm:$0xff]
      %s3559 = scalar_lea.vmem %s1791, 322 [#allocation2]
      %v3560 = vld [vmem:[%s3559] ss:$2 sm:$0xff]
      %s3561 = scalar_lea.vmem %s1791, 338 [#allocation2]
      %v3562 = vld [vmem:[%s3561] ss:$2 sm:$0xff]
      %s3563 = scalar_lea.vmem %s1791, 402 [#allocation2]
      %v3564 = vld [vmem:[%s3563] ss:$2 sm:$0xff]
      %s3565 = scalar_lea.vmem %s1791, 418 [#allocation2]
      %v3566 = vld [vmem:[%s3565] ss:$2 sm:$0xff]
      %s3567 = scalar_lea.vmem %s1791, 482 [#allocation2]
      %v3568 = vld [vmem:[%s3567] ss:$2 sm:$0xff]
      %s3569 = scalar_lea.vmem %s1791, 498 [#allocation2]
      %v3570 = vld [vmem:[%s3569] ss:$2 sm:$0xff]
      %s3571 = scalar_lea.vmem %s1791, 562 [#allocation2]
      %v3572 = vld [vmem:[%s3571] ss:$2 sm:$0xff]
      %s3573 = scalar_lea.vmem %s1791, 578 [#allocation2]
      %v3574 = vld [vmem:[%s3573] ss:$2 sm:$0xff]
      %s3575 = scalar_lea.vmem %s1791, 642 [#allocation2]
      %v3576 = vld [vmem:[%s3575] ss:$2 sm:$0xff]
      %s3577 = scalar_lea.vmem %s1791, 658 [#allocation2]
      %v3578 = vld [vmem:[%s3577] ss:$2 sm:$0xff]
      %s3579 = scalar_lea.vmem %s1791, 722 [#allocation2]
      %v3580 = vld [vmem:[%s3579] ss:$2 sm:$0xff]
      %s3581 = scalar_lea.vmem %s1791, 738 [#allocation2]
      %v3582 = vld [vmem:[%s3581] ss:$2 sm:$0xff]
      %s3583 = scalar_lea.vmem %s1791, 802 [#allocation2]
      %v3584 = vld [vmem:[%s3583] ss:$2 sm:$0xff]
      %s3585 = scalar_lea.vmem %s1791, 818 [#allocation2]
      %v3586 = vld [vmem:[%s3585] ss:$2 sm:$0xff]
      %s3587 = scalar_lea.vmem %s1791, 882 [#allocation2]
      %v3588 = vld [vmem:[%s3587] ss:$2 sm:$0xff]
      %s3589 = scalar_lea.vmem %s1791, 898 [#allocation2]
      %v3590 = vld [vmem:[%s3589] ss:$2 sm:$0xff]
      %s3591 = scalar_lea.vmem %s1791, 962 [#allocation2]
      %v3592 = vld [vmem:[%s3591] ss:$2 sm:$0xff]
      %s3593 = scalar_lea.vmem %s1791, 978 [#allocation2]
      %v3594 = vld [vmem:[%s3593] ss:$2 sm:$0xff]
      %s3595 = scalar_lea.vmem %s1791, 1042 [#allocation2]
      %v3596 = vld [vmem:[%s3595] ss:$2 sm:$0xff]
      %s3597 = scalar_lea.vmem %s1791, 1058 [#allocation2]
      %v3598 = vld [vmem:[%s3597] ss:$2 sm:$0xff]
      %s3599 = scalar_lea.vmem %s1791, 1122 [#allocation2]
      %v3600 = vld [vmem:[%s3599] ss:$2 sm:$0xff]
      %s3601 = scalar_lea.vmem %s1791, 1138 [#allocation2]
      %v3602 = vld [vmem:[%s3601] ss:$2 sm:$0xff]
      %s3603 = scalar_lea.vmem %s1791, 1202 [#allocation2]
      %v3604 = vld [vmem:[%s3603] ss:$2 sm:$0xff]
      %s3605 = scalar_lea.vmem %s1791, 1218 [#allocation2]
      %v3606 = vld [vmem:[%s3605] ss:$2 sm:$0xff]
      %v3607 = vpack.c.bf16 %v3546, %v3544
      %v3608 = vpack.c.bf16 %v3550, %v3548
      %v3609 = vpack.c.bf16 %v3554, %v3552
      %v3610 = vpack.c.bf16 %v3558, %v3556
      %v3611 = vpack.c.bf16 %v3562, %v3560
      %v3612 = vpack.c.bf16 %v3566, %v3564
      %v3613 = vpack.c.bf16 %v3570, %v3568
      %v3614 = vpack.c.bf16 %v3574, %v3572
      %v3615 = vpack.c.bf16 %v3578, %v3576
      %v3616 = vpack.c.bf16 %v3582, %v3580
      %v3617 = vpack.c.bf16 %v3586, %v3584
      %v3618 = vpack.c.bf16 %v3590, %v3588
      %v3619 = vpack.c.bf16 %v3594, %v3592
      %v3620 = vpack.c.bf16 %v3598, %v3596
      %v3621 = vpack.c.bf16 %v3602, %v3600
      %v3622 = vpack.c.bf16 %v3606, %v3604
      %s3623 = scalar_lea.vmem %s3, 320
      %v3624 = vld [vmem:[%s3623] sm:$0xf]
      %v3625 = vld [vmem:[%s3623 + $0x4] sm:$0xf]
      %v3626 = vld [vmem:[%s3623 + $0x8] sm:$0xf]
      %v3627 = vld [vmem:[%s3623 + $0xc] sm:$0xf]
      %v3628 = vld [vmem:[%s3623 + $0x10] sm:$0xf]
      %v3629 = vld [vmem:[%s3623 + $0x14] sm:$0xf]
      %v3630 = vld [vmem:[%s3623 + $0x18] sm:$0xf]
      %v3631 = vld [vmem:[%s3623 + $0x1c] sm:$0xf]
      %v3632 = vld [vmem:[%s3623 + $0x20] sm:$0xf]
      %v3633 = vld [vmem:[%s3623 + $0x24] sm:$0xf]
      %v3634 = vld [vmem:[%s3623 + $0x28] sm:$0xf]
      %v3635 = vld [vmem:[%s3623 + $0x2c] sm:$0xf]
      %v3636 = vld [vmem:[%s3623 + $0x30] sm:$0xf]
      %v3637 = vld [vmem:[%s3623 + $0x34] sm:$0xf]
      %v3638 = vld [vmem:[%s3623 + $0x38] sm:$0xf]
      %v3639 = vld [vmem:[%s3623 + $0x3c] sm:$0xf]
      %v3656 = vunpack.c.l.b16 %v3624
      %v3657 = vunpack.c.l.b16 %v3625
      %v3658 = vunpack.c.l.b16 %v3626
      %v3659 = vunpack.c.l.b16 %v3627
      %v3660 = vunpack.c.l.b16 %v3628
      %v3661 = vunpack.c.l.b16 %v3629
      %v3662 = vunpack.c.l.b16 %v3630
      %v3663 = vunpack.c.l.b16 %v3631
      %v3664 = vunpack.c.l.b16 %v3632
      %v3665 = vunpack.c.l.b16 %v3633
      %v3666 = vunpack.c.l.b16 %v3634
      %v3667 = vunpack.c.l.b16 %v3635
      %v3668 = vunpack.c.l.b16 %v3636
      %v3669 = vunpack.c.l.b16 %v3637
      %v3670 = vunpack.c.l.b16 %v3638
      %v3671 = vunpack.c.l.b16 %v3639
      %v3672 = vpack.c.b16 %v3657, %v3656
      %v3673 = vpack.c.b16 %v3659, %v3658
      %v3674 = vpack.c.b16 %v3661, %v3660
      %v3675 = vpack.c.b16 %v3663, %v3662
      %v3676 = vpack.c.b16 %v3665, %v3664
      %v3677 = vpack.c.b16 %v3667, %v3666
      %v3678 = vpack.c.b16 %v3669, %v3668
      %v3679 = vpack.c.b16 %v3671, %v3670
      %3688 = vmatprep.subr.bf16.mxu0 0
      %3689 = vmatpush1.bf16.msra.mxu0 %v3679
      %3690 = vmatprep.subr.bf16.mxu0 0
      %3691 = vmatpush1.bf16.msra.mxu0 %v3678
      %3692 = vmatprep.subr.bf16.mxu0 0
      %3693 = vmatpush1.bf16.msra.mxu0 %v3677
      %3694 = vmatprep.subr.bf16.mxu0 0
      %3695 = vmatpush1.bf16.msra.mxu0 %v3676
      %3696 = vmatprep.subr.bf16.mxu0 0
      %3697 = vmatpush1.bf16.msra.mxu0 %v3675
      %3698 = vmatprep.subr.bf16.mxu0 0
      %3699 = vmatpush1.bf16.msra.mxu0 %v3674
      %3700 = vmatprep.subr.bf16.mxu0 0
      %3701 = vmatpush1.bf16.msra.mxu0 %v3673
      %3702 = vmatprep.subr.bf16.mxu0 0
      %3703 = vmatpush1.bf16.msra.mxu0 %v3672
      %3704 = vmatprep.subr.bf16.mxu0 0
      %3705 = vmatpush2.bf16.msra.mxu0 0
      %3706 = vmatprep.subr.bf16.mxu0 0
      %3707 = vmatpush2.bf16.msra.mxu0 0
      %3708 = vmatprep.subr.bf16.mxu0 0
      %3709 = vmatpush2.bf16.msra.mxu0 0
      %3710 = vmatprep.subr.bf16.mxu0 0
      %3711 = vmatpush2.bf16.msra.mxu0 0
      %3712 = vmatprep.subr.bf16.mxu0 0
      %3713 = vmatpush2.bf16.msra.mxu0 0
      %3714 = vmatprep.subr.bf16.mxu0 0
      %3715 = vmatpush2.bf16.msra.mxu0 0
      %3716 = vmatprep.subr.bf16.mxu0 0
      %3717 = vmatpush2.bf16.msra.mxu0 0
      %3718 = vmatprep.subr.bf16.mxu0 0
      %3719 = vmatpush2.bf16.msra.mxu0 0
      %3720 = vmatprep.mubr.bf16.mxu0 0
      %3721 = vmatmul.mubr.bf16.gmra.mxu0 %v3607
      %v3722 = vpop.f32.mrf.mxu0
      %v3723 = vadd.f32 0.0, %v3722
      %v3724 = vpop.f32.mrf.mxu0
      %v3725 = vpop.f32.mrf.mxu0
      %v3726 = vadd.f32 0.0, %v3725
      %v3727 = vpop.f32.mrf.mxu0
      %3728 = vmatprep.mubr.bf16.mxu0 0
      %3729 = vmatmul.mubr.bf16.gmra.mxu0 %v3608
      %v3730 = vpop.f32.mrf.mxu0
      %v3731 = vadd.f32 0.0, %v3730
      %v3732 = vpop.f32.mrf.mxu0
      %v3733 = vpop.f32.mrf.mxu0
      %v3734 = vadd.f32 0.0, %v3733
      %v3735 = vpop.f32.mrf.mxu0
      %3736 = vmatprep.mubr.bf16.mxu0 0
      %3737 = vmatmul.mubr.bf16.gmra.mxu0 %v3609
      %v3738 = vpop.f32.mrf.mxu0
      %v3739 = vadd.f32 0.0, %v3738
      %v3740 = vpop.f32.mrf.mxu0
      %v3741 = vpop.f32.mrf.mxu0
      %v3742 = vadd.f32 0.0, %v3741
      %v3743 = vpop.f32.mrf.mxu0
      %3744 = vmatprep.mubr.bf16.mxu0 0
      %3745 = vmatmul.mubr.bf16.gmra.mxu0 %v3610
      %v3746 = vpop.f32.mrf.mxu0
      %v3747 = vadd.f32 0.0, %v3746
      %v3748 = vpop.f32.mrf.mxu0
      %v3749 = vpop.f32.mrf.mxu0
      %v3750 = vadd.f32 0.0, %v3749
      %v3751 = vpop.f32.mrf.mxu0
      %3752 = vmatprep.mubr.bf16.mxu0 0
      %3753 = vmatmul.mubr.bf16.gmra.mxu0 %v3611
      %v3754 = vpop.f32.mrf.mxu0
      %v3755 = vadd.f32 0.0, %v3754
      %v3756 = vpop.f32.mrf.mxu0
      %v3757 = vpop.f32.mrf.mxu0
      %v3758 = vadd.f32 0.0, %v3757
      %v3759 = vpop.f32.mrf.mxu0
      %3760 = vmatprep.mubr.bf16.mxu0 0
      %3761 = vmatmul.mubr.bf16.gmra.mxu0 %v3612
      %v3762 = vpop.f32.mrf.mxu0
      %v3763 = vadd.f32 0.0, %v3762
      %v3764 = vpop.f32.mrf.mxu0
      %v3765 = vpop.f32.mrf.mxu0
      %v3766 = vadd.f32 0.0, %v3765
      %v3767 = vpop.f32.mrf.mxu0
      %3768 = vmatprep.mubr.bf16.mxu0 0
      %3769 = vmatmul.mubr.bf16.gmra.mxu0 %v3613
      %v3770 = vpop.f32.mrf.mxu0
      %v3771 = vadd.f32 0.0, %v3770
      %v3772 = vpop.f32.mrf.mxu0
      %v3773 = vpop.f32.mrf.mxu0
      %v3774 = vadd.f32 0.0, %v3773
      %v3775 = vpop.f32.mrf.mxu0
      %3776 = vmatprep.mubr.bf16.mxu0 0
      %3777 = vmatmul.mubr.bf16.gmra.mxu0 %v3614
      %v3778 = vpop.f32.mrf.mxu0
      %v3779 = vadd.f32 0.0, %v3778
      %v3780 = vpop.f32.mrf.mxu0
      %v3781 = vpop.f32.mrf.mxu0
      %v3782 = vadd.f32 0.0, %v3781
      %v3783 = vpop.f32.mrf.mxu0
      %3784 = vmatprep.mubr.bf16.mxu0 0
      %3785 = vmatmul.mubr.bf16.gmra.mxu0 %v3615
      %v3786 = vpop.f32.mrf.mxu0
      %v3787 = vadd.f32 0.0, %v3786
      %v3788 = vpop.f32.mrf.mxu0
      %v3789 = vpop.f32.mrf.mxu0
      %v3790 = vadd.f32 0.0, %v3789
      %v3791 = vpop.f32.mrf.mxu0
      %3792 = vmatprep.mubr.bf16.mxu0 0
      %3793 = vmatmul.mubr.bf16.gmra.mxu0 %v3616
      %v3794 = vpop.f32.mrf.mxu0
      %v3795 = vadd.f32 0.0, %v3794
      %v3796 = vpop.f32.mrf.mxu0
      %v3797 = vpop.f32.mrf.mxu0
      %v3798 = vadd.f32 0.0, %v3797
      %v3799 = vpop.f32.mrf.mxu0
      %3800 = vmatprep.mubr.bf16.mxu0 0
      %3801 = vmatmul.mubr.bf16.gmra.mxu0 %v3617
      %v3802 = vpop.f32.mrf.mxu0
      %v3803 = vadd.f32 0.0, %v3802
      %v3804 = vpop.f32.mrf.mxu0
      %v3805 = vpop.f32.mrf.mxu0
      %v3806 = vadd.f32 0.0, %v3805
      %v3807 = vpop.f32.mrf.mxu0
      %3808 = vmatprep.mubr.bf16.mxu0 0
      %3809 = vmatmul.mubr.bf16.gmra.mxu0 %v3618
      %v3810 = vpop.f32.mrf.mxu0
      %v3811 = vadd.f32 0.0, %v3810
      %v3812 = vpop.f32.mrf.mxu0
      %v3813 = vpop.f32.mrf.mxu0
      %v3814 = vadd.f32 0.0, %v3813
      %v3815 = vpop.f32.mrf.mxu0
      %3816 = vmatprep.mubr.bf16.mxu0 0
      %3817 = vmatmul.mubr.bf16.gmra.mxu0 %v3619
      %v3818 = vpop.f32.mrf.mxu0
      %v3819 = vadd.f32 0.0, %v3818
      %v3820 = vpop.f32.mrf.mxu0
      %v3821 = vpop.f32.mrf.mxu0
      %v3822 = vadd.f32 0.0, %v3821
      %v3823 = vpop.f32.mrf.mxu0
      %3824 = vmatprep.mubr.bf16.mxu0 0
      %3825 = vmatmul.mubr.bf16.gmra.mxu0 %v3620
      %v3826 = vpop.f32.mrf.mxu0
      %v3827 = vadd.f32 0.0, %v3826
      %v3828 = vpop.f32.mrf.mxu0
      %v3829 = vpop.f32.mrf.mxu0
      %v3830 = vadd.f32 0.0, %v3829
      %v3831 = vpop.f32.mrf.mxu0
      %3832 = vmatprep.mubr.bf16.mxu0 0
      %3833 = vmatmul.mubr.bf16.gmra.mxu0 %v3621
      %v3834 = vpop.f32.mrf.mxu0
      %v3835 = vadd.f32 0.0, %v3834
      %v3836 = vpop.f32.mrf.mxu0
      %v3837 = vpop.f32.mrf.mxu0
      %v3838 = vadd.f32 0.0, %v3837
      %v3839 = vpop.f32.mrf.mxu0
      %3840 = vmatprep.mubr.bf16.mxu0 0
      %3841 = vmatmul.mubr.bf16.gmra.mxu0 %v3622
      %v3842 = vpop.f32.mrf.mxu0
      %v3843 = vadd.f32 0.0, %v3842
      %v3844 = vpop.f32.mrf.mxu0
      %v3845 = vpop.f32.mrf.mxu0
      %v3846 = vadd.f32 0.0, %v3845
      %v3847 = vpop.f32.mrf.mxu0
      %3848 = vdwg.mxu0
      %v3849 = vadd.f32 %v3511, %v3723
      %v3850 = vadd.f32 %v3512, %v3726
      %v3851 = vadd.f32 %v3513, %v3731
      %v3852 = vadd.f32 %v3514, %v3734
      %v3853 = vadd.f32 %v3515, %v3739
      %v3854 = vadd.f32 %v3516, %v3742
      %v3855 = vadd.f32 %v3517, %v3747
      %v3856 = vadd.f32 %v3518, %v3750
      %v3857 = vadd.f32 %v3519, %v3755
      %v3858 = vadd.f32 %v3520, %v3758
      %v3859 = vadd.f32 %v3521, %v3763
      %v3860 = vadd.f32 %v3522, %v3766
      %v3861 = vadd.f32 %v3523, %v3771
      %v3862 = vadd.f32 %v3524, %v3774
      %v3863 = vadd.f32 %v3525, %v3779
      %v3864 = vadd.f32 %v3526, %v3782
      %v3865 = vadd.f32 %v3527, %v3787
      %v3866 = vadd.f32 %v3528, %v3790
      %v3867 = vadd.f32 %v3529, %v3795
      %v3868 = vadd.f32 %v3530, %v3798
      %v3869 = vadd.f32 %v3531, %v3803
      %v3870 = vadd.f32 %v3532, %v3806
      %v3871 = vadd.f32 %v3533, %v3811
      %v3872 = vadd.f32 %v3534, %v3814
      %v3873 = vadd.f32 %v3535, %v3819
      %v3874 = vadd.f32 %v3536, %v3822
      %v3875 = vadd.f32 %v3537, %v3827
      %v3876 = vadd.f32 %v3538, %v3830
      %v3877 = vadd.f32 %v3539, %v3835
      %v3878 = vadd.f32 %v3540, %v3838
      %v3879 = vadd.f32 %v3541, %v3843
      %v3880 = vadd.f32 %v3542, %v3846
      %s3881 = scalar_lea.vmem [#allocation2], 80
      %v3882 = vld [vmem:[%s3881] ss:$2 sm:$0xff]
      %s3883 = scalar_lea.vmem %s3881, 16 [#allocation2]
      %v3884 = vld [vmem:[%s3883] ss:$2 sm:$0xff]
      %s3885 = scalar_lea.vmem %s3881, 80 [#allocation2]
      %v3886 = vld [vmem:[%s3885] ss:$2 sm:$0xff]
      %s3887 = scalar_lea.vmem %s3881, 96 [#allocation2]
      %v3888 = vld [vmem:[%s3887] ss:$2 sm:$0xff]
      %s3889 = scalar_lea.vmem %s3881, 160 [#allocation2]
      %v3890 = vld [vmem:[%s3889] ss:$2 sm:$0xff]
      %s3891 = scalar_lea.vmem %s3881, 176 [#allocation2]
      %v3892 = vld [vmem:[%s3891] ss:$2 sm:$0xff]
      %s3893 = scalar_lea.vmem %s3881, 240 [#allocation2]
      %v3894 = vld [vmem:[%s3893] ss:$2 sm:$0xff]
      %s3895 = scalar_lea.vmem %s3881, 256 [#allocation2]
      %v3896 = vld [vmem:[%s3895] ss:$2 sm:$0xff]
      %s3897 = scalar_lea.vmem %s3881, 320 [#allocation2]
      %v3898 = vld [vmem:[%s3897] ss:$2 sm:$0xff]
      %s3899 = scalar_lea.vmem %s3881, 336 [#allocation2]
      %v3900 = vld [vmem:[%s3899] ss:$2 sm:$0xff]
      %s3901 = scalar_lea.vmem %s3881, 400 [#allocation2]
      %v3902 = vld [vmem:[%s3901] ss:$2 sm:$0xff]
      %s3903 = scalar_lea.vmem %s3881, 416 [#allocation2]
      %v3904 = vld [vmem:[%s3903] ss:$2 sm:$0xff]
      %s3905 = scalar_lea.vmem %s3881, 480 [#allocation2]
      %v3906 = vld [vmem:[%s3905] ss:$2 sm:$0xff]
      %s3907 = scalar_lea.vmem %s3881, 496 [#allocation2]
      %v3908 = vld [vmem:[%s3907] ss:$2 sm:$0xff]
      %s3909 = scalar_lea.vmem %s3881, 560 [#allocation2]
      %v3910 = vld [vmem:[%s3909] ss:$2 sm:$0xff]
      %s3911 = scalar_lea.vmem %s3881, 576 [#allocation2]
      %v3912 = vld [vmem:[%s3911] ss:$2 sm:$0xff]
      %s3913 = scalar_lea.vmem %s3881, 640 [#allocation2]
      %v3914 = vld [vmem:[%s3913] ss:$2 sm:$0xff]
      %s3915 = scalar_lea.vmem %s3881, 656 [#allocation2]
      %v3916 = vld [vmem:[%s3915] ss:$2 sm:$0xff]
      %s3917 = scalar_lea.vmem %s3881, 720 [#allocation2]
      %v3918 = vld [vmem:[%s3917] ss:$2 sm:$0xff]
      %s3919 = scalar_lea.vmem %s3881, 736 [#allocation2]
      %v3920 = vld [vmem:[%s3919] ss:$2 sm:$0xff]
      %s3921 = scalar_lea.vmem %s3881, 800 [#allocation2]
      %v3922 = vld [vmem:[%s3921] ss:$2 sm:$0xff]
      %s3923 = scalar_lea.vmem %s3881, 816 [#allocation2]
      %v3924 = vld [vmem:[%s3923] ss:$2 sm:$0xff]
      %s3925 = scalar_lea.vmem %s3881, 880 [#allocation2]
      %v3926 = vld [vmem:[%s3925] ss:$2 sm:$0xff]
      %s3927 = scalar_lea.vmem %s3881, 896 [#allocation2]
      %v3928 = vld [vmem:[%s3927] ss:$2 sm:$0xff]
      %s3929 = scalar_lea.vmem %s3881, 960 [#allocation2]
      %v3930 = vld [vmem:[%s3929] ss:$2 sm:$0xff]
      %s3931 = scalar_lea.vmem %s3881, 976 [#allocation2]
      %v3932 = vld [vmem:[%s3931] ss:$2 sm:$0xff]
      %s3933 = scalar_lea.vmem %s3881, 1040 [#allocation2]
      %v3934 = vld [vmem:[%s3933] ss:$2 sm:$0xff]
      %s3935 = scalar_lea.vmem %s3881, 1056 [#allocation2]
      %v3936 = vld [vmem:[%s3935] ss:$2 sm:$0xff]
      %s3937 = scalar_lea.vmem %s3881, 1120 [#allocation2]
      %v3938 = vld [vmem:[%s3937] ss:$2 sm:$0xff]
      %s3939 = scalar_lea.vmem %s3881, 1136 [#allocation2]
      %v3940 = vld [vmem:[%s3939] ss:$2 sm:$0xff]
      %s3941 = scalar_lea.vmem %s3881, 1200 [#allocation2]
      %v3942 = vld [vmem:[%s3941] ss:$2 sm:$0xff]
      %s3943 = scalar_lea.vmem %s3881, 1216 [#allocation2]
      %v3944 = vld [vmem:[%s3943] ss:$2 sm:$0xff]
      %v3945 = vpack.c.bf16 %v3884, %v3882
      %v3946 = vpack.c.bf16 %v3888, %v3886
      %v3947 = vpack.c.bf16 %v3892, %v3890
      %v3948 = vpack.c.bf16 %v3896, %v3894
      %v3949 = vpack.c.bf16 %v3900, %v3898
      %v3950 = vpack.c.bf16 %v3904, %v3902
      %v3951 = vpack.c.bf16 %v3908, %v3906
      %v3952 = vpack.c.bf16 %v3912, %v3910
      %v3953 = vpack.c.bf16 %v3916, %v3914
      %v3954 = vpack.c.bf16 %v3920, %v3918
      %v3955 = vpack.c.bf16 %v3924, %v3922
      %v3956 = vpack.c.bf16 %v3928, %v3926
      %v3957 = vpack.c.bf16 %v3932, %v3930
      %v3958 = vpack.c.bf16 %v3936, %v3934
      %v3959 = vpack.c.bf16 %v3940, %v3938
      %v3960 = vpack.c.bf16 %v3944, %v3942
      %s3961 = scalar_lea.vmem %s3, 384
      %v3962 = vld [vmem:[%s3961] sm:$0xf]
      %v3963 = vld [vmem:[%s3961 + $0x4] sm:$0xf]
      %v3964 = vld [vmem:[%s3961 + $0x8] sm:$0xf]
      %v3965 = vld [vmem:[%s3961 + $0xc] sm:$0xf]
      %v3966 = vld [vmem:[%s3961 + $0x10] sm:$0xf]
      %v3967 = vld [vmem:[%s3961 + $0x14] sm:$0xf]
      %v3968 = vld [vmem:[%s3961 + $0x18] sm:$0xf]
      %v3969 = vld [vmem:[%s3961 + $0x1c] sm:$0xf]
      %v3970 = vld [vmem:[%s3961 + $0x20] sm:$0xf]
      %v3971 = vld [vmem:[%s3961 + $0x24] sm:$0xf]
      %v3972 = vld [vmem:[%s3961 + $0x28] sm:$0xf]
      %v3973 = vld [vmem:[%s3961 + $0x2c] sm:$0xf]
      %v3974 = vld [vmem:[%s3961 + $0x30] sm:$0xf]
      %v3975 = vld [vmem:[%s3961 + $0x34] sm:$0xf]
      %v3976 = vld [vmem:[%s3961 + $0x38] sm:$0xf]
      %v3977 = vld [vmem:[%s3961 + $0x3c] sm:$0xf]
      %v3994 = vunpack.c.l.b16 %v3962
      %v3995 = vunpack.c.l.b16 %v3963
      %v3996 = vunpack.c.l.b16 %v3964
      %v3997 = vunpack.c.l.b16 %v3965
      %v3998 = vunpack.c.l.b16 %v3966
      %v3999 = vunpack.c.l.b16 %v3967
      %v4000 = vunpack.c.l.b16 %v3968
      %v4001 = vunpack.c.l.b16 %v3969
      %v4002 = vunpack.c.l.b16 %v3970
      %v4003 = vunpack.c.l.b16 %v3971
      %v4004 = vunpack.c.l.b16 %v3972
      %v4005 = vunpack.c.l.b16 %v3973
      %v4006 = vunpack.c.l.b16 %v3974
      %v4007 = vunpack.c.l.b16 %v3975
      %v4008 = vunpack.c.l.b16 %v3976
      %v4009 = vunpack.c.l.b16 %v3977
      %v4010 = vpack.c.b16 %v3995, %v3994
      %v4011 = vpack.c.b16 %v3997, %v3996
      %v4012 = vpack.c.b16 %v3999, %v3998
      %v4013 = vpack.c.b16 %v4001, %v4000
      %v4014 = vpack.c.b16 %v4003, %v4002
      %v4015 = vpack.c.b16 %v4005, %v4004
      %v4016 = vpack.c.b16 %v4007, %v4006
      %v4017 = vpack.c.b16 %v4009, %v4008
      %4026 = vmatprep.subr.bf16.mxu0 0
      %4027 = vmatpush1.bf16.msra.mxu0 %v4017
      %4028 = vmatprep.subr.bf16.mxu0 0
      %4029 = vmatpush1.bf16.msra.mxu0 %v4016
      %4030 = vmatprep.subr.bf16.mxu0 0
      %4031 = vmatpush1.bf16.msra.mxu0 %v4015
      %4032 = vmatprep.subr.bf16.mxu0 0
      %4033 = vmatpush1.bf16.msra.mxu0 %v4014
      %4034 = vmatprep.subr.bf16.mxu0 0
      %4035 = vmatpush1.bf16.msra.mxu0 %v4013
      %4036 = vmatprep.subr.bf16.mxu0 0
      %4037 = vmatpush1.bf16.msra.mxu0 %v4012
      %4038 = vmatprep.subr.bf16.mxu0 0
      %4039 = vmatpush1.bf16.msra.mxu0 %v4011
      %4040 = vmatprep.subr.bf16.mxu0 0
      %4041 = vmatpush1.bf16.msra.mxu0 %v4010
      %4042 = vmatprep.subr.bf16.mxu0 0
      %4043 = vmatpush2.bf16.msra.mxu0 0
      %4044 = vmatprep.subr.bf16.mxu0 0
      %4045 = vmatpush2.bf16.msra.mxu0 0
      %4046 = vmatprep.subr.bf16.mxu0 0
      %4047 = vmatpush2.bf16.msra.mxu0 0
      %4048 = vmatprep.subr.bf16.mxu0 0
      %4049 = vmatpush2.bf16.msra.mxu0 0
      %4050 = vmatprep.subr.bf16.mxu0 0
      %4051 = vmatpush2.bf16.msra.mxu0 0
      %4052 = vmatprep.subr.bf16.mxu0 0
      %4053 = vmatpush2.bf16.msra.mxu0 0
      %4054 = vmatprep.subr.bf16.mxu0 0
      %4055 = vmatpush2.bf16.msra.mxu0 0
      %4056 = vmatprep.subr.bf16.mxu0 0
      %4057 = vmatpush2.bf16.msra.mxu0 0
      %4058 = vmatprep.mubr.bf16.mxu0 0
      %4059 = vmatmul.mubr.bf16.gmra.mxu0 %v3945
      %v4060 = vpop.f32.mrf.mxu0
      %v4061 = vadd.f32 0.0, %v4060
      %v4062 = vpop.f32.mrf.mxu0
      %v4063 = vpop.f32.mrf.mxu0
      %v4064 = vadd.f32 0.0, %v4063
      %v4065 = vpop.f32.mrf.mxu0
      %4066 = vmatprep.mubr.bf16.mxu0 0
      %4067 = vmatmul.mubr.bf16.gmra.mxu0 %v3946
      %v4068 = vpop.f32.mrf.mxu0
      %v4069 = vadd.f32 0.0, %v4068
      %v4070 = vpop.f32.mrf.mxu0
      %v4071 = vpop.f32.mrf.mxu0
      %v4072 = vadd.f32 0.0, %v4071
      %v4073 = vpop.f32.mrf.mxu0
      %4074 = vmatprep.mubr.bf16.mxu0 0
      %4075 = vmatmul.mubr.bf16.gmra.mxu0 %v3947
      %v4076 = vpop.f32.mrf.mxu0
      %v4077 = vadd.f32 0.0, %v4076
      %v4078 = vpop.f32.mrf.mxu0
      %v4079 = vpop.f32.mrf.mxu0
      %v4080 = vadd.f32 0.0, %v4079
      %v4081 = vpop.f32.mrf.mxu0
      %4082 = vmatprep.mubr.bf16.mxu0 0
      %4083 = vmatmul.mubr.bf16.gmra.mxu0 %v3948
      %v4084 = vpop.f32.mrf.mxu0
      %v4085 = vadd.f32 0.0, %v4084
      %v4086 = vpop.f32.mrf.mxu0
      %v4087 = vpop.f32.mrf.mxu0
      %v4088 = vadd.f32 0.0, %v4087
      %v4089 = vpop.f32.mrf.mxu0
      %4090 = vmatprep.mubr.bf16.mxu0 0
      %4091 = vmatmul.mubr.bf16.gmra.mxu0 %v3949
      %v4092 = vpop.f32.mrf.mxu0
      %v4093 = vadd.f32 0.0, %v4092
      %v4094 = vpop.f32.mrf.mxu0
      %v4095 = vpop.f32.mrf.mxu0
      %v4096 = vadd.f32 0.0, %v4095
      %v4097 = vpop.f32.mrf.mxu0
      %4098 = vmatprep.mubr.bf16.mxu0 0
      %4099 = vmatmul.mubr.bf16.gmra.mxu0 %v3950
      %v4100 = vpop.f32.mrf.mxu0
      %v4101 = vadd.f32 0.0, %v4100
      %v4102 = vpop.f32.mrf.mxu0
      %v4103 = vpop.f32.mrf.mxu0
      %v4104 = vadd.f32 0.0, %v4103
      %v4105 = vpop.f32.mrf.mxu0
      %4106 = vmatprep.mubr.bf16.mxu0 0
      %4107 = vmatmul.mubr.bf16.gmra.mxu0 %v3951
      %v4108 = vpop.f32.mrf.mxu0
      %v4109 = vadd.f32 0.0, %v4108
      %v4110 = vpop.f32.mrf.mxu0
      %v4111 = vpop.f32.mrf.mxu0
      %v4112 = vadd.f32 0.0, %v4111
      %v4113 = vpop.f32.mrf.mxu0
      %4114 = vmatprep.mubr.bf16.mxu0 0
      %4115 = vmatmul.mubr.bf16.gmra.mxu0 %v3952
      %v4116 = vpop.f32.mrf.mxu0
      %v4117 = vadd.f32 0.0, %v4116
      %v4118 = vpop.f32.mrf.mxu0
      %v4119 = vpop.f32.mrf.mxu0
      %v4120 = vadd.f32 0.0, %v4119
      %v4121 = vpop.f32.mrf.mxu0
      %4122 = vmatprep.mubr.bf16.mxu0 0
      %4123 = vmatmul.mubr.bf16.gmra.mxu0 %v3953
      %v4124 = vpop.f32.mrf.mxu0
      %v4125 = vadd.f32 0.0, %v4124
      %v4126 = vpop.f32.mrf.mxu0
      %v4127 = vpop.f32.mrf.mxu0
      %v4128 = vadd.f32 0.0, %v4127
      %v4129 = vpop.f32.mrf.mxu0
      %4130 = vmatprep.mubr.bf16.mxu0 0
      %4131 = vmatmul.mubr.bf16.gmra.mxu0 %v3954
      %v4132 = vpop.f32.mrf.mxu0
      %v4133 = vadd.f32 0.0, %v4132
      %v4134 = vpop.f32.mrf.mxu0
      %v4135 = vpop.f32.mrf.mxu0
      %v4136 = vadd.f32 0.0, %v4135
      %v4137 = vpop.f32.mrf.mxu0
      %4138 = vmatprep.mubr.bf16.mxu0 0
      %4139 = vmatmul.mubr.bf16.gmra.mxu0 %v3955
      %v4140 = vpop.f32.mrf.mxu0
      %v4141 = vadd.f32 0.0, %v4140
      %v4142 = vpop.f32.mrf.mxu0
      %v4143 = vpop.f32.mrf.mxu0
      %v4144 = vadd.f32 0.0, %v4143
      %v4145 = vpop.f32.mrf.mxu0
      %4146 = vmatprep.mubr.bf16.mxu0 0
      %4147 = vmatmul.mubr.bf16.gmra.mxu0 %v3956
      %v4148 = vpop.f32.mrf.mxu0
      %v4149 = vadd.f32 0.0, %v4148
      %v4150 = vpop.f32.mrf.mxu0
      %v4151 = vpop.f32.mrf.mxu0
      %v4152 = vadd.f32 0.0, %v4151
      %v4153 = vpop.f32.mrf.mxu0
      %4154 = vmatprep.mubr.bf16.mxu0 0
      %4155 = vmatmul.mubr.bf16.gmra.mxu0 %v3957
      %v4156 = vpop.f32.mrf.mxu0
      %v4157 = vadd.f32 0.0, %v4156
      %v4158 = vpop.f32.mrf.mxu0
      %v4159 = vpop.f32.mrf.mxu0
      %v4160 = vadd.f32 0.0, %v4159
      %v4161 = vpop.f32.mrf.mxu0
      %4162 = vmatprep.mubr.bf16.mxu0 0
      %4163 = vmatmul.mubr.bf16.gmra.mxu0 %v3958
      %v4164 = vpop.f32.mrf.mxu0
      %v4165 = vadd.f32 0.0, %v4164
      %v4166 = vpop.f32.mrf.mxu0
      %v4167 = vpop.f32.mrf.mxu0
      %v4168 = vadd.f32 0.0, %v4167
      %v4169 = vpop.f32.mrf.mxu0
      %4170 = vmatprep.mubr.bf16.mxu0 0
      %4171 = vmatmul.mubr.bf16.gmra.mxu0 %v3959
      %v4172 = vpop.f32.mrf.mxu0
      %v4173 = vadd.f32 0.0, %v4172
      %v4174 = vpop.f32.mrf.mxu0
      %v4175 = vpop.f32.mrf.mxu0
      %v4176 = vadd.f32 0.0, %v4175
      %v4177 = vpop.f32.mrf.mxu0
      %4178 = vmatprep.mubr.bf16.mxu0 0
      %4179 = vmatmul.mubr.bf16.gmra.mxu0 %v3960
      %v4180 = vpop.f32.mrf.mxu0
      %v4181 = vadd.f32 0.0, %v4180
      %v4182 = vpop.f32.mrf.mxu0
      %v4183 = vpop.f32.mrf.mxu0
      %v4184 = vadd.f32 0.0, %v4183
      %v4185 = vpop.f32.mrf.mxu0
      %4186 = vdwg.mxu0
      %v4187 = vadd.f32 %v3849, %v4061
      %v4188 = vadd.f32 %v3850, %v4064
      %v4189 = vadd.f32 %v3851, %v4069
      %v4190 = vadd.f32 %v3852, %v4072
      %v4191 = vadd.f32 %v3853, %v4077
      %v4192 = vadd.f32 %v3854, %v4080
      %v4193 = vadd.f32 %v3855, %v4085
      %v4194 = vadd.f32 %v3856, %v4088
      %v4195 = vadd.f32 %v3857, %v4093
      %v4196 = vadd.f32 %v3858, %v4096
      %v4197 = vadd.f32 %v3859, %v4101
      %v4198 = vadd.f32 %v3860, %v4104
      %v4199 = vadd.f32 %v3861, %v4109
      %v4200 = vadd.f32 %v3862, %v4112
      %v4201 = vadd.f32 %v3863, %v4117
      %v4202 = vadd.f32 %v3864, %v4120
      %v4203 = vadd.f32 %v3865, %v4125
      %v4204 = vadd.f32 %v3866, %v4128
      %v4205 = vadd.f32 %v3867, %v4133
      %v4206 = vadd.f32 %v3868, %v4136
      %v4207 = vadd.f32 %v3869, %v4141
      %v4208 = vadd.f32 %v3870, %v4144
      %v4209 = vadd.f32 %v3871, %v4149
      %v4210 = vadd.f32 %v3872, %v4152
      %v4211 = vadd.f32 %v3873, %v4157
      %v4212 = vadd.f32 %v3874, %v4160
      %v4213 = vadd.f32 %v3875, %v4165
      %v4214 = vadd.f32 %v3876, %v4168
      %v4215 = vadd.f32 %v3877, %v4173
      %v4216 = vadd.f32 %v3878, %v4176
      %v4217 = vadd.f32 %v3879, %v4181
      %v4218 = vadd.f32 %v3880, %v4184
      %s4219 = scalar_lea.vmem %s3881, 1 [#allocation2]
      %v4220 = vld [vmem:[%s4219] ss:$2 sm:$0xff]
      %s4221 = scalar_lea.vmem %s3881, 17 [#allocation2]
      %v4222 = vld [vmem:[%s4221] ss:$2 sm:$0xff]
      %s4223 = scalar_lea.vmem %s3881, 81 [#allocation2]
      %v4224 = vld [vmem:[%s4223] ss:$2 sm:$0xff]
      %s4225 = scalar_lea.vmem %s3881, 97 [#allocation2]
      %v4226 = vld [vmem:[%s4225] ss:$2 sm:$0xff]
      %s4227 = scalar_lea.vmem %s3881, 161 [#allocation2]
      %v4228 = vld [vmem:[%s4227] ss:$2 sm:$0xff]
      %s4229 = scalar_lea.vmem %s3881, 177 [#allocation2]
      %v4230 = vld [vmem:[%s4229] ss:$2 sm:$0xff]
      %s4231 = scalar_lea.vmem %s3881, 241 [#allocation2]
      %v4232 = vld [vmem:[%s4231] ss:$2 sm:$0xff]
      %s4233 = scalar_lea.vmem %s3881, 257 [#allocation2]
      %v4234 = vld [vmem:[%s4233] ss:$2 sm:$0xff]
      %s4235 = scalar_lea.vmem %s3881, 321 [#allocation2]
      %v4236 = vld [vmem:[%s4235] ss:$2 sm:$0xff]
      %s4237 = scalar_lea.vmem %s3881, 337 [#allocation2]
      %v4238 = vld [vmem:[%s4237] ss:$2 sm:$0xff]
      %s4239 = scalar_lea.vmem %s3881, 401 [#allocation2]
      %v4240 = vld [vmem:[%s4239] ss:$2 sm:$0xff]
      %s4241 = scalar_lea.vmem %s3881, 417 [#allocation2]
      %v4242 = vld [vmem:[%s4241] ss:$2 sm:$0xff]
      %s4243 = scalar_lea.vmem %s3881, 481 [#allocation2]
      %v4244 = vld [vmem:[%s4243] ss:$2 sm:$0xff]
      %s4245 = scalar_lea.vmem %s3881, 497 [#allocation2]
      %v4246 = vld [vmem:[%s4245] ss:$2 sm:$0xff]
      %s4247 = scalar_lea.vmem %s3881, 561 [#allocation2]
      %v4248 = vld [vmem:[%s4247] ss:$2 sm:$0xff]
      %s4249 = scalar_lea.vmem %s3881, 577 [#allocation2]
      %v4250 = vld [vmem:[%s4249] ss:$2 sm:$0xff]
      %s4251 = scalar_lea.vmem %s3881, 641 [#allocation2]
      %v4252 = vld [vmem:[%s4251] ss:$2 sm:$0xff]
      %s4253 = scalar_lea.vmem %s3881, 657 [#allocation2]
      %v4254 = vld [vmem:[%s4253] ss:$2 sm:$0xff]
      %s4255 = scalar_lea.vmem %s3881, 721 [#allocation2]
      %v4256 = vld [vmem:[%s4255] ss:$2 sm:$0xff]
      %s4257 = scalar_lea.vmem %s3881, 737 [#allocation2]
      %v4258 = vld [vmem:[%s4257] ss:$2 sm:$0xff]
      %s4259 = scalar_lea.vmem %s3881, 801 [#allocation2]
      %v4260 = vld [vmem:[%s4259] ss:$2 sm:$0xff]
      %s4261 = scalar_lea.vmem %s3881, 817 [#allocation2]
      %v4262 = vld [vmem:[%s4261] ss:$2 sm:$0xff]
      %s4263 = scalar_lea.vmem %s3881, 881 [#allocation2]
      %v4264 = vld [vmem:[%s4263] ss:$2 sm:$0xff]
      %s4265 = scalar_lea.vmem %s3881, 897 [#allocation2]
      %v4266 = vld [vmem:[%s4265] ss:$2 sm:$0xff]
      %s4267 = scalar_lea.vmem %s3881, 961 [#allocation2]
      %v4268 = vld [vmem:[%s4267] ss:$2 sm:$0xff]
      %s4269 = scalar_lea.vmem %s3881, 977 [#allocation2]
      %v4270 = vld [vmem:[%s4269] ss:$2 sm:$0xff]
      %s4271 = scalar_lea.vmem %s3881, 1041 [#allocation2]
      %v4272 = vld [vmem:[%s4271] ss:$2 sm:$0xff]
      %s4273 = scalar_lea.vmem %s3881, 1057 [#allocation2]
      %v4274 = vld [vmem:[%s4273] ss:$2 sm:$0xff]
      %s4275 = scalar_lea.vmem %s3881, 1121 [#allocation2]
      %v4276 = vld [vmem:[%s4275] ss:$2 sm:$0xff]
      %s4277 = scalar_lea.vmem %s3881, 1137 [#allocation2]
      %v4278 = vld [vmem:[%s4277] ss:$2 sm:$0xff]
      %s4279 = scalar_lea.vmem %s3881, 1201 [#allocation2]
      %v4280 = vld [vmem:[%s4279] ss:$2 sm:$0xff]
      %s4281 = scalar_lea.vmem %s3881, 1217 [#allocation2]
      %v4282 = vld [vmem:[%s4281] ss:$2 sm:$0xff]
      %v4283 = vpack.c.bf16 %v4222, %v4220
      %v4284 = vpack.c.bf16 %v4226, %v4224
      %v4285 = vpack.c.bf16 %v4230, %v4228
      %v4286 = vpack.c.bf16 %v4234, %v4232
      %v4287 = vpack.c.bf16 %v4238, %v4236
      %v4288 = vpack.c.bf16 %v4242, %v4240
      %v4289 = vpack.c.bf16 %v4246, %v4244
      %v4290 = vpack.c.bf16 %v4250, %v4248
      %v4291 = vpack.c.bf16 %v4254, %v4252
      %v4292 = vpack.c.bf16 %v4258, %v4256
      %v4293 = vpack.c.bf16 %v4262, %v4260
      %v4294 = vpack.c.bf16 %v4266, %v4264
      %v4295 = vpack.c.bf16 %v4270, %v4268
      %v4296 = vpack.c.bf16 %v4274, %v4272
      %v4297 = vpack.c.bf16 %v4278, %v4276
      %v4298 = vpack.c.bf16 %v4282, %v4280
      %s4299 = scalar_lea.vmem %s3, 448
      %v4300 = vld [vmem:[%s4299] sm:$0xf]
      %v4301 = vld [vmem:[%s4299 + $0x4] sm:$0xf]
      %v4302 = vld [vmem:[%s4299 + $0x8] sm:$0xf]
      %v4303 = vld [vmem:[%s4299 + $0xc] sm:$0xf]
      %v4304 = vld [vmem:[%s4299 + $0x10] sm:$0xf]
      %v4305 = vld [vmem:[%s4299 + $0x14] sm:$0xf]
      %v4306 = vld [vmem:[%s4299 + $0x18] sm:$0xf]
      %v4307 = vld [vmem:[%s4299 + $0x1c] sm:$0xf]
      %v4308 = vld [vmem:[%s4299 + $0x20] sm:$0xf]
      %v4309 = vld [vmem:[%s4299 + $0x24] sm:$0xf]
      %v4310 = vld [vmem:[%s4299 + $0x28] sm:$0xf]
      %v4311 = vld [vmem:[%s4299 + $0x2c] sm:$0xf]
      %v4312 = vld [vmem:[%s4299 + $0x30] sm:$0xf]
      %v4313 = vld [vmem:[%s4299 + $0x34] sm:$0xf]
      %v4314 = vld [vmem:[%s4299 + $0x38] sm:$0xf]
      %v4315 = vld [vmem:[%s4299 + $0x3c] sm:$0xf]
      %v4332 = vunpack.c.l.b16 %v4300
      %v4333 = vunpack.c.l.b16 %v4301
      %v4334 = vunpack.c.l.b16 %v4302
      %v4335 = vunpack.c.l.b16 %v4303
      %v4336 = vunpack.c.l.b16 %v4304
      %v4337 = vunpack.c.l.b16 %v4305
      %v4338 = vunpack.c.l.b16 %v4306
      %v4339 = vunpack.c.l.b16 %v4307
      %v4340 = vunpack.c.l.b16 %v4308
      %v4341 = vunpack.c.l.b16 %v4309
      %v4342 = vunpack.c.l.b16 %v4310
      %v4343 = vunpack.c.l.b16 %v4311
      %v4344 = vunpack.c.l.b16 %v4312
      %v4345 = vunpack.c.l.b16 %v4313
      %v4346 = vunpack.c.l.b16 %v4314
      %v4347 = vunpack.c.l.b16 %v4315
      %v4348 = vpack.c.b16 %v4333, %v4332
      %v4349 = vpack.c.b16 %v4335, %v4334
      %v4350 = vpack.c.b16 %v4337, %v4336
      %v4351 = vpack.c.b16 %v4339, %v4338
      %v4352 = vpack.c.b16 %v4341, %v4340
      %v4353 = vpack.c.b16 %v4343, %v4342
      %v4354 = vpack.c.b16 %v4345, %v4344
      %v4355 = vpack.c.b16 %v4347, %v4346
      %4364 = vmatprep.subr.bf16.mxu0 0
      %4365 = vmatpush1.bf16.msra.mxu0 %v4355
      %4366 = vmatprep.subr.bf16.mxu0 0
      %4367 = vmatpush1.bf16.msra.mxu0 %v4354
      %4368 = vmatprep.subr.bf16.mxu0 0
      %4369 = vmatpush1.bf16.msra.mxu0 %v4353
      %4370 = vmatprep.subr.bf16.mxu0 0
      %4371 = vmatpush1.bf16.msra.mxu0 %v4352
      %4372 = vmatprep.subr.bf16.mxu0 0
      %4373 = vmatpush1.bf16.msra.mxu0 %v4351
      %4374 = vmatprep.subr.bf16.mxu0 0
      %4375 = vmatpush1.bf16.msra.mxu0 %v4350
      %4376 = vmatprep.subr.bf16.mxu0 0
      %4377 = vmatpush1.bf16.msra.mxu0 %v4349
      %4378 = vmatprep.subr.bf16.mxu0 0
      %4379 = vmatpush1.bf16.msra.mxu0 %v4348
      %4380 = vmatprep.subr.bf16.mxu0 0
      %4381 = vmatpush2.bf16.msra.mxu0 0
      %4382 = vmatprep.subr.bf16.mxu0 0
      %4383 = vmatpush2.bf16.msra.mxu0 0
      %4384 = vmatprep.subr.bf16.mxu0 0
      %4385 = vmatpush2.bf16.msra.mxu0 0
      %4386 = vmatprep.subr.bf16.mxu0 0
      %4387 = vmatpush2.bf16.msra.mxu0 0
      %4388 = vmatprep.subr.bf16.mxu0 0
      %4389 = vmatpush2.bf16.msra.mxu0 0
      %4390 = vmatprep.subr.bf16.mxu0 0
      %4391 = vmatpush2.bf16.msra.mxu0 0
      %4392 = vmatprep.subr.bf16.mxu0 0
      %4393 = vmatpush2.bf16.msra.mxu0 0
      %4394 = vmatprep.subr.bf16.mxu0 0
      %4395 = vmatpush2.bf16.msra.mxu0 0
      %4396 = vmatprep.mubr.bf16.mxu0 0
      %4397 = vmatmul.mubr.bf16.gmra.mxu0 %v4283
      %v4398 = vpop.f32.mrf.mxu0
      %v4399 = vadd.f32 0.0, %v4398
      %v4400 = vpop.f32.mrf.mxu0
      %v4401 = vpop.f32.mrf.mxu0
      %v4402 = vadd.f32 0.0, %v4401
      %v4403 = vpop.f32.mrf.mxu0
      %4404 = vmatprep.mubr.bf16.mxu0 0
      %4405 = vmatmul.mubr.bf16.gmra.mxu0 %v4284
      %v4406 = vpop.f32.mrf.mxu0
      %v4407 = vadd.f32 0.0, %v4406
      %v4408 = vpop.f32.mrf.mxu0
      %v4409 = vpop.f32.mrf.mxu0
      %v4410 = vadd.f32 0.0, %v4409
      %v4411 = vpop.f32.mrf.mxu0
      %4412 = vmatprep.mubr.bf16.mxu0 0
      %4413 = vmatmul.mubr.bf16.gmra.mxu0 %v4285
      %v4414 = vpop.f32.mrf.mxu0
      %v4415 = vadd.f32 0.0, %v4414
      %v4416 = vpop.f32.mrf.mxu0
      %v4417 = vpop.f32.mrf.mxu0
      %v4418 = vadd.f32 0.0, %v4417
      %v4419 = vpop.f32.mrf.mxu0
      %4420 = vmatprep.mubr.bf16.mxu0 0
      %4421 = vmatmul.mubr.bf16.gmra.mxu0 %v4286
      %v4422 = vpop.f32.mrf.mxu0
      %v4423 = vadd.f32 0.0, %v4422
      %v4424 = vpop.f32.mrf.mxu0
      %v4425 = vpop.f32.mrf.mxu0
      %v4426 = vadd.f32 0.0, %v4425
      %v4427 = vpop.f32.mrf.mxu0
      %4428 = vmatprep.mubr.bf16.mxu0 0
      %4429 = vmatmul.mubr.bf16.gmra.mxu0 %v4287
      %v4430 = vpop.f32.mrf.mxu0
      %v4431 = vadd.f32 0.0, %v4430
      %v4432 = vpop.f32.mrf.mxu0
      %v4433 = vpop.f32.mrf.mxu0
      %v4434 = vadd.f32 0.0, %v4433
      %v4435 = vpop.f32.mrf.mxu0
      %4436 = vmatprep.mubr.bf16.mxu0 0
      %4437 = vmatmul.mubr.bf16.gmra.mxu0 %v4288
      %v4438 = vpop.f32.mrf.mxu0
      %v4439 = vadd.f32 0.0, %v4438
      %v4440 = vpop.f32.mrf.mxu0
      %v4441 = vpop.f32.mrf.mxu0
      %v4442 = vadd.f32 0.0, %v4441
      %v4443 = vpop.f32.mrf.mxu0
      %4444 = vmatprep.mubr.bf16.mxu0 0
      %4445 = vmatmul.mubr.bf16.gmra.mxu0 %v4289
      %v4446 = vpop.f32.mrf.mxu0
      %v4447 = vadd.f32 0.0, %v4446
      %v4448 = vpop.f32.mrf.mxu0
      %v4449 = vpop.f32.mrf.mxu0
      %v4450 = vadd.f32 0.0, %v4449
      %v4451 = vpop.f32.mrf.mxu0
      %4452 = vmatprep.mubr.bf16.mxu0 0
      %4453 = vmatmul.mubr.bf16.gmra.mxu0 %v4290
      %v4454 = vpop.f32.mrf.mxu0
      %v4455 = vadd.f32 0.0, %v4454
      %v4456 = vpop.f32.mrf.mxu0
      %v4457 = vpop.f32.mrf.mxu0
      %v4458 = vadd.f32 0.0, %v4457
      %v4459 = vpop.f32.mrf.mxu0
      %4460 = vmatprep.mubr.bf16.mxu0 0
      %4461 = vmatmul.mubr.bf16.gmra.mxu0 %v4291
      %v4462 = vpop.f32.mrf.mxu0
      %v4463 = vadd.f32 0.0, %v4462
      %v4464 = vpop.f32.mrf.mxu0
      %v4465 = vpop.f32.mrf.mxu0
      %v4466 = vadd.f32 0.0, %v4465
      %v4467 = vpop.f32.mrf.mxu0
      %4468 = vmatprep.mubr.bf16.mxu0 0
      %4469 = vmatmul.mubr.bf16.gmra.mxu0 %v4292
      %v4470 = vpop.f32.mrf.mxu0
      %v4471 = vadd.f32 0.0, %v4470
      %v4472 = vpop.f32.mrf.mxu0
      %v4473 = vpop.f32.mrf.mxu0
      %v4474 = vadd.f32 0.0, %v4473
      %v4475 = vpop.f32.mrf.mxu0
      %4476 = vmatprep.mubr.bf16.mxu0 0
      %4477 = vmatmul.mubr.bf16.gmra.mxu0 %v4293
      %v4478 = vpop.f32.mrf.mxu0
      %v4479 = vadd.f32 0.0, %v4478
      %v4480 = vpop.f32.mrf.mxu0
      %v4481 = vpop.f32.mrf.mxu0
      %v4482 = vadd.f32 0.0, %v4481
      %v4483 = vpop.f32.mrf.mxu0
      %4484 = vmatprep.mubr.bf16.mxu0 0
      %4485 = vmatmul.mubr.bf16.gmra.mxu0 %v4294
      %v4486 = vpop.f32.mrf.mxu0
      %v4487 = vadd.f32 0.0, %v4486
      %v4488 = vpop.f32.mrf.mxu0
      %v4489 = vpop.f32.mrf.mxu0
      %v4490 = vadd.f32 0.0, %v4489
      %v4491 = vpop.f32.mrf.mxu0
      %4492 = vmatprep.mubr.bf16.mxu0 0
      %4493 = vmatmul.mubr.bf16.gmra.mxu0 %v4295
      %v4494 = vpop.f32.mrf.mxu0
      %v4495 = vadd.f32 0.0, %v4494
      %v4496 = vpop.f32.mrf.mxu0
      %v4497 = vpop.f32.mrf.mxu0
      %v4498 = vadd.f32 0.0, %v4497
      %v4499 = vpop.f32.mrf.mxu0
      %4500 = vmatprep.mubr.bf16.mxu0 0
      %4501 = vmatmul.mubr.bf16.gmra.mxu0 %v4296
      %v4502 = vpop.f32.mrf.mxu0
      %v4503 = vadd.f32 0.0, %v4502
      %v4504 = vpop.f32.mrf.mxu0
      %v4505 = vpop.f32.mrf.mxu0
      %v4506 = vadd.f32 0.0, %v4505
      %v4507 = vpop.f32.mrf.mxu0
      %4508 = vmatprep.mubr.bf16.mxu0 0
      %4509 = vmatmul.mubr.bf16.gmra.mxu0 %v4297
      %v4510 = vpop.f32.mrf.mxu0
      %v4511 = vadd.f32 0.0, %v4510
      %v4512 = vpop.f32.mrf.mxu0
      %v4513 = vpop.f32.mrf.mxu0
      %v4514 = vadd.f32 0.0, %v4513
      %v4515 = vpop.f32.mrf.mxu0
      %4516 = vmatprep.mubr.bf16.mxu0 0
      %4517 = vmatmul.mubr.bf16.gmra.mxu0 %v4298
      %v4518 = vpop.f32.mrf.mxu0
      %v4519 = vadd.f32 0.0, %v4518
      %v4520 = vpop.f32.mrf.mxu0
      %v4521 = vpop.f32.mrf.mxu0
      %v4522 = vadd.f32 0.0, %v4521
      %v4523 = vpop.f32.mrf.mxu0
      %4524 = vdwg.mxu0
      %v4525 = vadd.f32 %v4187, %v4399
      %v4526 = vadd.f32 %v4188, %v4402
      %v4527 = vadd.f32 %v4189, %v4407
      %v4528 = vadd.f32 %v4190, %v4410
      %v4529 = vadd.f32 %v4191, %v4415
      %v4530 = vadd.f32 %v4192, %v4418
      %v4531 = vadd.f32 %v4193, %v4423
      %v4532 = vadd.f32 %v4194, %v4426
      %v4533 = vadd.f32 %v4195, %v4431
      %v4534 = vadd.f32 %v4196, %v4434
      %v4535 = vadd.f32 %v4197, %v4439
      %v4536 = vadd.f32 %v4198, %v4442
      %v4537 = vadd.f32 %v4199, %v4447
      %v4538 = vadd.f32 %v4200, %v4450
      %v4539 = vadd.f32 %v4201, %v4455
      %v4540 = vadd.f32 %v4202, %v4458
      %v4541 = vadd.f32 %v4203, %v4463
      %v4542 = vadd.f32 %v4204, %v4466
      %v4543 = vadd.f32 %v4205, %v4471
      %v4544 = vadd.f32 %v4206, %v4474
      %v4545 = vadd.f32 %v4207, %v4479
      %v4546 = vadd.f32 %v4208, %v4482
      %v4547 = vadd.f32 %v4209, %v4487
      %v4548 = vadd.f32 %v4210, %v4490
      %v4549 = vadd.f32 %v4211, %v4495
      %v4550 = vadd.f32 %v4212, %v4498
      %v4551 = vadd.f32 %v4213, %v4503
      %v4552 = vadd.f32 %v4214, %v4506
      %v4553 = vadd.f32 %v4215, %v4511
      %v4554 = vadd.f32 %v4216, %v4514
      %v4555 = vadd.f32 %v4217, %v4519
      %v4556 = vadd.f32 %v4218, %v4522
      %s4557 = scalar_lea.vmem %s3881, 2 [#allocation2]
      %v4558 = vld [vmem:[%s4557] ss:$2 sm:$0xff]
      %s4559 = scalar_lea.vmem %s3881, 18 [#allocation2]
      %v4560 = vld [vmem:[%s4559] ss:$2 sm:$0xff]
      %s4561 = scalar_lea.vmem %s3881, 82 [#allocation2]
      %v4562 = vld [vmem:[%s4561] ss:$2 sm:$0xff]
      %s4563 = scalar_lea.vmem %s3881, 98 [#allocation2]
      %v4564 = vld [vmem:[%s4563] ss:$2 sm:$0xff]
      %s4565 = scalar_lea.vmem %s3881, 162 [#allocation2]
      %v4566 = vld [vmem:[%s4565] ss:$2 sm:$0xff]
      %s4567 = scalar_lea.vmem %s3881, 178 [#allocation2]
      %v4568 = vld [vmem:[%s4567] ss:$2 sm:$0xff]
      %s4569 = scalar_lea.vmem %s3881, 242 [#allocation2]
      %v4570 = vld [vmem:[%s4569] ss:$2 sm:$0xff]
      %s4571 = scalar_lea.vmem %s3881, 258 [#allocation2]
      %v4572 = vld [vmem:[%s4571] ss:$2 sm:$0xff]
      %s4573 = scalar_lea.vmem %s3881, 322 [#allocation2]
      %v4574 = vld [vmem:[%s4573] ss:$2 sm:$0xff]
      %s4575 = scalar_lea.vmem %s3881, 338 [#allocation2]
      %v4576 = vld [vmem:[%s4575] ss:$2 sm:$0xff]
      %s4577 = scalar_lea.vmem %s3881, 402 [#allocation2]
      %v4578 = vld [vmem:[%s4577] ss:$2 sm:$0xff]
      %s4579 = scalar_lea.vmem %s3881, 418 [#allocation2]
      %v4580 = vld [vmem:[%s4579] ss:$2 sm:$0xff]
      %s4581 = scalar_lea.vmem %s3881, 482 [#allocation2]
      %v4582 = vld [vmem:[%s4581] ss:$2 sm:$0xff]
      %s4583 = scalar_lea.vmem %s3881, 498 [#allocation2]
      %v4584 = vld [vmem:[%s4583] ss:$2 sm:$0xff]
      %s4585 = scalar_lea.vmem %s3881, 562 [#allocation2]
      %v4586 = vld [vmem:[%s4585] ss:$2 sm:$0xff]
      %s4587 = scalar_lea.vmem %s3881, 578 [#allocation2]
      %v4588 = vld [vmem:[%s4587] ss:$2 sm:$0xff]
      %s4589 = scalar_lea.vmem %s3881, 642 [#allocation2]
      %v4590 = vld [vmem:[%s4589] ss:$2 sm:$0xff]
      %s4591 = scalar_lea.vmem %s3881, 658 [#allocation2]
      %v4592 = vld [vmem:[%s4591] ss:$2 sm:$0xff]
      %s4593 = scalar_lea.vmem %s3881, 722 [#allocation2]
      %v4594 = vld [vmem:[%s4593] ss:$2 sm:$0xff]
      %s4595 = scalar_lea.vmem %s3881, 738 [#allocation2]
      %v4596 = vld [vmem:[%s4595] ss:$2 sm:$0xff]
      %s4597 = scalar_lea.vmem %s3881, 802 [#allocation2]
      %v4598 = vld [vmem:[%s4597] ss:$2 sm:$0xff]
      %s4599 = scalar_lea.vmem %s3881, 818 [#allocation2]
      %v4600 = vld [vmem:[%s4599] ss:$2 sm:$0xff]
      %s4601 = scalar_lea.vmem %s3881, 882 [#allocation2]
      %v4602 = vld [vmem:[%s4601] ss:$2 sm:$0xff]
      %s4603 = scalar_lea.vmem %s3881, 898 [#allocation2]
      %v4604 = vld [vmem:[%s4603] ss:$2 sm:$0xff]
      %s4605 = scalar_lea.vmem %s3881, 962 [#allocation2]
      %v4606 = vld [vmem:[%s4605] ss:$2 sm:$0xff]
      %s4607 = scalar_lea.vmem %s3881, 978 [#allocation2]
      %v4608 = vld [vmem:[%s4607] ss:$2 sm:$0xff]
      %s4609 = scalar_lea.vmem %s3881, 1042 [#allocation2]
      %v4610 = vld [vmem:[%s4609] ss:$2 sm:$0xff]
      %s4611 = scalar_lea.vmem %s3881, 1058 [#allocation2]
      %v4612 = vld [vmem:[%s4611] ss:$2 sm:$0xff]
      %s4613 = scalar_lea.vmem %s3881, 1122 [#allocation2]
      %v4614 = vld [vmem:[%s4613] ss:$2 sm:$0xff]
      %s4615 = scalar_lea.vmem %s3881, 1138 [#allocation2]
      %v4616 = vld [vmem:[%s4615] ss:$2 sm:$0xff]
      %s4617 = scalar_lea.vmem %s3881, 1202 [#allocation2]
      %v4618 = vld [vmem:[%s4617] ss:$2 sm:$0xff]
      %s4619 = scalar_lea.vmem %s3881, 1218 [#allocation2]
      %v4620 = vld [vmem:[%s4619] ss:$2 sm:$0xff]
      %v4621 = vpack.c.bf16 %v4560, %v4558
      %v4622 = vpack.c.bf16 %v4564, %v4562
      %v4623 = vpack.c.bf16 %v4568, %v4566
      %v4624 = vpack.c.bf16 %v4572, %v4570
      %v4625 = vpack.c.bf16 %v4576, %v4574
      %v4626 = vpack.c.bf16 %v4580, %v4578
      %v4627 = vpack.c.bf16 %v4584, %v4582
      %v4628 = vpack.c.bf16 %v4588, %v4586
      %v4629 = vpack.c.bf16 %v4592, %v4590
      %v4630 = vpack.c.bf16 %v4596, %v4594
      %v4631 = vpack.c.bf16 %v4600, %v4598
      %v4632 = vpack.c.bf16 %v4604, %v4602
      %v4633 = vpack.c.bf16 %v4608, %v4606
      %v4634 = vpack.c.bf16 %v4612, %v4610
      %v4635 = vpack.c.bf16 %v4616, %v4614
      %v4636 = vpack.c.bf16 %v4620, %v4618
      %s4637 = scalar_lea.vmem %s3, 512
      %v4638 = vld [vmem:[%s4637] sm:$0xf]
      %v4639 = vld [vmem:[%s4637 + $0x4] sm:$0xf]
      %v4640 = vld [vmem:[%s4637 + $0x8] sm:$0xf]
      %v4641 = vld [vmem:[%s4637 + $0xc] sm:$0xf]
      %v4642 = vld [vmem:[%s4637 + $0x10] sm:$0xf]
      %v4643 = vld [vmem:[%s4637 + $0x14] sm:$0xf]
      %v4644 = vld [vmem:[%s4637 + $0x18] sm:$0xf]
      %v4645 = vld [vmem:[%s4637 + $0x1c] sm:$0xf]
      %v4646 = vld [vmem:[%s4637 + $0x20] sm:$0xf]
      %v4647 = vld [vmem:[%s4637 + $0x24] sm:$0xf]
      %v4648 = vld [vmem:[%s4637 + $0x28] sm:$0xf]
      %v4649 = vld [vmem:[%s4637 + $0x2c] sm:$0xf]
      %v4650 = vld [vmem:[%s4637 + $0x30] sm:$0xf]
      %v4651 = vld [vmem:[%s4637 + $0x34] sm:$0xf]
      %v4652 = vld [vmem:[%s4637 + $0x38] sm:$0xf]
      %v4653 = vld [vmem:[%s4637 + $0x3c] sm:$0xf]
      %v4670 = vunpack.c.l.b16 %v4638
      %v4671 = vunpack.c.l.b16 %v4639
      %v4672 = vunpack.c.l.b16 %v4640
      %v4673 = vunpack.c.l.b16 %v4641
      %v4674 = vunpack.c.l.b16 %v4642
      %v4675 = vunpack.c.l.b16 %v4643
      %v4676 = vunpack.c.l.b16 %v4644
      %v4677 = vunpack.c.l.b16 %v4645
      %v4678 = vunpack.c.l.b16 %v4646
      %v4679 = vunpack.c.l.b16 %v4647
      %v4680 = vunpack.c.l.b16 %v4648
      %v4681 = vunpack.c.l.b16 %v4649
      %v4682 = vunpack.c.l.b16 %v4650
      %v4683 = vunpack.c.l.b16 %v4651
      %v4684 = vunpack.c.l.b16 %v4652
      %v4685 = vunpack.c.l.b16 %v4653
      %v4686 = vpack.c.b16 %v4671, %v4670
      %v4687 = vpack.c.b16 %v4673, %v4672
      %v4688 = vpack.c.b16 %v4675, %v4674
      %v4689 = vpack.c.b16 %v4677, %v4676
      %v4690 = vpack.c.b16 %v4679, %v4678
      %v4691 = vpack.c.b16 %v4681, %v4680
      %v4692 = vpack.c.b16 %v4683, %v4682
      %v4693 = vpack.c.b16 %v4685, %v4684
      %4702 = vmatprep.subr.bf16.mxu0 0
      %4703 = vmatpush1.bf16.msra.mxu0 %v4693
      %4704 = vmatprep.subr.bf16.mxu0 0
      %4705 = vmatpush1.bf16.msra.mxu0 %v4692
      %4706 = vmatprep.subr.bf16.mxu0 0
      %4707 = vmatpush1.bf16.msra.mxu0 %v4691
      %4708 = vmatprep.subr.bf16.mxu0 0
      %4709 = vmatpush1.bf16.msra.mxu0 %v4690
      %4710 = vmatprep.subr.bf16.mxu0 0
      %4711 = vmatpush1.bf16.msra.mxu0 %v4689
      %4712 = vmatprep.subr.bf16.mxu0 0
      %4713 = vmatpush1.bf16.msra.mxu0 %v4688
      %4714 = vmatprep.subr.bf16.mxu0 0
      %4715 = vmatpush1.bf16.msra.mxu0 %v4687
      %4716 = vmatprep.subr.bf16.mxu0 0
      %4717 = vmatpush1.bf16.msra.mxu0 %v4686
      %4718 = vmatprep.subr.bf16.mxu0 0
      %4719 = vmatpush2.bf16.msra.mxu0 0
      %4720 = vmatprep.subr.bf16.mxu0 0
      %4721 = vmatpush2.bf16.msra.mxu0 0
      %4722 = vmatprep.subr.bf16.mxu0 0
      %4723 = vmatpush2.bf16.msra.mxu0 0
      %4724 = vmatprep.subr.bf16.mxu0 0
      %4725 = vmatpush2.bf16.msra.mxu0 0
      %4726 = vmatprep.subr.bf16.mxu0 0
      %4727 = vmatpush2.bf16.msra.mxu0 0
      %4728 = vmatprep.subr.bf16.mxu0 0
      %4729 = vmatpush2.bf16.msra.mxu0 0
      %4730 = vmatprep.subr.bf16.mxu0 0
      %4731 = vmatpush2.bf16.msra.mxu0 0
      %4732 = vmatprep.subr.bf16.mxu0 0
      %4733 = vmatpush2.bf16.msra.mxu0 0
      %4734 = vmatprep.mubr.bf16.mxu0 0
      %4735 = vmatmul.mubr.bf16.gmra.mxu0 %v4621
      %v4736 = vpop.f32.mrf.mxu0
      %v4737 = vadd.f32 0.0, %v4736
      %v4738 = vpop.f32.mrf.mxu0
      %v4739 = vpop.f32.mrf.mxu0
      %v4740 = vadd.f32 0.0, %v4739
      %v4741 = vpop.f32.mrf.mxu0
      %4742 = vmatprep.mubr.bf16.mxu0 0
      %4743 = vmatmul.mubr.bf16.gmra.mxu0 %v4622
      %v4744 = vpop.f32.mrf.mxu0
      %v4745 = vadd.f32 0.0, %v4744
      %v4746 = vpop.f32.mrf.mxu0
      %v4747 = vpop.f32.mrf.mxu0
      %v4748 = vadd.f32 0.0, %v4747
      %v4749 = vpop.f32.mrf.mxu0
      %4750 = vmatprep.mubr.bf16.mxu0 0
      %4751 = vmatmul.mubr.bf16.gmra.mxu0 %v4623
      %v4752 = vpop.f32.mrf.mxu0
      %v4753 = vadd.f32 0.0, %v4752
      %v4754 = vpop.f32.mrf.mxu0
      %v4755 = vpop.f32.mrf.mxu0
      %v4756 = vadd.f32 0.0, %v4755
      %v4757 = vpop.f32.mrf.mxu0
      %4758 = vmatprep.mubr.bf16.mxu0 0
      %4759 = vmatmul.mubr.bf16.gmra.mxu0 %v4624
      %v4760 = vpop.f32.mrf.mxu0
      %v4761 = vadd.f32 0.0, %v4760
      %v4762 = vpop.f32.mrf.mxu0
      %v4763 = vpop.f32.mrf.mxu0
      %v4764 = vadd.f32 0.0, %v4763
      %v4765 = vpop.f32.mrf.mxu0
      %4766 = vmatprep.mubr.bf16.mxu0 0
      %4767 = vmatmul.mubr.bf16.gmra.mxu0 %v4625
      %v4768 = vpop.f32.mrf.mxu0
      %v4769 = vadd.f32 0.0, %v4768
      %v4770 = vpop.f32.mrf.mxu0
      %v4771 = vpop.f32.mrf.mxu0
      %v4772 = vadd.f32 0.0, %v4771
      %v4773 = vpop.f32.mrf.mxu0
      %4774 = vmatprep.mubr.bf16.mxu0 0
      %4775 = vmatmul.mubr.bf16.gmra.mxu0 %v4626
      %v4776 = vpop.f32.mrf.mxu0
      %v4777 = vadd.f32 0.0, %v4776
      %v4778 = vpop.f32.mrf.mxu0
      %v4779 = vpop.f32.mrf.mxu0
      %v4780 = vadd.f32 0.0, %v4779
      %v4781 = vpop.f32.mrf.mxu0
      %4782 = vmatprep.mubr.bf16.mxu0 0
      %4783 = vmatmul.mubr.bf16.gmra.mxu0 %v4627
      %v4784 = vpop.f32.mrf.mxu0
      %v4785 = vadd.f32 0.0, %v4784
      %v4786 = vpop.f32.mrf.mxu0
      %v4787 = vpop.f32.mrf.mxu0
      %v4788 = vadd.f32 0.0, %v4787
      %v4789 = vpop.f32.mrf.mxu0
      %4790 = vmatprep.mubr.bf16.mxu0 0
      %4791 = vmatmul.mubr.bf16.gmra.mxu0 %v4628
      %v4792 = vpop.f32.mrf.mxu0
      %v4793 = vadd.f32 0.0, %v4792
      %v4794 = vpop.f32.mrf.mxu0
      %v4795 = vpop.f32.mrf.mxu0
      %v4796 = vadd.f32 0.0, %v4795
      %v4797 = vpop.f32.mrf.mxu0
      %4798 = vmatprep.mubr.bf16.mxu0 0
      %4799 = vmatmul.mubr.bf16.gmra.mxu0 %v4629
      %v4800 = vpop.f32.mrf.mxu0
      %v4801 = vadd.f32 0.0, %v4800
      %v4802 = vpop.f32.mrf.mxu0
      %v4803 = vpop.f32.mrf.mxu0
      %v4804 = vadd.f32 0.0, %v4803
      %v4805 = vpop.f32.mrf.mxu0
      %4806 = vmatprep.mubr.bf16.mxu0 0
      %4807 = vmatmul.mubr.bf16.gmra.mxu0 %v4630
      %v4808 = vpop.f32.mrf.mxu0
      %v4809 = vadd.f32 0.0, %v4808
      %v4810 = vpop.f32.mrf.mxu0
      %v4811 = vpop.f32.mrf.mxu0
      %v4812 = vadd.f32 0.0, %v4811
      %v4813 = vpop.f32.mrf.mxu0
      %4814 = vmatprep.mubr.bf16.mxu0 0
      %4815 = vmatmul.mubr.bf16.gmra.mxu0 %v4631
      %v4816 = vpop.f32.mrf.mxu0
      %v4817 = vadd.f32 0.0, %v4816
      %v4818 = vpop.f32.mrf.mxu0
      %v4819 = vpop.f32.mrf.mxu0
      %v4820 = vadd.f32 0.0, %v4819
      %v4821 = vpop.f32.mrf.mxu0
      %4822 = vmatprep.mubr.bf16.mxu0 0
      %4823 = vmatmul.mubr.bf16.gmra.mxu0 %v4632
      %v4824 = vpop.f32.mrf.mxu0
      %v4825 = vadd.f32 0.0, %v4824
      %v4826 = vpop.f32.mrf.mxu0
      %v4827 = vpop.f32.mrf.mxu0
      %v4828 = vadd.f32 0.0, %v4827
      %v4829 = vpop.f32.mrf.mxu0
      %4830 = vmatprep.mubr.bf16.mxu0 0
      %4831 = vmatmul.mubr.bf16.gmra.mxu0 %v4633
      %v4832 = vpop.f32.mrf.mxu0
      %v4833 = vadd.f32 0.0, %v4832
      %v4834 = vpop.f32.mrf.mxu0
      %v4835 = vpop.f32.mrf.mxu0
      %v4836 = vadd.f32 0.0, %v4835
      %v4837 = vpop.f32.mrf.mxu0
      %4838 = vmatprep.mubr.bf16.mxu0 0
      %4839 = vmatmul.mubr.bf16.gmra.mxu0 %v4634
      %v4840 = vpop.f32.mrf.mxu0
      %v4841 = vadd.f32 0.0, %v4840
      %v4842 = vpop.f32.mrf.mxu0
      %v4843 = vpop.f32.mrf.mxu0
      %v4844 = vadd.f32 0.0, %v4843
      %v4845 = vpop.f32.mrf.mxu0
      %4846 = vmatprep.mubr.bf16.mxu0 0
      %4847 = vmatmul.mubr.bf16.gmra.mxu0 %v4635
      %v4848 = vpop.f32.mrf.mxu0
      %v4849 = vadd.f32 0.0, %v4848
      %v4850 = vpop.f32.mrf.mxu0
      %v4851 = vpop.f32.mrf.mxu0
      %v4852 = vadd.f32 0.0, %v4851
      %v4853 = vpop.f32.mrf.mxu0
      %4854 = vmatprep.mubr.bf16.mxu0 0
      %4855 = vmatmul.mubr.bf16.gmra.mxu0 %v4636
      %v4856 = vpop.f32.mrf.mxu0
      %v4857 = vadd.f32 0.0, %v4856
      %v4858 = vpop.f32.mrf.mxu0
      %v4859 = vpop.f32.mrf.mxu0
      %v4860 = vadd.f32 0.0, %v4859
      %v4861 = vpop.f32.mrf.mxu0
      %4862 = vdwg.mxu0
      %v4863 = vadd.f32 %v4525, %v4737
      %v4864 = vadd.f32 %v4526, %v4740
      %v4865 = vadd.f32 %v4527, %v4745
      %v4866 = vadd.f32 %v4528, %v4748
      %v4867 = vadd.f32 %v4529, %v4753
      %v4868 = vadd.f32 %v4530, %v4756
      %v4869 = vadd.f32 %v4531, %v4761
      %v4870 = vadd.f32 %v4532, %v4764
      %v4871 = vadd.f32 %v4533, %v4769
      %v4872 = vadd.f32 %v4534, %v4772
      %v4873 = vadd.f32 %v4535, %v4777
      %v4874 = vadd.f32 %v4536, %v4780
      %v4875 = vadd.f32 %v4537, %v4785
      %v4876 = vadd.f32 %v4538, %v4788
      %v4877 = vadd.f32 %v4539, %v4793
      %v4878 = vadd.f32 %v4540, %v4796
      %v4879 = vadd.f32 %v4541, %v4801
      %v4880 = vadd.f32 %v4542, %v4804
      %v4881 = vadd.f32 %v4543, %v4809
      %v4882 = vadd.f32 %v4544, %v4812
      %v4883 = vadd.f32 %v4545, %v4817
      %v4884 = vadd.f32 %v4546, %v4820
      %v4885 = vadd.f32 %v4547, %v4825
      %v4886 = vadd.f32 %v4548, %v4828
      %v4887 = vadd.f32 %v4549, %v4833
      %v4888 = vadd.f32 %v4550, %v4836
      %v4889 = vadd.f32 %v4551, %v4841
      %v4890 = vadd.f32 %v4552, %v4844
      %v4891 = vadd.f32 %v4553, %v4849
      %v4892 = vadd.f32 %v4554, %v4852
      %v4893 = vadd.f32 %v4555, %v4857
      %v4894 = vadd.f32 %v4556, %v4860
      %v4895 = vld [vmem:[%s4] sm:$0x1]
      %v4897 = vlaneseq
      %v4898 = vshrl.u32 %v4897, 7
      %v4899 = vsub.s32 0, %v4898
      %v4900 = vrot.slane %v4895, %v4899
      %v4902 = vadd.f32 %v4863, %v4900
      %v4903 = vadd.f32 %v4864, %v4900
      %v4904 = vadd.f32 %v4865, %v4900
      %v4905 = vadd.f32 %v4866, %v4900
      %v4906 = vadd.f32 %v4867, %v4900
      %v4907 = vadd.f32 %v4868, %v4900
      %v4908 = vadd.f32 %v4869, %v4900
      %v4909 = vadd.f32 %v4870, %v4900
      %v4910 = vadd.f32 %v4871, %v4900
      %v4911 = vadd.f32 %v4872, %v4900
      %v4912 = vadd.f32 %v4873, %v4900
      %v4913 = vadd.f32 %v4874, %v4900
      %v4914 = vadd.f32 %v4875, %v4900
      %v4915 = vadd.f32 %v4876, %v4900
      %v4916 = vadd.f32 %v4877, %v4900
      %v4917 = vadd.f32 %v4878, %v4900
      %v4918 = vadd.f32 %v4879, %v4900
      %v4919 = vadd.f32 %v4880, %v4900
      %v4920 = vadd.f32 %v4881, %v4900
      %v4921 = vadd.f32 %v4882, %v4900
      %v4922 = vadd.f32 %v4883, %v4900
      %v4923 = vadd.f32 %v4884, %v4900
      %v4924 = vadd.f32 %v4885, %v4900
      %v4925 = vadd.f32 %v4886, %v4900
      %v4926 = vadd.f32 %v4887, %v4900
      %v4927 = vadd.f32 %v4888, %v4900
      %v4928 = vadd.f32 %v4889, %v4900
      %v4929 = vadd.f32 %v4890, %v4900
      %v4930 = vadd.f32 %v4891, %v4900
      %v4931 = vadd.f32 %v4892, %v4900
      %v4932 = vadd.f32 %v4893, %v4900
      %v4933 = vadd.f32 %v4894, %v4900
      %v4934 = vmax.f32 %v4902, 0.0
      %v4935 = vmax.f32 %v4903, 0.0
      %v4936 = vmax.f32 %v4904, 0.0
      %v4937 = vmax.f32 %v4905, 0.0
      %v4938 = vmax.f32 %v4906, 0.0
      %v4939 = vmax.f32 %v4907, 0.0
      %v4940 = vmax.f32 %v4908, 0.0
      %v4941 = vmax.f32 %v4909, 0.0
      %v4942 = vmax.f32 %v4910, 0.0
      %v4943 = vmax.f32 %v4911, 0.0
      %v4944 = vmax.f32 %v4912, 0.0
      %v4945 = vmax.f32 %v4913, 0.0
      %v4946 = vmax.f32 %v4914, 0.0
      %v4947 = vmax.f32 %v4915, 0.0
      %v4948 = vmax.f32 %v4916, 0.0
      %v4949 = vmax.f32 %v4917, 0.0
      %v4950 = vmax.f32 %v4918, 0.0
      %v4951 = vmax.f32 %v4919, 0.0
      %v4952 = vmax.f32 %v4920, 0.0
      %v4953 = vmax.f32 %v4921, 0.0
      %v4954 = vmax.f32 %v4922, 0.0
      %v4955 = vmax.f32 %v4923, 0.0
      %v4956 = vmax.f32 %v4924, 0.0
      %v4957 = vmax.f32 %v4925, 0.0
      %v4958 = vmax.f32 %v4926, 0.0
      %v4959 = vmax.f32 %v4927, 0.0
      %v4960 = vmax.f32 %v4928, 0.0
      %v4961 = vmax.f32 %v4929, 0.0
      %v4962 = vmax.f32 %v4930, 0.0
      %v4963 = vmax.f32 %v4931, 0.0
      %v4964 = vmax.f32 %v4932, 0.0
      %v4965 = vmax.f32 %v4933, 0.0
      %s4966 = scalar_lea.vmem [#allocation3], 24
      %4967 = vst [vmem:[%s4966 + $0x1] sm:$0xff] %v4934
      %4968 = vst [vmem:[%s4966 + $0x9] sm:$0xff] %v4935
      %4969 = vst [vmem:[%s4966 + $0x19] sm:$0xff] %v4936
      %4970 = vst [vmem:[%s4966 + $0x21] sm:$0xff] %v4937
      %4971 = vst [vmem:[%s4966 + $0x31] sm:$0xff] %v4938
      %4972 = vst [vmem:[%s4966 + $0x39] sm:$0xff] %v4939
      %4973 = vst [vmem:[%s4966 + $0x49] sm:$0xff] %v4940
      %4974 = vst [vmem:[%s4966 + $0x51] sm:$0xff] %v4941
      %4975 = vst [vmem:[%s4966 + $0x61] sm:$0xff] %v4942
      %4976 = vst [vmem:[%s4966 + $0x69] sm:$0xff] %v4943
      %4977 = vst [vmem:[%s4966 + $0x79] sm:$0xff] %v4944
      %4978 = vst [vmem:[%s4966 + $0x81] sm:$0xff] %v4945
      %4979 = vst [vmem:[%s4966 + $0x91] sm:$0xff] %v4946
      %4980 = vst [vmem:[%s4966 + $0x99] sm:$0xff] %v4947
      %4981 = vst [vmem:[%s4966 + $0xa9] sm:$0xff] %v4948
      %4982 = vst [vmem:[%s4966 + $0xb1] sm:$0xff] %v4949
      %4983 = vst [vmem:[%s4966 + $0xc1] sm:$0xff] %v4950
      %4984 = vst [vmem:[%s4966 + $0xc9] sm:$0xff] %v4951
      %4985 = vst [vmem:[%s4966 + $0xd9] sm:$0xff] %v4952
      %4986 = vst [vmem:[%s4966 + $0xe1] sm:$0xff] %v4953
      %4987 = vst [vmem:[%s4966 + $0xf1] sm:$0xff] %v4954
      %4988 = vst [vmem:[%s4966 + $0xf9] sm:$0xff] %v4955
      %4989 = vst [vmem:[%s4966 + $0x109] sm:$0xff] %v4956
      %4990 = vst [vmem:[%s4966 + $0x111] sm:$0xff] %v4957
      %4991 = vst [vmem:[%s4966 + $0x121] sm:$0xff] %v4958
      %4992 = vst [vmem:[%s4966 + $0x129] sm:$0xff] %v4959
      %4993 = vst [vmem:[%s4966 + $0x139] sm:$0xff] %v4960
      %4994 = vst [vmem:[%s4966 + $0x141] sm:$0xff] %v4961
      %4995 = vst [vmem:[%s4966 + $0x151] sm:$0xff] %v4962
      %4996 = vst [vmem:[%s4966 + $0x159] sm:$0xff] %v4963
      %4997 = vst [vmem:[%s4966 + $0x169] sm:$0xff] %v4964
      %4998 = vst [vmem:[%s4966 + $0x171] sm:$0xff] %v4965
      %v4999 = vld [vmem:[#allocation3] ss:$2 sm:$0xff]
      %s5000 = scalar_lea.vmem [#allocation3], 48
      %v5001 = vld [vmem:[%s5000] ss:$2 sm:$0xff]
      %s5002 = scalar_lea.vmem [#allocation3], 96
      %v5003 = vld [vmem:[%s5002] ss:$2 sm:$0xff]
      %s5004 = scalar_lea.vmem [#allocation3], 144
      %v5005 = vld [vmem:[%s5004] ss:$2 sm:$0xff]
      %s5006 = scalar_lea.vmem [#allocation3], 192
      %v5007 = vld [vmem:[%s5006] ss:$2 sm:$0xff]
      %s5008 = scalar_lea.vmem [#allocation3], 240
      %v5009 = vld [vmem:[%s5008] ss:$2 sm:$0xff]
      %s5010 = scalar_lea.vmem [#allocation3], 288
      %v5011 = vld [vmem:[%s5010] ss:$2 sm:$0xff]
      %s5012 = scalar_lea.vmem [#allocation3], 336
      %v5013 = vld [vmem:[%s5012] ss:$2 sm:$0xff]
      %v5014 = vpack.c.bf16 %v5001, %v4999
      %v5015 = vpack.c.bf16 %v5005, %v5003
      %v5016 = vpack.c.bf16 %v5009, %v5007
      %v5017 = vpack.c.bf16 %v5013, %v5011
      %v5018 = vld [vmem:[%s5] sm:$0xf]
      %v5019 = vld [vmem:[%s5 + $0x4] sm:$0xf]
      %v5020 = vld [vmem:[%s5 + $0x8] sm:$0xf]
      %v5021 = vld [vmem:[%s5 + $0xc] sm:$0xf]
      %v5022 = vld [vmem:[%s5 + $0x10] sm:$0xf]
      %v5023 = vld [vmem:[%s5 + $0x14] sm:$0xf]
      %v5024 = vld [vmem:[%s5 + $0x18] sm:$0xf]
      %v5025 = vld [vmem:[%s5 + $0x1c] sm:$0xf]
      %v5026 = vld [vmem:[%s5 + $0x20] sm:$0xf]
      %v5027 = vld [vmem:[%s5 + $0x24] sm:$0xf]
      %v5028 = vld [vmem:[%s5 + $0x28] sm:$0xf]
      %v5029 = vld [vmem:[%s5 + $0x2c] sm:$0xf]
      %v5030 = vld [vmem:[%s5 + $0x30] sm:$0xf]
      %v5031 = vld [vmem:[%s5 + $0x34] sm:$0xf]
      %v5032 = vld [vmem:[%s5 + $0x38] sm:$0xf]
      %v5033 = vld [vmem:[%s5 + $0x3c] sm:$0xf]
      %s5034 = scalar_lea.vmem [#allocation3], 1
      %v5035 = vld [vmem:[%s5034] ss:$2 sm:$0xff]
      %s5036 = scalar_lea.vmem [#allocation3], 49
      %v5037 = vld [vmem:[%s5036] ss:$2 sm:$0xff]
      %s5038 = scalar_lea.vmem [#allocation3], 97
      %v5039 = vld [vmem:[%s5038] ss:$2 sm:$0xff]
      %s5040 = scalar_lea.vmem [#allocation3], 145
      %v5041 = vld [vmem:[%s5040] ss:$2 sm:$0xff]
      %s5042 = scalar_lea.vmem [#allocation3], 193
      %v5043 = vld [vmem:[%s5042] ss:$2 sm:$0xff]
      %s5044 = scalar_lea.vmem [#allocation3], 241
      %v5045 = vld [vmem:[%s5044] ss:$2 sm:$0xff]
      %s5046 = scalar_lea.vmem [#allocation3], 289
      %v5047 = vld [vmem:[%s5046] ss:$2 sm:$0xff]
      %s5048 = scalar_lea.vmem [#allocation3], 337
      %v5049 = vld [vmem:[%s5048] ss:$2 sm:$0xff]
      %v5050 = vpack.c.bf16 %v5037, %v5035
      %v5051 = vpack.c.bf16 %v5041, %v5039
      %v5052 = vpack.c.bf16 %v5045, %v5043
      %v5053 = vpack.c.bf16 %v5049, %v5047
      %s5054 = scalar_lea.vmem %s5, 64
      %v5055 = vld [vmem:[%s5054] sm:$0xf]
      %v5056 = vld [vmem:[%s5054 + $0x4] sm:$0xf]
      %v5057 = vld [vmem:[%s5054 + $0x8] sm:$0xf]
      %v5058 = vld [vmem:[%s5054 + $0xc] sm:$0xf]
      %v5059 = vld [vmem:[%s5054 + $0x10] sm:$0xf]
      %v5060 = vld [vmem:[%s5054 + $0x14] sm:$0xf]
      %v5061 = vld [vmem:[%s5054 + $0x18] sm:$0xf]
      %v5062 = vld [vmem:[%s5054 + $0x1c] sm:$0xf]
      %v5063 = vld [vmem:[%s5054 + $0x20] sm:$0xf]
      %v5064 = vld [vmem:[%s5054 + $0x24] sm:$0xf]
      %v5065 = vld [vmem:[%s5054 + $0x28] sm:$0xf]
      %v5066 = vld [vmem:[%s5054 + $0x2c] sm:$0xf]
      %v5067 = vld [vmem:[%s5054 + $0x30] sm:$0xf]
      %v5068 = vld [vmem:[%s5054 + $0x34] sm:$0xf]
      %v5069 = vld [vmem:[%s5054 + $0x38] sm:$0xf]
      %v5070 = vld [vmem:[%s5054 + $0x3c] sm:$0xf]
      %v5087 = vunpack.c.l.b16 %v5055
      %v5088 = vunpack.c.l.b16 %v5056
      %v5089 = vunpack.c.l.b16 %v5057
      %v5090 = vunpack.c.l.b16 %v5058
      %v5091 = vunpack.c.l.b16 %v5059
      %v5092 = vunpack.c.l.b16 %v5060
      %v5093 = vunpack.c.l.b16 %v5061
      %v5094 = vunpack.c.l.b16 %v5062
      %v5095 = vunpack.c.l.b16 %v5063
      %v5096 = vunpack.c.l.b16 %v5064
      %v5097 = vunpack.c.l.b16 %v5065
      %v5098 = vunpack.c.l.b16 %v5066
      %v5099 = vunpack.c.l.b16 %v5067
      %v5100 = vunpack.c.l.b16 %v5068
      %v5101 = vunpack.c.l.b16 %v5069
      %v5102 = vunpack.c.l.b16 %v5070
      %v5103 = vpack.c.b16 %v5088, %v5087
      %v5104 = vpack.c.b16 %v5090, %v5089
      %v5105 = vpack.c.b16 %v5092, %v5091
      %v5106 = vpack.c.b16 %v5094, %v5093
      %v5107 = vpack.c.b16 %v5096, %v5095
      %v5108 = vpack.c.b16 %v5098, %v5097
      %v5109 = vpack.c.b16 %v5100, %v5099
      %v5110 = vpack.c.b16 %v5102, %v5101
      %5119 = vmatprep.subr.bf16.mxu0 0
      %5120 = vmatpush1.bf16.msra.mxu0 %v5110
      %5121 = vmatprep.subr.bf16.mxu0 0
      %5122 = vmatpush1.bf16.msra.mxu0 %v5109
      %5123 = vmatprep.subr.bf16.mxu0 0
      %5124 = vmatpush1.bf16.msra.mxu0 %v5108
      %5125 = vmatprep.subr.bf16.mxu0 0
      %5126 = vmatpush1.bf16.msra.mxu0 %v5107
      %5127 = vmatprep.subr.bf16.mxu0 0
      %5128 = vmatpush1.bf16.msra.mxu0 %v5106
      %5129 = vmatprep.subr.bf16.mxu0 0
      %5130 = vmatpush1.bf16.msra.mxu0 %v5105
      %5131 = vmatprep.subr.bf16.mxu0 0
      %5132 = vmatpush1.bf16.msra.mxu0 %v5104
      %5133 = vmatprep.subr.bf16.mxu0 0
      %5134 = vmatpush1.bf16.msra.mxu0 %v5103
      %5135 = vmatprep.subr.bf16.mxu0 0
      %5136 = vmatpush2.bf16.msra.mxu0 0
      %5137 = vmatprep.subr.bf16.mxu0 0
      %5138 = vmatpush2.bf16.msra.mxu0 0
      %5139 = vmatprep.subr.bf16.mxu0 0
      %5140 = vmatpush2.bf16.msra.mxu0 0
      %5141 = vmatprep.subr.bf16.mxu0 0
      %5142 = vmatpush2.bf16.msra.mxu0 0
      %5143 = vmatprep.subr.bf16.mxu0 0
      %5144 = vmatpush2.bf16.msra.mxu0 0
      %5145 = vmatprep.subr.bf16.mxu0 0
      %5146 = vmatpush2.bf16.msra.mxu0 0
      %5147 = vmatprep.subr.bf16.mxu0 0
      %5148 = vmatpush2.bf16.msra.mxu0 0
      %5149 = vmatprep.subr.bf16.mxu0 0
      %5150 = vmatpush2.bf16.msra.mxu0 0
      %5151 = vmatprep.mubr.bf16.mxu0 0
      %5152 = vmatmul.mubr.bf16.gmra.mxu0 %v5050
      %v5153 = vpop.f32.mrf.mxu0
      %v5154 = vadd.f32 0.0, %v5153
      %v5155 = vpop.f32.mrf.mxu0
      %v5156 = vpop.f32.mrf.mxu0
      %v5157 = vadd.f32 0.0, %v5156
      %v5158 = vpop.f32.mrf.mxu0
      %5159 = vmatprep.mubr.bf16.mxu0 0
      %5160 = vmatmul.mubr.bf16.gmra.mxu0 %v5051
      %v5161 = vpop.f32.mrf.mxu0
      %v5162 = vadd.f32 0.0, %v5161
      %v5163 = vpop.f32.mrf.mxu0
      %v5164 = vpop.f32.mrf.mxu0
      %v5165 = vadd.f32 0.0, %v5164
      %v5166 = vpop.f32.mrf.mxu0
      %5167 = vmatprep.mubr.bf16.mxu0 0
      %5168 = vmatmul.mubr.bf16.gmra.mxu0 %v5052
      %v5169 = vpop.f32.mrf.mxu0
      %v5170 = vadd.f32 0.0, %v5169
      %v5171 = vpop.f32.mrf.mxu0
      %v5172 = vpop.f32.mrf.mxu0
      %v5173 = vadd.f32 0.0, %v5172
      %v5174 = vpop.f32.mrf.mxu0
      %5175 = vmatprep.mubr.bf16.mxu0 0
      %5176 = vmatmul.mubr.bf16.gmra.mxu0 %v5053
      %v5177 = vpop.f32.mrf.mxu0
      %v5178 = vadd.f32 0.0, %v5177
      %v5179 = vpop.f32.mrf.mxu0
      %v5180 = vpop.f32.mrf.mxu0
      %v5181 = vadd.f32 0.0, %v5180
      %v5182 = vpop.f32.mrf.mxu0
      %5183 = vdwg.mxu0
      %v5200 = vunpack.c.l.b16 %v5018
      %v5201 = vunpack.c.l.b16 %v5019
      %v5202 = vunpack.c.l.b16 %v5020
      %v5203 = vunpack.c.l.b16 %v5021
      %v5204 = vunpack.c.l.b16 %v5022
      %v5205 = vunpack.c.l.b16 %v5023
      %v5206 = vunpack.c.l.b16 %v5024
      %v5207 = vunpack.c.l.b16 %v5025
      %v5208 = vunpack.c.l.b16 %v5026
      %v5209 = vunpack.c.l.b16 %v5027
      %v5210 = vunpack.c.l.b16 %v5028
      %v5211 = vunpack.c.l.b16 %v5029
      %v5212 = vunpack.c.l.b16 %v5030
      %v5213 = vunpack.c.l.b16 %v5031
      %v5214 = vunpack.c.l.b16 %v5032
      %v5215 = vunpack.c.l.b16 %v5033
      %v5216 = vpack.c.b16 %v5201, %v5200
      %v5217 = vpack.c.b16 %v5203, %v5202
      %v5218 = vpack.c.b16 %v5205, %v5204
      %v5219 = vpack.c.b16 %v5207, %v5206
      %v5220 = vpack.c.b16 %v5209, %v5208
      %v5221 = vpack.c.b16 %v5211, %v5210
      %v5222 = vpack.c.b16 %v5213, %v5212
      %v5223 = vpack.c.b16 %v5215, %v5214
      %5232 = vmatprep.subr.bf16.mxu0 0
      %5233 = vmatpush1.bf16.msra.mxu0 %v5223
      %5234 = vmatprep.subr.bf16.mxu0 0
      %5235 = vmatpush1.bf16.msra.mxu0 %v5222
      %5236 = vmatprep.subr.bf16.mxu0 0
      %5237 = vmatpush1.bf16.msra.mxu0 %v5221
      %5238 = vmatprep.subr.bf16.mxu0 0
      %5239 = vmatpush1.bf16.msra.mxu0 %v5220
      %5240 = vmatprep.subr.bf16.mxu0 0
      %5241 = vmatpush1.bf16.msra.mxu0 %v5219
      %5242 = vmatprep.subr.bf16.mxu0 0
      %5243 = vmatpush1.bf16.msra.mxu0 %v5218
      %5244 = vmatprep.subr.bf16.mxu0 0
      %5245 = vmatpush1.bf16.msra.mxu0 %v5217
      %5246 = vmatprep.subr.bf16.mxu0 0
      %5247 = vmatpush1.bf16.msra.mxu0 %v5216
      %5248 = vmatprep.subr.bf16.mxu0 0
      %5249 = vmatpush2.bf16.msra.mxu0 0
      %5250 = vmatprep.subr.bf16.mxu0 0
      %5251 = vmatpush2.bf16.msra.mxu0 0
      %5252 = vmatprep.subr.bf16.mxu0 0
      %5253 = vmatpush2.bf16.msra.mxu0 0
      %5254 = vmatprep.subr.bf16.mxu0 0
      %5255 = vmatpush2.bf16.msra.mxu0 0
      %5256 = vmatprep.subr.bf16.mxu0 0
      %5257 = vmatpush2.bf16.msra.mxu0 0
      %5258 = vmatprep.subr.bf16.mxu0 0
      %5259 = vmatpush2.bf16.msra.mxu0 0
      %5260 = vmatprep.subr.bf16.mxu0 0
      %5261 = vmatpush2.bf16.msra.mxu0 0
      %5262 = vmatprep.subr.bf16.mxu0 0
      %5263 = vmatpush2.bf16.msra.mxu0 0
      %5264 = vmatprep.mubr.bf16.mxu0 0
      %5265 = vmatmul.mubr.bf16.gmra.mxu0 %v5014
      %v5266 = vpop.f32.mrf.mxu0
      %v5267 = vadd.f32 %v5154, %v5266
      %v5268 = vpop.f32.mrf.mxu0
      %v5269 = vpop.f32.mrf.mxu0
      %v5270 = vadd.f32 %v5157, %v5269
      %v5271 = vpop.f32.mrf.mxu0
      %5272 = vmatprep.mubr.bf16.mxu0 0
      %5273 = vmatmul.mubr.bf16.gmra.mxu0 %v5015
      %v5274 = vpop.f32.mrf.mxu0
      %v5275 = vadd.f32 %v5162, %v5274
      %v5276 = vpop.f32.mrf.mxu0
      %v5277 = vpop.f32.mrf.mxu0
      %v5278 = vadd.f32 %v5165, %v5277
      %v5279 = vpop.f32.mrf.mxu0
      %5280 = vmatprep.mubr.bf16.mxu0 0
      %5281 = vmatmul.mubr.bf16.gmra.mxu0 %v5016
      %v5282 = vpop.f32.mrf.mxu0
      %v5283 = vadd.f32 %v5170, %v5282
      %v5284 = vpop.f32.mrf.mxu0
      %v5285 = vpop.f32.mrf.mxu0
      %v5286 = vadd.f32 %v5173, %v5285
      %v5287 = vpop.f32.mrf.mxu0
      %5288 = vmatprep.mubr.bf16.mxu0 0
      %5289 = vmatmul.mubr.bf16.gmra.mxu0 %v5017
      %v5290 = vpop.f32.mrf.mxu0
      %v5291 = vadd.f32 %v5178, %v5290
      %v5292 = vpop.f32.mrf.mxu0
      %v5293 = vpop.f32.mrf.mxu0
      %v5294 = vadd.f32 %v5181, %v5293
      %v5295 = vpop.f32.mrf.mxu0
      %5296 = vdwg.mxu0
      %s5297 = scalar_lea.vmem [#allocation3], 2
      %v5298 = vld [vmem:[%s5297] ss:$2 sm:$0xff]
      %s5299 = scalar_lea.vmem [#allocation3], 50
      %v5300 = vld [vmem:[%s5299] ss:$2 sm:$0xff]
      %s5301 = scalar_lea.vmem [#allocation3], 98
      %v5302 = vld [vmem:[%s5301] ss:$2 sm:$0xff]
      %s5303 = scalar_lea.vmem [#allocation3], 146
      %v5304 = vld [vmem:[%s5303] ss:$2 sm:$0xff]
      %s5305 = scalar_lea.vmem [#allocation3], 194
      %v5306 = vld [vmem:[%s5305] ss:$2 sm:$0xff]
      %s5307 = scalar_lea.vmem [#allocation3], 242
      %v5308 = vld [vmem:[%s5307] ss:$2 sm:$0xff]
      %s5309 = scalar_lea.vmem [#allocation3], 290
      %v5310 = vld [vmem:[%s5309] ss:$2 sm:$0xff]
      %s5311 = scalar_lea.vmem [#allocation3], 338
      %v5312 = vld [vmem:[%s5311] ss:$2 sm:$0xff]
      %v5313 = vpack.c.bf16 %v5300, %v5298
      %v5314 = vpack.c.bf16 %v5304, %v5302
      %v5315 = vpack.c.bf16 %v5308, %v5306
      %v5316 = vpack.c.bf16 %v5312, %v5310
      %s5317 = scalar_lea.vmem %s5, 128
      %v5318 = vld [vmem:[%s5317] sm:$0xf]
      %v5319 = vld [vmem:[%s5317 + $0x4] sm:$0xf]
      %v5320 = vld [vmem:[%s5317 + $0x8] sm:$0xf]
      %v5321 = vld [vmem:[%s5317 + $0xc] sm:$0xf]
      %v5322 = vld [vmem:[%s5317 + $0x10] sm:$0xf]
      %v5323 = vld [vmem:[%s5317 + $0x14] sm:$0xf]
      %v5324 = vld [vmem:[%s5317 + $0x18] sm:$0xf]
      %v5325 = vld [vmem:[%s5317 + $0x1c] sm:$0xf]
      %v5326 = vld [vmem:[%s5317 + $0x20] sm:$0xf]
      %v5327 = vld [vmem:[%s5317 + $0x24] sm:$0xf]
      %v5328 = vld [vmem:[%s5317 + $0x28] sm:$0xf]
      %v5329 = vld [vmem:[%s5317 + $0x2c] sm:$0xf]
      %v5330 = vld [vmem:[%s5317 + $0x30] sm:$0xf]
      %v5331 = vld [vmem:[%s5317 + $0x34] sm:$0xf]
      %v5332 = vld [vmem:[%s5317 + $0x38] sm:$0xf]
      %v5333 = vld [vmem:[%s5317 + $0x3c] sm:$0xf]
      %v5350 = vunpack.c.l.b16 %v5318
      %v5351 = vunpack.c.l.b16 %v5319
      %v5352 = vunpack.c.l.b16 %v5320
      %v5353 = vunpack.c.l.b16 %v5321
      %v5354 = vunpack.c.l.b16 %v5322
      %v5355 = vunpack.c.l.b16 %v5323
      %v5356 = vunpack.c.l.b16 %v5324
      %v5357 = vunpack.c.l.b16 %v5325
      %v5358 = vunpack.c.l.b16 %v5326
      %v5359 = vunpack.c.l.b16 %v5327
      %v5360 = vunpack.c.l.b16 %v5328
      %v5361 = vunpack.c.l.b16 %v5329
      %v5362 = vunpack.c.l.b16 %v5330
      %v5363 = vunpack.c.l.b16 %v5331
      %v5364 = vunpack.c.l.b16 %v5332
      %v5365 = vunpack.c.l.b16 %v5333
      %v5366 = vpack.c.b16 %v5351, %v5350
      %v5367 = vpack.c.b16 %v5353, %v5352
      %v5368 = vpack.c.b16 %v5355, %v5354
      %v5369 = vpack.c.b16 %v5357, %v5356
      %v5370 = vpack.c.b16 %v5359, %v5358
      %v5371 = vpack.c.b16 %v5361, %v5360
      %v5372 = vpack.c.b16 %v5363, %v5362
      %v5373 = vpack.c.b16 %v5365, %v5364
      %5382 = vmatprep.subr.bf16.mxu0 0
      %5383 = vmatpush1.bf16.msra.mxu0 %v5373
      %5384 = vmatprep.subr.bf16.mxu0 0
      %5385 = vmatpush1.bf16.msra.mxu0 %v5372
      %5386 = vmatprep.subr.bf16.mxu0 0
      %5387 = vmatpush1.bf16.msra.mxu0 %v5371
      %5388 = vmatprep.subr.bf16.mxu0 0
      %5389 = vmatpush1.bf16.msra.mxu0 %v5370
      %5390 = vmatprep.subr.bf16.mxu0 0
      %5391 = vmatpush1.bf16.msra.mxu0 %v5369
      %5392 = vmatprep.subr.bf16.mxu0 0
      %5393 = vmatpush1.bf16.msra.mxu0 %v5368
      %5394 = vmatprep.subr.bf16.mxu0 0
      %5395 = vmatpush1.bf16.msra.mxu0 %v5367
      %5396 = vmatprep.subr.bf16.mxu0 0
      %5397 = vmatpush1.bf16.msra.mxu0 %v5366
      %5398 = vmatprep.subr.bf16.mxu0 0
      %5399 = vmatpush2.bf16.msra.mxu0 0
      %5400 = vmatprep.subr.bf16.mxu0 0
      %5401 = vmatpush2.bf16.msra.mxu0 0
      %5402 = vmatprep.subr.bf16.mxu0 0
      %5403 = vmatpush2.bf16.msra.mxu0 0
      %5404 = vmatprep.subr.bf16.mxu0 0
      %5405 = vmatpush2.bf16.msra.mxu0 0
      %5406 = vmatprep.subr.bf16.mxu0 0
      %5407 = vmatpush2.bf16.msra.mxu0 0
      %5408 = vmatprep.subr.bf16.mxu0 0
      %5409 = vmatpush2.bf16.msra.mxu0 0
      %5410 = vmatprep.subr.bf16.mxu0 0
      %5411 = vmatpush2.bf16.msra.mxu0 0
      %5412 = vmatprep.subr.bf16.mxu0 0
      %5413 = vmatpush2.bf16.msra.mxu0 0
      %5414 = vmatprep.mubr.bf16.mxu0 0
      %5415 = vmatmul.mubr.bf16.gmra.mxu0 %v5313
      %v5416 = vpop.f32.mrf.mxu0
      %v5417 = vadd.f32 0.0, %v5416
      %v5418 = vpop.f32.mrf.mxu0
      %v5419 = vpop.f32.mrf.mxu0
      %v5420 = vadd.f32 0.0, %v5419
      %v5421 = vpop.f32.mrf.mxu0
      %5422 = vmatprep.mubr.bf16.mxu0 0
      %5423 = vmatmul.mubr.bf16.gmra.mxu0 %v5314
      %v5424 = vpop.f32.mrf.mxu0
      %v5425 = vadd.f32 0.0, %v5424
      %v5426 = vpop.f32.mrf.mxu0
      %v5427 = vpop.f32.mrf.mxu0
      %v5428 = vadd.f32 0.0, %v5427
      %v5429 = vpop.f32.mrf.mxu0
      %5430 = vmatprep.mubr.bf16.mxu0 0
      %5431 = vmatmul.mubr.bf16.gmra.mxu0 %v5315
      %v5432 = vpop.f32.mrf.mxu0
      %v5433 = vadd.f32 0.0, %v5432
      %v5434 = vpop.f32.mrf.mxu0
      %v5435 = vpop.f32.mrf.mxu0
      %v5436 = vadd.f32 0.0, %v5435
      %v5437 = vpop.f32.mrf.mxu0
      %5438 = vmatprep.mubr.bf16.mxu0 0
      %5439 = vmatmul.mubr.bf16.gmra.mxu0 %v5316
      %v5440 = vpop.f32.mrf.mxu0
      %v5441 = vadd.f32 0.0, %v5440
      %v5442 = vpop.f32.mrf.mxu0
      %v5443 = vpop.f32.mrf.mxu0
      %v5444 = vadd.f32 0.0, %v5443
      %v5445 = vpop.f32.mrf.mxu0
      %5446 = vdwg.mxu0
      %v5447 = vadd.f32 %v5267, %v5417
      %v5448 = vadd.f32 %v5270, %v5420
      %v5449 = vadd.f32 %v5275, %v5425
      %v5450 = vadd.f32 %v5278, %v5428
      %v5451 = vadd.f32 %v5283, %v5433
      %v5452 = vadd.f32 %v5286, %v5436
      %v5453 = vadd.f32 %v5291, %v5441
      %v5454 = vadd.f32 %v5294, %v5444
      %v5455 = vld [vmem:[%s4966] ss:$2 sm:$0xff]
      %s5456 = scalar_lea.vmem %s4966, 48 [#allocation3]
      %v5457 = vld [vmem:[%s5456] ss:$2 sm:$0xff]
      %s5458 = scalar_lea.vmem %s4966, 96 [#allocation3]
      %v5459 = vld [vmem:[%s5458] ss:$2 sm:$0xff]
      %s5460 = scalar_lea.vmem %s4966, 144 [#allocation3]
      %v5461 = vld [vmem:[%s5460] ss:$2 sm:$0xff]
      %s5462 = scalar_lea.vmem %s4966, 192 [#allocation3]
      %v5463 = vld [vmem:[%s5462] ss:$2 sm:$0xff]
      %s5464 = scalar_lea.vmem %s4966, 240 [#allocation3]
      %v5465 = vld [vmem:[%s5464] ss:$2 sm:$0xff]
      %s5466 = scalar_lea.vmem %s4966, 288 [#allocation3]
      %v5467 = vld [vmem:[%s5466] ss:$2 sm:$0xff]
      %s5468 = scalar_lea.vmem %s4966, 336 [#allocation3]
      %v5469 = vld [vmem:[%s5468] ss:$2 sm:$0xff]
      %v5470 = vpack.c.bf16 %v5457, %v5455
      %v5471 = vpack.c.bf16 %v5461, %v5459
      %v5472 = vpack.c.bf16 %v5465, %v5463
      %v5473 = vpack.c.bf16 %v5469, %v5467
      %s5474 = scalar_lea.vmem %s5, 192
      %v5475 = vld [vmem:[%s5474] sm:$0xf]
      %v5476 = vld [vmem:[%s5474 + $0x4] sm:$0xf]
      %v5477 = vld [vmem:[%s5474 + $0x8] sm:$0xf]
      %v5478 = vld [vmem:[%s5474 + $0xc] sm:$0xf]
      %v5479 = vld [vmem:[%s5474 + $0x10] sm:$0xf]
      %v5480 = vld [vmem:[%s5474 + $0x14] sm:$0xf]
      %v5481 = vld [vmem:[%s5474 + $0x18] sm:$0xf]
      %v5482 = vld [vmem:[%s5474 + $0x1c] sm:$0xf]
      %v5483 = vld [vmem:[%s5474 + $0x20] sm:$0xf]
      %v5484 = vld [vmem:[%s5474 + $0x24] sm:$0xf]
      %v5485 = vld [vmem:[%s5474 + $0x28] sm:$0xf]
      %v5486 = vld [vmem:[%s5474 + $0x2c] sm:$0xf]
      %v5487 = vld [vmem:[%s5474 + $0x30] sm:$0xf]
      %v5488 = vld [vmem:[%s5474 + $0x34] sm:$0xf]
      %v5489 = vld [vmem:[%s5474 + $0x38] sm:$0xf]
      %v5490 = vld [vmem:[%s5474 + $0x3c] sm:$0xf]
      %v5507 = vunpack.c.l.b16 %v5475
      %v5508 = vunpack.c.l.b16 %v5476
      %v5509 = vunpack.c.l.b16 %v5477
      %v5510 = vunpack.c.l.b16 %v5478
      %v5511 = vunpack.c.l.b16 %v5479
      %v5512 = vunpack.c.l.b16 %v5480
      %v5513 = vunpack.c.l.b16 %v5481
      %v5514 = vunpack.c.l.b16 %v5482
      %v5515 = vunpack.c.l.b16 %v5483
      %v5516 = vunpack.c.l.b16 %v5484
      %v5517 = vunpack.c.l.b16 %v5485
      %v5518 = vunpack.c.l.b16 %v5486
      %v5519 = vunpack.c.l.b16 %v5487
      %v5520 = vunpack.c.l.b16 %v5488
      %v5521 = vunpack.c.l.b16 %v5489
      %v5522 = vunpack.c.l.b16 %v5490
      %v5523 = vpack.c.b16 %v5508, %v5507
      %v5524 = vpack.c.b16 %v5510, %v5509
      %v5525 = vpack.c.b16 %v5512, %v5511
      %v5526 = vpack.c.b16 %v5514, %v5513
      %v5527 = vpack.c.b16 %v5516, %v5515
      %v5528 = vpack.c.b16 %v5518, %v5517
      %v5529 = vpack.c.b16 %v5520, %v5519
      %v5530 = vpack.c.b16 %v5522, %v5521
      %5539 = vmatprep.subr.bf16.mxu0 0
      %5540 = vmatpush1.bf16.msra.mxu0 %v5530
      %5541 = vmatprep.subr.bf16.mxu0 0
      %5542 = vmatpush1.bf16.msra.mxu0 %v5529
      %5543 = vmatprep.subr.bf16.mxu0 0
      %5544 = vmatpush1.bf16.msra.mxu0 %v5528
      %5545 = vmatprep.subr.bf16.mxu0 0
      %5546 = vmatpush1.bf16.msra.mxu0 %v5527
      %5547 = vmatprep.subr.bf16.mxu0 0
      %5548 = vmatpush1.bf16.msra.mxu0 %v5526
      %5549 = vmatprep.subr.bf16.mxu0 0
      %5550 = vmatpush1.bf16.msra.mxu0 %v5525
      %5551 = vmatprep.subr.bf16.mxu0 0
      %5552 = vmatpush1.bf16.msra.mxu0 %v5524
      %5553 = vmatprep.subr.bf16.mxu0 0
      %5554 = vmatpush1.bf16.msra.mxu0 %v5523
      %5555 = vmatprep.subr.bf16.mxu0 0
      %5556 = vmatpush2.bf16.msra.mxu0 0
      %5557 = vmatprep.subr.bf16.mxu0 0
      %5558 = vmatpush2.bf16.msra.mxu0 0
      %5559 = vmatprep.subr.bf16.mxu0 0
      %5560 = vmatpush2.bf16.msra.mxu0 0
      %5561 = vmatprep.subr.bf16.mxu0 0
      %5562 = vmatpush2.bf16.msra.mxu0 0
      %5563 = vmatprep.subr.bf16.mxu0 0
      %5564 = vmatpush2.bf16.msra.mxu0 0
      %5565 = vmatprep.subr.bf16.mxu0 0
      %5566 = vmatpush2.bf16.msra.mxu0 0
      %5567 = vmatprep.subr.bf16.mxu0 0
      %5568 = vmatpush2.bf16.msra.mxu0 0
      %5569 = vmatprep.subr.bf16.mxu0 0
      %5570 = vmatpush2.bf16.msra.mxu0 0
      %5571 = vmatprep.mubr.bf16.mxu0 0
      %5572 = vmatmul.mubr.bf16.gmra.mxu0 %v5470
      %v5573 = vpop.f32.mrf.mxu0
      %v5574 = vadd.f32 0.0, %v5573
      %v5575 = vpop.f32.mrf.mxu0
      %v5576 = vpop.f32.mrf.mxu0
      %v5577 = vadd.f32 0.0, %v5576
      %v5578 = vpop.f32.mrf.mxu0
      %5579 = vmatprep.mubr.bf16.mxu0 0
      %5580 = vmatmul.mubr.bf16.gmra.mxu0 %v5471
      %v5581 = vpop.f32.mrf.mxu0
      %v5582 = vadd.f32 0.0, %v5581
      %v5583 = vpop.f32.mrf.mxu0
      %v5584 = vpop.f32.mrf.mxu0
      %v5585 = vadd.f32 0.0, %v5584
      %v5586 = vpop.f32.mrf.mxu0
      %5587 = vmatprep.mubr.bf16.mxu0 0
      %5588 = vmatmul.mubr.bf16.gmra.mxu0 %v5472
      %v5589 = vpop.f32.mrf.mxu0
      %v5590 = vadd.f32 0.0, %v5589
      %v5591 = vpop.f32.mrf.mxu0
      %v5592 = vpop.f32.mrf.mxu0
      %v5593 = vadd.f32 0.0, %v5592
      %v5594 = vpop.f32.mrf.mxu0
      %5595 = vmatprep.mubr.bf16.mxu0 0
      %5596 = vmatmul.mubr.bf16.gmra.mxu0 %v5473
      %v5597 = vpop.f32.mrf.mxu0
      %v5598 = vadd.f32 0.0, %v5597
      %v5599 = vpop.f32.mrf.mxu0
      %v5600 = vpop.f32.mrf.mxu0
      %v5601 = vadd.f32 0.0, %v5600
      %v5602 = vpop.f32.mrf.mxu0
      %5603 = vdwg.mxu0
      %v5604 = vadd.f32 %v5447, %v5574
      %v5605 = vadd.f32 %v5448, %v5577
      %v5606 = vadd.f32 %v5449, %v5582
      %v5607 = vadd.f32 %v5450, %v5585
      %v5608 = vadd.f32 %v5451, %v5590
      %v5609 = vadd.f32 %v5452, %v5593
      %v5610 = vadd.f32 %v5453, %v5598
      %v5611 = vadd.f32 %v5454, %v5601
      %s5612 = scalar_lea.vmem %s4966, 1 [#allocation3]
      %v5613 = vld [vmem:[%s5612] ss:$2 sm:$0xff]
      %s5614 = scalar_lea.vmem %s4966, 49 [#allocation3]
      %v5615 = vld [vmem:[%s5614] ss:$2 sm:$0xff]
      %s5616 = scalar_lea.vmem %s4966, 97 [#allocation3]
      %v5617 = vld [vmem:[%s5616] ss:$2 sm:$0xff]
      %s5618 = scalar_lea.vmem %s4966, 145 [#allocation3]
      %v5619 = vld [vmem:[%s5618] ss:$2 sm:$0xff]
      %s5620 = scalar_lea.vmem %s4966, 193 [#allocation3]
      %v5621 = vld [vmem:[%s5620] ss:$2 sm:$0xff]
      %s5622 = scalar_lea.vmem %s4966, 241 [#allocation3]
      %v5623 = vld [vmem:[%s5622] ss:$2 sm:$0xff]
      %s5624 = scalar_lea.vmem %s4966, 289 [#allocation3]
      %v5625 = vld [vmem:[%s5624] ss:$2 sm:$0xff]
      %s5626 = scalar_lea.vmem %s4966, 337 [#allocation3]
      %v5627 = vld [vmem:[%s5626] ss:$2 sm:$0xff]
      %v5628 = vpack.c.bf16 %v5615, %v5613
      %v5629 = vpack.c.bf16 %v5619, %v5617
      %v5630 = vpack.c.bf16 %v5623, %v5621
      %v5631 = vpack.c.bf16 %v5627, %v5625
      %s5632 = scalar_lea.vmem %s5, 256
      %v5633 = vld [vmem:[%s5632] sm:$0xf]
      %v5634 = vld [vmem:[%s5632 + $0x4] sm:$0xf]
      %v5635 = vld [vmem:[%s5632 + $0x8] sm:$0xf]
      %v5636 = vld [vmem:[%s5632 + $0xc] sm:$0xf]
      %v5637 = vld [vmem:[%s5632 + $0x10] sm:$0xf]
      %v5638 = vld [vmem:[%s5632 + $0x14] sm:$0xf]
      %v5639 = vld [vmem:[%s5632 + $0x18] sm:$0xf]
      %v5640 = vld [vmem:[%s5632 + $0x1c] sm:$0xf]
      %v5641 = vld [vmem:[%s5632 + $0x20] sm:$0xf]
      %v5642 = vld [vmem:[%s5632 + $0x24] sm:$0xf]
      %v5643 = vld [vmem:[%s5632 + $0x28] sm:$0xf]
      %v5644 = vld [vmem:[%s5632 + $0x2c] sm:$0xf]
      %v5645 = vld [vmem:[%s5632 + $0x30] sm:$0xf]
      %v5646 = vld [vmem:[%s5632 + $0x34] sm:$0xf]
      %v5647 = vld [vmem:[%s5632 + $0x38] sm:$0xf]
      %v5648 = vld [vmem:[%s5632 + $0x3c] sm:$0xf]
      %v5665 = vunpack.c.l.b16 %v5633
      %v5666 = vunpack.c.l.b16 %v5634
      %v5667 = vunpack.c.l.b16 %v5635
      %v5668 = vunpack.c.l.b16 %v5636
      %v5669 = vunpack.c.l.b16 %v5637
      %v5670 = vunpack.c.l.b16 %v5638
      %v5671 = vunpack.c.l.b16 %v5639
      %v5672 = vunpack.c.l.b16 %v5640
      %v5673 = vunpack.c.l.b16 %v5641
      %v5674 = vunpack.c.l.b16 %v5642
      %v5675 = vunpack.c.l.b16 %v5643
      %v5676 = vunpack.c.l.b16 %v5644
      %v5677 = vunpack.c.l.b16 %v5645
      %v5678 = vunpack.c.l.b16 %v5646
      %v5679 = vunpack.c.l.b16 %v5647
      %v5680 = vunpack.c.l.b16 %v5648
      %v5681 = vpack.c.b16 %v5666, %v5665
      %v5682 = vpack.c.b16 %v5668, %v5667
      %v5683 = vpack.c.b16 %v5670, %v5669
      %v5684 = vpack.c.b16 %v5672, %v5671
      %v5685 = vpack.c.b16 %v5674, %v5673
      %v5686 = vpack.c.b16 %v5676, %v5675
      %v5687 = vpack.c.b16 %v5678, %v5677
      %v5688 = vpack.c.b16 %v5680, %v5679
      %5697 = vmatprep.subr.bf16.mxu0 0
      %5698 = vmatpush1.bf16.msra.mxu0 %v5688
      %5699 = vmatprep.subr.bf16.mxu0 0
      %5700 = vmatpush1.bf16.msra.mxu0 %v5687
      %5701 = vmatprep.subr.bf16.mxu0 0
      %5702 = vmatpush1.bf16.msra.mxu0 %v5686
      %5703 = vmatprep.subr.bf16.mxu0 0
      %5704 = vmatpush1.bf16.msra.mxu0 %v5685
      %5705 = vmatprep.subr.bf16.mxu0 0
      %5706 = vmatpush1.bf16.msra.mxu0 %v5684
      %5707 = vmatprep.subr.bf16.mxu0 0
      %5708 = vmatpush1.bf16.msra.mxu0 %v5683
      %5709 = vmatprep.subr.bf16.mxu0 0
      %5710 = vmatpush1.bf16.msra.mxu0 %v5682
      %5711 = vmatprep.subr.bf16.mxu0 0
      %5712 = vmatpush1.bf16.msra.mxu0 %v5681
      %5713 = vmatprep.subr.bf16.mxu0 0
      %5714 = vmatpush2.bf16.msra.mxu0 0
      %5715 = vmatprep.subr.bf16.mxu0 0
      %5716 = vmatpush2.bf16.msra.mxu0 0
      %5717 = vmatprep.subr.bf16.mxu0 0
      %5718 = vmatpush2.bf16.msra.mxu0 0
      %5719 = vmatprep.subr.bf16.mxu0 0
      %5720 = vmatpush2.bf16.msra.mxu0 0
      %5721 = vmatprep.subr.bf16.mxu0 0
      %5722 = vmatpush2.bf16.msra.mxu0 0
      %5723 = vmatprep.subr.bf16.mxu0 0
      %5724 = vmatpush2.bf16.msra.mxu0 0
      %5725 = vmatprep.subr.bf16.mxu0 0
      %5726 = vmatpush2.bf16.msra.mxu0 0
      %5727 = vmatprep.subr.bf16.mxu0 0
      %5728 = vmatpush2.bf16.msra.mxu0 0
      %5729 = vmatprep.mubr.bf16.mxu0 0
      %5730 = vmatmul.mubr.bf16.gmra.mxu0 %v5628
      %v5731 = vpop.f32.mrf.mxu0
      %v5732 = vadd.f32 0.0, %v5731
      %v5733 = vpop.f32.mrf.mxu0
      %v5734 = vpop.f32.mrf.mxu0
      %v5735 = vadd.f32 0.0, %v5734
      %v5736 = vpop.f32.mrf.mxu0
      %5737 = vmatprep.mubr.bf16.mxu0 0
      %5738 = vmatmul.mubr.bf16.gmra.mxu0 %v5629
      %v5739 = vpop.f32.mrf.mxu0
      %v5740 = vadd.f32 0.0, %v5739
      %v5741 = vpop.f32.mrf.mxu0
      %v5742 = vpop.f32.mrf.mxu0
      %v5743 = vadd.f32 0.0, %v5742
      %v5744 = vpop.f32.mrf.mxu0
      %5745 = vmatprep.mubr.bf16.mxu0 0
      %5746 = vmatmul.mubr.bf16.gmra.mxu0 %v5630
      %v5747 = vpop.f32.mrf.mxu0
      %v5748 = vadd.f32 0.0, %v5747
      %v5749 = vpop.f32.mrf.mxu0
      %v5750 = vpop.f32.mrf.mxu0
      %v5751 = vadd.f32 0.0, %v5750
      %v5752 = vpop.f32.mrf.mxu0
      %5753 = vmatprep.mubr.bf16.mxu0 0
      %5754 = vmatmul.mubr.bf16.gmra.mxu0 %v5631
      %v5755 = vpop.f32.mrf.mxu0
      %v5756 = vadd.f32 0.0, %v5755
      %v5757 = vpop.f32.mrf.mxu0
      %v5758 = vpop.f32.mrf.mxu0
      %v5759 = vadd.f32 0.0, %v5758
      %v5760 = vpop.f32.mrf.mxu0
      %5761 = vdwg.mxu0
      %v5762 = vadd.f32 %v5604, %v5732
      %v5763 = vadd.f32 %v5605, %v5735
      %v5764 = vadd.f32 %v5606, %v5740
      %v5765 = vadd.f32 %v5607, %v5743
      %v5766 = vadd.f32 %v5608, %v5748
      %v5767 = vadd.f32 %v5609, %v5751
      %v5768 = vadd.f32 %v5610, %v5756
      %v5769 = vadd.f32 %v5611, %v5759
      %s5770 = scalar_lea.vmem %s4966, 2 [#allocation3]
      %v5771 = vld [vmem:[%s5770] ss:$2 sm:$0xff]
      %s5772 = scalar_lea.vmem %s4966, 50 [#allocation3]
      %v5773 = vld [vmem:[%s5772] ss:$2 sm:$0xff]
      %s5774 = scalar_lea.vmem %s4966, 98 [#allocation3]
      %v5775 = vld [vmem:[%s5774] ss:$2 sm:$0xff]
      %s5776 = scalar_lea.vmem %s4966, 146 [#allocation3]
      %v5777 = vld [vmem:[%s5776] ss:$2 sm:$0xff]
      %s5778 = scalar_lea.vmem %s4966, 194 [#allocation3]
      %v5779 = vld [vmem:[%s5778] ss:$2 sm:$0xff]
      %s5780 = scalar_lea.vmem %s4966, 242 [#allocation3]
      %v5781 = vld [vmem:[%s5780] ss:$2 sm:$0xff]
      %s5782 = scalar_lea.vmem %s4966, 290 [#allocation3]
      %v5783 = vld [vmem:[%s5782] ss:$2 sm:$0xff]
      %s5784 = scalar_lea.vmem %s4966, 338 [#allocation3]
      %v5785 = vld [vmem:[%s5784] ss:$2 sm:$0xff]
      %v5786 = vpack.c.bf16 %v5773, %v5771
      %v5787 = vpack.c.bf16 %v5777, %v5775
      %v5788 = vpack.c.bf16 %v5781, %v5779
      %v5789 = vpack.c.bf16 %v5785, %v5783
      %s5790 = scalar_lea.vmem %s5, 320
      %v5791 = vld [vmem:[%s5790] sm:$0xf]
      %v5792 = vld [vmem:[%s5790 + $0x4] sm:$0xf]
      %v5793 = vld [vmem:[%s5790 + $0x8] sm:$0xf]
      %v5794 = vld [vmem:[%s5790 + $0xc] sm:$0xf]
      %v5795 = vld [vmem:[%s5790 + $0x10] sm:$0xf]
      %v5796 = vld [vmem:[%s5790 + $0x14] sm:$0xf]
      %v5797 = vld [vmem:[%s5790 + $0x18] sm:$0xf]
      %v5798 = vld [vmem:[%s5790 + $0x1c] sm:$0xf]
      %v5799 = vld [vmem:[%s5790 + $0x20] sm:$0xf]
      %v5800 = vld [vmem:[%s5790 + $0x24] sm:$0xf]
      %v5801 = vld [vmem:[%s5790 + $0x28] sm:$0xf]
      %v5802 = vld [vmem:[%s5790 + $0x2c] sm:$0xf]
      %v5803 = vld [vmem:[%s5790 + $0x30] sm:$0xf]
      %v5804 = vld [vmem:[%s5790 + $0x34] sm:$0xf]
      %v5805 = vld [vmem:[%s5790 + $0x38] sm:$0xf]
      %v5806 = vld [vmem:[%s5790 + $0x3c] sm:$0xf]
      %v5823 = vunpack.c.l.b16 %v5791
      %v5824 = vunpack.c.l.b16 %v5792
      %v5825 = vunpack.c.l.b16 %v5793
      %v5826 = vunpack.c.l.b16 %v5794
      %v5827 = vunpack.c.l.b16 %v5795
      %v5828 = vunpack.c.l.b16 %v5796
      %v5829 = vunpack.c.l.b16 %v5797
      %v5830 = vunpack.c.l.b16 %v5798
      %v5831 = vunpack.c.l.b16 %v5799
      %v5832 = vunpack.c.l.b16 %v5800
      %v5833 = vunpack.c.l.b16 %v5801
      %v5834 = vunpack.c.l.b16 %v5802
      %v5835 = vunpack.c.l.b16 %v5803
      %v5836 = vunpack.c.l.b16 %v5804
      %v5837 = vunpack.c.l.b16 %v5805
      %v5838 = vunpack.c.l.b16 %v5806
      %v5839 = vpack.c.b16 %v5824, %v5823
      %v5840 = vpack.c.b16 %v5826, %v5825
      %v5841 = vpack.c.b16 %v5828, %v5827
      %v5842 = vpack.c.b16 %v5830, %v5829
      %v5843 = vpack.c.b16 %v5832, %v5831
      %v5844 = vpack.c.b16 %v5834, %v5833
      %v5845 = vpack.c.b16 %v5836, %v5835
      %v5846 = vpack.c.b16 %v5838, %v5837
      %5855 = vmatprep.subr.bf16.mxu0 0
      %5856 = vmatpush1.bf16.msra.mxu0 %v5846
      %5857 = vmatprep.subr.bf16.mxu0 0
      %5858 = vmatpush1.bf16.msra.mxu0 %v5845
      %5859 = vmatprep.subr.bf16.mxu0 0
      %5860 = vmatpush1.bf16.msra.mxu0 %v5844
      %5861 = vmatprep.subr.bf16.mxu0 0
      %5862 = vmatpush1.bf16.msra.mxu0 %v5843
      %5863 = vmatprep.subr.bf16.mxu0 0
      %5864 = vmatpush1.bf16.msra.mxu0 %v5842
      %5865 = vmatprep.subr.bf16.mxu0 0
      %5866 = vmatpush1.bf16.msra.mxu0 %v5841
      %5867 = vmatprep.subr.bf16.mxu0 0
      %5868 = vmatpush1.bf16.msra.mxu0 %v5840
      %5869 = vmatprep.subr.bf16.mxu0 0
      %5870 = vmatpush1.bf16.msra.mxu0 %v5839
      %5871 = vmatprep.subr.bf16.mxu0 0
      %5872 = vmatpush2.bf16.msra.mxu0 0
      %5873 = vmatprep.subr.bf16.mxu0 0
      %5874 = vmatpush2.bf16.msra.mxu0 0
      %5875 = vmatprep.subr.bf16.mxu0 0
      %5876 = vmatpush2.bf16.msra.mxu0 0
      %5877 = vmatprep.subr.bf16.mxu0 0
      %5878 = vmatpush2.bf16.msra.mxu0 0
      %5879 = vmatprep.subr.bf16.mxu0 0
      %5880 = vmatpush2.bf16.msra.mxu0 0
      %5881 = vmatprep.subr.bf16.mxu0 0
      %5882 = vmatpush2.bf16.msra.mxu0 0
      %5883 = vmatprep.subr.bf16.mxu0 0
      %5884 = vmatpush2.bf16.msra.mxu0 0
      %5885 = vmatprep.subr.bf16.mxu0 0
      %5886 = vmatpush2.bf16.msra.mxu0 0
      %5887 = vmatprep.mubr.bf16.mxu0 0
      %5888 = vmatmul.mubr.bf16.gmra.mxu0 %v5786
      %v5889 = vpop.f32.mrf.mxu0
      %v5890 = vadd.f32 0.0, %v5889
      %v5891 = vpop.f32.mrf.mxu0
      %v5892 = vpop.f32.mrf.mxu0
      %v5893 = vadd.f32 0.0, %v5892
      %v5894 = vpop.f32.mrf.mxu0
      %5895 = vmatprep.mubr.bf16.mxu0 0
      %5896 = vmatmul.mubr.bf16.gmra.mxu0 %v5787
      %v5897 = vpop.f32.mrf.mxu0
      %v5898 = vadd.f32 0.0, %v5897
      %v5899 = vpop.f32.mrf.mxu0
      %v5900 = vpop.f32.mrf.mxu0
      %v5901 = vadd.f32 0.0, %v5900
      %v5902 = vpop.f32.mrf.mxu0
      %5903 = vmatprep.mubr.bf16.mxu0 0
      %5904 = vmatmul.mubr.bf16.gmra.mxu0 %v5788
      %v5905 = vpop.f32.mrf.mxu0
      %v5906 = vadd.f32 0.0, %v5905
      %v5907 = vpop.f32.mrf.mxu0
      %v5908 = vpop.f32.mrf.mxu0
      %v5909 = vadd.f32 0.0, %v5908
      %v5910 = vpop.f32.mrf.mxu0
      %5911 = vmatprep.mubr.bf16.mxu0 0
      %5912 = vmatmul.mubr.bf16.gmra.mxu0 %v5789
      %v5913 = vpop.f32.mrf.mxu0
      %v5914 = vadd.f32 0.0, %v5913
      %v5915 = vpop.f32.mrf.mxu0
      %v5916 = vpop.f32.mrf.mxu0
      %v5917 = vadd.f32 0.0, %v5916
      %v5918 = vpop.f32.mrf.mxu0
      %5919 = vdwg.mxu0
      %v5920 = vadd.f32 %v5762, %v5890
      %v5921 = vadd.f32 %v5763, %v5893
      %v5922 = vadd.f32 %v5764, %v5898
      %v5923 = vadd.f32 %v5765, %v5901
      %v5924 = vadd.f32 %v5766, %v5906
      %v5925 = vadd.f32 %v5767, %v5909
      %v5926 = vadd.f32 %v5768, %v5914
      %v5927 = vadd.f32 %v5769, %v5917
      %s5928 = scalar_lea.vmem [#allocation3], 48
      %v5929 = vld [vmem:[%s5928] ss:$2 sm:$0xff]
      %s5930 = scalar_lea.vmem %s5928, 48 [#allocation3]
      %v5931 = vld [vmem:[%s5930] ss:$2 sm:$0xff]
      %s5932 = scalar_lea.vmem %s5928, 96 [#allocation3]
      %v5933 = vld [vmem:[%s5932] ss:$2 sm:$0xff]
      %s5934 = scalar_lea.vmem %s5928, 144 [#allocation3]
      %v5935 = vld [vmem:[%s5934] ss:$2 sm:$0xff]
      %s5936 = scalar_lea.vmem %s5928, 192 [#allocation3]
      %v5937 = vld [vmem:[%s5936] ss:$2 sm:$0xff]
      %s5938 = scalar_lea.vmem %s5928, 240 [#allocation3]
      %v5939 = vld [vmem:[%s5938] ss:$2 sm:$0xff]
      %s5940 = scalar_lea.vmem %s5928, 288 [#allocation3]
      %v5941 = vld [vmem:[%s5940] ss:$2 sm:$0xff]
      %s5942 = scalar_lea.vmem %s5928, 336 [#allocation3]
      %v5943 = vld [vmem:[%s5942] ss:$2 sm:$0xff]
      %v5944 = vpack.c.bf16 %v5931, %v5929
      %v5945 = vpack.c.bf16 %v5935, %v5933
      %v5946 = vpack.c.bf16 %v5939, %v5937
      %v5947 = vpack.c.bf16 %v5943, %v5941
      %s5948 = scalar_lea.vmem %s5, 384
      %v5949 = vld [vmem:[%s5948] sm:$0xf]
      %v5950 = vld [vmem:[%s5948 + $0x4] sm:$0xf]
      %v5951 = vld [vmem:[%s5948 + $0x8] sm:$0xf]
      %v5952 = vld [vmem:[%s5948 + $0xc] sm:$0xf]
      %v5953 = vld [vmem:[%s5948 + $0x10] sm:$0xf]
      %v5954 = vld [vmem:[%s5948 + $0x14] sm:$0xf]
      %v5955 = vld [vmem:[%s5948 + $0x18] sm:$0xf]
      %v5956 = vld [vmem:[%s5948 + $0x1c] sm:$0xf]
      %v5957 = vld [vmem:[%s5948 + $0x20] sm:$0xf]
      %v5958 = vld [vmem:[%s5948 + $0x24] sm:$0xf]
      %v5959 = vld [vmem:[%s5948 + $0x28] sm:$0xf]
      %v5960 = vld [vmem:[%s5948 + $0x2c] sm:$0xf]
      %v5961 = vld [vmem:[%s5948 + $0x30] sm:$0xf]
      %v5962 = vld [vmem:[%s5948 + $0x34] sm:$0xf]
      %v5963 = vld [vmem:[%s5948 + $0x38] sm:$0xf]
      %v5964 = vld [vmem:[%s5948 + $0x3c] sm:$0xf]
      %v5981 = vunpack.c.l.b16 %v5949
      %v5982 = vunpack.c.l.b16 %v5950
      %v5983 = vunpack.c.l.b16 %v5951
      %v5984 = vunpack.c.l.b16 %v5952
      %v5985 = vunpack.c.l.b16 %v5953
      %v5986 = vunpack.c.l.b16 %v5954
      %v5987 = vunpack.c.l.b16 %v5955
      %v5988 = vunpack.c.l.b16 %v5956
      %v5989 = vunpack.c.l.b16 %v5957
      %v5990 = vunpack.c.l.b16 %v5958
      %v5991 = vunpack.c.l.b16 %v5959
      %v5992 = vunpack.c.l.b16 %v5960
      %v5993 = vunpack.c.l.b16 %v5961
      %v5994 = vunpack.c.l.b16 %v5962
      %v5995 = vunpack.c.l.b16 %v5963
      %v5996 = vunpack.c.l.b16 %v5964
      %v5997 = vpack.c.b16 %v5982, %v5981
      %v5998 = vpack.c.b16 %v5984, %v5983
      %v5999 = vpack.c.b16 %v5986, %v5985
      %v6000 = vpack.c.b16 %v5988, %v5987
      %v6001 = vpack.c.b16 %v5990, %v5989
      %v6002 = vpack.c.b16 %v5992, %v5991
      %v6003 = vpack.c.b16 %v5994, %v5993
      %v6004 = vpack.c.b16 %v5996, %v5995
      %6013 = vmatprep.subr.bf16.mxu0 0
      %6014 = vmatpush1.bf16.msra.mxu0 %v6004
      %6015 = vmatprep.subr.bf16.mxu0 0
      %6016 = vmatpush1.bf16.msra.mxu0 %v6003
      %6017 = vmatprep.subr.bf16.mxu0 0
      %6018 = vmatpush1.bf16.msra.mxu0 %v6002
      %6019 = vmatprep.subr.bf16.mxu0 0
      %6020 = vmatpush1.bf16.msra.mxu0 %v6001
      %6021 = vmatprep.subr.bf16.mxu0 0
      %6022 = vmatpush1.bf16.msra.mxu0 %v6000
      %6023 = vmatprep.subr.bf16.mxu0 0
      %6024 = vmatpush1.bf16.msra.mxu0 %v5999
      %6025 = vmatprep.subr.bf16.mxu0 0
      %6026 = vmatpush1.bf16.msra.mxu0 %v5998
      %6027 = vmatprep.subr.bf16.mxu0 0
      %6028 = vmatpush1.bf16.msra.mxu0 %v5997
      %6029 = vmatprep.subr.bf16.mxu0 0
      %6030 = vmatpush2.bf16.msra.mxu0 0
      %6031 = vmatprep.subr.bf16.mxu0 0
      %6032 = vmatpush2.bf16.msra.mxu0 0
      %6033 = vmatprep.subr.bf16.mxu0 0
      %6034 = vmatpush2.bf16.msra.mxu0 0
      %6035 = vmatprep.subr.bf16.mxu0 0
      %6036 = vmatpush2.bf16.msra.mxu0 0
      %6037 = vmatprep.subr.bf16.mxu0 0
      %6038 = vmatpush2.bf16.msra.mxu0 0
      %6039 = vmatprep.subr.bf16.mxu0 0
      %6040 = vmatpush2.bf16.msra.mxu0 0
      %6041 = vmatprep.subr.bf16.mxu0 0
      %6042 = vmatpush2.bf16.msra.mxu0 0
      %6043 = vmatprep.subr.bf16.mxu0 0
      %6044 = vmatpush2.bf16.msra.mxu0 0
      %6045 = vmatprep.mubr.bf16.mxu0 0
      %6046 = vmatmul.mubr.bf16.gmra.mxu0 %v5944
      %v6047 = vpop.f32.mrf.mxu0
      %v6048 = vadd.f32 0.0, %v6047
      %v6049 = vpop.f32.mrf.mxu0
      %v6050 = vpop.f32.mrf.mxu0
      %v6051 = vadd.f32 0.0, %v6050
      %v6052 = vpop.f32.mrf.mxu0
      %6053 = vmatprep.mubr.bf16.mxu0 0
      %6054 = vmatmul.mubr.bf16.gmra.mxu0 %v5945
      %v6055 = vpop.f32.mrf.mxu0
      %v6056 = vadd.f32 0.0, %v6055
      %v6057 = vpop.f32.mrf.mxu0
      %v6058 = vpop.f32.mrf.mxu0
      %v6059 = vadd.f32 0.0, %v6058
      %v6060 = vpop.f32.mrf.mxu0
      %6061 = vmatprep.mubr.bf16.mxu0 0
      %6062 = vmatmul.mubr.bf16.gmra.mxu0 %v5946
      %v6063 = vpop.f32.mrf.mxu0
      %v6064 = vadd.f32 0.0, %v6063
      %v6065 = vpop.f32.mrf.mxu0
      %v6066 = vpop.f32.mrf.mxu0
      %v6067 = vadd.f32 0.0, %v6066
      %v6068 = vpop.f32.mrf.mxu0
      %6069 = vmatprep.mubr.bf16.mxu0 0
      %6070 = vmatmul.mubr.bf16.gmra.mxu0 %v5947
      %v6071 = vpop.f32.mrf.mxu0
      %v6072 = vadd.f32 0.0, %v6071
      %v6073 = vpop.f32.mrf.mxu0
      %v6074 = vpop.f32.mrf.mxu0
      %v6075 = vadd.f32 0.0, %v6074
      %v6076 = vpop.f32.mrf.mxu0
      %6077 = vdwg.mxu0
      %v6078 = vadd.f32 %v5920, %v6048
      %v6079 = vadd.f32 %v5921, %v6051
      %v6080 = vadd.f32 %v5922, %v6056
      %v6081 = vadd.f32 %v5923, %v6059
      %v6082 = vadd.f32 %v5924, %v6064
      %v6083 = vadd.f32 %v5925, %v6067
      %v6084 = vadd.f32 %v5926, %v6072
      %v6085 = vadd.f32 %v5927, %v6075
      %s6086 = scalar_lea.vmem %s5928, 1 [#allocation3]
      %v6087 = vld [vmem:[%s6086] ss:$2 sm:$0xff]
      %s6088 = scalar_lea.vmem %s5928, 49 [#allocation3]
      %v6089 = vld [vmem:[%s6088] ss:$2 sm:$0xff]
      %s6090 = scalar_lea.vmem %s5928, 97 [#allocation3]
      %v6091 = vld [vmem:[%s6090] ss:$2 sm:$0xff]
      %s6092 = scalar_lea.vmem %s5928, 145 [#allocation3]
      %v6093 = vld [vmem:[%s6092] ss:$2 sm:$0xff]
      %s6094 = scalar_lea.vmem %s5928, 193 [#allocation3]
      %v6095 = vld [vmem:[%s6094] ss:$2 sm:$0xff]
      %s6096 = scalar_lea.vmem %s5928, 241 [#allocation3]
      %v6097 = vld [vmem:[%s6096] ss:$2 sm:$0xff]
      %s6098 = scalar_lea.vmem %s5928, 289 [#allocation3]
      %v6099 = vld [vmem:[%s6098] ss:$2 sm:$0xff]
      %s6100 = scalar_lea.vmem %s5928, 337 [#allocation3]
      %v6101 = vld [vmem:[%s6100] ss:$2 sm:$0xff]
      %v6102 = vpack.c.bf16 %v6089, %v6087
      %v6103 = vpack.c.bf16 %v6093, %v6091
      %v6104 = vpack.c.bf16 %v6097, %v6095
      %v6105 = vpack.c.bf16 %v6101, %v6099
      %s6106 = scalar_lea.vmem %s5, 448
      %v6107 = vld [vmem:[%s6106] sm:$0xf]
      %v6108 = vld [vmem:[%s6106 + $0x4] sm:$0xf]
      %v6109 = vld [vmem:[%s6106 + $0x8] sm:$0xf]
      %v6110 = vld [vmem:[%s6106 + $0xc] sm:$0xf]
      %v6111 = vld [vmem:[%s6106 + $0x10] sm:$0xf]
      %v6112 = vld [vmem:[%s6106 + $0x14] sm:$0xf]
      %v6113 = vld [vmem:[%s6106 + $0x18] sm:$0xf]
      %v6114 = vld [vmem:[%s6106 + $0x1c] sm:$0xf]
      %v6115 = vld [vmem:[%s6106 + $0x20] sm:$0xf]
      %v6116 = vld [vmem:[%s6106 + $0x24] sm:$0xf]
      %v6117 = vld [vmem:[%s6106 + $0x28] sm:$0xf]
      %v6118 = vld [vmem:[%s6106 + $0x2c] sm:$0xf]
      %v6119 = vld [vmem:[%s6106 + $0x30] sm:$0xf]
      %v6120 = vld [vmem:[%s6106 + $0x34] sm:$0xf]
      %v6121 = vld [vmem:[%s6106 + $0x38] sm:$0xf]
      %v6122 = vld [vmem:[%s6106 + $0x3c] sm:$0xf]
      %v6139 = vunpack.c.l.b16 %v6107
      %v6140 = vunpack.c.l.b16 %v6108
      %v6141 = vunpack.c.l.b16 %v6109
      %v6142 = vunpack.c.l.b16 %v6110
      %v6143 = vunpack.c.l.b16 %v6111
      %v6144 = vunpack.c.l.b16 %v6112
      %v6145 = vunpack.c.l.b16 %v6113
      %v6146 = vunpack.c.l.b16 %v6114
      %v6147 = vunpack.c.l.b16 %v6115
      %v6148 = vunpack.c.l.b16 %v6116
      %v6149 = vunpack.c.l.b16 %v6117
      %v6150 = vunpack.c.l.b16 %v6118
      %v6151 = vunpack.c.l.b16 %v6119
      %v6152 = vunpack.c.l.b16 %v6120
      %v6153 = vunpack.c.l.b16 %v6121
      %v6154 = vunpack.c.l.b16 %v6122
      %v6155 = vpack.c.b16 %v6140, %v6139
      %v6156 = vpack.c.b16 %v6142, %v6141
      %v6157 = vpack.c.b16 %v6144, %v6143
      %v6158 = vpack.c.b16 %v6146, %v6145
      %v6159 = vpack.c.b16 %v6148, %v6147
      %v6160 = vpack.c.b16 %v6150, %v6149
      %v6161 = vpack.c.b16 %v6152, %v6151
      %v6162 = vpack.c.b16 %v6154, %v6153
      %6171 = vmatprep.subr.bf16.mxu0 0
      %6172 = vmatpush1.bf16.msra.mxu0 %v6162
      %6173 = vmatprep.subr.bf16.mxu0 0
      %6174 = vmatpush1.bf16.msra.mxu0 %v6161
      %6175 = vmatprep.subr.bf16.mxu0 0
      %6176 = vmatpush1.bf16.msra.mxu0 %v6160
      %6177 = vmatprep.subr.bf16.mxu0 0
      %6178 = vmatpush1.bf16.msra.mxu0 %v6159
      %6179 = vmatprep.subr.bf16.mxu0 0
      %6180 = vmatpush1.bf16.msra.mxu0 %v6158
      %6181 = vmatprep.subr.bf16.mxu0 0
      %6182 = vmatpush1.bf16.msra.mxu0 %v6157
      %6183 = vmatprep.subr.bf16.mxu0 0
      %6184 = vmatpush1.bf16.msra.mxu0 %v6156
      %6185 = vmatprep.subr.bf16.mxu0 0
      %6186 = vmatpush1.bf16.msra.mxu0 %v6155
      %6187 = vmatprep.subr.bf16.mxu0 0
      %6188 = vmatpush2.bf16.msra.mxu0 0
      %6189 = vmatprep.subr.bf16.mxu0 0
      %6190 = vmatpush2.bf16.msra.mxu0 0
      %6191 = vmatprep.subr.bf16.mxu0 0
      %6192 = vmatpush2.bf16.msra.mxu0 0
      %6193 = vmatprep.subr.bf16.mxu0 0
      %6194 = vmatpush2.bf16.msra.mxu0 0
      %6195 = vmatprep.subr.bf16.mxu0 0
      %6196 = vmatpush2.bf16.msra.mxu0 0
      %6197 = vmatprep.subr.bf16.mxu0 0
      %6198 = vmatpush2.bf16.msra.mxu0 0
      %6199 = vmatprep.subr.bf16.mxu0 0
      %6200 = vmatpush2.bf16.msra.mxu0 0
      %6201 = vmatprep.subr.bf16.mxu0 0
      %6202 = vmatpush2.bf16.msra.mxu0 0
      %6203 = vmatprep.mubr.bf16.mxu0 0
      %6204 = vmatmul.mubr.bf16.gmra.mxu0 %v6102
      %v6205 = vpop.f32.mrf.mxu0
      %v6206 = vadd.f32 0.0, %v6205
      %v6207 = vpop.f32.mrf.mxu0
      %v6208 = vpop.f32.mrf.mxu0
      %v6209 = vadd.f32 0.0, %v6208
      %v6210 = vpop.f32.mrf.mxu0
      %6211 = vmatprep.mubr.bf16.mxu0 0
      %6212 = vmatmul.mubr.bf16.gmra.mxu0 %v6103
      %v6213 = vpop.f32.mrf.mxu0
      %v6214 = vadd.f32 0.0, %v6213
      %v6215 = vpop.f32.mrf.mxu0
      %v6216 = vpop.f32.mrf.mxu0
      %v6217 = vadd.f32 0.0, %v6216
      %v6218 = vpop.f32.mrf.mxu0
      %6219 = vmatprep.mubr.bf16.mxu0 0
      %6220 = vmatmul.mubr.bf16.gmra.mxu0 %v6104
      %v6221 = vpop.f32.mrf.mxu0
      %v6222 = vadd.f32 0.0, %v6221
      %v6223 = vpop.f32.mrf.mxu0
      %v6224 = vpop.f32.mrf.mxu0
      %v6225 = vadd.f32 0.0, %v6224
      %v6226 = vpop.f32.mrf.mxu0
      %6227 = vmatprep.mubr.bf16.mxu0 0
      %6228 = vmatmul.mubr.bf16.gmra.mxu0 %v6105
      %v6229 = vpop.f32.mrf.mxu0
      %v6230 = vadd.f32 0.0, %v6229
      %v6231 = vpop.f32.mrf.mxu0
      %v6232 = vpop.f32.mrf.mxu0
      %v6233 = vadd.f32 0.0, %v6232
      %v6234 = vpop.f32.mrf.mxu0
      %6235 = vdwg.mxu0
      %v6236 = vadd.f32 %v6078, %v6206
      %v6237 = vadd.f32 %v6079, %v6209
      %v6238 = vadd.f32 %v6080, %v6214
      %v6239 = vadd.f32 %v6081, %v6217
      %v6240 = vadd.f32 %v6082, %v6222
      %v6241 = vadd.f32 %v6083, %v6225
      %v6242 = vadd.f32 %v6084, %v6230
      %v6243 = vadd.f32 %v6085, %v6233
      %s6244 = scalar_lea.vmem %s5928, 2 [#allocation3]
      %v6245 = vld [vmem:[%s6244] ss:$2 sm:$0xff]
      %s6246 = scalar_lea.vmem %s5928, 50 [#allocation3]
      %v6247 = vld [vmem:[%s6246] ss:$2 sm:$0xff]
      %s6248 = scalar_lea.vmem %s5928, 98 [#allocation3]
      %v6249 = vld [vmem:[%s6248] ss:$2 sm:$0xff]
      %s6250 = scalar_lea.vmem %s5928, 146 [#allocation3]
      %v6251 = vld [vmem:[%s6250] ss:$2 sm:$0xff]
      %s6252 = scalar_lea.vmem %s5928, 194 [#allocation3]
      %v6253 = vld [vmem:[%s6252] ss:$2 sm:$0xff]
      %s6254 = scalar_lea.vmem %s5928, 242 [#allocation3]
      %v6255 = vld [vmem:[%s6254] ss:$2 sm:$0xff]
      %s6256 = scalar_lea.vmem %s5928, 290 [#allocation3]
      %v6257 = vld [vmem:[%s6256] ss:$2 sm:$0xff]
      %s6258 = scalar_lea.vmem %s5928, 338 [#allocation3]
      %v6259 = vld [vmem:[%s6258] ss:$2 sm:$0xff]
      %v6260 = vpack.c.bf16 %v6247, %v6245
      %v6261 = vpack.c.bf16 %v6251, %v6249
      %v6262 = vpack.c.bf16 %v6255, %v6253
      %v6263 = vpack.c.bf16 %v6259, %v6257
      %s6264 = scalar_lea.vmem %s5, 512
      %v6265 = vld [vmem:[%s6264] sm:$0xf]
      %v6266 = vld [vmem:[%s6264 + $0x4] sm:$0xf]
      %v6267 = vld [vmem:[%s6264 + $0x8] sm:$0xf]
      %v6268 = vld [vmem:[%s6264 + $0xc] sm:$0xf]
      %v6269 = vld [vmem:[%s6264 + $0x10] sm:$0xf]
      %v6270 = vld [vmem:[%s6264 + $0x14] sm:$0xf]
      %v6271 = vld [vmem:[%s6264 + $0x18] sm:$0xf]
      %v6272 = vld [vmem:[%s6264 + $0x1c] sm:$0xf]
      %v6273 = vld [vmem:[%s6264 + $0x20] sm:$0xf]
      %v6274 = vld [vmem:[%s6264 + $0x24] sm:$0xf]
      %v6275 = vld [vmem:[%s6264 + $0x28] sm:$0xf]
      %v6276 = vld [vmem:[%s6264 + $0x2c] sm:$0xf]
      %v6277 = vld [vmem:[%s6264 + $0x30] sm:$0xf]
      %v6278 = vld [vmem:[%s6264 + $0x34] sm:$0xf]
      %v6279 = vld [vmem:[%s6264 + $0x38] sm:$0xf]
      %v6280 = vld [vmem:[%s6264 + $0x3c] sm:$0xf]
      %v6297 = vunpack.c.l.b16 %v6265
      %v6298 = vunpack.c.l.b16 %v6266
      %v6299 = vunpack.c.l.b16 %v6267
      %v6300 = vunpack.c.l.b16 %v6268
      %v6301 = vunpack.c.l.b16 %v6269
      %v6302 = vunpack.c.l.b16 %v6270
      %v6303 = vunpack.c.l.b16 %v6271
      %v6304 = vunpack.c.l.b16 %v6272
      %v6305 = vunpack.c.l.b16 %v6273
      %v6306 = vunpack.c.l.b16 %v6274
      %v6307 = vunpack.c.l.b16 %v6275
      %v6308 = vunpack.c.l.b16 %v6276
      %v6309 = vunpack.c.l.b16 %v6277
      %v6310 = vunpack.c.l.b16 %v6278
      %v6311 = vunpack.c.l.b16 %v6279
      %v6312 = vunpack.c.l.b16 %v6280
      %v6313 = vpack.c.b16 %v6298, %v6297
      %v6314 = vpack.c.b16 %v6300, %v6299
      %v6315 = vpack.c.b16 %v6302, %v6301
      %v6316 = vpack.c.b16 %v6304, %v6303
      %v6317 = vpack.c.b16 %v6306, %v6305
      %v6318 = vpack.c.b16 %v6308, %v6307
      %v6319 = vpack.c.b16 %v6310, %v6309
      %v6320 = vpack.c.b16 %v6312, %v6311
      %6329 = vmatprep.subr.bf16.mxu0 0
      %6330 = vmatpush1.bf16.msra.mxu0 %v6320
      %6331 = vmatprep.subr.bf16.mxu0 0
      %6332 = vmatpush1.bf16.msra.mxu0 %v6319
      %6333 = vmatprep.subr.bf16.mxu0 0
      %6334 = vmatpush1.bf16.msra.mxu0 %v6318
      %6335 = vmatprep.subr.bf16.mxu0 0
      %6336 = vmatpush1.bf16.msra.mxu0 %v6317
      %6337 = vmatprep.subr.bf16.mxu0 0
      %6338 = vmatpush1.bf16.msra.mxu0 %v6316
      %6339 = vmatprep.subr.bf16.mxu0 0
      %6340 = vmatpush1.bf16.msra.mxu0 %v6315
      %6341 = vmatprep.subr.bf16.mxu0 0
      %6342 = vmatpush1.bf16.msra.mxu0 %v6314
      %6343 = vmatprep.subr.bf16.mxu0 0
      %6344 = vmatpush1.bf16.msra.mxu0 %v6313
      %6345 = vmatprep.subr.bf16.mxu0 0
      %6346 = vmatpush2.bf16.msra.mxu0 0
      %6347 = vmatprep.subr.bf16.mxu0 0
      %6348 = vmatpush2.bf16.msra.mxu0 0
      %6349 = vmatprep.subr.bf16.mxu0 0
      %6350 = vmatpush2.bf16.msra.mxu0 0
      %6351 = vmatprep.subr.bf16.mxu0 0
      %6352 = vmatpush2.bf16.msra.mxu0 0
      %6353 = vmatprep.subr.bf16.mxu0 0
      %6354 = vmatpush2.bf16.msra.mxu0 0
      %6355 = vmatprep.subr.bf16.mxu0 0
      %6356 = vmatpush2.bf16.msra.mxu0 0
      %6357 = vmatprep.subr.bf16.mxu0 0
      %6358 = vmatpush2.bf16.msra.mxu0 0
      %6359 = vmatprep.subr.bf16.mxu0 0
      %6360 = vmatpush2.bf16.msra.mxu0 0
      %6361 = vmatprep.mubr.bf16.mxu0 0
      %6362 = vmatmul.mubr.bf16.gmra.mxu0 %v6260
      %v6363 = vpop.f32.mrf.mxu0
      %v6364 = vadd.f32 0.0, %v6363
      %v6365 = vpop.f32.mrf.mxu0
      %v6366 = vpop.f32.mrf.mxu0
      %v6367 = vadd.f32 0.0, %v6366
      %v6368 = vpop.f32.mrf.mxu0
      %6369 = vmatprep.mubr.bf16.mxu0 0
      %6370 = vmatmul.mubr.bf16.gmra.mxu0 %v6261
      %v6371 = vpop.f32.mrf.mxu0
      %v6372 = vadd.f32 0.0, %v6371
      %v6373 = vpop.f32.mrf.mxu0
      %v6374 = vpop.f32.mrf.mxu0
      %v6375 = vadd.f32 0.0, %v6374
      %v6376 = vpop.f32.mrf.mxu0
      %6377 = vmatprep.mubr.bf16.mxu0 0
      %6378 = vmatmul.mubr.bf16.gmra.mxu0 %v6262
      %v6379 = vpop.f32.mrf.mxu0
      %v6380 = vadd.f32 0.0, %v6379
      %v6381 = vpop.f32.mrf.mxu0
      %v6382 = vpop.f32.mrf.mxu0
      %v6383 = vadd.f32 0.0, %v6382
      %v6384 = vpop.f32.mrf.mxu0
      %6385 = vmatprep.mubr.bf16.mxu0 0
      %6386 = vmatmul.mubr.bf16.gmra.mxu0 %v6263
      %v6387 = vpop.f32.mrf.mxu0
      %v6388 = vadd.f32 0.0, %v6387
      %v6389 = vpop.f32.mrf.mxu0
      %v6390 = vpop.f32.mrf.mxu0
      %v6391 = vadd.f32 0.0, %v6390
      %v6392 = vpop.f32.mrf.mxu0
      %6393 = vdwg.mxu0
      %v6394 = vadd.f32 %v6236, %v6364
      %v6395 = vadd.f32 %v6237, %v6367
      %v6396 = vadd.f32 %v6238, %v6372
      %v6397 = vadd.f32 %v6239, %v6375
      %v6398 = vadd.f32 %v6240, %v6380
      %v6399 = vadd.f32 %v6241, %v6383
      %v6400 = vadd.f32 %v6242, %v6388
      %v6401 = vadd.f32 %v6243, %v6391
      %v6402 = vld [vmem:[%s6] sm:$0x1]
      %v6404 = vlaneseq
      %v6405 = vshrl.u32 %v6404, 7
      %v6406 = vsub.s32 0, %v6405
      %v6407 = vrot.slane %v6402, %v6406
      %v6409 = vadd.f32 %v6394, %v6407
      %v6410 = vadd.f32 %v6395, %v6407
      %v6411 = vadd.f32 %v6396, %v6407
      %v6412 = vadd.f32 %v6397, %v6407
      %v6413 = vadd.f32 %v6398, %v6407
      %v6414 = vadd.f32 %v6399, %v6407
      %v6415 = vadd.f32 %v6400, %v6407
      %v6416 = vadd.f32 %v6401, %v6407
      %v6417 = vlaneseq
      %v6418 = vand.u32 %v6417, 127
      %v6419 = vld [vmem:[%s8] sm:$0x1]
      %v6420 = vld [vmem:[%s7] sm:$0xff]
      %v6421 = vld [vmem:[%s7 + $0x8] sm:$0xff]
      %v6422 = vld [vmem:[%s7 + $0x10] sm:$0xff]
      %v6423 = vld [vmem:[%s7 + $0x18] sm:$0xff]
      %v6424 = vld [vmem:[%s7 + $0x20] sm:$0xff]
      %v6425 = vld [vmem:[%s7 + $0x28] sm:$0xff]
      %v6426 = vld [vmem:[%s7 + $0x30] sm:$0xff]
      %v6427 = vld [vmem:[%s7 + $0x38] sm:$0xff]
      %v6428 = vmul.f32 %v6409, %v6420
      %v6429 = vmul.f32 %v6410, %v6421
      %v6430 = vmul.f32 %v6411, %v6422
      %v6431 = vmul.f32 %v6412, %v6423
      %v6432 = vmul.f32 %v6413, %v6424
      %v6433 = vmul.f32 %v6414, %v6425
      %v6434 = vmul.f32 %v6415, %v6426
      %v6435 = vmul.f32 %v6416, %v6427
      %v6436 = vadd.f32 %v6428, %v6429
      %v6437 = vadd.f32 %v6436, %v6430
      %v6438 = vadd.f32 %v6437, %v6431
      %v6439 = vadd.f32 %v6438, %v6432
      %v6440 = vadd.f32 %v6439, %v6433
      %v6441 = vadd.f32 %v6440, %v6434
      %v6442 = vadd.f32 %v6441, %v6435
      %6443 = vadd.xlane.f32.xlu0 %v6442
      %v6444 = vpop.xlane.xlu0 %6443
      %v6445 = vrot.slane %v6444, 4
      %v6446 = vadd.f32 %v6444, %v6445
      %v6447 = vrot.slane %v6446, 2
      %v6448 = vadd.f32 %v6446, %v6447
      %v6449 = vrot.slane %v6448, 1
      %v6450 = vadd.f32 %v6448, %v6449
      %vm6451 = vcmp.eq.s32.totalorder %v6418, 0
      %v6452 = vsel %vm6451, %v6450, 0.0
      %v6453 = vadd.f32 %v6419, %v6452
      %s6454 = scalar_lea.vmem %s7, 64
      %v6455 = vld [vmem:[%s6454] sm:$0xff]
      %v6456 = vld [vmem:[%s6454 + $0x8] sm:$0xff]
      %v6457 = vld [vmem:[%s6454 + $0x10] sm:$0xff]
      %v6458 = vld [vmem:[%s6454 + $0x18] sm:$0xff]
      %v6459 = vld [vmem:[%s6454 + $0x20] sm:$0xff]
      %v6460 = vld [vmem:[%s6454 + $0x28] sm:$0xff]
      %v6461 = vld [vmem:[%s6454 + $0x30] sm:$0xff]
      %v6462 = vld [vmem:[%s6454 + $0x38] sm:$0xff]
      %v6463 = vmul.f32 %v6409, %v6455
      %v6464 = vmul.f32 %v6410, %v6456
      %v6465 = vmul.f32 %v6411, %v6457
      %v6466 = vmul.f32 %v6412, %v6458
      %v6467 = vmul.f32 %v6413, %v6459
      %v6468 = vmul.f32 %v6414, %v6460
      %v6469 = vmul.f32 %v6415, %v6461
      %v6470 = vmul.f32 %v6416, %v6462
      %v6471 = vadd.f32 %v6463, %v6464
      %v6472 = vadd.f32 %v6471, %v6465
      %v6473 = vadd.f32 %v6472, %v6466
      %v6474 = vadd.f32 %v6473, %v6467
      %v6475 = vadd.f32 %v6474, %v6468
      %v6476 = vadd.f32 %v6475, %v6469
      %v6477 = vadd.f32 %v6476, %v6470
      %6478 = vadd.xlane.f32.xlu0 %v6477
      %v6479 = vpop.xlane.xlu0 %6478
      %v6480 = vrot.slane %v6479, 4
      %v6481 = vadd.f32 %v6479, %v6480
      %v6482 = vrot.slane %v6481, 2
      %v6483 = vadd.f32 %v6481, %v6482
      %v6484 = vrot.slane %v6483, 1
      %v6485 = vadd.f32 %v6483, %v6484
      %vm6486 = vcmp.eq.s32.totalorder %v6418, 1
      %v6487 = vsel %vm6486, %v6485, 0.0
      %v6488 = vadd.f32 %v6453, %v6487
      %s6489 = scalar_lea.vmem %s7, 128
      %v6490 = vld [vmem:[%s6489] sm:$0xff]
      %v6491 = vld [vmem:[%s6489 + $0x8] sm:$0xff]
      %v6492 = vld [vmem:[%s6489 + $0x10] sm:$0xff]
      %v6493 = vld [vmem:[%s6489 + $0x18] sm:$0xff]
      %v6494 = vld [vmem:[%s6489 + $0x20] sm:$0xff]
      %v6495 = vld [vmem:[%s6489 + $0x28] sm:$0xff]
      %v6496 = vld [vmem:[%s6489 + $0x30] sm:$0xff]
      %v6497 = vld [vmem:[%s6489 + $0x38] sm:$0xff]
      %v6498 = vmul.f32 %v6409, %v6490
      %v6499 = vmul.f32 %v6410, %v6491
      %v6500 = vmul.f32 %v6411, %v6492
      %v6501 = vmul.f32 %v6412, %v6493
      %v6502 = vmul.f32 %v6413, %v6494
      %v6503 = vmul.f32 %v6414, %v6495
      %v6504 = vmul.f32 %v6415, %v6496
      %v6505 = vmul.f32 %v6416, %v6497
      %v6506 = vadd.f32 %v6498, %v6499
      %v6507 = vadd.f32 %v6506, %v6500
      %v6508 = vadd.f32 %v6507, %v6501
      %v6509 = vadd.f32 %v6508, %v6502
      %v6510 = vadd.f32 %v6509, %v6503
      %v6511 = vadd.f32 %v6510, %v6504
      %v6512 = vadd.f32 %v6511, %v6505
      %6513 = vadd.xlane.f32.xlu0 %v6512
      %v6514 = vpop.xlane.xlu0 %6513
      %v6515 = vrot.slane %v6514, 4
      %v6516 = vadd.f32 %v6514, %v6515
      %v6517 = vrot.slane %v6516, 2
      %v6518 = vadd.f32 %v6516, %v6517
      %v6519 = vrot.slane %v6518, 1
      %v6520 = vadd.f32 %v6518, %v6519
      %vm6521 = vcmp.eq.s32.totalorder %v6418, 2
      %v6522 = vsel %vm6521, %v6520, 0.0
      %v6523 = vadd.f32 %v6488, %v6522
      %s6524 = scalar_lea.vmem %s7, 192
      %v6525 = vld [vmem:[%s6524] sm:$0xff]
      %v6526 = vld [vmem:[%s6524 + $0x8] sm:$0xff]
      %v6527 = vld [vmem:[%s6524 + $0x10] sm:$0xff]
      %v6528 = vld [vmem:[%s6524 + $0x18] sm:$0xff]
      %v6529 = vld [vmem:[%s6524 + $0x20] sm:$0xff]
      %v6530 = vld [vmem:[%s6524 + $0x28] sm:$0xff]
      %v6531 = vld [vmem:[%s6524 + $0x30] sm:$0xff]
      %v6532 = vld [vmem:[%s6524 + $0x38] sm:$0xff]
      %v6533 = vmul.f32 %v6409, %v6525
      %v6534 = vmul.f32 %v6410, %v6526
      %v6535 = vmul.f32 %v6411, %v6527
      %v6536 = vmul.f32 %v6412, %v6528
      %v6537 = vmul.f32 %v6413, %v6529
      %v6538 = vmul.f32 %v6414, %v6530
      %v6539 = vmul.f32 %v6415, %v6531
      %v6540 = vmul.f32 %v6416, %v6532
      %v6541 = vadd.f32 %v6533, %v6534
      %v6542 = vadd.f32 %v6541, %v6535
      %v6543 = vadd.f32 %v6542, %v6536
      %v6544 = vadd.f32 %v6543, %v6537
      %v6545 = vadd.f32 %v6544, %v6538
      %v6546 = vadd.f32 %v6545, %v6539
      %v6547 = vadd.f32 %v6546, %v6540
      %6548 = vadd.xlane.f32.xlu0 %v6547
      %v6549 = vpop.xlane.xlu0 %6548
      %v6550 = vrot.slane %v6549, 4
      %v6551 = vadd.f32 %v6549, %v6550
      %v6552 = vrot.slane %v6551, 2
      %v6553 = vadd.f32 %v6551, %v6552
      %v6554 = vrot.slane %v6553, 1
      %v6555 = vadd.f32 %v6553, %v6554
      %vm6556 = vcmp.eq.s32.totalorder %v6418, 3
      %v6557 = vsel %vm6556, %v6555, 0.0
      %v6558 = vadd.f32 %v6523, %v6557
      %s6559 = scalar_lea.vmem %s7, 256
      %v6560 = vld [vmem:[%s6559] sm:$0xff]
      %v6561 = vld [vmem:[%s6559 + $0x8] sm:$0xff]
      %v6562 = vld [vmem:[%s6559 + $0x10] sm:$0xff]
      %v6563 = vld [vmem:[%s6559 + $0x18] sm:$0xff]
      %v6564 = vld [vmem:[%s6559 + $0x20] sm:$0xff]
      %v6565 = vld [vmem:[%s6559 + $0x28] sm:$0xff]
      %v6566 = vld [vmem:[%s6559 + $0x30] sm:$0xff]
      %v6567 = vld [vmem:[%s6559 + $0x38] sm:$0xff]
      %v6568 = vmul.f32 %v6409, %v6560
      %v6569 = vmul.f32 %v6410, %v6561
      %v6570 = vmul.f32 %v6411, %v6562
      %v6571 = vmul.f32 %v6412, %v6563
      %v6572 = vmul.f32 %v6413, %v6564
      %v6573 = vmul.f32 %v6414, %v6565
      %v6574 = vmul.f32 %v6415, %v6566
      %v6575 = vmul.f32 %v6416, %v6567
      %v6576 = vadd.f32 %v6568, %v6569
      %v6577 = vadd.f32 %v6576, %v6570
      %v6578 = vadd.f32 %v6577, %v6571
      %v6579 = vadd.f32 %v6578, %v6572
      %v6580 = vadd.f32 %v6579, %v6573
      %v6581 = vadd.f32 %v6580, %v6574
      %v6582 = vadd.f32 %v6581, %v6575
      %6583 = vadd.xlane.f32.xlu0 %v6582
      %v6584 = vpop.xlane.xlu0 %6583
      %v6585 = vrot.slane %v6584, 4
      %v6586 = vadd.f32 %v6584, %v6585
      %v6587 = vrot.slane %v6586, 2
      %v6588 = vadd.f32 %v6586, %v6587
      %v6589 = vrot.slane %v6588, 1
      %v6590 = vadd.f32 %v6588, %v6589
      %vm6591 = vcmp.eq.s32.totalorder %v6418, 4
      %v6592 = vsel %vm6591, %v6590, 0.0
      %v6593 = vadd.f32 %v6558, %v6592
      %s6594 = scalar_lea.vmem %s7, 320
      %v6595 = vld [vmem:[%s6594] sm:$0xff]
      %v6596 = vld [vmem:[%s6594 + $0x8] sm:$0xff]
      %v6597 = vld [vmem:[%s6594 + $0x10] sm:$0xff]
      %v6598 = vld [vmem:[%s6594 + $0x18] sm:$0xff]
      %v6599 = vld [vmem:[%s6594 + $0x20] sm:$0xff]
      %v6600 = vld [vmem:[%s6594 + $0x28] sm:$0xff]
      %v6601 = vld [vmem:[%s6594 + $0x30] sm:$0xff]
      %v6602 = vld [vmem:[%s6594 + $0x38] sm:$0xff]
      %v6603 = vmul.f32 %v6409, %v6595
      %v6604 = vmul.f32 %v6410, %v6596
      %v6605 = vmul.f32 %v6411, %v6597
      %v6606 = vmul.f32 %v6412, %v6598
      %v6607 = vmul.f32 %v6413, %v6599
      %v6608 = vmul.f32 %v6414, %v6600
      %v6609 = vmul.f32 %v6415, %v6601
      %v6610 = vmul.f32 %v6416, %v6602
      %v6611 = vadd.f32 %v6603, %v6604
      %v6612 = vadd.f32 %v6611, %v6605
      %v6613 = vadd.f32 %v6612, %v6606
      %v6614 = vadd.f32 %v6613, %v6607
      %v6615 = vadd.f32 %v6614, %v6608
      %v6616 = vadd.f32 %v6615, %v6609
      %v6617 = vadd.f32 %v6616, %v6610
      %6618 = vadd.xlane.f32.xlu0 %v6617
      %v6619 = vpop.xlane.xlu0 %6618
      %v6620 = vrot.slane %v6619, 4
      %v6621 = vadd.f32 %v6619, %v6620
      %v6622 = vrot.slane %v6621, 2
      %v6623 = vadd.f32 %v6621, %v6622
      %v6624 = vrot.slane %v6623, 1
      %v6625 = vadd.f32 %v6623, %v6624
      %vm6626 = vcmp.eq.s32.totalorder %v6418, 5
      %v6627 = vsel %vm6626, %v6625, 0.0
      %v6628 = vadd.f32 %v6593, %v6627
      %s6629 = scalar_lea.vmem %s7, 384
      %v6630 = vld [vmem:[%s6629] sm:$0xff]
      %v6631 = vld [vmem:[%s6629 + $0x8] sm:$0xff]
      %v6632 = vld [vmem:[%s6629 + $0x10] sm:$0xff]
      %v6633 = vld [vmem:[%s6629 + $0x18] sm:$0xff]
      %v6634 = vld [vmem:[%s6629 + $0x20] sm:$0xff]
      %v6635 = vld [vmem:[%s6629 + $0x28] sm:$0xff]
      %v6636 = vld [vmem:[%s6629 + $0x30] sm:$0xff]
      %v6637 = vld [vmem:[%s6629 + $0x38] sm:$0xff]
      %v6638 = vmul.f32 %v6409, %v6630
      %v6639 = vmul.f32 %v6410, %v6631
      %v6640 = vmul.f32 %v6411, %v6632
      %v6641 = vmul.f32 %v6412, %v6633
      %v6642 = vmul.f32 %v6413, %v6634
      %v6643 = vmul.f32 %v6414, %v6635
      %v6644 = vmul.f32 %v6415, %v6636
      %v6645 = vmul.f32 %v6416, %v6637
      %v6646 = vadd.f32 %v6638, %v6639
      %v6647 = vadd.f32 %v6646, %v6640
      %v6648 = vadd.f32 %v6647, %v6641
      %v6649 = vadd.f32 %v6648, %v6642
      %v6650 = vadd.f32 %v6649, %v6643
      %v6651 = vadd.f32 %v6650, %v6644
      %v6652 = vadd.f32 %v6651, %v6645
      %6653 = vadd.xlane.f32.xlu0 %v6652
      %v6654 = vpop.xlane.xlu0 %6653
      %v6655 = vrot.slane %v6654, 4
      %v6656 = vadd.f32 %v6654, %v6655
      %v6657 = vrot.slane %v6656, 2
      %v6658 = vadd.f32 %v6656, %v6657
      %v6659 = vrot.slane %v6658, 1
      %v6660 = vadd.f32 %v6658, %v6659
      %vm6661 = vcmp.eq.s32.totalorder %v6418, 6
      %v6662 = vsel %vm6661, %v6660, 0.0
      %v6663 = vadd.f32 %v6628, %v6662
      %s6664 = scalar_lea.vmem %s7, 448
      %v6665 = vld [vmem:[%s6664] sm:$0xff]
      %v6666 = vld [vmem:[%s6664 + $0x8] sm:$0xff]
      %v6667 = vld [vmem:[%s6664 + $0x10] sm:$0xff]
      %v6668 = vld [vmem:[%s6664 + $0x18] sm:$0xff]
      %v6669 = vld [vmem:[%s6664 + $0x20] sm:$0xff]
      %v6670 = vld [vmem:[%s6664 + $0x28] sm:$0xff]
      %v6671 = vld [vmem:[%s6664 + $0x30] sm:$0xff]
      %v6672 = vld [vmem:[%s6664 + $0x38] sm:$0xff]
      %v6673 = vmul.f32 %v6409, %v6665
      %v6674 = vmul.f32 %v6410, %v6666
      %v6675 = vmul.f32 %v6411, %v6667
      %v6676 = vmul.f32 %v6412, %v6668
      %v6677 = vmul.f32 %v6413, %v6669
      %v6678 = vmul.f32 %v6414, %v6670
      %v6679 = vmul.f32 %v6415, %v6671
      %v6680 = vmul.f32 %v6416, %v6672
      %v6681 = vadd.f32 %v6673, %v6674
      %v6682 = vadd.f32 %v6681, %v6675
      %v6683 = vadd.f32 %v6682, %v6676
      %v6684 = vadd.f32 %v6683, %v6677
      %v6685 = vadd.f32 %v6684, %v6678
      %v6686 = vadd.f32 %v6685, %v6679
      %v6687 = vadd.f32 %v6686, %v6680
      %6688 = vadd.xlane.f32.xlu0 %v6687
      %v6689 = vpop.xlane.xlu0 %6688
      %v6690 = vrot.slane %v6689, 4
      %v6691 = vadd.f32 %v6689, %v6690
      %v6692 = vrot.slane %v6691, 2
      %v6693 = vadd.f32 %v6691, %v6692
      %v6694 = vrot.slane %v6693, 1
      %v6695 = vadd.f32 %v6693, %v6694
      %vm6696 = vcmp.eq.s32.totalorder %v6418, 7
      %v6697 = vsel %vm6696, %v6695, 0.0
      %v6698 = vadd.f32 %v6663, %v6697
      %s6699 = scalar_lea.vmem %s7, 512
      %v6700 = vld [vmem:[%s6699] sm:$0xff]
      %v6701 = vld [vmem:[%s6699 + $0x8] sm:$0xff]
      %v6702 = vld [vmem:[%s6699 + $0x10] sm:$0xff]
      %v6703 = vld [vmem:[%s6699 + $0x18] sm:$0xff]
      %v6704 = vld [vmem:[%s6699 + $0x20] sm:$0xff]
      %v6705 = vld [vmem:[%s6699 + $0x28] sm:$0xff]
      %v6706 = vld [vmem:[%s6699 + $0x30] sm:$0xff]
      %v6707 = vld [vmem:[%s6699 + $0x38] sm:$0xff]
      %v6708 = vmul.f32 %v6409, %v6700
      %v6709 = vmul.f32 %v6410, %v6701
      %v6710 = vmul.f32 %v6411, %v6702
      %v6711 = vmul.f32 %v6412, %v6703
      %v6712 = vmul.f32 %v6413, %v6704
      %v6713 = vmul.f32 %v6414, %v6705
      %v6714 = vmul.f32 %v6415, %v6706
      %v6715 = vmul.f32 %v6416, %v6707
      %v6716 = vadd.f32 %v6708, %v6709
      %v6717 = vadd.f32 %v6716, %v6710
      %v6718 = vadd.f32 %v6717, %v6711
      %v6719 = vadd.f32 %v6718, %v6712
      %v6720 = vadd.f32 %v6719, %v6713
      %v6721 = vadd.f32 %v6720, %v6714
      %v6722 = vadd.f32 %v6721, %v6715
      %6723 = vadd.xlane.f32.xlu0 %v6722
      %v6724 = vpop.xlane.xlu0 %6723
      %v6725 = vrot.slane %v6724, 4
      %v6726 = vadd.f32 %v6724, %v6725
      %v6727 = vrot.slane %v6726, 2
      %v6728 = vadd.f32 %v6726, %v6727
      %v6729 = vrot.slane %v6728, 1
      %v6730 = vadd.f32 %v6728, %v6729
      %vm6731 = vcmp.eq.s32.totalorder %v6418, 8
      %v6732 = vsel %vm6731, %v6730, 0.0
      %v6733 = vadd.f32 %v6698, %v6732
      %s6734 = scalar_lea.vmem %s7, 576
      %v6735 = vld [vmem:[%s6734] sm:$0xff]
      %v6736 = vld [vmem:[%s6734 + $0x8] sm:$0xff]
      %v6737 = vld [vmem:[%s6734 + $0x10] sm:$0xff]
      %v6738 = vld [vmem:[%s6734 + $0x18] sm:$0xff]
      %v6739 = vld [vmem:[%s6734 + $0x20] sm:$0xff]
      %v6740 = vld [vmem:[%s6734 + $0x28] sm:$0xff]
      %v6741 = vld [vmem:[%s6734 + $0x30] sm:$0xff]
      %v6742 = vld [vmem:[%s6734 + $0x38] sm:$0xff]
      %v6743 = vmul.f32 %v6409, %v6735
      %v6744 = vmul.f32 %v6410, %v6736
      %v6745 = vmul.f32 %v6411, %v6737
      %v6746 = vmul.f32 %v6412, %v6738
      %v6747 = vmul.f32 %v6413, %v6739
      %v6748 = vmul.f32 %v6414, %v6740
      %v6749 = vmul.f32 %v6415, %v6741
      %v6750 = vmul.f32 %v6416, %v6742
      %v6751 = vadd.f32 %v6743, %v6744
      %v6752 = vadd.f32 %v6751, %v6745
      %v6753 = vadd.f32 %v6752, %v6746
      %v6754 = vadd.f32 %v6753, %v6747
      %v6755 = vadd.f32 %v6754, %v6748
      %v6756 = vadd.f32 %v6755, %v6749
      %v6757 = vadd.f32 %v6756, %v6750
      %6758 = vadd.xlane.f32.xlu0 %v6757
      %v6759 = vpop.xlane.xlu0 %6758
      %v6760 = vrot.slane %v6759, 4
      %v6761 = vadd.f32 %v6759, %v6760
      %v6762 = vrot.slane %v6761, 2
      %v6763 = vadd.f32 %v6761, %v6762
      %v6764 = vrot.slane %v6763, 1
      %v6765 = vadd.f32 %v6763, %v6764
      %vm6766 = vcmp.eq.s32.totalorder %v6418, 9
      %v6767 = vsel %vm6766, %v6765, 0.0
      %v6768 = vadd.f32 %v6733, %v6767
      %v6770 = vlaneseq
      %v6771 = vshrl.u32 %v6770, 7
      %v6772 = vsub.s32 0, %v6771
      %v6773 = vrot.slane %v6768, %v6772
      %6775 = vst [vmem:[%s330] sm:$0xff] %v6773
      %p6776 = scmp.lt.s32.totalorder %s20, 1
      %s6777 = scalar_select %p6776, %s20, 1
      %s6778 = smul.addr %s6777, 8
      %s6779 = scalar_lea.vmem %s9, %s6778
      // Predicated region
      $region57: #{netv1_forward.1} parent=55 // pred_check
        %p6780 = pneg %p232
      $region58: #{netv1_forward.1} parent=55 // pred_check_branch
        %6782 = sbr.rel (%p6780) target = $region60
      $region59: #{netv1_forward.1} parent=55 // pred_region
        _
      $region60: #{netv1_forward.1} parent=55 // pred_fallthru
        _
    $region56: #{netv1_forward.1} parent=5 // pred_fallthru
      _
    %p6783 = scmp.le.s32.totalorder 2, %s15
    // Predicated region
    $region61: #{netv1_forward.1} parent=5 // pred_check
      %p6784 = pneg %p6783
    $region62: #{netv1_forward.1} parent=5 // pred_check_branch
      %6786 = sbr.rel (%p6784) target = $region64
    $region63: #{netv1_forward.1} parent=5 // pred_region
      %s6787 = ssub.s32 %s15, 2
      // Predicated region
      $region65: #{netv1_forward.1} parent=63 // pred_check
        %p6788 = pneg %p238
      $region66: #{netv1_forward.1} parent=63 // pred_check_branch
        %6790 = sbr.rel (%p6788) target = $region68
      $region67: #{netv1_forward.1} parent=63 // pred_region
        %p6791 = scmp.lt.s32.totalorder %s21, 1
        %s6792 = scalar_select %p6791, %s21, 1
        %s6793 = smul.addr %s6792, 8
        %s6794 = scalar_lea.vmem %s9, %s6793
      $region68: #{netv1_forward.1} parent=63 // pred_fallthru
        _
    $region64: #{netv1_forward.1} parent=5 // pred_fallthru
      _
  $region6: #{netv1_forward.1} parent=0 // loop_footer
    %s19 = sadd.s32 1, %s15
  $region7: #{netv1_forward.1} parent=0 // loop_footer_branch
    %14 = sbr.rel target = $region3
  $region8: #{netv1_forward.1} parent=0 // loop_exit
    _

</llo_original>
